<compile_context>
chip_gen: v6e
topology: v6e:2x2x1
jax: 0.10.0
libtpu: 0.0.40
codegen_flags: <defaults>
</compile_context>

<pallas_src>
import jax
import jax.numpy as jnp
from jax.experimental import pallas as pl
from jax.experimental.pallas import tpu as pltpu

BN_EPS = 1e-5  # PyTorch BatchNorm2d default


# ------------------------------ small helpers ------------------------------

def _round_up(v, m):
    return ((v + m - 1) // m) * m


def _pad_last(a, target):
    pad = target - a.shape[-1]
    if pad == 0:
        return a
    cfg = [(0, 0)] * (a.ndim - 1) + [(0, pad)]
    return jnp.pad(a, cfg)


def _pick_rows(m, cap=1024):
    # Largest row tile <= cap that divides m and keeps the sublane dim aligned.
    cap = max(1, min(cap, m))
    for t in range(cap, 0, -1):
        if m % t == 0 and (t % 8 == 0 or t == m):
            return t
    return m


def _pick_conv_rows(h, w, cs_pad, cpad, budget=6 << 20):
    # Largest divisor of H whose per-block working set fits a VMEM budget that
    # is comfortable on every generation (v5e/v6e scoped defaults, v7x 64 MiB).
    k = 9 * (cs_pad + cpad)
    per_row = w * (
        2 * 2 * (cs_pad + cpad) * 2      # conv1 bf16 input slabs, double-buffered
        + 2 * cpad * 4                   # conv2 f32 input slab, double-buffered
        + 2 * 2 * cpad * 4               # raw conv outputs (f32), double-buffered
        + k * 2 + cpad * 4               # in-VMEM im2col patches + f32 accumulator
    )
    for th in range(h, 0, -1):
        if h % th == 0 and th * per_row <= budget:
            return th
    return 1


def _row_slabs(x, th):
    # (N, H, W, C) -> (N, H//th, th+2, W+2, C) zero-padded halo row-slabs so the
    # conv kernels can use plain Blocked BlockSpec indexing per row tile.
    xp = jnp.pad(x, ((0, 0), (1, 1), (1, 1), (0, 0)))
    n, hp, wp, c = xp.shape
    h = hp - 2
    nh = h // th
    if nh == 1:
        return xp[:, None]
    return jnp.stack([xp[:, j * th:j * th + th + 2] for j in range(nh)], axis=1)


# ------------------------------ Pallas kernels ------------------------------

def _up_kernel(x_ref, w_ref, b_ref, o_ref):
    # x: (TM, Cin) bf16, w: (Cin, 4*Cpad) bf16, b: (1, 4*Cpad) f32
    acc = jnp.dot(x_ref[...], w_ref[...], preferred_element_type=jnp.float32)
    o_ref[...] = (acc + b_ref[...]).astype(o_ref.dtype)


def _write_stats(st_ref, acc):
    # Per-block centered BN partials: [sum, sum((x - block_mean)^2)].
    rows = acc.shape[0]
    s = jnp.sum(acc, axis=0, keepdims=True)
    d = acc - s / rows
    st_ref[0:1, :] = s
    st_ref[1:2, :] = jnp.sum(d * d, axis=0, keepdims=True)


def _conv1_kernel(skip_ref, up_ref, w_ref, o_ref, st_ref):
    # skip/up: (TH+2, W+2, C*) bf16 halo slabs (fused channel concat),
    # w: (9*(Cs+Cu), Cpad) bf16, o: (TH, W, Cpad) f32, st: (2, Cpad) f32
    th, w_out, cpad = o_ref.shape
    cols = []
    for kh in range(3):
        for kw in range(3):
            for ref in (skip_ref, up_ref):
                win = ref[kh:kh + th, kw:kw + w_out, :]
                cols.append(win.reshape(th * w_out, win.shape[-1]))
    patches = jnp.concatenate(cols, axis=-1)                 # in-VMEM im2col
    acc = jnp.dot(patches, w_ref[...], preferred_element_type=jnp.float32)
    o_ref[...] = acc.reshape(th, w_out, cpad)
    _write_stats(st_ref, acc)


def _conv2_kernel(x_ref, scale_ref, shift_ref, w_ref, o_ref, st_ref):
    # x: (TH+2, W+2, Cpad) f32 halo slab of conv1's RAW output.  conv1's BN
    # affine + ReLU is fused here; global border positions are masked back to
    # zero (relu(shift) != 0 on the zero pad otherwise).
    th, w_out, cpad = o_ref.shape
    wp = x_ref.shape[1]
    j = pl.program_id(1)
    n_row_blocks = pl.num_programs(1)

    x = x_ref[...]
    act = jnp.maximum(x * scale_ref[...] + shift_ref[...], 0.0)
    row = jax.lax.broadcasted_iota(jnp.int32, (th + 2, wp, 1), 0)
    col = jax.lax.broadcasted_iota(jnp.int32, (th + 2, wp, 1), 1)
    halo = (((j == 0) & (row == 0))
            | ((j == n_row_blocks - 1) & (row == th + 1))
            | (col == 0) | (col == wp - 1))
    act = jnp.where(halo, 0.0, act).astype(jnp.bfloat16)

    cols = []
    for kh in range(3):
        for kw in range(3):
            win = act[kh:kh + th, kw:kw + w_out, :]
            cols.append(win.reshape(th * w_out, cpad))
    patches = jnp.concatenate(cols, axis=-1)
    acc = jnp.dot(patches, w_ref[...], preferred_element_type=jnp.float32)
    o_ref[...] = acc.reshape(th, w_out, cpad)
    _write_stats(st_ref, acc)


def _bn_relu_kernel(x_ref, scale_ref, shift_ref, o_ref):
    o_ref[...] = jnp.maximum(x_ref[...] * scale_ref[...] + shift_ref[...], 0.0)


# --------------------------- pallas_call wrappers ---------------------------

def _up_matmul(x2d, w2d, b2d):
    m, k = x2d.shape
    n = w2d.shape[1]
    tm = _pick_rows(m, cap=1024)
    return pl.pallas_call(
        _up_kernel,
        out_shape=jax.ShapeDtypeStruct((m, n), jnp.bfloat16),
        grid=(m // tm,),
        in_specs=[pl.BlockSpec((tm, k), lambda i: (i, 0)),
                  pl.BlockSpec((k, n), lambda i: (0, 0)),
                  pl.BlockSpec((1, n), lambda i: (0, 0))],
        out_specs=pl.BlockSpec((tm, n), lambda i: (i, 0)),
        compiler_params=pltpu.CompilerParams(dimension_semantics=("parallel",)),
        cost_estimate=pl.CostEstimate(
            flops=2 * m * k * n, transcendentals=0,
            bytes_accessed=2 * (m * k + k * n + m * n)),
    )(x2d, w2d, b2d)


def _conv1_call(skip_slab, up_slab, w1, n, nh, th, h, w, cpad):
    wp = w + 2
    cs = skip_slab.shape[-1]
    cu = up_slab.shape[-1]
    k = w1.shape[0]
    return pl.pallas_call(
        _conv1_kernel,
        out_shape=(jax.ShapeDtypeStruct((n, h, w, cpad), jnp.float32),
                   jax.ShapeDtypeStruct((n, nh, 2, cpad), jnp.float32)),
        grid=(n, nh),
        in_specs=[
            pl.BlockSpec((None, None, th + 2, wp, cs), lambda b, j: (b, j, 0, 0, 0)),
            pl.BlockSpec((None, None, th + 2, wp, cu), lambda b, j: (b, j, 0, 0, 0)),
            pl.BlockSpec((k, cpad), lambda b, j: (0, 0)),
        ],
        out_specs=(
            pl.BlockSpec((None, th, w, cpad), lambda b, j: (b, j, 0, 0)),
            pl.BlockSpec((None, None, 2, cpad), lambda b, j: (b, j, 0, 0)),
        ),
        compiler_params=pltpu.CompilerParams(
            dimension_semantics=("parallel", "parallel")),
        cost_estimate=pl.CostEstimate(
            flops=2 * n * h * w * k * cpad, transcendentals=0,
            bytes_accessed=2 * (skip_slab.size + up_slab.size + w1.size)
            + 4 * n * h * w * cpad),
    )(skip_slab, up_slab, w1)


def _conv2_call(x_slab, scale, shift, w2, n, nh, th, h, w, cpad):
    wp = w + 2
    k = w2.shape[0]
    return pl.pallas_call(
        _conv2_kernel,
        out_shape=(jax.ShapeDtypeStruct((n, h, w, cpad), jnp.float32),
                   jax.ShapeDtypeStruct((n, nh, 2, cpad), jnp.float32)),
        grid=(n, nh),
        in_specs=[
            pl.BlockSpec((None, None, th + 2, wp, cpad), lambda b, j: (b, j, 0, 0, 0)),
            pl.BlockSpec((1, cpad), lambda b, j: (0, 0)),
            pl.BlockSpec((1, cpad), lambda b, j: (0, 0)),
            pl.BlockSpec((k, cpad), lambda b, j: (0, 0)),
        ],
        out_specs=(
            pl.BlockSpec((None, th, w, cpad), lambda b, j: (b, j, 0, 0)),
            pl.BlockSpec((None, None, 2, cpad), lambda b, j: (b, j, 0, 0)),
        ),
        compiler_params=pltpu.CompilerParams(
            dimension_semantics=("parallel", "parallel")),
        cost_estimate=pl.CostEstimate(
            flops=2 * n * h * w * k * cpad, transcendentals=0,
            bytes_accessed=4 * x_slab.size + 2 * w2.size + 4 * n * h * w * cpad),
    )(x_slab, scale, shift, w2)


def _bn_relu(x2d, scale, shift):
    m, c = x2d.shape
    tm = _pick_rows(m, cap=2048)
    return pl.pallas_call(
        _bn_relu_kernel,
        out_shape=jax.ShapeDtypeStruct((m, c), jnp.float32),
        grid=(m // tm,),
        in_specs=[pl.BlockSpec((tm, c), lambda i: (i, 0)),
                  pl.BlockSpec((1, c), lambda i: (0, 0)),
                  pl.BlockSpec((1, c), lambda i: (0, 0))],
        out_specs=pl.BlockSpec((tm, c), lambda i: (i, 0)),
        compiler_params=pltpu.CompilerParams(dimension_semantics=("parallel",)),
    )(x2d, scale, shift)


# --------------------------------- JAX glue ---------------------------------

def _conv1_weight(w, c_skip, cs_pad, cu_pad, cpad):
    # (Cout, Cskip+Cout, 3, 3) -> (9*(cs_pad+cu_pad), cpad) bf16, row order =
    # [tap(kh,kw)][skip rows, up rows] to match the kernel's im2col column order.
    cin = w.shape[1]
    wt = jnp.transpose(w, (2, 3, 1, 0))                      # (3, 3, Cin, Cout)
    taps = []
    for kh in range(3):
        for kw in range(3):
            blk = wt[kh, kw]                                 # (Cin, Cout)
            s_blk = jnp.pad(blk[:c_skip], ((0, cs_pad - c_skip), (0, 0)))
            u_blk = jnp.pad(blk[c_skip:], ((0, cu_pad - (cin - c_skip)), (0, 0)))
            taps.append(jnp.concatenate([s_blk, u_blk], axis=0))
    wmat = jnp.concatenate(taps, axis=0)
    return _pad_last(wmat, cpad).astype(jnp.bfloat16)


def _conv2_weight(w, cpad):
    cout, cin = w.shape[0], w.shape[1]
    wt = jnp.transpose(w, (2, 3, 1, 0)).reshape(9, cin, cout)
    wt = jnp.pad(wt, ((0, 0), (0, cpad - cin), (0, 0))).reshape(9 * cpad, cout)
    return _pad_last(wt, cpad).astype(jnp.bfloat16)


def _bn_affine(stats, gamma, beta, rows_per_block, cpad):
    # Merge per-block centered partials (Chan / Welford) and fold into affine.
    # TODO(synk): nn.BatchNorm2d running_mean/running_var updates not reproduced.
    s = stats[..., 0, :].reshape(-1, cpad)
    m2 = stats[..., 1, :].reshape(-1, cpad)
    n_blocks = s.shape[0]
    total = n_blocks * rows_per_block
    mean_b = s / rows_per_block
    mean = jnp.sum(s, axis=0) / total
    var = (jnp.sum(m2, axis=0)
           + rows_per_block * jnp.sum((mean_b - mean) ** 2, axis=0)) / total
    var = jnp.maximum(var, 0.0)                              # biased, as PyTorch BN
    inv = jax.lax.rsqrt(var + BN_EPS)
    scale = _pad_last(gamma, cpad) * inv                     # padded ch: gamma=0 -> 0
    shift = _pad_last(beta, cpad) - mean * scale
    return scale.reshape(1, cpad), shift.reshape(1, cpad)


def init_params(key, in_channels, skip_channels, out_channels):
    ks = jax.random.split(key, 8)
    c1_in = out_channels + skip_channels
    return {
        "up_w": 0.1 * jax.random.normal(ks[0], (in_channels, out_channels, 2, 2), jnp.float32),
        "up_b": 0.1 * jax.random.normal(ks[1], (out_channels,), jnp.float32),
        "w1": 0.1 * jax.random.normal(ks[2], (out_channels, c1_in, 3, 3), jnp.float32),
        "g1": 1.0 + 0.1 * jax.random.normal(ks[3], (out_channels,), jnp.float32),
        "b1": 0.1 * jax.random.normal(ks[4], (out_channels,), jnp.float32),
        "w2": 0.1 * jax.random.normal(ks[5], (out_channels, out_channels, 3, 3), jnp.float32),
        "g2": 1.0 + 0.1 * jax.random.normal(ks[6], (out_channels,), jnp.float32),
        "b2": 0.1 * jax.random.normal(ks[7], (out_channels,), jnp.float32),
    }


@jax.jit
def decoder_block_forward(params, x_nchw, skip_nchw):
    N, Cin, Hin, Win = x_nchw.shape
    _, Cskip, Hs, Ws = skip_nchw.shape
    Cout = params["up_b"].shape[0]
    Hup, Wup = 2 * Hin, 2 * Win
    assert (Hup, Wup) == (Hs, Ws)
    # TODO(synk): F.interpolate(mode='bilinear', align_corners=True) fallback for
    # mismatched spatial sizes is not implemented (never triggers with 2x skips).

    Cpad = _round_up(Cout, 128)                  # lane-dense internal channels
    Cs_pad = _round_up(Cskip, 128)

    x = jnp.transpose(x_nchw, (0, 2, 3, 1)).astype(jnp.float32)        # NHWC
    skip = jnp.transpose(skip_nchw, (0, 2, 3, 1)).astype(jnp.float32)  # NHWC

    # --- ConvTranspose2d(k=2, s=2): one lane-dense quadrant matmul (bf16) ---
    w_up = jnp.transpose(params["up_w"], (0, 2, 3, 1)).reshape(Cin, 4, Cout)
    w_up = _pad_last(w_up, Cpad).reshape(Cin, 4 * Cpad).astype(jnp.bfloat16)
    b_up = jnp.tile(_pad_last(params["up_b"].reshape(1, Cout), Cpad), (1, 4))
    x2d = x.reshape(N * Hin * Win, Cin).astype(jnp.bfloat16)
    y = _up_matmul(x2d, w_up, b_up)                                    # (M, 4*Cpad) bf16
    up = (y.reshape(N, Hin, Win, 2, 2, Cpad)
            .transpose(0, 1, 3, 2, 4, 5)
            .reshape(N, Hup, Wup, Cpad))                               # NHWC, lane-dense

    # Row tiling for the conv stage (bounded VMEM, parallel (N, nH) grid).
    TH = _pick_conv_rows(Hs, Ws, Cs_pad, Cpad)
    nH = Hs // TH

    # --- conv1 over the fused concat([skip, up]) + centered BN partials ---
    skip_b = _pad_last(skip.astype(jnp.bfloat16), Cs_pad)
    skip_sl = _row_slabs(skip_b, TH)             # (N, nH, TH+2, Ws+2, Cs_pad) bf16
    up_sl = _row_slabs(up, TH)                   # (N, nH, TH+2, Ws+2, Cpad)  bf16
    w1 = _conv1_weight(params["w1"], Cskip, Cs_pad, Cpad, Cpad)
    raw1, st1 = _conv1_call(skip_sl, up_sl, w1, N, nH, TH, Hs, Ws, Cpad)
    scale1, shift1 = _bn_affine(st1, params["g1"], params["b1"], TH * Ws, Cpad)

    # --- conv2 with conv1's BN affine + ReLU fused into its input path ---
    raw1_sl = _row_slabs(raw1, TH)               # f32 halo slabs of raw conv1
    w2 = _conv2_weight(params["w2"], Cpad)
    raw2, st2 = _conv2_call(raw1_sl, scale1, shift1, w2, N, nH, TH, Hs, Ws, Cpad)
    scale2, shift2 = _bn_affine(st2, params["g2"], params["b2"], TH * Ws, Cpad)

    out = _bn_relu(raw2.reshape(N * Hs * Ws, Cpad), scale2, shift2)
    out = out.reshape(N, Hs, Ws, Cpad)[..., :Cout]
    return jnp.transpose(out, (0, 3, 1, 2))      # back to NCHW


# ----------------------------- pure-JAX reference ----------------------------

@jax.jit
def _reference(params, x_nchw, skip_nchw):
    hi = jax.lax.Precision.HIGHEST
    x = jnp.transpose(x_nchw, (0, 2, 3, 1)).astype(jnp.float32)
    skip = jnp.transpose(skip_nchw, (0, 2, 3, 1)).astype(jnp.float32)
    N, Hin, Win, Cin = x.shape
    Cout = params["up_b"].shape[0]
    w_up = jnp.transpose(params["up_w"], (0, 2, 3, 1)).reshape(Cin, 4 * Cout)
    y = jnp.dot(x.reshape(-1, Cin), w_up, precision=hi) + jnp.tile(params["up_b"], (4,))
    up = (y.reshape(N, Hin, Win, 2, 2, Cout)
            .transpose(0, 1, 3, 2, 4, 5).reshape(N, 2 * Hin, 2 * Win, Cout))
    z = jnp.concatenate([skip, up], axis=-1)

    def conv_bn_relu(a, w, g, b):
        out = jax.lax.conv_general_dilated(
            a, w, (1, 1), "SAME",
            dimension_numbers=("NHWC", "OIHW", "NHWC"), precision=hi)
        mean = out.mean(axis=(0, 1, 2))
        var = out.var(axis=(0, 1, 2))
        return jnp.maximum((out - mean) * jax.lax.rsqrt(var + BN_EPS) * g + b, 0.0)

    h1 = conv_bn_relu(z, params["w1"], params["g1"], params["b1"])
    h2 = conv_bn_relu(h1, params["w2"], params["g2"], params["b2"])
    return jnp.transpose(h2, (0, 3, 1, 2))


if __name__ == "__main__":
    key = jax.random.PRNGKey(0)
    k_x, k_s, k_p = jax.random.split(key, 3)

    N, Cin, Cskip, Cout = 2, 8, 4, 8
    Hin = Win = 8                        # -> upsampled / skip spatial = 16x16
    x = jax.random.normal(k_x, (N, Cin, Hin, Win), jnp.float32)
    skip = jax.random.normal(k_s, (N, Cskip, 2 * Hin, 2 * Win), jnp.float32)
    params = init_params(k_p, Cin, Cskip, Cout)

    out = jax.block_until_ready(decoder_block_forward(params, x, skip))
    assert out.shape == (N, Cout, 2 * Hin, 2 * Win), out.shape
    assert out.dtype == jnp.float32

    ref = jax.block_until_ready(_reference(params, x, skip))
    max_err = float(jnp.max(jnp.abs(out - ref)))
    mean_err = float(jnp.mean(jnp.abs(out - ref)))
    # bf16 matmul operands (f32 accumulation / f32 BN) vs. an f32 reference.
    assert max_err < 1e-1 and mean_err < 1e-2, (max_err, mean_err)

    print("KERNEL_OK")
</pallas_src>

<mosaic_0001>
module attributes {stable_mosaic.version = 11 : i64} {
  func.func @_up_kernel(%arg0: i32, %arg1: memref<128x8xbf16, #tpu.memory_space<vmem>>, %arg2: memref<8x512xbf16, #tpu.memory_space<vmem>>, %arg3: memref<1x512xf32, #tpu.memory_space<vmem>>, %arg4: memref<128x512xbf16, #tpu.memory_space<vmem>>) attributes {dimension_semantics = [#tpu.dimension_semantics<parallel>], iteration_bounds = array<i64: 1>, scalar_prefetch = 0 : i64, scratch_operands = 0 : i64, tpu.core_type = #tpu.core_type<tc>, window_params = [{transform_indices = @transform_0, window_bounds = array<i64: 128, 8>}, {pipeline_mode = #tpu.pipeline_mode<synchronous>, transform_indices = @transform_1, window_bounds = array<i64: 8, 512>}, {pipeline_mode = #tpu.pipeline_mode<synchronous>, transform_indices = @transform_2, window_bounds = array<i64: 1, 512>}, {transform_indices = @transform_3, window_bounds = array<i64: 128, 512>}]} {
    %c0 = arith.constant 0 : index
    %c0_0 = arith.constant 0 : index
    %0 = vector.load %arg1[%c0, %c0_0] : memref<128x8xbf16, #tpu.memory_space<vmem>>, vector<128x8xbf16>
    %c0_1 = arith.constant 0 : index
    %c0_2 = arith.constant 0 : index
    %1 = vector.load %arg2[%c0_1, %c0_2] : memref<8x512xbf16, #tpu.memory_space<vmem>>, vector<8x512xbf16>
    %cst = arith.constant dense<0.000000e+00> : vector<128x512xf32>
    %2 = tpu.matmul %0, %1, %cst {dimension_numbers = #tpu.dot_dimension_numbers<[1], [0], [0], [1], [0, 0, 1, 1], [], []>} : vector<128x8xbf16>, vector<8x512xbf16>, vector<128x512xf32> -> vector<128x512xf32>
    %c0_3 = arith.constant 0 : index
    %c0_4 = arith.constant 0 : index
    %3 = vector.load %arg3[%c0_3, %c0_4] : memref<1x512xf32, #tpu.memory_space<vmem>>, vector<1x512xf32>
    %4 = vector.broadcast %3 : vector<1x512xf32> to vector<128x512xf32>
    %5 = arith.addf %2, %4 : vector<128x512xf32>
    %6 = arith.truncf %5 : vector<128x512xf32> to vector<128x512xbf16>
    %c0_5 = arith.constant 0 : index
    %c0_6 = arith.constant 0 : index
    %7 = vector.load %arg4[%c0_5, %c0_6] : memref<128x512xbf16, #tpu.memory_space<vmem>>, vector<128x512xbf16>
    tpu.vector_store %arg4[%c0_5, %c0_6], %6 {strides = array<i32>} : memref<128x512xbf16, #tpu.memory_space<vmem>>, vector<128x512xbf16>,
    return
  }
  func.func @transform_0(%arg0: i32) -> (i32, i32) {
    %c0_i32 = arith.constant 0 : i32
    %c0_i32_0 = arith.constant 0 : i32
    return %arg0, %c0_i32 : i32, i32
  }
  func.func @transform_1(%arg0: i32) -> (i32, i32) {
    %c0_i32 = arith.constant 0 : i32
    %c0_i32_0 = arith.constant 0 : i32
    %c0_i32_1 = arith.constant 0 : i32
    return %c0_i32, %c0_i32_0 : i32, i32
  }
  func.func @transform_2(%arg0: i32) -> (i32, i32) {
    %c0_i32 = arith.constant 0 : i32
    %c0_i32_0 = arith.constant 0 : i32
    %c0_i32_1 = arith.constant 0 : i32
    return %c0_i32, %c0_i32_0 : i32, i32
  }
  func.func @transform_3(%arg0: i32) -> (i32, i32) {
    %c0_i32 = arith.constant 0 : i32
    %c0_i32_0 = arith.constant 0 : i32
    return %arg0, %c0_i32 : i32, i32
  }
}

module attributes {stable_mosaic.version = 11 : i64} {
  func.func @_conv1_kernel(%arg0: i32, %arg1: i32, %arg2: memref<1x1x18x18x128xbf16, #tpu.memory_space<vmem>>, %arg3: memref<1x1x18x18x128xbf16, #tpu.memory_space<vmem>>, %arg4: memref<2304x128xbf16, #tpu.memory_space<vmem>>, %arg5: memref<1x16x16x128xf32, #tpu.memory_space<vmem>>, %arg6: memref<1x1x2x128xf32, #tpu.memory_space<vmem>>) attributes {dimension_semantics = [#tpu.dimension_semantics<parallel>, #tpu.dimension_semantics<parallel>], iteration_bounds = array<i64: 2, 1>, scalar_prefetch = 0 : i64, scratch_operands = 0 : i64, tpu.core_type = #tpu.core_type<tc>, window_params = [{transform_indices = @transform_0, window_bounds = array<i64: 1, 1, 18, 18, 128>}, {transform_indices = @transform_1, window_bounds = array<i64: 1, 1, 18, 18, 128>}, {pipeline_mode = #tpu.pipeline_mode<synchronous>, transform_indices = @transform_2, window_bounds = array<i64: 2304, 128>}, {transform_indices = @transform_3, window_bounds = array<i64: 1, 16, 16, 128>}, {transform_indices = @transform_4, window_bounds = array<i64: 1, 1, 2, 128>}]} {
    %c0 = arith.constant 0 : index
    %c0_0 = arith.constant 0 : index
    %c0_1 = arith.constant 0 : index
    %c0_2 = arith.constant 0 : index
    %c0_3 = arith.constant 0 : index
    %0 = vector.load %arg2[%c0, %c0_0, %c0_1, %c0_2, %c0_3] : memref<1x1x18x18x128xbf16, #tpu.memory_space<vmem>>, vector<1x1x16x16x128xbf16>
    %1 = vector.shape_cast %0 : vector<1x1x16x16x128xbf16> to vector<16x16x128xbf16>
    %2 = vector.shape_cast %1 : vector<16x16x128xbf16> to vector<256x128xbf16>
    %c0_4 = arith.constant 0 : index
    %c0_5 = arith.constant 0 : index
    %c0_6 = arith.constant 0 : index
    %c0_7 = arith.constant 0 : index
    %c0_8 = arith.constant 0 : index
    %3 = vector.load %arg3[%c0_4, %c0_5, %c0_6, %c0_7, %c0_8] : memref<1x1x18x18x128xbf16, #tpu.memory_space<vmem>>, vector<1x1x16x16x128xbf16>
    %4 = vector.shape_cast %3 : vector<1x1x16x16x128xbf16> to vector<16x16x128xbf16>
    %5 = vector.shape_cast %4 : vector<16x16x128xbf16> to vector<256x128xbf16>
    %c0_9 = arith.constant 0 : index
    %c0_10 = arith.constant 0 : index
    %c0_11 = arith.constant 0 : index
    %c1 = arith.constant 1 : index
    %c0_12 = arith.constant 0 : index
    %6 = vector.load %arg2[%c0_9, %c0_10, %c0_11, %c1, %c0_12] : memref<1x1x18x18x128xbf16, #tpu.memory_space<vmem>>, vector<1x1x16x16x128xbf16>
    %7 = vector.shape_cast %6 : vector<1x1x16x16x128xbf16> to vector<16x16x128xbf16>
    %8 = vector.shape_cast %7 : vector<16x16x128xbf16> to vector<256x128xbf16>
    %c0_13 = arith.constant 0 : index
    %c0_14 = arith.constant 0 : index
    %c0_15 = arith.constant 0 : index
    %c1_16 = arith.constant 1 : index
    %c0_17 = arith.constant 0 : index
    %9 = vector.load %arg3[%c0_13, %c0_14, %c0_15, %c1_16, %c0_17] : memref<1x1x18x18x128xbf16, #tpu.memory_space<vmem>>, vector<1x1x16x16x128xbf16>
    %10 = vector.shape_cast %9 : vector<1x1x16x16x128xbf16> to vector<16x16x128xbf16>
    %11 = vector.shape_cast %10 : vector<16x16x128xbf16> to vector<256x128xbf16>
    %c0_18 = arith.constant 0 : index
    %c0_19 = arith.constant 0 : index
    %c0_20 = arith.constant 0 : index
    %c2 = arith.constant 2 : index
    %c0_21 = arith.constant 0 : index
    %12 = vector.load %arg2[%c0_18, %c0_19, %c0_20, %c2, %c0_21] : memref<1x1x18x18x128xbf16, #tpu.memory_space<vmem>>, vector<1x1x16x16x128xbf16>
    %13 = vector.shape_cast %12 : vector<1x1x16x16x128xbf16> to vector<16x16x128xbf16>
    %14 = vector.shape_cast %13 : vector<16x16x128xbf16> to vector<256x128xbf16>
    %c0_22 = arith.constant 0 : index
    %c0_23 = arith.constant 0 : index
    %c0_24 = arith.constant 0 : index
    %c2_25 = arith.constant 2 : index
    %c0_26 = arith.constant 0 : index
    %15 = vector.load %arg3[%c0_22, %c0_23, %c0_24, %c2_25, %c0_26] : memref<1x1x18x18x128xbf16, #tpu.memory_space<vmem>>, vector<1x1x16x16x128xbf16>
    %16 = vector.shape_cast %15 : vector<1x1x16x16x128xbf16> to vector<16x16x128xbf16>
    %17 = vector.shape_cast %16 : vector<16x16x128xbf16> to vector<256x128xbf16>
    %c0_27 = arith.constant 0 : index
    %c0_28 = arith.constant 0 : index
    %c1_29 = arith.constant 1 : index
    %c0_30 = arith.constant 0 : index
    %c0_31 = arith.constant 0 : index
    %18 = vector.load %arg2[%c0_27, %c0_28, %c1_29, %c0_30, %c0_31] : memref<1x1x18x18x128xbf16, #tpu.memory_space<vmem>>, vector<1x1x16x16x128xbf16>
    %19 = vector.shape_cast %18 : vector<1x1x16x16x128xbf16> to vector<16x16x128xbf16>
    %20 = vector.shape_cast %19 : vector<16x16x128xbf16> to vector<256x128xbf16>
    %c0_32 = arith.constant 0 : index
    %c0_33 = arith.constant 0 : index
    %c1_34 = arith.constant 1 : index
    %c0_35 = arith.constant 0 : index
    %c0_36 = arith.constant 0 : index
    %21 = vector.load %arg3[%c0_32, %c0_33, %c1_34, %c0_35, %c0_36] : memref<1x1x18x18x128xbf16, #tpu.memory_space<vmem>>, vector<1x1x16x16x128xbf16>
    %22 = vector.shape_cast %21 : vector<1x1x16x16x128xbf16> to vector<16x16x128xbf16>
    %23 = vector.shape_cast %22 : vector<16x16x128xbf16> to vector<256x128xbf16>
    %c0_37 = arith.constant 0 : index
    %c0_38 = arith.constant 0 : index
    %c1_39 = arith.constant 1 : index
    %c1_40 = arith.constant 1 : index
    %c0_41 = arith.constant 0 : index
    %24 = vector.load %arg2[%c0_37, %c0_38, %c1_39, %c1_40, %c0_41] : memref<1x1x18x18x128xbf16, #tpu.memory_space<vmem>>, vector<1x1x16x16x128xbf16>
    %25 = vector.shape_cast %24 : vector<1x1x16x16x128xbf16> to vector<16x16x128xbf16>
    %26 = vector.shape_cast %25 : vector<16x16x128xbf16> to vector<256x128xbf16>
    %c0_42 = arith.constant 0 : index
    %c0_43 = arith.constant 0 : index
    %c1_44 = arith.constant 1 : index
    %c1_45 = arith.constant 1 : index
    %c0_46 = arith.constant 0 : index
    %27 = vector.load %arg3[%c0_42, %c0_43, %c1_44, %c1_45, %c0_46] : memref<1x1x18x18x128xbf16, #tpu.memory_space<vmem>>, vector<1x1x16x16x128xbf16>
    %28 = vector.shape_cast %27 : vector<1x1x16x16x128xbf16> to vector<16x16x128xbf16>
    %29 = vector.shape_cast %28 : vector<16x16x128xbf16> to vector<256x128xbf16>
    %c0_47 = arith.constant 0 : index
    %c0_48 = arith.constant 0 : index
    %c1_49 = arith.constant 1 : index
    %c2_50 = arith.constant 2 : index
    %c0_51 = arith.constant 0 : index
    %30 = vector.load %arg2[%c0_47, %c0_48, %c1_49, %c2_50, %c0_51] : memref<1x1x18x18x128xbf16, #tpu.memory_space<vmem>>, vector<1x1x16x16x128xbf16>
    %31 = vector.shape_cast %30 : vector<1x1x16x16x128xbf16> to vector<16x16x128xbf16>
    %32 = vector.shape_cast %31 : vector<16x16x128xbf16> to vector<256x128xbf16>
    %c0_52 = arith.constant 0 : index
    %c0_53 = arith.constant 0 : index
    %c1_54 = arith.constant 1 : index
    %c2_55 = arith.constant 2 : index
    %c0_56 = arith.constant 0 : index
    %33 = vector.load %arg3[%c0_52, %c0_53, %c1_54, %c2_55, %c0_56] : memref<1x1x18x18x128xbf16, #tpu.memory_space<vmem>>, vector<1x1x16x16x128xbf16>
    %34 = vector.shape_cast %33 : vector<1x1x16x16x128xbf16> to vector<16x16x128xbf16>
    %35 = vector.shape_cast %34 : vector<16x16x128xbf16> to vector<256x128xbf16>
    %c0_57 = arith.constant 0 : index
    %c0_58 = arith.constant 0 : index
    %c2_59 = arith.constant 2 : index
    %c0_60 = arith.constant 0 : index
    %c0_61 = arith.constant 0 : index
    %36 = vector.load %arg2[%c0_57, %c0_58, %c2_59, %c0_60, %c0_61] : memref<1x1x18x18x128xbf16, #tpu.memory_space<vmem>>, vector<1x1x16x16x128xbf16>
    %37 = vector.shape_cast %36 : vector<1x1x16x16x128xbf16> to vector<16x16x128xbf16>
    %38 = vector.shape_cast %37 : vector<16x16x128xbf16> to vector<256x128xbf16>
    %c0_62 = arith.constant 0 : index
    %c0_63 = arith.constant 0 : index
    %c2_64 = arith.constant 2 : index
    %c0_65 = arith.constant 0 : index
    %c0_66 = arith.constant 0 : index
    %39 = vector.load %arg3[%c0_62, %c0_63, %c2_64, %c0_65, %c0_66] : memref<1x1x18x18x128xbf16, #tpu.memory_space<vmem>>, vector<1x1x16x16x128xbf16>
    %40 = vector.shape_cast %39 : vector<1x1x16x16x128xbf16> to vector<16x16x128xbf16>
    %41 = vector.shape_cast %40 : vector<16x16x128xbf16> to vector<256x128xbf16>
    %c0_67 = arith.constant 0 : index
    %c0_68 = arith.constant 0 : index
    %c2_69 = arith.constant 2 : index
    %c1_70 = arith.constant 1 : index
    %c0_71 = arith.constant 0 : index
    %42 = vector.load %arg2[%c0_67, %c0_68, %c2_69, %c1_70, %c0_71] : memref<1x1x18x18x128xbf16, #tpu.memory_space<vmem>>, vector<1x1x16x16x128xbf16>
    %43 = vector.shape_cast %42 : vector<1x1x16x16x128xbf16> to vector<16x16x128xbf16>
    %44 = vector.shape_cast %43 : vector<16x16x128xbf16> to vector<256x128xbf16>
    %c0_72 = arith.constant 0 : index
    %c0_73 = arith.constant 0 : index
    %c2_74 = arith.constant 2 : index
    %c1_75 = arith.constant 1 : index
    %c0_76 = arith.constant 0 : index
    %45 = vector.load %arg3[%c0_72, %c0_73, %c2_74, %c1_75, %c0_76] : memref<1x1x18x18x128xbf16, #tpu.memory_space<vmem>>, vector<1x1x16x16x128xbf16>
    %46 = vector.shape_cast %45 : vector<1x1x16x16x128xbf16> to vector<16x16x128xbf16>
    %47 = vector.shape_cast %46 : vector<16x16x128xbf16> to vector<256x128xbf16>
    %c0_77 = arith.constant 0 : index
    %c0_78 = arith.constant 0 : index
    %c2_79 = arith.constant 2 : index
    %c2_80 = arith.constant 2 : index
    %c0_81 = arith.constant 0 : index
    %48 = vector.load %arg2[%c0_77, %c0_78, %c2_79, %c2_80, %c0_81] : memref<1x1x18x18x128xbf16, #tpu.memory_space<vmem>>, vector<1x1x16x16x128xbf16>
    %49 = vector.shape_cast %48 : vector<1x1x16x16x128xbf16> to vector<16x16x128xbf16>
    %50 = vector.shape_cast %49 : vector<16x16x128xbf16> to vector<256x128xbf16>
    %c0_82 = arith.constant 0 : index
    %c0_83 = arith.constant 0 : index
    %c2_84 = arith.constant 2 : index
    %c2_85 = arith.constant 2 : index
    %c0_86 = arith.constant 0 : index
    %51 = vector.load %arg3[%c0_82, %c0_83, %c2_84, %c2_85, %c0_86] : memref<1x1x18x18x128xbf16, #tpu.memory_space<vmem>>, vector<1x1x16x16x128xbf16>
    %52 = vector.shape_cast %51 : vector<1x1x16x16x128xbf16> to vector<16x16x128xbf16>
    %53 = vector.shape_cast %52 : vector<16x16x128xbf16> to vector<256x128xbf16>
    %54 = tpu.concatenate %2, %5, %8, %11, %14, %17, %20, %23, %26, %29, %32, %35, %38, %41, %44, %47 in 1 : vector<256x128xbf16>, vector<256x128xbf16>, vector<256x128xbf16>, vector<256x128xbf16>, vector<256x128xbf16>, vector<256x128xbf16>, vector<256x128xbf16>, vector<256x128xbf16>, vector<256x128xbf16>, vector<256x128xbf16>, vector<256x128xbf16>, vector<256x128xbf16>, vector<256x128xbf16>, vector<256x128xbf16>, vector<256x128xbf16>, vector<256x128xbf16> -> vector<256x2048xbf16>
    %55 = tpu.concatenate %50, %53 in 1 : vector<256x128xbf16>, vector<256x128xbf16> -> vector<256x256xbf16>
    %56 = tpu.concatenate %54, %55 in 1 : vector<256x2048xbf16>, vector<256x256xbf16> -> vector<256x2304xbf16>
    %c0_87 = arith.constant 0 : index
    %c0_88 = arith.constant 0 : index
    %57 = vector.load %arg4[%c0_87, %c0_88] : memref<2304x128xbf16, #tpu.memory_space<vmem>>, vector<2304x128xbf16>
    %cst = arith.constant dense<0.000000e+00> : vector<256x128xf32>
    %58 = tpu.matmul %56, %57, %cst {dimension_numbers = #tpu.dot_dimension_numbers<[1], [0], [0], [1], [0, 0, 1, 1], [], []>} : vector<256x2304xbf16>, vector<2304x128xbf16>, vector<256x128xf32> -> vector<256x128xf32>
    %59 = vector.shape_cast %58 : vector<256x128xf32> to vector<16x16x128xf32>
    %c0_89 = arith.constant 0 : index
    %c0_90 = arith.constant 0 : index
    %c0_91 = arith.constant 0 : index
    %c0_92 = arith.constant 0 : index
    %60 = vector.load %arg5[%c0_89, %c0_90, %c0_91, %c0_92] : memref<1x16x16x128xf32, #tpu.memory_space<vmem>>, vector<1x16x16x128xf32>
    %61 = vector.shape_cast %60 : vector<1x16x16x128xf32> to vector<16x16x128xf32>
    %62 = vector.shape_cast %59 : vector<16x16x128xf32> to vector<1x16x16x128xf32>
    tpu.vector_store %arg5[%c0_89, %c0_90, %c0_91, %c0_92], %62 {strides = array<i32>} : memref<1x16x16x128xf32, #tpu.memory_space<vmem>>, vector<1x16x16x128xf32>,
    %cst_93 = arith.constant dense<0.000000e+00> : vector<128xf32>
    %63 = vector.multi_reduction <add>, %58, %cst_93 [0] : vector<256x128xf32> to vector<128xf32>
    %64 = vector.shape_cast %63 : vector<128xf32> to vector<1x128xf32>
    %cst_94 = arith.constant 2.560000e+02 : f32
    %65 = vector.broadcast %cst_94 : f32 to vector<1x128xf32>
    %66 = arith.divf %64, %65 : vector<1x128xf32>
    %67 = vector.broadcast %66 : vector<1x128xf32> to vector<256x128xf32>
    %68 = arith.subf %58, %67 : vector<256x128xf32>
    %c0_95 = arith.constant 0 : index
    %c0_96 = arith.constant 0 : index
    %c0_97 = arith.constant 0 : index
    %c0_98 = arith.constant 0 : index
    %69 = vector.load %arg6[%c0_95, %c0_96, %c0_97, %c0_98] : memref<1x1x2x128xf32, #tpu.memory_space<vmem>>, vector<1x1x1x128xf32>
    %70 = vector.shape_cast %69 : vector<1x1x1x128xf32> to vector<1x128xf32>
    %71 = vector.shape_cast %64 : vector<1x128xf32> to vector<1x1x1x128xf32>
    tpu.vector_store %arg6[%c0_95, %c0_96, %c0_97, %c0_98], %71 {strides = array<i32>} : memref<1x1x2x128xf32, #tpu.memory_space<vmem>>, vector<1x1x1x128xf32>,
    %72 = arith.mulf %68, %68 : vector<256x128xf32>
    %cst_99 = arith.constant dense<0.000000e+00> : vector<128xf32>
    %73 = vector.multi_reduction <add>, %72, %cst_99 [0] : vector<256x128xf32> to vector<128xf32>
    %74 = vector.shape_cast %73 : vector<128xf32> to vector<1x128xf32>
    %c0_100 = arith.constant 0 : index
    %c0_101 = arith.constant 0 : index
    %c1_102 = arith.constant 1 : index
    %c0_103 = arith.constant 0 : index
    %75 = vector.load %arg6[%c0_100, %c0_101, %c1_102, %c0_103] : memref<1x1x2x128xf32, #tpu.memory_space<vmem>>, vector<1x1x1x128xf32>
    %76 = vector.shape_cast %75 : vector<1x1x1x128xf32> to vector<1x128xf32>
    %77 = vector.shape_cast %74 : vector<1x128xf32> to vector<1x1x1x128xf32>
    tpu.vector_store %arg6[%c0_100, %c0_101, %c1_102, %c0_103], %77 {strides = array<i32>} : memref<1x1x2x128xf32, #tpu.memory_space<vmem>>, vector<1x1x1x128xf32>,
    return
  }
  func.func @transform_0(%arg0: i32, %arg1: i32) -> (i32, i32, i32, i32, i32) {
    %c0_i32 = arith.constant 0 : i32
    %c0_i32_0 = arith.constant 0 : i32
    %c0_i32_1 = arith.constant 0 : i32
    %c0_i32_2 = arith.constant 0 : i32
    return %arg0, %arg1, %c0_i32, %c0_i32_0, %c0_i32_1 : i32, i32, i32, i32, i32
  }
  func.func @transform_1(%arg0: i32, %arg1: i32) -> (i32, i32, i32, i32, i32) {
    %c0_i32 = arith.constant 0 : i32
    %c0_i32_0 = arith.constant 0 : i32
    %c0_i32_1 = arith.constant 0 : i32
    %c0_i32_2 = arith.constant 0 : i32
    return %arg0, %arg1, %c0_i32, %c0_i32_0, %c0_i32_1 : i32, i32, i32, i32, i32
  }
  func.func @transform_2(%arg0: i32, %arg1: i32) -> (i32, i32) {
    %c0_i32 = arith.constant 0 : i32
    %c0_i32_0 = arith.constant 0 : i32
    %c0_i32_1 = arith.constant 0 : i32
    return %c0_i32, %c0_i32_0 : i32, i32
  }
  func.func @transform_3(%arg0: i32, %arg1: i32) -> (i32, i32, i32, i32) {
    %c0_i32 = arith.constant 0 : i32
    %c0_i32_0 = arith.constant 0 : i32
    %c0_i32_1 = arith.constant 0 : i32
    return %arg0, %arg1, %c0_i32, %c0_i32_0 : i32, i32, i32, i32
  }
  func.func @transform_4(%arg0: i32, %arg1: i32) -> (i32, i32, i32, i32) {
    %c0_i32 = arith.constant 0 : i32
    %c0_i32_0 = arith.constant 0 : i32
    %c0_i32_1 = arith.constant 0 : i32
    return %arg0, %arg1, %c0_i32, %c0_i32_0 : i32, i32, i32, i32
  }
}

module attributes {stable_mosaic.version = 11 : i64} {
  func.func @_conv2_kernel(%arg0: i32, %arg1: i32, %arg2: memref<1x1x18x18x128xf32, #tpu.memory_space<vmem>>, %arg3: memref<1x128xf32, #tpu.memory_space<vmem>>, %arg4: memref<1x128xf32, #tpu.memory_space<vmem>>, %arg5: memref<1152x128xbf16, #tpu.memory_space<vmem>>, %arg6: memref<1x16x16x128xf32, #tpu.memory_space<vmem>>, %arg7: memref<1x1x2x128xf32, #tpu.memory_space<vmem>>) attributes {dimension_semantics = [#tpu.dimension_semantics<parallel>, #tpu.dimension_semantics<parallel>], iteration_bounds = array<i64: 2, 1>, scalar_prefetch = 0 : i64, scratch_operands = 0 : i64, tpu.core_type = #tpu.core_type<tc>, window_params = [{transform_indices = @transform_0, window_bounds = array<i64: 1, 1, 18, 18, 128>}, {pipeline_mode = #tpu.pipeline_mode<synchronous>, transform_indices = @transform_1, window_bounds = array<i64: 1, 128>}, {pipeline_mode = #tpu.pipeline_mode<synchronous>, transform_indices = @transform_2, window_bounds = array<i64: 1, 128>}, {pipeline_mode = #tpu.pipeline_mode<synchronous>, transform_indices = @transform_3, window_bounds = array<i64: 1152, 128>}, {transform_indices = @transform_4, window_bounds = array<i64: 1, 16, 16, 128>}, {transform_indices = @transform_5, window_bounds = array<i64: 1, 1, 2, 128>}]} {
    %c0 = arith.constant 0 : index
    %c0_0 = arith.constant 0 : index
    %c0_1 = arith.constant 0 : index
    %c0_2 = arith.constant 0 : index
    %c0_3 = arith.constant 0 : index
    %0 = vector.load %arg2[%c0, %c0_0, %c0_1, %c0_2, %c0_3] : memref<1x1x18x18x128xf32, #tpu.memory_space<vmem>>, vector<1x1x18x18x128xf32>
    %1 = vector.shape_cast %0 : vector<1x1x18x18x128xf32> to vector<18x18x128xf32>
    %c0_4 = arith.constant 0 : index
    %c0_5 = arith.constant 0 : index
    %2 = vector.load %arg3[%c0_4, %c0_5] : memref<1x128xf32, #tpu.memory_space<vmem>>, vector<1x128xf32>
    %3 = vector.shape_cast %2 : vector<1x128xf32> to vector<1x1x128xf32>
    %4 = vector.broadcast %3 : vector<1x1x128xf32> to vector<18x18x128xf32>
    %5 = arith.mulf %1, %4 : vector<18x18x128xf32>
    %c0_6 = arith.constant 0 : index
    %c0_7 = arith.constant 0 : index
    %6 = vector.load %arg4[%c0_6, %c0_7] : memref<1x128xf32, #tpu.memory_space<vmem>>, vector<1x128xf32>
    %7 = vector.shape_cast %6 : vector<1x128xf32> to vector<1x1x128xf32>
    %8 = vector.broadcast %7 : vector<1x1x128xf32> to vector<18x18x128xf32>
    %9 = arith.addf %5, %8 : vector<18x18x128xf32>
    %cst = arith.constant 0.000000e+00 : f32
    %10 = vector.broadcast %cst : f32 to vector<18x18x128xf32>
    %11 = arith.maximumf %9, %10 : vector<18x18x128xf32>
    %12 = tpu.iota {dimensions = array<i32: 0>} : vector<18x18x1xi32>
    %13 = tpu.iota {dimensions = array<i32: 1>} : vector<18x18x1xi32>
    %c0_i32 = arith.constant 0 : i32
    %14 = arith.cmpi eq, %arg1, %c0_i32 : i32
    %c0_i32_8 = arith.constant 0 : i32
    %15 = vector.broadcast %c0_i32_8 : i32 to vector<18x18x1xi32>
    %16 = arith.cmpi eq, %12, %15 : vector<18x18x1xi32>
    %17 = vector.broadcast %14 : i1 to vector<18x18x1xi1>
    %18 = arith.andi %17, %16 : vector<18x18x1xi1>
    %c0_i32_9 = arith.constant 0 : i32
    %19 = arith.cmpi eq, %arg1, %c0_i32_9 : i32
    %c17_i32 = arith.constant 17 : i32
    %20 = vector.broadcast %c17_i32 : i32 to vector<18x18x1xi32>
    %21 = arith.cmpi eq, %12, %20 : vector<18x18x1xi32>
    %22 = vector.broadcast %19 : i1 to vector<18x18x1xi1>
    %23 = arith.andi %22, %21 : vector<18x18x1xi1>
    %24 = arith.ori %18, %23 : vector<18x18x1xi1>
    %c0_i32_10 = arith.constant 0 : i32
    %25 = vector.broadcast %c0_i32_10 : i32 to vector<18x18x1xi32>
    %26 = arith.cmpi eq, %13, %25 : vector<18x18x1xi32>
    %27 = arith.ori %24, %26 : vector<18x18x1xi1>
    %c17_i32_11 = arith.constant 17 : i32
    %28 = vector.broadcast %c17_i32_11 : i32 to vector<18x18x1xi32>
    %29 = arith.cmpi eq, %13, %28 : vector<18x18x1xi32>
    %30 = arith.ori %27, %29 : vector<18x18x1xi1>
    %cst_12 = arith.constant 0.000000e+00 : f32
    %31 = vector.shape_cast %30 : vector<18x18x1xi1> to vector<18x18x1xi1>
    %32 = vector.broadcast %31 : vector<18x18x1xi1> to vector<18x18x128xi1>
    %33 = vector.broadcast %cst_12 : f32 to vector<18x18x128xf32>
    %34 = arith.select %32, %33, %11 : vector<18x18x128xi1>, vector<18x18x128xf32>
    %35 = arith.truncf %34 : vector<18x18x128xf32> to vector<18x18x128xbf16>
    %36 = vector.extract_strided_slice %35 {offsets = [0, 0, 0], sizes = [16, 16, 128], strides = [1, 1, 1]} : vector<18x18x128xbf16> to vector<16x16x128xbf16>
    %37 = vector.shape_cast %36 : vector<16x16x128xbf16> to vector<256x128xbf16>
    %38 = vector.extract_strided_slice %35 {offsets = [0, 1, 0], sizes = [16, 16, 128], strides = [1, 1, 1]} : vector<18x18x128xbf16> to vector<16x16x128xbf16>
    %39 = vector.shape_cast %38 : vector<16x16x128xbf16> to vector<256x128xbf16>
    %40 = vector.extract_strided_slice %35 {offsets = [0, 2, 0], sizes = [16, 16, 128], strides = [1, 1, 1]} : vector<18x18x128xbf16> to vector<16x16x128xbf16>
    %41 = vector.shape_cast %40 : vector<16x16x128xbf16> to vector<256x128xbf16>
    %42 = vector.extract_strided_slice %35 {offsets = [1, 0, 0], sizes = [16, 16, 128], strides = [1, 1, 1]} : vector<18x18x128xbf16> to vector<16x16x128xbf16>
    %43 = vector.shape_cast %42 : vector<16x16x128xbf16> to vector<256x128xbf16>
    %44 = vector.extract_strided_slice %35 {offsets = [1, 1, 0], sizes = [16, 16, 128], strides = [1, 1, 1]} : vector<18x18x128xbf16> to vector<16x16x128xbf16>
    %45 = vector.shape_cast %44 : vector<16x16x128xbf16> to vector<256x128xbf16>
    %46 = vector.extract_strided_slice %35 {offsets = [1, 2, 0], sizes = [16, 16, 128], strides = [1, 1, 1]} : vector<18x18x128xbf16> to vector<16x16x128xbf16>
    %47 = vector.shape_cast %46 : vector<16x16x128xbf16> to vector<256x128xbf16>
    %48 = vector.extract_strided_slice %35 {offsets = [2, 0, 0], sizes = [16, 16, 128], strides = [1, 1, 1]} : vector<18x18x128xbf16> to vector<16x16x128xbf16>
    %49 = vector.shape_cast %48 : vector<16x16x128xbf16> to vector<256x128xbf16>
    %50 = vector.extract_strided_slice %35 {offsets = [2, 1, 0], sizes = [16, 16, 128], strides = [1, 1, 1]} : vector<18x18x128xbf16> to vector<16x16x128xbf16>
    %51 = vector.shape_cast %50 : vector<16x16x128xbf16> to vector<256x128xbf16>
    %52 = vector.extract_strided_slice %35 {offsets = [2, 2, 0], sizes = [16, 16, 128], strides = [1, 1, 1]} : vector<18x18x128xbf16> to vector<16x16x128xbf16>
    %53 = vector.shape_cast %52 : vector<16x16x128xbf16> to vector<256x128xbf16>
    %54 = tpu.concatenate %37, %39, %41, %43, %45, %47, %49, %51, %53 in 1 : vector<256x128xbf16>, vector<256x128xbf16>, vector<256x128xbf16>, vector<256x128xbf16>, vector<256x128xbf16>, vector<256x128xbf16>, vector<256x128xbf16>, vector<256x128xbf16>, vector<256x128xbf16> -> vector<256x1152xbf16>
    %c0_13 = arith.constant 0 : index
    %c0_14 = arith.constant 0 : index
    %55 = vector.load %arg5[%c0_13, %c0_14] : memref<1152x128xbf16, #tpu.memory_space<vmem>>, vector<1152x128xbf16>
    %cst_15 = arith.constant dense<0.000000e+00> : vector<256x128xf32>
    %56 = tpu.matmul %54, %55, %cst_15 {dimension_numbers = #tpu.dot_dimension_numbers<[1], [0], [0], [1], [0, 0, 1, 1], [], []>} : vector<256x1152xbf16>, vector<1152x128xbf16>, vector<256x128xf32> -> vector<256x128xf32>
    %57 = vector.shape_cast %56 : vector<256x128xf32> to vector<16x16x128xf32>
    %c0_16 = arith.constant 0 : index
    %c0_17 = arith.constant 0 : index
    %c0_18 = arith.constant 0 : index
    %c0_19 = arith.constant 0 : index
    %58 = vector.load %arg6[%c0_16, %c0_17, %c0_18, %c0_19] : memref<1x16x16x128xf32, #tpu.memory_space<vmem>>, vector<1x16x16x128xf32>
    %59 = vector.shape_cast %58 : vector<1x16x16x128xf32> to vector<16x16x128xf32>
    %60 = vector.shape_cast %57 : vector<16x16x128xf32> to vector<1x16x16x128xf32>
    tpu.vector_store %arg6[%c0_16, %c0_17, %c0_18, %c0_19], %60 {strides = array<i32>} : memref<1x16x16x128xf32, #tpu.memory_space<vmem>>, vector<1x16x16x128xf32>,
    %cst_20 = arith.constant dense<0.000000e+00> : vector<128xf32>
    %61 = vector.multi_reduction <add>, %56, %cst_20 [0] : vector<256x128xf32> to vector<128xf32>
    %62 = vector.shape_cast %61 : vector<128xf32> to vector<1x128xf32>
    %cst_21 = arith.constant 2.560000e+02 : f32
    %63 = vector.broadcast %cst_21 : f32 to vector<1x128xf32>
    %64 = arith.divf %62, %63 : vector<1x128xf32>
    %65 = vector.broadcast %64 : vector<1x128xf32> to vector<256x128xf32>
    %66 = arith.subf %56, %65 : vector<256x128xf32>
    %c0_22 = arith.constant 0 : index
    %c0_23 = arith.constant 0 : index
    %c0_24 = arith.constant 0 : index
    %c0_25 = arith.constant 0 : index
    %67 = vector.load %arg7[%c0_22, %c0_23, %c0_24, %c0_25] : memref<1x1x2x128xf32, #tpu.memory_space<vmem>>, vector<1x1x1x128xf32>
    %68 = vector.shape_cast %67 : vector<1x1x1x128xf32> to vector<1x128xf32>
    %69 = vector.shape_cast %62 : vector<1x128xf32> to vector<1x1x1x128xf32>
    tpu.vector_store %arg7[%c0_22, %c0_23, %c0_24, %c0_25], %69 {strides = array<i32>} : memref<1x1x2x128xf32, #tpu.memory_space<vmem>>, vector<1x1x1x128xf32>,
    %70 = arith.mulf %66, %66 : vector<256x128xf32>
    %cst_26 = arith.constant dense<0.000000e+00> : vector<128xf32>
    %71 = vector.multi_reduction <add>, %70, %cst_26 [0] : vector<256x128xf32> to vector<128xf32>
    %72 = vector.shape_cast %71 : vector<128xf32> to vector<1x128xf32>
    %c0_27 = arith.constant 0 : index
    %c0_28 = arith.constant 0 : index
    %c1 = arith.constant 1 : index
    %c0_29 = arith.constant 0 : index
    %73 = vector.load %arg7[%c0_27, %c0_28, %c1, %c0_29] : memref<1x1x2x128xf32, #tpu.memory_space<vmem>>, vector<1x1x1x128xf32>
    %74 = vector.shape_cast %73 : vector<1x1x1x128xf32> to vector<1x128xf32>
    %75 = vector.shape_cast %72 : vector<1x128xf32> to vector<1x1x1x128xf32>
    tpu.vector_store %arg7[%c0_27, %c0_28, %c1, %c0_29], %75 {strides = array<i32>} : memref<1x1x2x128xf32, #tpu.memory_space<vmem>>, vector<1x1x1x128xf32>,
    return
  }
  func.func @transform_0(%arg0: i32, %arg1: i32) -> (i32, i32, i32, i32, i32) {
    %c0_i32 = arith.constant 0 : i32
    %c0_i32_0 = arith.constant 0 : i32
    %c0_i32_1 = arith.constant 0 : i32
    %c0_i32_2 = arith.constant 0 : i32
    return %arg0, %arg1, %c0_i32, %c0_i32_0, %c0_i32_1 : i32, i32, i32, i32, i32
  }
  func.func @transform_1(%arg0: i32, %arg1: i32) -> (i32, i32) {
    %c0_i32 = arith.constant 0 : i32
    %c0_i32_0 = arith.constant 0 : i32
    %c0_i32_1 = arith.constant 0 : i32
    return %c0_i32, %c0_i32_0 : i32, i32
  }
  func.func @transform_2(%arg0: i32, %arg1: i32) -> (i32, i32) {
    %c0_i32 = arith.constant 0 : i32
    %c0_i32_0 = arith.constant 0 : i32
    %c0_i32_1 = arith.constant 0 : i32
    return %c0_i32, %c0_i32_0 : i32, i32
  }
  func.func @transform_3(%arg0: i32, %arg1: i32) -> (i32, i32) {
    %c0_i32 = arith.constant 0 : i32
    %c0_i32_0 = arith.constant 0 : i32
    %c0_i32_1 = arith.constant 0 : i32
    return %c0_i32, %c0_i32_0 : i32, i32
  }
  func.func @transform_4(%arg0: i32, %arg1: i32) -> (i32, i32, i32, i32) {
    %c0_i32 = arith.constant 0 : i32
    %c0_i32_0 = arith.constant 0 : i32
    %c0_i32_1 = arith.constant 0 : i32
    return %arg0, %arg1, %c0_i32, %c0_i32_0 : i32, i32, i32, i32
  }
  func.func @transform_5(%arg0: i32, %arg1: i32) -> (i32, i32, i32, i32) {
    %c0_i32 = arith.constant 0 : i32
    %c0_i32_0 = arith.constant 0 : i32
    %c0_i32_1 = arith.constant 0 : i32
    return %arg0, %arg1, %c0_i32, %c0_i32_0 : i32, i32, i32, i32
  }
}

module attributes {stable_mosaic.version = 11 : i64} {
  func.func @_bn_relu_kernel(%arg0: i32, %arg1: memref<512x128xf32, #tpu.memory_space<vmem>>, %arg2: memref<1x128xf32, #tpu.memory_space<vmem>>, %arg3: memref<1x128xf32, #tpu.memory_space<vmem>>, %arg4: memref<512x128xf32, #tpu.memory_space<vmem>>) attributes {dimension_semantics = [#tpu.dimension_semantics<parallel>], iteration_bounds = array<i64: 1>, scalar_prefetch = 0 : i64, scratch_operands = 0 : i64, tpu.core_type = #tpu.core_type<tc>, window_params = [{transform_indices = @transform_0, window_bounds = array<i64: 512, 128>}, {pipeline_mode = #tpu.pipeline_mode<synchronous>, transform_indices = @transform_1, window_bounds = array<i64: 1, 128>}, {pipeline_mode = #tpu.pipeline_mode<synchronous>, transform_indices = @transform_2, window_bounds = array<i64: 1, 128>}, {transform_indices = @transform_3, window_bounds = array<i64: 512, 128>}]} {
    %c0 = arith.constant 0 : index
    %c0_0 = arith.constant 0 : index
    %0 = vector.load %arg1[%c0, %c0_0] : memref<512x128xf32, #tpu.memory_space<vmem>>, vector<512x128xf32>
    %c0_1 = arith.constant 0 : index
    %c0_2 = arith.constant 0 : index
    %1 = vector.load %arg2[%c0_1, %c0_2] : memref<1x128xf32, #tpu.memory_space<vmem>>, vector<1x128xf32>
    %2 = vector.broadcast %1 : vector<1x128xf32> to vector<512x128xf32>
    %3 = arith.mulf %0, %2 : vector<512x128xf32>
    %c0_3 = arith.constant 0 : index
    %c0_4 = arith.constant 0 : index
    %4 = vector.load %arg3[%c0_3, %c0_4] : memref<1x128xf32, #tpu.memory_space<vmem>>, vector<1x128xf32>
    %5 = vector.broadcast %4 : vector<1x128xf32> to vector<512x128xf32>
    %6 = arith.addf %3, %5 : vector<512x128xf32>
    %cst = arith.constant 0.000000e+00 : f32
    %7 = vector.broadcast %cst : f32 to vector<512x128xf32>
    %8 = arith.maximumf %6, %7 : vector<512x128xf32>
    %c0_5 = arith.constant 0 : index
    %c0_6 = arith.constant 0 : index
    %9 = vector.load %arg4[%c0_5, %c0_6] : memref<512x128xf32, #tpu.memory_space<vmem>>, vector<512x128xf32>
    tpu.vector_store %arg4[%c0_5, %c0_6], %8 {strides = array<i32>} : memref<512x128xf32, #tpu.memory_space<vmem>>, vector<512x128xf32>,
    return
  }
  func.func @transform_0(%arg0: i32) -> (i32, i32) {
    %c0_i32 = arith.constant 0 : i32
    %c0_i32_0 = arith.constant 0 : i32
    return %arg0, %c0_i32 : i32, i32
  }
  func.func @transform_1(%arg0: i32) -> (i32, i32) {
    %c0_i32 = arith.constant 0 : i32
    %c0_i32_0 = arith.constant 0 : i32
    %c0_i32_1 = arith.constant 0 : i32
    return %c0_i32, %c0_i32_0 : i32, i32
  }
  func.func @transform_2(%arg0: i32) -> (i32, i32) {
    %c0_i32 = arith.constant 0 : i32
    %c0_i32_0 = arith.constant 0 : i32
    %c0_i32_1 = arith.constant 0 : i32
    return %c0_i32, %c0_i32_0 : i32, i32
  }
  func.func @transform_3(%arg0: i32) -> (i32, i32) {
    %c0_i32 = arith.constant 0 : i32
    %c0_i32_0 = arith.constant 0 : i32
    return %arg0, %c0_i32 : i32, i32
  }
}

</mosaic_0001>

<llo_original>
// kernel: decoder_block_forward.4
$region0: #{decoder_block_forward.4}
  #allocation0 [shape = 'u32[]', space=smem, size = 0x4, offset = 0x4, fixed_abs, tag = 'smem constant byte address 0x4 - core index']
  #allocation1 [shape = 'u32[144,128]{1,0:T(1,128)}', space=vmem, size = 0x12000, scoped, tag = 'internal scratch']
  %s0 = inlined_call_operand.vmem [shape: bf16[128,8], index: 0, kind: input, shape index: {}]
  %s1 = inlined_call_operand.vmem [shape: bf16[8,512], index: 1, kind: input, shape index: {}]
  %s2 = inlined_call_operand.vmem [shape: f32[1,512], index: 2, kind: input, shape index: {}]
  %s3 = inlined_call_operand.vmem [shape: bf16[128,512], index: 3, kind: output, shape index: {}]
  %s4 = sld [smem:[#allocation0]]
  $region22: #{decoder_block_forward.4} parent=0
    _
  %s6 = ssub.s32 1, %s4
  %s7 = scalar_select 0, %s6, %s4
  // Predicated region
  $region2: #{decoder_block_forward.4} parent=0 // pred_check
    _
  $region3: #{decoder_block_forward.4} parent=0 // pred_check_branch
    %9 = sbr.rel (0) target = $region5
  $region4: #{decoder_block_forward.4} parent=0 // pred_region
    _
  $region5: #{decoder_block_forward.4} parent=0 // pred_fallthru
    _
  // Predicated region
  $region6: #{decoder_block_forward.4} parent=0 // pred_check
    _
  $region7: #{decoder_block_forward.4} parent=0 // pred_check_branch
    %11 = sbr.rel (0) target = $region9
  $region8: #{decoder_block_forward.4} parent=0 // pred_region
    _
  $region9: #{decoder_block_forward.4} parent=0 // pred_fallthru
    _
  // Predicated region
  $region10: #{decoder_block_forward.4} parent=0 // pred_check
    _
  $region11: #{decoder_block_forward.4} parent=0 // pred_check_branch
    %13 = sbr.rel (0) target = $region13
  $region12: #{decoder_block_forward.4} parent=0 // pred_region
    _
  $region13: #{decoder_block_forward.4} parent=0 // pred_fallthru
    _
  %v15 = vld [vmem:[%s0] sm:$0xf]
  %v16 = vld [vmem:[%s0 + $0x4] sm:$0xf]
  %v17 = vld [vmem:[%s0 + $0x8] sm:$0xf]
  %v18 = vld [vmem:[%s0 + $0xc] sm:$0xf]
  %v19 = vld [vmem:[%s0 + $0x10] sm:$0xf]
  %v20 = vld [vmem:[%s0 + $0x14] sm:$0xf]
  %v21 = vld [vmem:[%s0 + $0x18] sm:$0xf]
  %v22 = vld [vmem:[%s0 + $0x1c] sm:$0xf]
  %v23 = vld [vmem:[%s0 + $0x20] sm:$0xf]
  %v24 = vld [vmem:[%s0 + $0x24] sm:$0xf]
  %v25 = vld [vmem:[%s0 + $0x28] sm:$0xf]
  %v26 = vld [vmem:[%s0 + $0x2c] sm:$0xf]
  %v27 = vld [vmem:[%s0 + $0x30] sm:$0xf]
  %v28 = vld [vmem:[%s0 + $0x34] sm:$0xf]
  %v29 = vld [vmem:[%s0 + $0x38] sm:$0xf]
  %v30 = vld [vmem:[%s0 + $0x3c] sm:$0xf]
  %v31 = vld [vmem:[%s1] sm:$0xff]
  %v32 = vld [vmem:[%s1 + $0x8] sm:$0xff]
  %v33 = vld [vmem:[%s2] sm:$0xf]
  %v35 = vlaneseq
  %v36 = vshrl.u32 %v35, 7
  %v37 = vsub.s32 0, %v36
  %v38 = vrot.slane %v33, %v37
  %v39 = vlaneseq
  %v40 = vshrl.u32 %v39, 7
  %v41 = vsub.s32 1, %v40
  %v42 = vrot.slane %v33, %v41
  %v43 = vlaneseq
  %v44 = vshrl.u32 %v43, 7
  %v45 = vsub.s32 2, %v44
  %v46 = vrot.slane %v33, %v45
  %v47 = vlaneseq
  %v48 = vshrl.u32 %v47, 7
  %v49 = vsub.s32 3, %v48
  %v50 = vrot.slane %v33, %v49
  %v71 = vunpack.c.l.b16 %v15
  %v72 = vunpack.c.l.b16 %v16
  %v73 = vunpack.c.l.b16 %v17
  %v74 = vunpack.c.l.b16 %v18
  %v75 = vunpack.c.l.b16 %v19
  %v76 = vunpack.c.l.b16 %v20
  %v77 = vunpack.c.l.b16 %v21
  %v78 = vunpack.c.l.b16 %v22
  %v79 = vunpack.c.l.b16 %v23
  %v80 = vunpack.c.l.b16 %v24
  %v81 = vunpack.c.l.b16 %v25
  %v82 = vunpack.c.l.b16 %v26
  %v83 = vunpack.c.l.b16 %v27
  %v84 = vunpack.c.l.b16 %v28
  %v85 = vunpack.c.l.b16 %v29
  %v86 = vunpack.c.l.b16 %v30
  %v87 = vpack.c.b16 %v72, %v71
  %v88 = vpack.c.b16 %v74, %v73
  %v89 = vpack.c.b16 %v76, %v75
  %v90 = vpack.c.b16 %v78, %v77
  %v91 = vpack.c.b16 %v80, %v79
  %v92 = vpack.c.b16 %v82, %v81
  %v93 = vpack.c.b16 %v84, %v83
  %v94 = vpack.c.b16 %v86, %v85
  %v97 = vunpack.c.l.b16 %v31
  %v98 = vunpack.c.h.b16 %v31
  %v99 = vunpack.c.l.b16 %v32
  %v100 = vunpack.c.h.b16 %v32
  %v101 = vpack.c.b16 %v97, %v97
  %v102 = vpack.c.b16 %v98, %v98
  %v103 = vpack.c.b16 %v99, %v99
  %v104 = vpack.c.b16 %v100, %v100
  %vm105 = vcmask 64512
  %v107 = vsel %vm105, %v87, 0
  %v110 = vsel %vm105, %v88, 0
  %v113 = vsel %vm105, %v89, 0
  %v116 = vsel %vm105, %v90, 0
  %v119 = vsel %vm105, %v91, 0
  %v122 = vsel %vm105, %v92, 0
  %v125 = vsel %vm105, %v93, 0
  %v128 = vsel %vm105, %v94, 0
  %vm130 = vcmask 1043456
  %v132 = vsel %vm130, %v101, 0
  %v135 = vsel %vm130, %v102, 0
  %v138 = vsel %vm130, %v103, 0
  %v141 = vsel %vm130, %v104, 0
  %143 = vmatprep.subr.bf16.mxu0 0
  %144 = vmatpush1.bf16.msra.mxu0 0
  %145 = vmatprep.subr.bf16.mxu0 0
  %146 = vmatpush1.bf16.msra.mxu0 0
  %147 = vmatprep.subr.bf16.mxu0 0
  %148 = vmatpush1.bf16.msra.mxu0 0
  %149 = vmatprep.subr.bf16.mxu0 0
  %150 = vmatpush1.bf16.msra.mxu0 0
  %151 = vmatprep.subr.bf16.mxu0 0
  %152 = vmatpush1.bf16.msra.mxu0 0
  %153 = vmatprep.subr.bf16.mxu0 0
  %154 = vmatpush1.bf16.msra.mxu0 0
  %155 = vmatprep.subr.bf16.mxu0 0
  %156 = vmatpush1.bf16.msra.mxu0 0
  %157 = vmatprep.subr.bf16.mxu0 %v135
  %158 = vmatpush1.bf16.msra.mxu0 %v132
  %159 = vmatprep.subr.bf16.mxu0 0
  %160 = vmatpush2.bf16.msra.mxu0 0
  %161 = vmatprep.subr.bf16.mxu0 0
  %162 = vmatpush2.bf16.msra.mxu0 0
  %163 = vmatprep.subr.bf16.mxu0 0
  %164 = vmatpush2.bf16.msra.mxu0 0
  %165 = vmatprep.subr.bf16.mxu0 0
  %166 = vmatpush2.bf16.msra.mxu0 0
  %167 = vmatprep.subr.bf16.mxu0 0
  %168 = vmatpush2.bf16.msra.mxu0 0
  %169 = vmatprep.subr.bf16.mxu0 0
  %170 = vmatpush2.bf16.msra.mxu0 0
  %171 = vmatprep.subr.bf16.mxu0 0
  %172 = vmatpush2.bf16.msra.mxu0 0
  %173 = vmatprep.subr.bf16.mxu0 0
  %174 = vmatpush2.bf16.msra.mxu0 0
  %175 = vmatprep.mubr.bf16.mxu0 0
  %176 = vmatmul.mubr.bf16.gmra.mxu0 %v107
  %v177 = vpop.f32.mrf.mxu0
  %v178 = vadd.f32 %v38, %v177
  %v179 = vpop.f32.mrf.mxu0
  %v180 = vadd.f32 %v42, %v179
  %v181 = vpop.f32.mrf.mxu0
  %v182 = vadd.f32 %v38, %v181
  %v183 = vpop.f32.mrf.mxu0
  %v184 = vadd.f32 %v42, %v183
  %185 = vmatprep.mubr.bf16.mxu0 0
  %186 = vmatmul.mubr.bf16.gmra.mxu0 %v110
  %v187 = vpop.f32.mrf.mxu0
  %v188 = vadd.f32 %v38, %v187
  %v189 = vpop.f32.mrf.mxu0
  %v190 = vadd.f32 %v42, %v189
  %v191 = vpop.f32.mrf.mxu0
  %v192 = vadd.f32 %v38, %v191
  %v193 = vpop.f32.mrf.mxu0
  %v194 = vadd.f32 %v42, %v193
  %195 = vmatprep.mubr.bf16.mxu0 0
  %196 = vmatmul.mubr.bf16.gmra.mxu0 %v113
  %v197 = vpop.f32.mrf.mxu0
  %v198 = vadd.f32 %v38, %v197
  %v199 = vpop.f32.mrf.mxu0
  %v200 = vadd.f32 %v42, %v199
  %v201 = vpop.f32.mrf.mxu0
  %v202 = vadd.f32 %v38, %v201
  %v203 = vpop.f32.mrf.mxu0
  %v204 = vadd.f32 %v42, %v203
  %205 = vmatprep.mubr.bf16.mxu0 0
  %206 = vmatmul.mubr.bf16.gmra.mxu0 %v116
  %v207 = vpop.f32.mrf.mxu0
  %v208 = vadd.f32 %v38, %v207
  %v209 = vpop.f32.mrf.mxu0
  %v210 = vadd.f32 %v42, %v209
  %v211 = vpop.f32.mrf.mxu0
  %v212 = vadd.f32 %v38, %v211
  %v213 = vpop.f32.mrf.mxu0
  %v214 = vadd.f32 %v42, %v213
  %215 = vmatprep.mubr.bf16.mxu0 0
  %216 = vmatmul.mubr.bf16.gmra.mxu0 %v119
  %v217 = vpop.f32.mrf.mxu0
  %v218 = vadd.f32 %v38, %v217
  %v219 = vpop.f32.mrf.mxu0
  %v220 = vadd.f32 %v42, %v219
  %v221 = vpop.f32.mrf.mxu0
  %v222 = vadd.f32 %v38, %v221
  %v223 = vpop.f32.mrf.mxu0
  %v224 = vadd.f32 %v42, %v223
  %225 = vmatprep.mubr.bf16.mxu0 0
  %226 = vmatmul.mubr.bf16.gmra.mxu0 %v122
  %v227 = vpop.f32.mrf.mxu0
  %v228 = vadd.f32 %v38, %v227
  %v229 = vpop.f32.mrf.mxu0
  %v230 = vadd.f32 %v42, %v229
  %v231 = vpop.f32.mrf.mxu0
  %v232 = vadd.f32 %v38, %v231
  %v233 = vpop.f32.mrf.mxu0
  %v234 = vadd.f32 %v42, %v233
  %235 = vmatprep.mubr.bf16.mxu0 0
  %236 = vmatmul.mubr.bf16.gmra.mxu0 %v125
  %v237 = vpop.f32.mrf.mxu0
  %v238 = vadd.f32 %v38, %v237
  %v239 = vpop.f32.mrf.mxu0
  %v240 = vadd.f32 %v42, %v239
  %v241 = vpop.f32.mrf.mxu0
  %v242 = vadd.f32 %v38, %v241
  %v243 = vpop.f32.mrf.mxu0
  %v244 = vadd.f32 %v42, %v243
  %245 = vmatprep.mubr.bf16.mxu0 0
  %246 = vmatmul.mubr.bf16.gmra.mxu0 %v128
  %v247 = vpop.f32.mrf.mxu0
  %v248 = vadd.f32 %v38, %v247
  %v249 = vpop.f32.mrf.mxu0
  %v250 = vadd.f32 %v42, %v249
  %v251 = vpop.f32.mrf.mxu0
  %v252 = vadd.f32 %v38, %v251
  %v253 = vpop.f32.mrf.mxu0
  %v254 = vadd.f32 %v42, %v253
  %255 = vdwg.mxu0
  %256 = vmatprep.subr.bf16.mxu0 0
  %257 = vmatpush1.bf16.msra.mxu0 0
  %258 = vmatprep.subr.bf16.mxu0 0
  %259 = vmatpush1.bf16.msra.mxu0 0
  %260 = vmatprep.subr.bf16.mxu0 0
  %261 = vmatpush1.bf16.msra.mxu0 0
  %262 = vmatprep.subr.bf16.mxu0 0
  %263 = vmatpush1.bf16.msra.mxu0 0
  %264 = vmatprep.subr.bf16.mxu0 0
  %265 = vmatpush1.bf16.msra.mxu0 0
  %266 = vmatprep.subr.bf16.mxu0 0
  %267 = vmatpush1.bf16.msra.mxu0 0
  %268 = vmatprep.subr.bf16.mxu0 0
  %269 = vmatpush1.bf16.msra.mxu0 0
  %270 = vmatprep.subr.bf16.mxu0 %v141
  %271 = vmatpush1.bf16.msra.mxu0 %v138
  %272 = vmatprep.subr.bf16.mxu0 0
  %273 = vmatpush2.bf16.msra.mxu0 0
  %274 = vmatprep.subr.bf16.mxu0 0
  %275 = vmatpush2.bf16.msra.mxu0 0
  %276 = vmatprep.subr.bf16.mxu0 0
  %277 = vmatpush2.bf16.msra.mxu0 0
  %278 = vmatprep.subr.bf16.mxu0 0
  %279 = vmatpush2.bf16.msra.mxu0 0
  %280 = vmatprep.subr.bf16.mxu0 0
  %281 = vmatpush2.bf16.msra.mxu0 0
  %282 = vmatprep.subr.bf16.mxu0 0
  %283 = vmatpush2.bf16.msra.mxu0 0
  %284 = vmatprep.subr.bf16.mxu0 0
  %285 = vmatpush2.bf16.msra.mxu0 0
  %286 = vmatprep.subr.bf16.mxu0 0
  %287 = vmatpush2.bf16.msra.mxu0 0
  %288 = vmatprep.mubr.bf16.mxu0 0
  %289 = vmatmul.mubr.bf16.gmra.mxu0 %v107
  %v290 = vpop.f32.mrf.mxu0
  %v291 = vadd.f32 %v46, %v290
  %v292 = vpop.f32.mrf.mxu0
  %v293 = vadd.f32 %v50, %v292
  %v294 = vpop.f32.mrf.mxu0
  %v295 = vadd.f32 %v46, %v294
  %v296 = vpop.f32.mrf.mxu0
  %v297 = vadd.f32 %v50, %v296
  %298 = vmatprep.mubr.bf16.mxu0 0
  %299 = vmatmul.mubr.bf16.gmra.mxu0 %v110
  %v300 = vpop.f32.mrf.mxu0
  %v301 = vadd.f32 %v46, %v300
  %v302 = vpop.f32.mrf.mxu0
  %v303 = vadd.f32 %v50, %v302
  %v304 = vpop.f32.mrf.mxu0
  %v305 = vadd.f32 %v46, %v304
  %v306 = vpop.f32.mrf.mxu0
  %v307 = vadd.f32 %v50, %v306
  %308 = vmatprep.mubr.bf16.mxu0 0
  %309 = vmatmul.mubr.bf16.gmra.mxu0 %v113
  %v310 = vpop.f32.mrf.mxu0
  %v311 = vadd.f32 %v46, %v310
  %v312 = vpop.f32.mrf.mxu0
  %v313 = vadd.f32 %v50, %v312
  %v314 = vpop.f32.mrf.mxu0
  %v315 = vadd.f32 %v46, %v314
  %v316 = vpop.f32.mrf.mxu0
  %v317 = vadd.f32 %v50, %v316
  %318 = vmatprep.mubr.bf16.mxu0 0
  %319 = vmatmul.mubr.bf16.gmra.mxu0 %v116
  %v320 = vpop.f32.mrf.mxu0
  %v321 = vadd.f32 %v46, %v320
  %v322 = vpop.f32.mrf.mxu0
  %v323 = vadd.f32 %v50, %v322
  %v324 = vpop.f32.mrf.mxu0
  %v325 = vadd.f32 %v46, %v324
  %v326 = vpop.f32.mrf.mxu0
  %v327 = vadd.f32 %v50, %v326
  %328 = vmatprep.mubr.bf16.mxu0 0
  %329 = vmatmul.mubr.bf16.gmra.mxu0 %v119
  %v330 = vpop.f32.mrf.mxu0
  %v331 = vadd.f32 %v46, %v330
  %v332 = vpop.f32.mrf.mxu0
  %v333 = vadd.f32 %v50, %v332
  %v334 = vpop.f32.mrf.mxu0
  %v335 = vadd.f32 %v46, %v334
  %v336 = vpop.f32.mrf.mxu0
  %v337 = vadd.f32 %v50, %v336
  %338 = vmatprep.mubr.bf16.mxu0 0
  %339 = vmatmul.mubr.bf16.gmra.mxu0 %v122
  %v340 = vpop.f32.mrf.mxu0
  %v341 = vadd.f32 %v46, %v340
  %v342 = vpop.f32.mrf.mxu0
  %v343 = vadd.f32 %v50, %v342
  %v344 = vpop.f32.mrf.mxu0
  %v345 = vadd.f32 %v46, %v344
  %v346 = vpop.f32.mrf.mxu0
  %v347 = vadd.f32 %v50, %v346
  %348 = vmatprep.mubr.bf16.mxu0 0
  %349 = vmatmul.mubr.bf16.gmra.mxu0 %v125
  %v350 = vpop.f32.mrf.mxu0
  %v351 = vadd.f32 %v46, %v350
  %v352 = vpop.f32.mrf.mxu0
  %v353 = vadd.f32 %v50, %v352
  %v354 = vpop.f32.mrf.mxu0
  %v355 = vadd.f32 %v46, %v354
  %v356 = vpop.f32.mrf.mxu0
  %v357 = vadd.f32 %v50, %v356
  %358 = vmatprep.mubr.bf16.mxu0 0
  %359 = vmatmul.mubr.bf16.gmra.mxu0 %v128
  %v360 = vpop.f32.mrf.mxu0
  %v361 = vadd.f32 %v46, %v360
  %v362 = vpop.f32.mrf.mxu0
  %v363 = vadd.f32 %v50, %v362
  %v364 = vpop.f32.mrf.mxu0
  %v365 = vadd.f32 %v46, %v364
  %v366 = vpop.f32.mrf.mxu0
  %v367 = vadd.f32 %v50, %v366
  %368 = vdwg.mxu0
  %v369 = vpack.c.bf16 %v182, %v178
  %v370 = vpack.c.bf16 %v184, %v180
  %v371 = vpack.c.bf16 %v295, %v291
  %v372 = vpack.c.bf16 %v297, %v293
  %v373 = vpack.c.bf16 %v192, %v188
  %v374 = vpack.c.bf16 %v194, %v190
  %v375 = vpack.c.bf16 %v305, %v301
  %v376 = vpack.c.bf16 %v307, %v303
  %v377 = vpack.c.bf16 %v202, %v198
  %v378 = vpack.c.bf16 %v204, %v200
  %v379 = vpack.c.bf16 %v315, %v311
  %v380 = vpack.c.bf16 %v317, %v313
  %v381 = vpack.c.bf16 %v212, %v208
  %v382 = vpack.c.bf16 %v214, %v210
  %v383 = vpack.c.bf16 %v325, %v321
  %v384 = vpack.c.bf16 %v327, %v323
  %v385 = vpack.c.bf16 %v222, %v218
  %v386 = vpack.c.bf16 %v224, %v220
  %v387 = vpack.c.bf16 %v335, %v331
  %v388 = vpack.c.bf16 %v337, %v333
  %v389 = vpack.c.bf16 %v232, %v228
  %v390 = vpack.c.bf16 %v234, %v230
  %v391 = vpack.c.bf16 %v345, %v341
  %v392 = vpack.c.bf16 %v347, %v343
  %v393 = vpack.c.bf16 %v242, %v238
  %v394 = vpack.c.bf16 %v244, %v240
  %v395 = vpack.c.bf16 %v355, %v351
  %v396 = vpack.c.bf16 %v357, %v353
  %v397 = vpack.c.bf16 %v252, %v248
  %v398 = vpack.c.bf16 %v254, %v250
  %v399 = vpack.c.bf16 %v365, %v361
  %v400 = vpack.c.bf16 %v367, %v363
  %v433 = vunpack.c.l.b16 %v369
  %v434 = vunpack.c.l.b16 %v370
  %v435 = vunpack.c.l.b16 %v371
  %v436 = vunpack.c.l.b16 %v372
  %v437 = vunpack.c.h.b16 %v369
  %v438 = vunpack.c.h.b16 %v370
  %v439 = vunpack.c.h.b16 %v371
  %v440 = vunpack.c.h.b16 %v372
  %v441 = vunpack.c.l.b16 %v373
  %v442 = vunpack.c.l.b16 %v374
  %v443 = vunpack.c.l.b16 %v375
  %v444 = vunpack.c.l.b16 %v376
  %v445 = vunpack.c.h.b16 %v373
  %v446 = vunpack.c.h.b16 %v374
  %v447 = vunpack.c.h.b16 %v375
  %v448 = vunpack.c.h.b16 %v376
  %v449 = vunpack.c.l.b16 %v377
  %v450 = vunpack.c.l.b16 %v378
  %v451 = vunpack.c.l.b16 %v379
  %v452 = vunpack.c.l.b16 %v380
  %v453 = vunpack.c.h.b16 %v377
  %v454 = vunpack.c.h.b16 %v378
  %v455 = vunpack.c.h.b16 %v379
  %v456 = vunpack.c.h.b16 %v380
  %v457 = vunpack.c.l.b16 %v381
  %v458 = vunpack.c.l.b16 %v382
  %v459 = vunpack.c.l.b16 %v383
  %v460 = vunpack.c.l.b16 %v384
  %v461 = vunpack.c.h.b16 %v381
  %v462 = vunpack.c.h.b16 %v382
  %v463 = vunpack.c.h.b16 %v383
  %v464 = vunpack.c.h.b16 %v384
  %v465 = vunpack.c.l.b16 %v385
  %v466 = vunpack.c.l.b16 %v386
  %v467 = vunpack.c.l.b16 %v387
  %v468 = vunpack.c.l.b16 %v388
  %v469 = vunpack.c.h.b16 %v385
  %v470 = vunpack.c.h.b16 %v386
  %v471 = vunpack.c.h.b16 %v387
  %v472 = vunpack.c.h.b16 %v388
  %v473 = vunpack.c.l.b16 %v389
  %v474 = vunpack.c.l.b16 %v390
  %v475 = vunpack.c.l.b16 %v391
  %v476 = vunpack.c.l.b16 %v392
  %v477 = vunpack.c.h.b16 %v389
  %v478 = vunpack.c.h.b16 %v390
  %v479 = vunpack.c.h.b16 %v391
  %v480 = vunpack.c.h.b16 %v392
  %v481 = vunpack.c.l.b16 %v393
  %v482 = vunpack.c.l.b16 %v394
  %v483 = vunpack.c.l.b16 %v395
  %v484 = vunpack.c.l.b16 %v396
  %v485 = vunpack.c.h.b16 %v393
  %v486 = vunpack.c.h.b16 %v394
  %v487 = vunpack.c.h.b16 %v395
  %v488 = vunpack.c.h.b16 %v396
  %v489 = vunpack.c.l.b16 %v397
  %v490 = vunpack.c.l.b16 %v398
  %v491 = vunpack.c.l.b16 %v399
  %v492 = vunpack.c.l.b16 %v400
  %v493 = vunpack.c.h.b16 %v397
  %v494 = vunpack.c.h.b16 %v398
  %v495 = vunpack.c.h.b16 %v399
  %v496 = vunpack.c.h.b16 %v400
  %v497 = vpack.c.b16 %v434, %v433
  %v498 = vpack.c.b16 %v436, %v435
  %v499 = vpack.c.b16 %v438, %v437
  %v500 = vpack.c.b16 %v440, %v439
  %v501 = vpack.c.b16 %v442, %v441
  %v502 = vpack.c.b16 %v444, %v443
  %v503 = vpack.c.b16 %v446, %v445
  %v504 = vpack.c.b16 %v448, %v447
  %v505 = vpack.c.b16 %v450, %v449
  %v506 = vpack.c.b16 %v452, %v451
  %v507 = vpack.c.b16 %v454, %v453
  %v508 = vpack.c.b16 %v456, %v455
  %v509 = vpack.c.b16 %v458, %v457
  %v510 = vpack.c.b16 %v460, %v459
  %v511 = vpack.c.b16 %v462, %v461
  %v512 = vpack.c.b16 %v464, %v463
  %v513 = vpack.c.b16 %v466, %v465
  %v514 = vpack.c.b16 %v468, %v467
  %v515 = vpack.c.b16 %v470, %v469
  %v516 = vpack.c.b16 %v472, %v471
  %v517 = vpack.c.b16 %v474, %v473
  %v518 = vpack.c.b16 %v476, %v475
  %v519 = vpack.c.b16 %v478, %v477
  %v520 = vpack.c.b16 %v480, %v479
  %v521 = vpack.c.b16 %v482, %v481
  %v522 = vpack.c.b16 %v484, %v483
  %v523 = vpack.c.b16 %v486, %v485
  %v524 = vpack.c.b16 %v488, %v487
  %v525 = vpack.c.b16 %v490, %v489
  %v526 = vpack.c.b16 %v492, %v491
  %v527 = vpack.c.b16 %v494, %v493
  %v528 = vpack.c.b16 %v496, %v495
  %561 = vst [vmem:[%s3] sm:$0xff] %v497
  %562 = vst [vmem:[%s3 + $0x8] sm:$0xff] %v498
  %563 = vst [vmem:[%s3 + $0x10] sm:$0xff] %v499
  %564 = vst [vmem:[%s3 + $0x18] sm:$0xff] %v500
  %565 = vst [vmem:[%s3 + $0x20] sm:$0xff] %v501
  %566 = vst [vmem:[%s3 + $0x28] sm:$0xff] %v502
  %567 = vst [vmem:[%s3 + $0x30] sm:$0xff] %v503
  %568 = vst [vmem:[%s3 + $0x38] sm:$0xff] %v504
  %569 = vst [vmem:[%s3 + $0x40] sm:$0xff] %v505
  %570 = vst [vmem:[%s3 + $0x48] sm:$0xff] %v506
  %571 = vst [vmem:[%s3 + $0x50] sm:$0xff] %v507
  %572 = vst [vmem:[%s3 + $0x58] sm:$0xff] %v508
  %573 = vst [vmem:[%s3 + $0x60] sm:$0xff] %v509
  %574 = vst [vmem:[%s3 + $0x68] sm:$0xff] %v510
  %575 = vst [vmem:[%s3 + $0x70] sm:$0xff] %v511
  %576 = vst [vmem:[%s3 + $0x78] sm:$0xff] %v512
  %577 = vst [vmem:[%s3 + $0x80] sm:$0xff] %v513
  %578 = vst [vmem:[%s3 + $0x88] sm:$0xff] %v514
  %579 = vst [vmem:[%s3 + $0x90] sm:$0xff] %v515
  %580 = vst [vmem:[%s3 + $0x98] sm:$0xff] %v516
  %581 = vst [vmem:[%s3 + $0xa0] sm:$0xff] %v517
  %582 = vst [vmem:[%s3 + $0xa8] sm:$0xff] %v518
  %583 = vst [vmem:[%s3 + $0xb0] sm:$0xff] %v519
  %584 = vst [vmem:[%s3 + $0xb8] sm:$0xff] %v520
  %585 = vst [vmem:[%s3 + $0xc0] sm:$0xff] %v521
  %586 = vst [vmem:[%s3 + $0xc8] sm:$0xff] %v522
  %587 = vst [vmem:[%s3 + $0xd0] sm:$0xff] %v523
  %588 = vst [vmem:[%s3 + $0xd8] sm:$0xff] %v524
  %589 = vst [vmem:[%s3 + $0xe0] sm:$0xff] %v525
  %590 = vst [vmem:[%s3 + $0xe8] sm:$0xff] %v526
  %591 = vst [vmem:[%s3 + $0xf0] sm:$0xff] %v527
  %592 = vst [vmem:[%s3 + $0xf8] sm:$0xff] %v528
  // Predicated region
  $region14: #{decoder_block_forward.4} parent=0 // pred_check
    _
  $region15: #{decoder_block_forward.4} parent=0 // pred_check_branch
    %594 = sbr.rel (0) target = $region17
  $region16: #{decoder_block_forward.4} parent=0 // pred_region
    _
  $region17: #{decoder_block_forward.4} parent=0 // pred_fallthru
    _
  // Predicated region
  $region18: #{decoder_block_forward.4} parent=0 // pred_check
    _
  $region19: #{decoder_block_forward.4} parent=0 // pred_check_branch
    %596 = sbr.rel (0) target = $region21
  $region20: #{decoder_block_forward.4} parent=0 // pred_region
    _
  $region21: #{decoder_block_forward.4} parent=0 // pred_fallthru
    _

// kernel: decoder_block_forward.7
$region0: #{decoder_block_forward.7}
  #allocation0 [shape = 'u32[]', space=smem, size = 0x4, offset = 0x4, fixed_abs, tag = 'smem constant byte address 0x4 - core index']
  #allocation1 [shape = 'u32[144,128]{1,0:T(1,128)}', space=vmem, size = 0x12000, scoped, tag = 'internal scratch']
  %s0 = inlined_call_operand.vmem [shape: f32[512,128], index: 0, kind: input, shape index: {}]
  %s1 = inlined_call_operand.vmem [shape: f32[1,128], index: 1, kind: input, shape index: {}]
  %s2 = inlined_call_operand.vmem [shape: f32[1,128], index: 2, kind: input, shape index: {}]
  %s3 = inlined_call_operand.vmem [shape: f32[512,128], index: 3, kind: output, shape index: {}]
  %s4 = sld [smem:[#allocation0]]
  $region22: #{decoder_block_forward.7} parent=0
    _
  %s6 = ssub.s32 1, %s4
  %s7 = scalar_select 0, %s6, %s4
  // Predicated region
  $region2: #{decoder_block_forward.7} parent=0 // pred_check
    _
  $region3: #{decoder_block_forward.7} parent=0 // pred_check_branch
    %9 = sbr.rel (0) target = $region5
  $region4: #{decoder_block_forward.7} parent=0 // pred_region
    _
  $region5: #{decoder_block_forward.7} parent=0 // pred_fallthru
    _
  // Predicated region
  $region6: #{decoder_block_forward.7} parent=0 // pred_check
    _
  $region7: #{decoder_block_forward.7} parent=0 // pred_check_branch
    %11 = sbr.rel (0) target = $region9
  $region8: #{decoder_block_forward.7} parent=0 // pred_region
    _
  $region9: #{decoder_block_forward.7} parent=0 // pred_fallthru
    _
  // Predicated region
  $region10: #{decoder_block_forward.7} parent=0 // pred_check
    _
  $region11: #{decoder_block_forward.7} parent=0 // pred_check_branch
    %13 = sbr.rel (0) target = $region13
  $region12: #{decoder_block_forward.7} parent=0 // pred_region
    _
  $region13: #{decoder_block_forward.7} parent=0 // pred_fallthru
    _
  %v14 = vld [vmem:[%s0] sm:$0xff]
  %v15 = vld [vmem:[%s0 + $0x8] sm:$0xff]
  %v16 = vld [vmem:[%s0 + $0x10] sm:$0xff]
  %v17 = vld [vmem:[%s0 + $0x18] sm:$0xff]
  %v18 = vld [vmem:[%s0 + $0x20] sm:$0xff]
  %v19 = vld [vmem:[%s0 + $0x28] sm:$0xff]
  %v20 = vld [vmem:[%s0 + $0x30] sm:$0xff]
  %v21 = vld [vmem:[%s0 + $0x38] sm:$0xff]
  %v22 = vld [vmem:[%s0 + $0x40] sm:$0xff]
  %v23 = vld [vmem:[%s0 + $0x48] sm:$0xff]
  %v24 = vld [vmem:[%s0 + $0x50] sm:$0xff]
  %v25 = vld [vmem:[%s0 + $0x58] sm:$0xff]
  %v26 = vld [vmem:[%s0 + $0x60] sm:$0xff]
  %v27 = vld [vmem:[%s0 + $0x68] sm:$0xff]
  %v28 = vld [vmem:[%s0 + $0x70] sm:$0xff]
  %v29 = vld [vmem:[%s0 + $0x78] sm:$0xff]
  %v30 = vld [vmem:[%s0 + $0x80] sm:$0xff]
  %v31 = vld [vmem:[%s0 + $0x88] sm:$0xff]
  %v32 = vld [vmem:[%s0 + $0x90] sm:$0xff]
  %v33 = vld [vmem:[%s0 + $0x98] sm:$0xff]
  %v34 = vld [vmem:[%s0 + $0xa0] sm:$0xff]
  %v35 = vld [vmem:[%s0 + $0xa8] sm:$0xff]
  %v36 = vld [vmem:[%s0 + $0xb0] sm:$0xff]
  %v37 = vld [vmem:[%s0 + $0xb8] sm:$0xff]
  %v38 = vld [vmem:[%s0 + $0xc0] sm:$0xff]
  %v39 = vld [vmem:[%s0 + $0xc8] sm:$0xff]
  %v40 = vld [vmem:[%s0 + $0xd0] sm:$0xff]
  %v41 = vld [vmem:[%s0 + $0xd8] sm:$0xff]
  %v42 = vld [vmem:[%s0 + $0xe0] sm:$0xff]
  %v43 = vld [vmem:[%s0 + $0xe8] sm:$0xff]
  %v44 = vld [vmem:[%s0 + $0xf0] sm:$0xff]
  %v45 = vld [vmem:[%s0 + $0xf8] sm:$0xff]
  %v46 = vld [vmem:[%s0 + $0x100] sm:$0xff]
  %v47 = vld [vmem:[%s0 + $0x108] sm:$0xff]
  %v48 = vld [vmem:[%s0 + $0x110] sm:$0xff]
  %v49 = vld [vmem:[%s0 + $0x118] sm:$0xff]
  %v50 = vld [vmem:[%s0 + $0x120] sm:$0xff]
  %v51 = vld [vmem:[%s0 + $0x128] sm:$0xff]
  %v52 = vld [vmem:[%s0 + $0x130] sm:$0xff]
  %v53 = vld [vmem:[%s0 + $0x138] sm:$0xff]
  %v54 = vld [vmem:[%s0 + $0x140] sm:$0xff]
  %v55 = vld [vmem:[%s0 + $0x148] sm:$0xff]
  %v56 = vld [vmem:[%s0 + $0x150] sm:$0xff]
  %v57 = vld [vmem:[%s0 + $0x158] sm:$0xff]
  %v58 = vld [vmem:[%s0 + $0x160] sm:$0xff]
  %v59 = vld [vmem:[%s0 + $0x168] sm:$0xff]
  %v60 = vld [vmem:[%s0 + $0x170] sm:$0xff]
  %v61 = vld [vmem:[%s0 + $0x178] sm:$0xff]
  %v62 = vld [vmem:[%s0 + $0x180] sm:$0xff]
  %v63 = vld [vmem:[%s0 + $0x188] sm:$0xff]
  %v64 = vld [vmem:[%s0 + $0x190] sm:$0xff]
  %v65 = vld [vmem:[%s0 + $0x198] sm:$0xff]
  %v66 = vld [vmem:[%s0 + $0x1a0] sm:$0xff]
  %v67 = vld [vmem:[%s0 + $0x1a8] sm:$0xff]
  %v68 = vld [vmem:[%s0 + $0x1b0] sm:$0xff]
  %v69 = vld [vmem:[%s0 + $0x1b8] sm:$0xff]
  %v70 = vld [vmem:[%s0 + $0x1c0] sm:$0xff]
  %v71 = vld [vmem:[%s0 + $0x1c8] sm:$0xff]
  %v72 = vld [vmem:[%s0 + $0x1d0] sm:$0xff]
  %v73 = vld [vmem:[%s0 + $0x1d8] sm:$0xff]
  %v74 = vld [vmem:[%s0 + $0x1e0] sm:$0xff]
  %v75 = vld [vmem:[%s0 + $0x1e8] sm:$0xff]
  %v76 = vld [vmem:[%s0 + $0x1f0] sm:$0xff]
  %v77 = vld [vmem:[%s0 + $0x1f8] sm:$0xff]
  %v78 = vld [vmem:[%s1] sm:$0x1]
  %v80 = vlaneseq
  %v81 = vshrl.u32 %v80, 7
  %v82 = vsub.s32 0, %v81
  %v83 = vrot.slane %v78, %v82
  %v85 = vmul.f32 %v14, %v83
  %v86 = vmul.f32 %v15, %v83
  %v87 = vmul.f32 %v16, %v83
  %v88 = vmul.f32 %v17, %v83
  %v89 = vmul.f32 %v18, %v83
  %v90 = vmul.f32 %v19, %v83
  %v91 = vmul.f32 %v20, %v83
  %v92 = vmul.f32 %v21, %v83
  %v93 = vmul.f32 %v22, %v83
  %v94 = vmul.f32 %v23, %v83
  %v95 = vmul.f32 %v24, %v83
  %v96 = vmul.f32 %v25, %v83
  %v97 = vmul.f32 %v26, %v83
  %v98 = vmul.f32 %v27, %v83
  %v99 = vmul.f32 %v28, %v83
  %v100 = vmul.f32 %v29, %v83
  %v101 = vmul.f32 %v30, %v83
  %v102 = vmul.f32 %v31, %v83
  %v103 = vmul.f32 %v32, %v83
  %v104 = vmul.f32 %v33, %v83
  %v105 = vmul.f32 %v34, %v83
  %v106 = vmul.f32 %v35, %v83
  %v107 = vmul.f32 %v36, %v83
  %v108 = vmul.f32 %v37, %v83
  %v109 = vmul.f32 %v38, %v83
  %v110 = vmul.f32 %v39, %v83
  %v111 = vmul.f32 %v40, %v83
  %v112 = vmul.f32 %v41, %v83
  %v113 = vmul.f32 %v42, %v83
  %v114 = vmul.f32 %v43, %v83
  %v115 = vmul.f32 %v44, %v83
  %v116 = vmul.f32 %v45, %v83
  %v117 = vmul.f32 %v46, %v83
  %v118 = vmul.f32 %v47, %v83
  %v119 = vmul.f32 %v48, %v83
  %v120 = vmul.f32 %v49, %v83
  %v121 = vmul.f32 %v50, %v83
  %v122 = vmul.f32 %v51, %v83
  %v123 = vmul.f32 %v52, %v83
  %v124 = vmul.f32 %v53, %v83
  %v125 = vmul.f32 %v54, %v83
  %v126 = vmul.f32 %v55, %v83
  %v127 = vmul.f32 %v56, %v83
  %v128 = vmul.f32 %v57, %v83
  %v129 = vmul.f32 %v58, %v83
  %v130 = vmul.f32 %v59, %v83
  %v131 = vmul.f32 %v60, %v83
  %v132 = vmul.f32 %v61, %v83
  %v133 = vmul.f32 %v62, %v83
  %v134 = vmul.f32 %v63, %v83
  %v135 = vmul.f32 %v64, %v83
  %v136 = vmul.f32 %v65, %v83
  %v137 = vmul.f32 %v66, %v83
  %v138 = vmul.f32 %v67, %v83
  %v139 = vmul.f32 %v68, %v83
  %v140 = vmul.f32 %v69, %v83
  %v141 = vmul.f32 %v70, %v83
  %v142 = vmul.f32 %v71, %v83
  %v143 = vmul.f32 %v72, %v83
  %v144 = vmul.f32 %v73, %v83
  %v145 = vmul.f32 %v74, %v83
  %v146 = vmul.f32 %v75, %v83
  %v147 = vmul.f32 %v76, %v83
  %v148 = vmul.f32 %v77, %v83
  %v149 = vld [vmem:[%s2] sm:$0x1]
  %v151 = vlaneseq
  %v152 = vshrl.u32 %v151, 7
  %v153 = vsub.s32 0, %v152
  %v154 = vrot.slane %v149, %v153
  %v156 = vadd.f32 %v85, %v154
  %v157 = vadd.f32 %v86, %v154
  %v158 = vadd.f32 %v87, %v154
  %v159 = vadd.f32 %v88, %v154
  %v160 = vadd.f32 %v89, %v154
  %v161 = vadd.f32 %v90, %v154
  %v162 = vadd.f32 %v91, %v154
  %v163 = vadd.f32 %v92, %v154
  %v164 = vadd.f32 %v93, %v154
  %v165 = vadd.f32 %v94, %v154
  %v166 = vadd.f32 %v95, %v154
  %v167 = vadd.f32 %v96, %v154
  %v168 = vadd.f32 %v97, %v154
  %v169 = vadd.f32 %v98, %v154
  %v170 = vadd.f32 %v99, %v154
  %v171 = vadd.f32 %v100, %v154
  %v172 = vadd.f32 %v101, %v154
  %v173 = vadd.f32 %v102, %v154
  %v174 = vadd.f32 %v103, %v154
  %v175 = vadd.f32 %v104, %v154
  %v176 = vadd.f32 %v105, %v154
  %v177 = vadd.f32 %v106, %v154
  %v178 = vadd.f32 %v107, %v154
  %v179 = vadd.f32 %v108, %v154
  %v180 = vadd.f32 %v109, %v154
  %v181 = vadd.f32 %v110, %v154
  %v182 = vadd.f32 %v111, %v154
  %v183 = vadd.f32 %v112, %v154
  %v184 = vadd.f32 %v113, %v154
  %v185 = vadd.f32 %v114, %v154
  %v186 = vadd.f32 %v115, %v154
  %v187 = vadd.f32 %v116, %v154
  %v188 = vadd.f32 %v117, %v154
  %v189 = vadd.f32 %v118, %v154
  %v190 = vadd.f32 %v119, %v154
  %v191 = vadd.f32 %v120, %v154
  %v192 = vadd.f32 %v121, %v154
  %v193 = vadd.f32 %v122, %v154
  %v194 = vadd.f32 %v123, %v154
  %v195 = vadd.f32 %v124, %v154
  %v196 = vadd.f32 %v125, %v154
  %v197 = vadd.f32 %v126, %v154
  %v198 = vadd.f32 %v127, %v154
  %v199 = vadd.f32 %v128, %v154
  %v200 = vadd.f32 %v129, %v154
  %v201 = vadd.f32 %v130, %v154
  %v202 = vadd.f32 %v131, %v154
  %v203 = vadd.f32 %v132, %v154
  %v204 = vadd.f32 %v133, %v154
  %v205 = vadd.f32 %v134, %v154
  %v206 = vadd.f32 %v135, %v154
  %v207 = vadd.f32 %v136, %v154
  %v208 = vadd.f32 %v137, %v154
  %v209 = vadd.f32 %v138, %v154
  %v210 = vadd.f32 %v139, %v154
  %v211 = vadd.f32 %v140, %v154
  %v212 = vadd.f32 %v141, %v154
  %v213 = vadd.f32 %v142, %v154
  %v214 = vadd.f32 %v143, %v154
  %v215 = vadd.f32 %v144, %v154
  %v216 = vadd.f32 %v145, %v154
  %v217 = vadd.f32 %v146, %v154
  %v218 = vadd.f32 %v147, %v154
  %v219 = vadd.f32 %v148, %v154
  %v220 = vmax.f32 %v156, 0.0
  %v221 = vmax.f32 %v157, 0.0
  %v222 = vmax.f32 %v158, 0.0
  %v223 = vmax.f32 %v159, 0.0
  %v224 = vmax.f32 %v160, 0.0
  %v225 = vmax.f32 %v161, 0.0
  %v226 = vmax.f32 %v162, 0.0
  %v227 = vmax.f32 %v163, 0.0
  %v228 = vmax.f32 %v164, 0.0
  %v229 = vmax.f32 %v165, 0.0
  %v230 = vmax.f32 %v166, 0.0
  %v231 = vmax.f32 %v167, 0.0
  %v232 = vmax.f32 %v168, 0.0
  %v233 = vmax.f32 %v169, 0.0
  %v234 = vmax.f32 %v170, 0.0
  %v235 = vmax.f32 %v171, 0.0
  %v236 = vmax.f32 %v172, 0.0
  %v237 = vmax.f32 %v173, 0.0
  %v238 = vmax.f32 %v174, 0.0
  %v239 = vmax.f32 %v175, 0.0
  %v240 = vmax.f32 %v176, 0.0
  %v241 = vmax.f32 %v177, 0.0
  %v242 = vmax.f32 %v178, 0.0
  %v243 = vmax.f32 %v179, 0.0
  %v244 = vmax.f32 %v180, 0.0
  %v245 = vmax.f32 %v181, 0.0
  %v246 = vmax.f32 %v182, 0.0
  %v247 = vmax.f32 %v183, 0.0
  %v248 = vmax.f32 %v184, 0.0
  %v249 = vmax.f32 %v185, 0.0
  %v250 = vmax.f32 %v186, 0.0
  %v251 = vmax.f32 %v187, 0.0
  %v252 = vmax.f32 %v188, 0.0
  %v253 = vmax.f32 %v189, 0.0
  %v254 = vmax.f32 %v190, 0.0
  %v255 = vmax.f32 %v191, 0.0
  %v256 = vmax.f32 %v192, 0.0
  %v257 = vmax.f32 %v193, 0.0
  %v258 = vmax.f32 %v194, 0.0
  %v259 = vmax.f32 %v195, 0.0
  %v260 = vmax.f32 %v196, 0.0
  %v261 = vmax.f32 %v197, 0.0
  %v262 = vmax.f32 %v198, 0.0
  %v263 = vmax.f32 %v199, 0.0
  %v264 = vmax.f32 %v200, 0.0
  %v265 = vmax.f32 %v201, 0.0
  %v266 = vmax.f32 %v202, 0.0
  %v267 = vmax.f32 %v203, 0.0
  %v268 = vmax.f32 %v204, 0.0
  %v269 = vmax.f32 %v205, 0.0
  %v270 = vmax.f32 %v206, 0.0
  %v271 = vmax.f32 %v207, 0.0
  %v272 = vmax.f32 %v208, 0.0
  %v273 = vmax.f32 %v209, 0.0
  %v274 = vmax.f32 %v210, 0.0
  %v275 = vmax.f32 %v211, 0.0
  %v276 = vmax.f32 %v212, 0.0
  %v277 = vmax.f32 %v213, 0.0
  %v278 = vmax.f32 %v214, 0.0
  %v279 = vmax.f32 %v215, 0.0
  %v280 = vmax.f32 %v216, 0.0
  %v281 = vmax.f32 %v217, 0.0
  %v282 = vmax.f32 %v218, 0.0
  %v283 = vmax.f32 %v219, 0.0
  %284 = vst [vmem:[%s3] sm:$0xff] %v220
  %285 = vst [vmem:[%s3 + $0x8] sm:$0xff] %v221
  %286 = vst [vmem:[%s3 + $0x10] sm:$0xff] %v222
  %287 = vst [vmem:[%s3 + $0x18] sm:$0xff] %v223
  %288 = vst [vmem:[%s3 + $0x20] sm:$0xff] %v224
  %289 = vst [vmem:[%s3 + $0x28] sm:$0xff] %v225
  %290 = vst [vmem:[%s3 + $0x30] sm:$0xff] %v226
  %291 = vst [vmem:[%s3 + $0x38] sm:$0xff] %v227
  %292 = vst [vmem:[%s3 + $0x40] sm:$0xff] %v228
  %293 = vst [vmem:[%s3 + $0x48] sm:$0xff] %v229
  %294 = vst [vmem:[%s3 + $0x50] sm:$0xff] %v230
  %295 = vst [vmem:[%s3 + $0x58] sm:$0xff] %v231
  %296 = vst [vmem:[%s3 + $0x60] sm:$0xff] %v232
  %297 = vst [vmem:[%s3 + $0x68] sm:$0xff] %v233
  %298 = vst [vmem:[%s3 + $0x70] sm:$0xff] %v234
  %299 = vst [vmem:[%s3 + $0x78] sm:$0xff] %v235
  %300 = vst [vmem:[%s3 + $0x80] sm:$0xff] %v236
  %301 = vst [vmem:[%s3 + $0x88] sm:$0xff] %v237
  %302 = vst [vmem:[%s3 + $0x90] sm:$0xff] %v238
  %303 = vst [vmem:[%s3 + $0x98] sm:$0xff] %v239
  %304 = vst [vmem:[%s3 + $0xa0] sm:$0xff] %v240
  %305 = vst [vmem:[%s3 + $0xa8] sm:$0xff] %v241
  %306 = vst [vmem:[%s3 + $0xb0] sm:$0xff] %v242
  %307 = vst [vmem:[%s3 + $0xb8] sm:$0xff] %v243
  %308 = vst [vmem:[%s3 + $0xc0] sm:$0xff] %v244
  %309 = vst [vmem:[%s3 + $0xc8] sm:$0xff] %v245
  %310 = vst [vmem:[%s3 + $0xd0] sm:$0xff] %v246
  %311 = vst [vmem:[%s3 + $0xd8] sm:$0xff] %v247
  %312 = vst [vmem:[%s3 + $0xe0] sm:$0xff] %v248
  %313 = vst [vmem:[%s3 + $0xe8] sm:$0xff] %v249
  %314 = vst [vmem:[%s3 + $0xf0] sm:$0xff] %v250
  %315 = vst [vmem:[%s3 + $0xf8] sm:$0xff] %v251
  %316 = vst [vmem:[%s3 + $0x100] sm:$0xff] %v252
  %317 = vst [vmem:[%s3 + $0x108] sm:$0xff] %v253
  %318 = vst [vmem:[%s3 + $0x110] sm:$0xff] %v254
  %319 = vst [vmem:[%s3 + $0x118] sm:$0xff] %v255
  %320 = vst [vmem:[%s3 + $0x120] sm:$0xff] %v256
  %321 = vst [vmem:[%s3 + $0x128] sm:$0xff] %v257
  %322 = vst [vmem:[%s3 + $0x130] sm:$0xff] %v258
  %323 = vst [vmem:[%s3 + $0x138] sm:$0xff] %v259
  %324 = vst [vmem:[%s3 + $0x140] sm:$0xff] %v260
  %325 = vst [vmem:[%s3 + $0x148] sm:$0xff] %v261
  %326 = vst [vmem:[%s3 + $0x150] sm:$0xff] %v262
  %327 = vst [vmem:[%s3 + $0x158] sm:$0xff] %v263
  %328 = vst [vmem:[%s3 + $0x160] sm:$0xff] %v264
  %329 = vst [vmem:[%s3 + $0x168] sm:$0xff] %v265
  %330 = vst [vmem:[%s3 + $0x170] sm:$0xff] %v266
  %331 = vst [vmem:[%s3 + $0x178] sm:$0xff] %v267
  %332 = vst [vmem:[%s3 + $0x180] sm:$0xff] %v268
  %333 = vst [vmem:[%s3 + $0x188] sm:$0xff] %v269
  %334 = vst [vmem:[%s3 + $0x190] sm:$0xff] %v270
  %335 = vst [vmem:[%s3 + $0x198] sm:$0xff] %v271
  %336 = vst [vmem:[%s3 + $0x1a0] sm:$0xff] %v272
  %337 = vst [vmem:[%s3 + $0x1a8] sm:$0xff] %v273
  %338 = vst [vmem:[%s3 + $0x1b0] sm:$0xff] %v274
  %339 = vst [vmem:[%s3 + $0x1b8] sm:$0xff] %v275
  %340 = vst [vmem:[%s3 + $0x1c0] sm:$0xff] %v276
  %341 = vst [vmem:[%s3 + $0x1c8] sm:$0xff] %v277
  %342 = vst [vmem:[%s3 + $0x1d0] sm:$0xff] %v278
  %343 = vst [vmem:[%s3 + $0x1d8] sm:$0xff] %v279
  %344 = vst [vmem:[%s3 + $0x1e0] sm:$0xff] %v280
  %345 = vst [vmem:[%s3 + $0x1e8] sm:$0xff] %v281
  %346 = vst [vmem:[%s3 + $0x1f0] sm:$0xff] %v282
  %347 = vst [vmem:[%s3 + $0x1f8] sm:$0xff] %v283
  // Predicated region
  $region14: #{decoder_block_forward.7} parent=0 // pred_check
    _
  $region15: #{decoder_block_forward.7} parent=0 // pred_check_branch
    %349 = sbr.rel (0) target = $region17
  $region16: #{decoder_block_forward.7} parent=0 // pred_region
    _
  $region17: #{decoder_block_forward.7} parent=0 // pred_fallthru
    _
  // Predicated region
  $region18: #{decoder_block_forward.7} parent=0 // pred_check
    _
  $region19: #{decoder_block_forward.7} parent=0 // pred_check_branch
    %351 = sbr.rel (0) target = $region21
  $region20: #{decoder_block_forward.7} parent=0 // pred_region
    _
  $region21: #{decoder_block_forward.7} parent=0 // pred_fallthru
    _

// kernel: decoder_block_forward.6
$region0: #{decoder_block_forward.6}
  #allocation0 [shape = 'u32[]', space=smem, size = 0x4, offset = 0x4, fixed_abs, tag = 'smem constant byte address 0x4 - core index']
  #allocation1 [shape = 'u32[144,128]{1,0:T(1,128)}', space=vmem, size = 0x12000, scoped, tag = 'internal scratch']
  %s0 = inlined_call_operand.vmem [shape: f32[2,1,18,18,128], index: 0, kind: input, shape index: {}]
  %s1 = inlined_call_operand.vmem [shape: f32[1,128], index: 1, kind: input, shape index: {}]
  %s2 = inlined_call_operand.vmem [shape: f32[1,128], index: 2, kind: input, shape index: {}]
  %s3 = inlined_call_operand.vmem [shape: bf16[1152,128], index: 3, kind: input, shape index: {}]
  %s4 = inlined_call_operand.vmem [shape: f32[2,16,16,128], index: 4, kind: output, shape index: {0}]
  %s5 = inlined_call_operand.vmem [shape: f32[2,1,2,128], index: 5, kind: output, shape index: {1}]
  %6 = xla_tuple %s4, %s5
  %s7 = sld [smem:[#allocation0]]
  $region57: #{decoder_block_forward.6} parent=0
    _
  %s9 = ssub.s32 1, %s7
  %s10 = scalar_select 0, %s9, %s7
  loop: start=0, step=1, limit=4
  $region2: #{decoder_block_forward.6} parent=0 // loop_pre_header
    _
  $region3: #{decoder_block_forward.6} parent=0 // loop_header
    %s12 = sphi 0, %s16
    %p13 = scmp.ge.s32.totalorder %s12, 4
    %s19 = sphi 0, %s31
    %s20 = sphi 0, %s27
    %s21 = sphi 0, %s19
    %s22 = sphi 0, %s20
    %s23 = sphi 0, %s21
    %s24 = sphi 0, %s22
    %s36 = sphi 0, %s38
    %s39 = sphi 0, %s36
    %s40 = sphi 0, %s39
    %s56 = sphi 0, %s40
    %s60 = sphi 0, %s60
    %s62 = sphi 0, %s60
    %s63 = sphi 0, %s62
    %s77 = sphi 0, %s63
    %s81 = sphi 0, %s81
    %s83 = sphi 0, %s81
    %s84 = sphi 0, %s83
    %s98 = sphi 0, %s84
    %s102 = sphi 0, %s102
    %s104 = sphi 0, %s102
    %s105 = sphi 0, %s104
    %s119 = sphi 0, %s105
    %s127 = sphi 0, %s129
    %s130 = sphi 0, %s127
    %s131 = sphi 0, %s130
    %s147 = sphi 0, %s131
    %s155 = sphi 0, %s157
    %s158 = sphi 0, %s155
    %s159 = sphi 0, %s158
    %s175 = sphi 0, %s159
  $region4: #{decoder_block_forward.6} parent=0 // loop_header_branch
    %15 = sbr.rel (%p13) target = $region8
  $region5: #{decoder_block_forward.6} parent=0 // loop_body
    %s17 = ssub.s32 %s12, 1
    %s18 = ssub.s32 %s12, 2
    %s25 = sadd.s32 1, %s20
    %p26 = scmp.ge.s32.totalorder %s25, 1
    %s27 = scalar_select %p26, 0, %s25
    %s28 = sadd.s32 1, %s19
    %s29 = scalar_select %p26, %s28, %s19
    %p30 = scmp.ge.s32.totalorder %s29, 2
    %s31 = scalar_select %p30, 0, %s29
    %s32 = ssub.s32 %s19, %s31
    %s33 = ssub.s32 %s20, %s27
    %s34 = sor.u32 %s32, %s33
    %p35 = scmp.eq.s32.totalorder %s34, 0
    %s37 = sadd.s32 %s36, 1
    %s38 = scalar_select %p35, %s36, %s37
    %p41 = pneg %p35
    %p42 = scmp.eq.s32.totalorder %s12, 1
    %p43 = por %p41, %p42
    %p44 = scmp.ne.s32.totalorder %s36, %s39
    %p45 = scmp.eq.s32.totalorder %s12, 0
    %p46 = por %p44, %p45
    %p47 = scmp.ne.s32.totalorder %s36, %s39
    %p48 = scmp.eq.s32.totalorder %s17, 1
    %p49 = por %p47, %p48
    %p50 = scmp.ne.s32.totalorder %s39, %s40
    %p51 = scmp.eq.s32.totalorder %s17, 0
    %p52 = por %p50, %p51
    %p53 = scmp.ne.s32.totalorder %s39, %s40
    %p54 = scmp.eq.s32.totalorder %s18, 1
    %p55 = por %p53, %p54
    %p57 = scmp.ne.s32.totalorder %s40, %s56
    %p58 = scmp.eq.s32.totalorder %s18, 0
    %p59 = por %p57, %p58
    %s61 = sadd.s32 %s60, 1
    %p64 = scmp.eq.s32.totalorder %s12, 1
    %p65 = scmp.ne.s32.totalorder %s60, %s62
    %p66 = scmp.eq.s32.totalorder %s12, 0
    %p67 = por %p65, %p66
    %p68 = scmp.ne.s32.totalorder %s60, %s62
    %p69 = scmp.eq.s32.totalorder %s17, 1
    %p70 = por %p68, %p69
    %p71 = scmp.ne.s32.totalorder %s62, %s63
    %p72 = scmp.eq.s32.totalorder %s17, 0
    %p73 = por %p71, %p72
    %p74 = scmp.ne.s32.totalorder %s62, %s63
    %p75 = scmp.eq.s32.totalorder %s18, 1
    %p76 = por %p74, %p75
    %p78 = scmp.ne.s32.totalorder %s63, %s77
    %p79 = scmp.eq.s32.totalorder %s18, 0
    %p80 = por %p78, %p79
    %s82 = sadd.s32 %s81, 1
    %p85 = scmp.eq.s32.totalorder %s12, 1
    %p86 = scmp.ne.s32.totalorder %s81, %s83
    %p87 = scmp.eq.s32.totalorder %s12, 0
    %p88 = por %p86, %p87
    %p89 = scmp.ne.s32.totalorder %s81, %s83
    %p90 = scmp.eq.s32.totalorder %s17, 1
    %p91 = por %p89, %p90
    %p92 = scmp.ne.s32.totalorder %s83, %s84
    %p93 = scmp.eq.s32.totalorder %s17, 0
    %p94 = por %p92, %p93
    %p95 = scmp.ne.s32.totalorder %s83, %s84
    %p96 = scmp.eq.s32.totalorder %s18, 1
    %p97 = por %p95, %p96
    %p99 = scmp.ne.s32.totalorder %s84, %s98
    %p100 = scmp.eq.s32.totalorder %s18, 0
    %p101 = por %p99, %p100
    %s103 = sadd.s32 %s102, 1
    %p106 = scmp.eq.s32.totalorder %s12, 1
    %p107 = scmp.ne.s32.totalorder %s102, %s104
    %p108 = scmp.eq.s32.totalorder %s12, 0
    %p109 = por %p107, %p108
    %p110 = scmp.ne.s32.totalorder %s102, %s104
    %p111 = scmp.eq.s32.totalorder %s17, 1
    %p112 = por %p110, %p111
    %p113 = scmp.ne.s32.totalorder %s104, %s105
    %p114 = scmp.eq.s32.totalorder %s17, 0
    %p115 = por %p113, %p114
    %p116 = scmp.ne.s32.totalorder %s104, %s105
    %p117 = scmp.eq.s32.totalorder %s18, 1
    %p118 = por %p116, %p117
    %p120 = scmp.ne.s32.totalorder %s105, %s119
    %p121 = scmp.eq.s32.totalorder %s18, 0
    %p122 = por %p120, %p121
    %s123 = ssub.s32 %s19, %s31
    %s124 = ssub.s32 %s20, %s27
    %s125 = sor.u32 %s123, %s124
    %p126 = scmp.eq.s32.totalorder %s125, 0
    %s128 = sadd.s32 %s127, 1
    %s129 = scalar_select %p126, %s127, %s128
    %p132 = pneg %p126
    %p133 = scmp.eq.s32.totalorder %s12, 1
    %p134 = por %p132, %p133
    %p135 = scmp.ne.s32.totalorder %s127, %s130
    %p136 = scmp.eq.s32.totalorder %s12, 0
    %p137 = por %p135, %p136
    %p138 = scmp.ne.s32.totalorder %s127, %s130
    %p139 = scmp.eq.s32.totalorder %s17, 1
    %p140 = por %p138, %p139
    %p141 = scmp.ne.s32.totalorder %s130, %s131
    %p142 = scmp.eq.s32.totalorder %s17, 0
    %p143 = por %p141, %p142
    %p144 = scmp.ne.s32.totalorder %s130, %s131
    %p145 = scmp.eq.s32.totalorder %s18, 1
    %p146 = por %p144, %p145
    %p148 = scmp.ne.s32.totalorder %s131, %s147
    %p149 = scmp.eq.s32.totalorder %s18, 0
    %p150 = por %p148, %p149
    %s151 = ssub.s32 %s19, %s31
    %s152 = ssub.s32 %s20, %s27
    %s153 = sor.u32 %s151, %s152
    %p154 = scmp.eq.s32.totalorder %s153, 0
    %s156 = sadd.s32 %s155, 1
    %s157 = scalar_select %p154, %s155, %s156
    %p160 = pneg %p154
    %p161 = scmp.eq.s32.totalorder %s12, 1
    %p162 = por %p160, %p161
    %p163 = scmp.ne.s32.totalorder %s155, %s158
    %p164 = scmp.eq.s32.totalorder %s12, 0
    %p165 = por %p163, %p164
    %p166 = scmp.ne.s32.totalorder %s155, %s158
    %p167 = scmp.eq.s32.totalorder %s17, 1
    %p168 = por %p166, %p167
    %p169 = scmp.ne.s32.totalorder %s158, %s159
    %p170 = scmp.eq.s32.totalorder %s17, 0
    %p171 = por %p169, %p170
    %p172 = scmp.ne.s32.totalorder %s158, %s159
    %p173 = scmp.eq.s32.totalorder %s18, 1
    %p174 = por %p172, %p173
    %p176 = scmp.ne.s32.totalorder %s159, %s175
    %p177 = scmp.eq.s32.totalorder %s18, 0
    %p178 = por %p176, %p177
    %p179 = scmp.le.s32.totalorder 1, %s12
    %p180 = scmp.lt.s32.totalorder %s12, 3
    %p181 = pnand %p179, %p180
    %p182 = pneg %p181
    // Predicated region
    $region9: #{decoder_block_forward.6} parent=5 // pred_check
      _
    $region10: #{decoder_block_forward.6} parent=5 // pred_check_branch
      %184 = sbr.rel (%p181) target = $region12
    $region11: #{decoder_block_forward.6} parent=5 // pred_region
      %s185 = ssub.s32 %s12, 1
      // Predicated region
      $region13: #{decoder_block_forward.6} parent=11 // pred_check
        %p186 = pneg %p73
      $region14: #{decoder_block_forward.6} parent=11 // pred_check_branch
        %188 = sbr.rel (%p186) target = $region16
      $region15: #{decoder_block_forward.6} parent=11 // pred_region
        _
      $region16: #{decoder_block_forward.6} parent=11 // pred_fallthru
        _
      // Predicated region
      $region17: #{decoder_block_forward.6} parent=11 // pred_check
        %p189 = pneg %p94
      $region18: #{decoder_block_forward.6} parent=11 // pred_check_branch
        %191 = sbr.rel (%p189) target = $region20
      $region19: #{decoder_block_forward.6} parent=11 // pred_region
        _
      $region20: #{decoder_block_forward.6} parent=11 // pred_fallthru
        _
      // Predicated region
      $region21: #{decoder_block_forward.6} parent=11 // pred_check
        %p192 = pneg %p115
      $region22: #{decoder_block_forward.6} parent=11 // pred_check_branch
        %194 = sbr.rel (%p192) target = $region24
      $region23: #{decoder_block_forward.6} parent=11 // pred_region
        _
      $region24: #{decoder_block_forward.6} parent=11 // pred_fallthru
        _
    $region12: #{decoder_block_forward.6} parent=5 // pred_fallthru
      _
    %p195 = scmp.lt.s32.totalorder %s12, 2
    // Predicated region
    $region25: #{decoder_block_forward.6} parent=5 // pred_check
      %p196 = pneg %p195
    $region26: #{decoder_block_forward.6} parent=5 // pred_check_branch
      %198 = sbr.rel (%p196) target = $region28
    $region27: #{decoder_block_forward.6} parent=5 // pred_region
      // Predicated region
      $region29: #{decoder_block_forward.6} parent=27 // pred_check
        %p199 = pneg %p46
      $region30: #{decoder_block_forward.6} parent=27 // pred_check_branch
        %201 = sbr.rel (%p199) target = $region32
      $region31: #{decoder_block_forward.6} parent=27 // pred_region
        %p202 = scmp.lt.s32.totalorder %s19, 1
        %s203 = scalar_select %p202, %s19, 1
        %p204 = scmp.lt.s32.totalorder %s20, 0
        %s205 = scalar_select %p204, %s20, 0
        %s206 = smul.addr %s205, 54
        %s207 = smul.addr %s203, 54
        %s208 = sadd.s32 %s206, %s207
        %s209 = smul.addr %s208, 8
        %s210 = scalar_lea.vmem %s0, %s209
      $region32: #{decoder_block_forward.6} parent=27 // pred_fallthru
        _
    $region28: #{decoder_block_forward.6} parent=5 // pred_fallthru
      _
    %p211 = scmp.le.s32.totalorder 1, %s12
    %p212 = scmp.lt.s32.totalorder %s12, 3
    %p213 = pnand %p211, %p212
    %p214 = pneg %p213
    // Predicated region
    $region33: #{decoder_block_forward.6} parent=5 // pred_check
      _
    $region34: #{decoder_block_forward.6} parent=5 // pred_check_branch
      %216 = sbr.rel (%p213) target = $region36
    $region35: #{decoder_block_forward.6} parent=5 // pred_region
      %s217 = ssub.s32 %s12, 1
      %p218 = scmp.lt.s32.totalorder %s21, 1
      %s219 = scalar_select %p218, %s21, 1
      %p220 = scmp.lt.s32.totalorder %s22, 0
      %s221 = scalar_select %p220, %s22, 0
      %s222 = smul.addr %s221, 54
      %s223 = smul.addr %s219, 54
      %s224 = sadd.s32 %s222, %s223
      %s225 = smul.addr %s224, 8
      %s226 = scalar_lea.vmem %s0, %s225
      %p227 = pneg %p52
      %p228 = pneg %p49
      %p229 = pneg %p73
      %p230 = pneg %p70
      %p231 = pneg %p94
      %p232 = pneg %p91
      %p233 = pneg %p115
      %p234 = pneg %p112
      %p235 = pneg %p143
      %p236 = pneg %p140
      %s237 = smul.u32 16, %s22
      %p238 = scmp.lt.s32.totalorder %s21, 1
      %s239 = scalar_select %p238, %s21, 1
      %p240 = scmp.lt.s32.totalorder %s237, 15
      %s241 = scalar_select %p240, %s237, 15
      %s242 = smul.addr %s241, 2
      %s243 = smul.addr %s239, 32
      %s244 = sadd.s32 %s242, %s243
      %s245 = smul.addr %s244, 8
      %s246 = scalar_lea.vmem %s4, %s245
      %p247 = pneg %p171
      %p248 = pneg %p168
      %p249 = scmp.lt.s32.totalorder %s21, 1
      %s250 = scalar_select %p249, %s21, 1
      %p251 = scmp.lt.s32.totalorder %s22, 0
      %s252 = scalar_select %p251, %s22, 0
      %s253 = sadd.s32 %s252, %s250
      %s254 = smul.addr %s253, 2
      %s255 = scalar_lea.vmem %s5, %s254
      %p256 = scmp.lt.s32.totalorder %s21, 1
      %s257 = scalar_select %p256, %s21, 1
      %p258 = scmp.lt.s32.totalorder %s22, 0
      %s259 = scalar_select %p258, %s22, 0
      %s260 = smul.addr %s259, 54
      %s261 = smul.addr %s257, 54
      %s262 = sadd.s32 %s260, %s261
      %s263 = smul.addr %s262, 8
      %s264 = scalar_lea.vmem %s0, %s263
      %s265 = smul.u32 16, %s22
      %p266 = scmp.lt.s32.totalorder %s21, 1
      %s267 = scalar_select %p266, %s21, 1
      %p268 = scmp.lt.s32.totalorder %s265, 15
      %s269 = scalar_select %p268, %s265, 15
      %s270 = smul.addr %s269, 2
      %s271 = smul.addr %s267, 32
      %s272 = sadd.s32 %s270, %s271
      %s273 = smul.addr %s272, 8
      %s274 = scalar_lea.vmem %s4, %s273
      %s275 = smul.u32 16, %s22
      %p276 = scmp.lt.s32.totalorder %s21, 1
      %s277 = scalar_select %p276, %s21, 1
      %p278 = scmp.lt.s32.totalorder %s22, 0
      %s279 = scalar_select %p278, %s22, 0
      %s280 = sadd.s32 %s279, %s277
      %s281 = smul.addr %s280, 2
      %s282 = scalar_lea.vmem %s5, %s281
      %v284 = vld [vmem:[%s264] sm:$0xff]
      %v285 = vld [vmem:[%s264 + $0x8] sm:$0xff]
      %v286 = vld [vmem:[%s264 + $0x10] sm:$0x3]
      %v287 = vld [vmem:[%s264 + $0x18] sm:$0xff]
      %v288 = vld [vmem:[%s264 + $0x20] sm:$0xff]
      %v289 = vld [vmem:[%s264 + $0x28] sm:$0x3]
      %v290 = vld [vmem:[%s264 + $0x30] sm:$0xff]
      %v291 = vld [vmem:[%s264 + $0x38] sm:$0xff]
      %v292 = vld [vmem:[%s264 + $0x40] sm:$0x3]
      %v293 = vld [vmem:[%s264 + $0x48] sm:$0xff]
      %v294 = vld [vmem:[%s264 + $0x50] sm:$0xff]
      %v295 = vld [vmem:[%s264 + $0x58] sm:$0x3]
      %v296 = vld [vmem:[%s264 + $0x60] sm:$0xff]
      %v297 = vld [vmem:[%s264 + $0x68] sm:$0xff]
      %v298 = vld [vmem:[%s264 + $0x70] sm:$0x3]
      %v299 = vld [vmem:[%s264 + $0x78] sm:$0xff]
      %v300 = vld [vmem:[%s264 + $0x80] sm:$0xff]
      %v301 = vld [vmem:[%s264 + $0x88] sm:$0x3]
      %v302 = vld [vmem:[%s264 + $0x90] sm:$0xff]
      %v303 = vld [vmem:[%s264 + $0x98] sm:$0xff]
      %v304 = vld [vmem:[%s264 + $0xa0] sm:$0x3]
      %v305 = vld [vmem:[%s264 + $0xa8] sm:$0xff]
      %v306 = vld [vmem:[%s264 + $0xb0] sm:$0xff]
      %v307 = vld [vmem:[%s264 + $0xb8] sm:$0x3]
      %v308 = vld [vmem:[%s264 + $0xc0] sm:$0xff]
      %v309 = vld [vmem:[%s264 + $0xc8] sm:$0xff]
      %v310 = vld [vmem:[%s264 + $0xd0] sm:$0x3]
      %v311 = vld [vmem:[%s264 + $0xd8] sm:$0xff]
      %v312 = vld [vmem:[%s264 + $0xe0] sm:$0xff]
      %v313 = vld [vmem:[%s264 + $0xe8] sm:$0x3]
      %v314 = vld [vmem:[%s264 + $0xf0] sm:$0xff]
      %v315 = vld [vmem:[%s264 + $0xf8] sm:$0xff]
      %v316 = vld [vmem:[%s264 + $0x100] sm:$0x3]
      %v317 = vld [vmem:[%s264 + $0x108] sm:$0xff]
      %v318 = vld [vmem:[%s264 + $0x110] sm:$0xff]
      %v319 = vld [vmem:[%s264 + $0x118] sm:$0x3]
      %v320 = vld [vmem:[%s264 + $0x120] sm:$0xff]
      %v321 = vld [vmem:[%s264 + $0x128] sm:$0xff]
      %v322 = vld [vmem:[%s264 + $0x130] sm:$0x3]
      %v323 = vld [vmem:[%s264 + $0x138] sm:$0xff]
      %v324 = vld [vmem:[%s264 + $0x140] sm:$0xff]
      %v325 = vld [vmem:[%s264 + $0x148] sm:$0x3]
      %v326 = vld [vmem:[%s264 + $0x150] sm:$0xff]
      %v327 = vld [vmem:[%s264 + $0x158] sm:$0xff]
      %v328 = vld [vmem:[%s264 + $0x160] sm:$0x3]
      %v329 = vld [vmem:[%s264 + $0x168] sm:$0xff]
      %v330 = vld [vmem:[%s264 + $0x170] sm:$0xff]
      %v331 = vld [vmem:[%s264 + $0x178] sm:$0x3]
      %v332 = vld [vmem:[%s264 + $0x180] sm:$0xff]
      %v333 = vld [vmem:[%s264 + $0x188] sm:$0xff]
      %v334 = vld [vmem:[%s264 + $0x190] sm:$0x3]
      %v335 = vld [vmem:[%s264 + $0x198] sm:$0xff]
      %v336 = vld [vmem:[%s264 + $0x1a0] sm:$0xff]
      %v337 = vld [vmem:[%s264 + $0x1a8] sm:$0x3]
      %v338 = vld [vmem:[%s1] sm:$0x1]
      %v340 = vlaneseq
      %v341 = vshrl.u32 %v340, 7
      %v342 = vsub.s32 0, %v341
      %v343 = vrot.slane %v338, %v342
      %v345 = vmul.f32 %v284, %v343
      %v346 = vmul.f32 %v285, %v343
      %v347 = vmul.f32 %v286, %v343
      %v348 = vmul.f32 %v287, %v343
      %v349 = vmul.f32 %v288, %v343
      %v350 = vmul.f32 %v289, %v343
      %v351 = vmul.f32 %v290, %v343
      %v352 = vmul.f32 %v291, %v343
      %v353 = vmul.f32 %v292, %v343
      %v354 = vmul.f32 %v293, %v343
      %v355 = vmul.f32 %v294, %v343
      %v356 = vmul.f32 %v295, %v343
      %v357 = vmul.f32 %v296, %v343
      %v358 = vmul.f32 %v297, %v343
      %v359 = vmul.f32 %v298, %v343
      %v360 = vmul.f32 %v299, %v343
      %v361 = vmul.f32 %v300, %v343
      %v362 = vmul.f32 %v301, %v343
      %v363 = vmul.f32 %v302, %v343
      %v364 = vmul.f32 %v303, %v343
      %v365 = vmul.f32 %v304, %v343
      %v366 = vmul.f32 %v305, %v343
      %v367 = vmul.f32 %v306, %v343
      %v368 = vmul.f32 %v307, %v343
      %v369 = vmul.f32 %v308, %v343
      %v370 = vmul.f32 %v309, %v343
      %v371 = vmul.f32 %v310, %v343
      %v372 = vmul.f32 %v311, %v343
      %v373 = vmul.f32 %v312, %v343
      %v374 = vmul.f32 %v313, %v343
      %v375 = vmul.f32 %v314, %v343
      %v376 = vmul.f32 %v315, %v343
      %v377 = vmul.f32 %v316, %v343
      %v378 = vmul.f32 %v317, %v343
      %v379 = vmul.f32 %v318, %v343
      %v380 = vmul.f32 %v319, %v343
      %v381 = vmul.f32 %v320, %v343
      %v382 = vmul.f32 %v321, %v343
      %v383 = vmul.f32 %v322, %v343
      %v384 = vmul.f32 %v323, %v343
      %v385 = vmul.f32 %v324, %v343
      %v386 = vmul.f32 %v325, %v343
      %v387 = vmul.f32 %v326, %v343
      %v388 = vmul.f32 %v327, %v343
      %v389 = vmul.f32 %v328, %v343
      %v390 = vmul.f32 %v329, %v343
      %v391 = vmul.f32 %v330, %v343
      %v392 = vmul.f32 %v331, %v343
      %v393 = vmul.f32 %v332, %v343
      %v394 = vmul.f32 %v333, %v343
      %v395 = vmul.f32 %v334, %v343
      %v396 = vmul.f32 %v335, %v343
      %v397 = vmul.f32 %v336, %v343
      %v398 = vmul.f32 %v337, %v343
      %v399 = vld [vmem:[%s2] sm:$0x1]
      %v401 = vlaneseq
      %v402 = vshrl.u32 %v401, 7
      %v403 = vsub.s32 0, %v402
      %v404 = vrot.slane %v399, %v403
      %v406 = vadd.f32 %v345, %v404
      %v407 = vadd.f32 %v346, %v404
      %v408 = vadd.f32 %v347, %v404
      %v409 = vadd.f32 %v348, %v404
      %v410 = vadd.f32 %v349, %v404
      %v411 = vadd.f32 %v350, %v404
      %v412 = vadd.f32 %v351, %v404
      %v413 = vadd.f32 %v352, %v404
      %v414 = vadd.f32 %v353, %v404
      %v415 = vadd.f32 %v354, %v404
      %v416 = vadd.f32 %v355, %v404
      %v417 = vadd.f32 %v356, %v404
      %v418 = vadd.f32 %v357, %v404
      %v419 = vadd.f32 %v358, %v404
      %v420 = vadd.f32 %v359, %v404
      %v421 = vadd.f32 %v360, %v404
      %v422 = vadd.f32 %v361, %v404
      %v423 = vadd.f32 %v362, %v404
      %v424 = vadd.f32 %v363, %v404
      %v425 = vadd.f32 %v364, %v404
      %v426 = vadd.f32 %v365, %v404
      %v427 = vadd.f32 %v366, %v404
      %v428 = vadd.f32 %v367, %v404
      %v429 = vadd.f32 %v368, %v404
      %v430 = vadd.f32 %v369, %v404
      %v431 = vadd.f32 %v370, %v404
      %v432 = vadd.f32 %v371, %v404
      %v433 = vadd.f32 %v372, %v404
      %v434 = vadd.f32 %v373, %v404
      %v435 = vadd.f32 %v374, %v404
      %v436 = vadd.f32 %v375, %v404
      %v437 = vadd.f32 %v376, %v404
      %v438 = vadd.f32 %v377, %v404
      %v439 = vadd.f32 %v378, %v404
      %v440 = vadd.f32 %v379, %v404
      %v441 = vadd.f32 %v380, %v404
      %v442 = vadd.f32 %v381, %v404
      %v443 = vadd.f32 %v382, %v404
      %v444 = vadd.f32 %v383, %v404
      %v445 = vadd.f32 %v384, %v404
      %v446 = vadd.f32 %v385, %v404
      %v447 = vadd.f32 %v386, %v404
      %v448 = vadd.f32 %v387, %v404
      %v449 = vadd.f32 %v388, %v404
      %v450 = vadd.f32 %v389, %v404
      %v451 = vadd.f32 %v390, %v404
      %v452 = vadd.f32 %v391, %v404
      %v453 = vadd.f32 %v392, %v404
      %v454 = vadd.f32 %v393, %v404
      %v455 = vadd.f32 %v394, %v404
      %v456 = vadd.f32 %v395, %v404
      %v457 = vadd.f32 %v396, %v404
      %v458 = vadd.f32 %v397, %v404
      %v459 = vadd.f32 %v398, %v404
      %v460 = vmax.f32 %v406, 0.0
      %v461 = vmax.f32 %v407, 0.0
      %v462 = vmax.f32 %v408, 0.0
      %v463 = vmax.f32 %v409, 0.0
      %v464 = vmax.f32 %v410, 0.0
      %v465 = vmax.f32 %v411, 0.0
      %v466 = vmax.f32 %v412, 0.0
      %v467 = vmax.f32 %v413, 0.0
      %v468 = vmax.f32 %v414, 0.0
      %v469 = vmax.f32 %v415, 0.0
      %v470 = vmax.f32 %v416, 0.0
      %v471 = vmax.f32 %v417, 0.0
      %v472 = vmax.f32 %v418, 0.0
      %v473 = vmax.f32 %v419, 0.0
      %v474 = vmax.f32 %v420, 0.0
      %v475 = vmax.f32 %v421, 0.0
      %v476 = vmax.f32 %v422, 0.0
      %v477 = vmax.f32 %v423, 0.0
      %v478 = vmax.f32 %v424, 0.0
      %v479 = vmax.f32 %v425, 0.0
      %v480 = vmax.f32 %v426, 0.0
      %v481 = vmax.f32 %v427, 0.0
      %v482 = vmax.f32 %v428, 0.0
      %v483 = vmax.f32 %v429, 0.0
      %v484 = vmax.f32 %v430, 0.0
      %v485 = vmax.f32 %v431, 0.0
      %v486 = vmax.f32 %v432, 0.0
      %v487 = vmax.f32 %v433, 0.0
      %v488 = vmax.f32 %v434, 0.0
      %v489 = vmax.f32 %v435, 0.0
      %v490 = vmax.f32 %v436, 0.0
      %v491 = vmax.f32 %v437, 0.0
      %v492 = vmax.f32 %v438, 0.0
      %v493 = vmax.f32 %v439, 0.0
      %v494 = vmax.f32 %v440, 0.0
      %v495 = vmax.f32 %v441, 0.0
      %v496 = vmax.f32 %v442, 0.0
      %v497 = vmax.f32 %v443, 0.0
      %v498 = vmax.f32 %v444, 0.0
      %v499 = vmax.f32 %v445, 0.0
      %v500 = vmax.f32 %v446, 0.0
      %v501 = vmax.f32 %v447, 0.0
      %v502 = vmax.f32 %v448, 0.0
      %v503 = vmax.f32 %v449, 0.0
      %v504 = vmax.f32 %v450, 0.0
      %v505 = vmax.f32 %v451, 0.0
      %v506 = vmax.f32 %v452, 0.0
      %v507 = vmax.f32 %v453, 0.0
      %v508 = vmax.f32 %v454, 0.0
      %v509 = vmax.f32 %v455, 0.0
      %v510 = vmax.f32 %v456, 0.0
      %v511 = vmax.f32 %v457, 0.0
      %v512 = vmax.f32 %v458, 0.0
      %v513 = vmax.f32 %v459, 0.0
      %v514 = vlaneseq
      %v515 = vshrl.u32 %v514, 7
      %v516 = vadd.s32 %v515, 8
      %v517 = vadd.s32 %v515, 16
      %p518 = scmp.eq.s32.totalorder %s22, 0
      %s519 = scalar_select %p518, 1, 0
      %v520 = vstv %s519
      %vm521 = vcmp.eq.s32.totalorder %v520, 1
      %vm522 = vcmp.eq.s32.totalorder %v515, 0
      %vm523 = vcmp.eq.s32.totalorder %v516, 0
      %vm524 = vcmp.eq.s32.totalorder %v517, 0
      %vm525 = vmor %vm521, %vm522
      %vm526 = vmor %vm521, %vm523
      %vm527 = vmor %vm521, %vm524
      %vm528 = vmor 0, %vm522
      %vm529 = vmor 0, %vm523
      %vm530 = vmor 0, %vm524
      %vm531 = vcmp.eq.s32.totalorder %v515, 17
      %vm532 = vcmp.eq.s32.totalorder %v516, 17
      %vm533 = vcmp.eq.s32.totalorder %v517, 17
      %vm534 = vmor %vm525, %vm531
      %vm535 = vmor %vm526, %vm532
      %vm536 = vmor %vm527, %vm533
      %vm537 = vmor %vm528, %vm531
      %vm538 = vmor %vm529, %vm532
      %vm539 = vmor %vm530, %vm533
      %v540 = vsel %vm534, 1, 0
      %v541 = vsel %vm535, 1, 0
      %v542 = vsel %vm536, 1, 0
      %v543 = vsel %vm537, 1, 0
      %v544 = vsel %vm538, 1, 0
      %v545 = vsel %vm539, 1, 0
      %vm546 = vcmp.eq.s32.totalorder %v540, 1
      %vm547 = vcmp.eq.s32.totalorder %v541, 1
      %vm548 = vcmp.eq.s32.totalorder %v542, 1
      %vm549 = vcmp.eq.s32.totalorder %v543, 1
      %vm550 = vcmp.eq.s32.totalorder %v544, 1
      %vm551 = vcmp.eq.s32.totalorder %v545, 1
      %v552 = vsel %vm546, 0.0, %v460
      %v553 = vsel %vm547, 0.0, %v461
      %v554 = vsel %vm548, 0.0, %v462
      %v555 = vsel %vm549, 0.0, %v463
      %v556 = vsel %vm550, 0.0, %v464
      %v557 = vsel %vm551, 0.0, %v465
      %v558 = vsel %vm549, 0.0, %v466
      %v559 = vsel %vm550, 0.0, %v467
      %v560 = vsel %vm551, 0.0, %v468
      %v561 = vsel %vm549, 0.0, %v469
      %v562 = vsel %vm550, 0.0, %v470
      %v563 = vsel %vm551, 0.0, %v471
      %v564 = vsel %vm549, 0.0, %v472
      %v565 = vsel %vm550, 0.0, %v473
      %v566 = vsel %vm551, 0.0, %v474
      %v567 = vsel %vm549, 0.0, %v475
      %v568 = vsel %vm550, 0.0, %v476
      %v569 = vsel %vm551, 0.0, %v477
      %v570 = vsel %vm549, 0.0, %v478
      %v571 = vsel %vm550, 0.0, %v479
      %v572 = vsel %vm551, 0.0, %v480
      %v573 = vsel %vm549, 0.0, %v481
      %v574 = vsel %vm550, 0.0, %v482
      %v575 = vsel %vm551, 0.0, %v483
      %v576 = vsel %vm549, 0.0, %v484
      %v577 = vsel %vm550, 0.0, %v485
      %v578 = vsel %vm551, 0.0, %v486
      %v579 = vsel %vm549, 0.0, %v487
      %v580 = vsel %vm550, 0.0, %v488
      %v581 = vsel %vm551, 0.0, %v489
      %v582 = vsel %vm549, 0.0, %v490
      %v583 = vsel %vm550, 0.0, %v491
      %v584 = vsel %vm551, 0.0, %v492
      %v585 = vsel %vm549, 0.0, %v493
      %v586 = vsel %vm550, 0.0, %v494
      %v587 = vsel %vm551, 0.0, %v495
      %v588 = vsel %vm549, 0.0, %v496
      %v589 = vsel %vm550, 0.0, %v497
      %v590 = vsel %vm551, 0.0, %v498
      %v591 = vsel %vm549, 0.0, %v499
      %v592 = vsel %vm550, 0.0, %v500
      %v593 = vsel %vm551, 0.0, %v501
      %v594 = vsel %vm549, 0.0, %v502
      %v595 = vsel %vm550, 0.0, %v503
      %v596 = vsel %vm551, 0.0, %v504
      %v597 = vsel %vm549, 0.0, %v505
      %v598 = vsel %vm550, 0.0, %v506
      %v599 = vsel %vm551, 0.0, %v507
      %v600 = vsel %vm549, 0.0, %v508
      %v601 = vsel %vm550, 0.0, %v509
      %v602 = vsel %vm551, 0.0, %v510
      %v603 = vsel %vm546, 0.0, %v511
      %v604 = vsel %vm547, 0.0, %v512
      %v605 = vsel %vm548, 0.0, %v513
      %v606 = vpack.c.bf16 %v553, %v552
      %v607 = vpack.c.bf16 %v554, %v554
      %v608 = vpack.c.bf16 %v556, %v555
      %v609 = vpack.c.bf16 %v557, %v557
      %v610 = vpack.c.bf16 %v559, %v558
      %v611 = vpack.c.bf16 %v560, %v560
      %v612 = vpack.c.bf16 %v562, %v561
      %v613 = vpack.c.bf16 %v563, %v563
      %v614 = vpack.c.bf16 %v565, %v564
      %v615 = vpack.c.bf16 %v566, %v566
      %v616 = vpack.c.bf16 %v568, %v567
      %v617 = vpack.c.bf16 %v569, %v569
      %v618 = vpack.c.bf16 %v571, %v570
      %v619 = vpack.c.bf16 %v572, %v572
      %v620 = vpack.c.bf16 %v574, %v573
      %v621 = vpack.c.bf16 %v575, %v575
      %v622 = vpack.c.bf16 %v577, %v576
      %v623 = vpack.c.bf16 %v578, %v578
      %v624 = vpack.c.bf16 %v580, %v579
      %v625 = vpack.c.bf16 %v581, %v581
      %v626 = vpack.c.bf16 %v583, %v582
      %v627 = vpack.c.bf16 %v584, %v584
      %v628 = vpack.c.bf16 %v586, %v585
      %v629 = vpack.c.bf16 %v587, %v587
      %v630 = vpack.c.bf16 %v589, %v588
      %v631 = vpack.c.bf16 %v590, %v590
      %v632 = vpack.c.bf16 %v592, %v591
      %v633 = vpack.c.bf16 %v593, %v593
      %v634 = vpack.c.bf16 %v595, %v594
      %v635 = vpack.c.bf16 %v596, %v596
      %v636 = vpack.c.bf16 %v598, %v597
      %v637 = vpack.c.bf16 %v599, %v599
      %v638 = vpack.c.bf16 %v601, %v600
      %v639 = vpack.c.bf16 %v602, %v602
      %v640 = vpack.c.bf16 %v604, %v603
      %v641 = vpack.c.bf16 %v605, %v605
      %vm642 = vsmask.f32 7424
      %v644 = vshrl.u32 %v606, 16
      %v646 = vshll.u32 %v606, 16
      %v648 = vrot.slane %v646, 1
      %v649 = vor.u32 %v644, %v648
      %v651 = vshll.u32 %v607, 16
      %v653 = vrot.slane %v651, 1
      %v654 = vsel %vm642, %v649, %v653
      %v656 = vshrl.u32 %v608, 16
      %v658 = vshll.u32 %v608, 16
      %v660 = vrot.slane %v658, 1
      %v661 = vor.u32 %v656, %v660
      %v663 = vshll.u32 %v609, 16
      %v665 = vrot.slane %v663, 1
      %v666 = vsel %vm642, %v661, %v665
      %v668 = vshrl.u32 %v610, 16
      %v670 = vshll.u32 %v610, 16
      %v672 = vrot.slane %v670, 1
      %v673 = vor.u32 %v668, %v672
      %v675 = vshll.u32 %v611, 16
      %v677 = vrot.slane %v675, 1
      %v678 = vsel %vm642, %v673, %v677
      %v680 = vshrl.u32 %v612, 16
      %v682 = vshll.u32 %v612, 16
      %v684 = vrot.slane %v682, 1
      %v685 = vor.u32 %v680, %v684
      %v687 = vshll.u32 %v613, 16
      %v689 = vrot.slane %v687, 1
      %v690 = vsel %vm642, %v685, %v689
      %v692 = vshrl.u32 %v614, 16
      %v694 = vshll.u32 %v614, 16
      %v696 = vrot.slane %v694, 1
      %v697 = vor.u32 %v692, %v696
      %v699 = vshll.u32 %v615, 16
      %v701 = vrot.slane %v699, 1
      %v702 = vsel %vm642, %v697, %v701
      %v704 = vshrl.u32 %v616, 16
      %v706 = vshll.u32 %v616, 16
      %v708 = vrot.slane %v706, 1
      %v709 = vor.u32 %v704, %v708
      %v711 = vshll.u32 %v617, 16
      %v713 = vrot.slane %v711, 1
      %v714 = vsel %vm642, %v709, %v713
      %v716 = vshrl.u32 %v618, 16
      %v718 = vshll.u32 %v618, 16
      %v720 = vrot.slane %v718, 1
      %v721 = vor.u32 %v716, %v720
      %v723 = vshll.u32 %v619, 16
      %v725 = vrot.slane %v723, 1
      %v726 = vsel %vm642, %v721, %v725
      %v728 = vshrl.u32 %v620, 16
      %v730 = vshll.u32 %v620, 16
      %v732 = vrot.slane %v730, 1
      %v733 = vor.u32 %v728, %v732
      %v735 = vshll.u32 %v621, 16
      %v737 = vrot.slane %v735, 1
      %v738 = vsel %vm642, %v733, %v737
      %v740 = vshrl.u32 %v622, 16
      %v742 = vshll.u32 %v622, 16
      %v744 = vrot.slane %v742, 1
      %v745 = vor.u32 %v740, %v744
      %v747 = vshll.u32 %v623, 16
      %v749 = vrot.slane %v747, 1
      %v750 = vsel %vm642, %v745, %v749
      %v752 = vshrl.u32 %v624, 16
      %v754 = vshll.u32 %v624, 16
      %v756 = vrot.slane %v754, 1
      %v757 = vor.u32 %v752, %v756
      %v759 = vshll.u32 %v625, 16
      %v761 = vrot.slane %v759, 1
      %v762 = vsel %vm642, %v757, %v761
      %v764 = vshrl.u32 %v626, 16
      %v766 = vshll.u32 %v626, 16
      %v768 = vrot.slane %v766, 1
      %v769 = vor.u32 %v764, %v768
      %v771 = vshll.u32 %v627, 16
      %v773 = vrot.slane %v771, 1
      %v774 = vsel %vm642, %v769, %v773
      %v776 = vshrl.u32 %v628, 16
      %v778 = vshll.u32 %v628, 16
      %v780 = vrot.slane %v778, 1
      %v781 = vor.u32 %v776, %v780
      %v783 = vshll.u32 %v629, 16
      %v785 = vrot.slane %v783, 1
      %v786 = vsel %vm642, %v781, %v785
      %v788 = vshrl.u32 %v630, 16
      %v790 = vshll.u32 %v630, 16
      %v792 = vrot.slane %v790, 1
      %v793 = vor.u32 %v788, %v792
      %v795 = vshll.u32 %v631, 16
      %v797 = vrot.slane %v795, 1
      %v798 = vsel %vm642, %v793, %v797
      %v800 = vshrl.u32 %v632, 16
      %v802 = vshll.u32 %v632, 16
      %v804 = vrot.slane %v802, 1
      %v805 = vor.u32 %v800, %v804
      %v807 = vshll.u32 %v633, 16
      %v809 = vrot.slane %v807, 1
      %v810 = vsel %vm642, %v805, %v809
      %v812 = vshrl.u32 %v634, 16
      %v814 = vshll.u32 %v634, 16
      %v816 = vrot.slane %v814, 1
      %v817 = vor.u32 %v812, %v816
      %v819 = vshll.u32 %v635, 16
      %v821 = vrot.slane %v819, 1
      %v822 = vsel %vm642, %v817, %v821
      %v824 = vshrl.u32 %v636, 16
      %v826 = vshll.u32 %v636, 16
      %v828 = vrot.slane %v826, 1
      %v829 = vor.u32 %v824, %v828
      %v831 = vshll.u32 %v637, 16
      %v833 = vrot.slane %v831, 1
      %v834 = vsel %vm642, %v829, %v833
      %vm883 = vcmask 1046528
      %v884 = vrot.slane %v606, 1
      %v885 = vrot.slane %v607, 1
      %v886 = vsel %vm883, %v884, %v885
      %v887 = vrot.slane %v608, 1
      %v888 = vrot.slane %v609, 1
      %v889 = vsel %vm883, %v887, %v888
      %v890 = vrot.slane %v610, 1
      %v891 = vrot.slane %v611, 1
      %v892 = vsel %vm883, %v890, %v891
      %v893 = vrot.slane %v612, 1
      %v894 = vrot.slane %v613, 1
      %v895 = vsel %vm883, %v893, %v894
      %v896 = vrot.slane %v614, 1
      %v897 = vrot.slane %v615, 1
      %v898 = vsel %vm883, %v896, %v897
      %v899 = vrot.slane %v616, 1
      %v900 = vrot.slane %v617, 1
      %v901 = vsel %vm883, %v899, %v900
      %v902 = vrot.slane %v618, 1
      %v903 = vrot.slane %v619, 1
      %v904 = vsel %vm883, %v902, %v903
      %v905 = vrot.slane %v620, 1
      %v906 = vrot.slane %v621, 1
      %v907 = vsel %vm883, %v905, %v906
      %v908 = vrot.slane %v622, 1
      %v909 = vrot.slane %v623, 1
      %v910 = vsel %vm883, %v908, %v909
      %v911 = vrot.slane %v624, 1
      %v912 = vrot.slane %v625, 1
      %v913 = vsel %vm883, %v911, %v912
      %v914 = vrot.slane %v626, 1
      %v915 = vrot.slane %v627, 1
      %v916 = vsel %vm883, %v914, %v915
      %v917 = vrot.slane %v628, 1
      %v918 = vrot.slane %v629, 1
      %v919 = vsel %vm883, %v917, %v918
      %v920 = vrot.slane %v630, 1
      %v921 = vrot.slane %v631, 1
      %v922 = vsel %vm883, %v920, %v921
      %v923 = vrot.slane %v632, 1
      %v924 = vrot.slane %v633, 1
      %v925 = vsel %vm883, %v923, %v924
      %v926 = vrot.slane %v634, 1
      %v927 = vrot.slane %v635, 1
      %v928 = vsel %vm883, %v926, %v927
      %v929 = vrot.slane %v636, 1
      %v930 = vrot.slane %v637, 1
      %v931 = vsel %vm883, %v929, %v930
      %v949 = vshrl.u32 %v638, 16
      %v951 = vshll.u32 %v638, 16
      %v953 = vrot.slane %v951, 1
      %v954 = vor.u32 %v949, %v953
      %v956 = vshll.u32 %v639, 16
      %v958 = vrot.slane %v956, 1
      %v959 = vsel %vm642, %v954, %v958
      %v963 = vrot.slane %v638, 1
      %v964 = vrot.slane %v639, 1
      %v965 = vsel %vm883, %v963, %v964
      %v968 = vshrl.u32 %v640, 16
      %v970 = vshll.u32 %v640, 16
      %v972 = vrot.slane %v970, 1
      %v973 = vor.u32 %v968, %v972
      %v975 = vshll.u32 %v641, 16
      %v977 = vrot.slane %v975, 1
      %v978 = vsel %vm642, %v973, %v977
      %v982 = vrot.slane %v640, 1
      %v983 = vrot.slane %v641, 1
      %v984 = vsel %vm883, %v982, %v983
      %v986 = vld [vmem:[%s3] sm:$0xf]
      %v987 = vld [vmem:[%s3 + $0x4] sm:$0xf]
      %v988 = vld [vmem:[%s3 + $0x8] sm:$0xf]
      %v989 = vld [vmem:[%s3 + $0xc] sm:$0xf]
      %v990 = vld [vmem:[%s3 + $0x10] sm:$0xf]
      %v991 = vld [vmem:[%s3 + $0x14] sm:$0xf]
      %v992 = vld [vmem:[%s3 + $0x18] sm:$0xf]
      %v993 = vld [vmem:[%s3 + $0x1c] sm:$0xf]
      %v994 = vld [vmem:[%s3 + $0x20] sm:$0xf]
      %v995 = vld [vmem:[%s3 + $0x24] sm:$0xf]
      %v996 = vld [vmem:[%s3 + $0x28] sm:$0xf]
      %v997 = vld [vmem:[%s3 + $0x2c] sm:$0xf]
      %v998 = vld [vmem:[%s3 + $0x30] sm:$0xf]
      %v999 = vld [vmem:[%s3 + $0x34] sm:$0xf]
      %v1000 = vld [vmem:[%s3 + $0x38] sm:$0xf]
      %v1001 = vld [vmem:[%s3 + $0x3c] sm:$0xf]
      %v1002 = vld [vmem:[%s3 + $0x40] sm:$0xf]
      %v1003 = vld [vmem:[%s3 + $0x44] sm:$0xf]
      %v1004 = vld [vmem:[%s3 + $0x48] sm:$0xf]
      %v1005 = vld [vmem:[%s3 + $0x4c] sm:$0xf]
      %v1006 = vld [vmem:[%s3 + $0x50] sm:$0xf]
      %v1007 = vld [vmem:[%s3 + $0x54] sm:$0xf]
      %v1008 = vld [vmem:[%s3 + $0x58] sm:$0xf]
      %v1009 = vld [vmem:[%s3 + $0x5c] sm:$0xf]
      %v1010 = vld [vmem:[%s3 + $0x60] sm:$0xf]
      %v1011 = vld [vmem:[%s3 + $0x64] sm:$0xf]
      %v1012 = vld [vmem:[%s3 + $0x68] sm:$0xf]
      %v1013 = vld [vmem:[%s3 + $0x6c] sm:$0xf]
      %v1014 = vld [vmem:[%s3 + $0x70] sm:$0xf]
      %v1015 = vld [vmem:[%s3 + $0x74] sm:$0xf]
      %v1016 = vld [vmem:[%s3 + $0x78] sm:$0xf]
      %v1017 = vld [vmem:[%s3 + $0x7c] sm:$0xf]
      %v1018 = vld [vmem:[%s3 + $0x80] sm:$0xf]
      %v1019 = vld [vmem:[%s3 + $0x84] sm:$0xf]
      %v1020 = vld [vmem:[%s3 + $0x88] sm:$0xf]
      %v1021 = vld [vmem:[%s3 + $0x8c] sm:$0xf]
      %v1022 = vld [vmem:[%s3 + $0x90] sm:$0xf]
      %v1023 = vld [vmem:[%s3 + $0x94] sm:$0xf]
      %v1024 = vld [vmem:[%s3 + $0x98] sm:$0xf]
      %v1025 = vld [vmem:[%s3 + $0x9c] sm:$0xf]
      %v1026 = vld [vmem:[%s3 + $0xa0] sm:$0xf]
      %v1027 = vld [vmem:[%s3 + $0xa4] sm:$0xf]
      %v1028 = vld [vmem:[%s3 + $0xa8] sm:$0xf]
      %v1029 = vld [vmem:[%s3 + $0xac] sm:$0xf]
      %v1030 = vld [vmem:[%s3 + $0xb0] sm:$0xf]
      %v1031 = vld [vmem:[%s3 + $0xb4] sm:$0xf]
      %v1032 = vld [vmem:[%s3 + $0xb8] sm:$0xf]
      %v1033 = vld [vmem:[%s3 + $0xbc] sm:$0xf]
      %v1034 = vld [vmem:[%s3 + $0xc0] sm:$0xf]
      %v1035 = vld [vmem:[%s3 + $0xc4] sm:$0xf]
      %v1036 = vld [vmem:[%s3 + $0xc8] sm:$0xf]
      %v1037 = vld [vmem:[%s3 + $0xcc] sm:$0xf]
      %v1038 = vld [vmem:[%s3 + $0xd0] sm:$0xf]
      %v1039 = vld [vmem:[%s3 + $0xd4] sm:$0xf]
      %v1040 = vld [vmem:[%s3 + $0xd8] sm:$0xf]
      %v1041 = vld [vmem:[%s3 + $0xdc] sm:$0xf]
      %v1042 = vld [vmem:[%s3 + $0xe0] sm:$0xf]
      %v1043 = vld [vmem:[%s3 + $0xe4] sm:$0xf]
      %v1044 = vld [vmem:[%s3 + $0xe8] sm:$0xf]
      %v1045 = vld [vmem:[%s3 + $0xec] sm:$0xf]
      %v1046 = vld [vmem:[%s3 + $0xf0] sm:$0xf]
      %v1047 = vld [vmem:[%s3 + $0xf4] sm:$0xf]
      %v1048 = vld [vmem:[%s3 + $0xf8] sm:$0xf]
      %v1049 = vld [vmem:[%s3 + $0xfc] sm:$0xf]
      %v1050 = vld [vmem:[%s3 + $0x100] sm:$0xf]
      %v1051 = vld [vmem:[%s3 + $0x104] sm:$0xf]
      %v1052 = vld [vmem:[%s3 + $0x108] sm:$0xf]
      %v1053 = vld [vmem:[%s3 + $0x10c] sm:$0xf]
      %v1054 = vld [vmem:[%s3 + $0x110] sm:$0xf]
      %v1055 = vld [vmem:[%s3 + $0x114] sm:$0xf]
      %v1056 = vld [vmem:[%s3 + $0x118] sm:$0xf]
      %v1057 = vld [vmem:[%s3 + $0x11c] sm:$0xf]
      %v1058 = vld [vmem:[%s3 + $0x120] sm:$0xf]
      %v1059 = vld [vmem:[%s3 + $0x124] sm:$0xf]
      %v1060 = vld [vmem:[%s3 + $0x128] sm:$0xf]
      %v1061 = vld [vmem:[%s3 + $0x12c] sm:$0xf]
      %v1062 = vld [vmem:[%s3 + $0x130] sm:$0xf]
      %v1063 = vld [vmem:[%s3 + $0x134] sm:$0xf]
      %v1064 = vld [vmem:[%s3 + $0x138] sm:$0xf]
      %v1065 = vld [vmem:[%s3 + $0x13c] sm:$0xf]
      %v1066 = vld [vmem:[%s3 + $0x140] sm:$0xf]
      %v1067 = vld [vmem:[%s3 + $0x144] sm:$0xf]
      %v1068 = vld [vmem:[%s3 + $0x148] sm:$0xf]
      %v1069 = vld [vmem:[%s3 + $0x14c] sm:$0xf]
      %v1070 = vld [vmem:[%s3 + $0x150] sm:$0xf]
      %v1071 = vld [vmem:[%s3 + $0x154] sm:$0xf]
      %v1072 = vld [vmem:[%s3 + $0x158] sm:$0xf]
      %v1073 = vld [vmem:[%s3 + $0x15c] sm:$0xf]
      %v1074 = vld [vmem:[%s3 + $0x160] sm:$0xf]
      %v1075 = vld [vmem:[%s3 + $0x164] sm:$0xf]
      %v1076 = vld [vmem:[%s3 + $0x168] sm:$0xf]
      %v1077 = vld [vmem:[%s3 + $0x16c] sm:$0xf]
      %v1078 = vld [vmem:[%s3 + $0x170] sm:$0xf]
      %v1079 = vld [vmem:[%s3 + $0x174] sm:$0xf]
      %v1080 = vld [vmem:[%s3 + $0x178] sm:$0xf]
      %v1081 = vld [vmem:[%s3 + $0x17c] sm:$0xf]
      %v1082 = vld [vmem:[%s3 + $0x180] sm:$0xf]
      %v1083 = vld [vmem:[%s3 + $0x184] sm:$0xf]
      %v1084 = vld [vmem:[%s3 + $0x188] sm:$0xf]
      %v1085 = vld [vmem:[%s3 + $0x18c] sm:$0xf]
      %v1086 = vld [vmem:[%s3 + $0x190] sm:$0xf]
      %v1087 = vld [vmem:[%s3 + $0x194] sm:$0xf]
      %v1088 = vld [vmem:[%s3 + $0x198] sm:$0xf]
      %v1089 = vld [vmem:[%s3 + $0x19c] sm:$0xf]
      %v1090 = vld [vmem:[%s3 + $0x1a0] sm:$0xf]
      %v1091 = vld [vmem:[%s3 + $0x1a4] sm:$0xf]
      %v1092 = vld [vmem:[%s3 + $0x1a8] sm:$0xf]
      %v1093 = vld [vmem:[%s3 + $0x1ac] sm:$0xf]
      %v1094 = vld [vmem:[%s3 + $0x1b0] sm:$0xf]
      %v1095 = vld [vmem:[%s3 + $0x1b4] sm:$0xf]
      %v1096 = vld [vmem:[%s3 + $0x1b8] sm:$0xf]
      %v1097 = vld [vmem:[%s3 + $0x1bc] sm:$0xf]
      %v1098 = vld [vmem:[%s3 + $0x1c0] sm:$0xf]
      %v1099 = vld [vmem:[%s3 + $0x1c4] sm:$0xf]
      %v1100 = vld [vmem:[%s3 + $0x1c8] sm:$0xf]
      %v1101 = vld [vmem:[%s3 + $0x1cc] sm:$0xf]
      %v1102 = vld [vmem:[%s3 + $0x1d0] sm:$0xf]
      %v1103 = vld [vmem:[%s3 + $0x1d4] sm:$0xf]
      %v1104 = vld [vmem:[%s3 + $0x1d8] sm:$0xf]
      %v1105 = vld [vmem:[%s3 + $0x1dc] sm:$0xf]
      %v1106 = vld [vmem:[%s3 + $0x1e0] sm:$0xf]
      %v1107 = vld [vmem:[%s3 + $0x1e4] sm:$0xf]
      %v1108 = vld [vmem:[%s3 + $0x1e8] sm:$0xf]
      %v1109 = vld [vmem:[%s3 + $0x1ec] sm:$0xf]
      %v1110 = vld [vmem:[%s3 + $0x1f0] sm:$0xf]
      %v1111 = vld [vmem:[%s3 + $0x1f4] sm:$0xf]
      %v1112 = vld [vmem:[%s3 + $0x1f8] sm:$0xf]
      %v1113 = vld [vmem:[%s3 + $0x1fc] sm:$0xf]
      %v1114 = vld [vmem:[%s3 + $0x200] sm:$0xf]
      %v1115 = vld [vmem:[%s3 + $0x204] sm:$0xf]
      %v1116 = vld [vmem:[%s3 + $0x208] sm:$0xf]
      %v1117 = vld [vmem:[%s3 + $0x20c] sm:$0xf]
      %v1118 = vld [vmem:[%s3 + $0x210] sm:$0xf]
      %v1119 = vld [vmem:[%s3 + $0x214] sm:$0xf]
      %v1120 = vld [vmem:[%s3 + $0x218] sm:$0xf]
      %v1121 = vld [vmem:[%s3 + $0x21c] sm:$0xf]
      %v1122 = vld [vmem:[%s3 + $0x220] sm:$0xf]
      %v1123 = vld [vmem:[%s3 + $0x224] sm:$0xf]
      %v1124 = vld [vmem:[%s3 + $0x228] sm:$0xf]
      %v1125 = vld [vmem:[%s3 + $0x22c] sm:$0xf]
      %v1126 = vld [vmem:[%s3 + $0x230] sm:$0xf]
      %v1127 = vld [vmem:[%s3 + $0x234] sm:$0xf]
      %v1128 = vld [vmem:[%s3 + $0x238] sm:$0xf]
      %v1129 = vld [vmem:[%s3 + $0x23c] sm:$0xf]
      %v1274 = vunpack.c.l.b16 %v986
      %v1275 = vunpack.c.l.b16 %v987
      %v1276 = vunpack.c.l.b16 %v988
      %v1277 = vunpack.c.l.b16 %v989
      %v1278 = vunpack.c.l.b16 %v990
      %v1279 = vunpack.c.l.b16 %v991
      %v1280 = vunpack.c.l.b16 %v992
      %v1281 = vunpack.c.l.b16 %v993
      %v1282 = vunpack.c.l.b16 %v994
      %v1283 = vunpack.c.l.b16 %v995
      %v1284 = vunpack.c.l.b16 %v996
      %v1285 = vunpack.c.l.b16 %v997
      %v1286 = vunpack.c.l.b16 %v998
      %v1287 = vunpack.c.l.b16 %v999
      %v1288 = vunpack.c.l.b16 %v1000
      %v1289 = vunpack.c.l.b16 %v1001
      %v1290 = vunpack.c.l.b16 %v1002
      %v1291 = vunpack.c.l.b16 %v1003
      %v1292 = vunpack.c.l.b16 %v1004
      %v1293 = vunpack.c.l.b16 %v1005
      %v1294 = vunpack.c.l.b16 %v1006
      %v1295 = vunpack.c.l.b16 %v1007
      %v1296 = vunpack.c.l.b16 %v1008
      %v1297 = vunpack.c.l.b16 %v1009
      %v1298 = vunpack.c.l.b16 %v1010
      %v1299 = vunpack.c.l.b16 %v1011
      %v1300 = vunpack.c.l.b16 %v1012
      %v1301 = vunpack.c.l.b16 %v1013
      %v1302 = vunpack.c.l.b16 %v1014
      %v1303 = vunpack.c.l.b16 %v1015
      %v1304 = vunpack.c.l.b16 %v1016
      %v1305 = vunpack.c.l.b16 %v1017
      %v1306 = vunpack.c.l.b16 %v1018
      %v1307 = vunpack.c.l.b16 %v1019
      %v1308 = vunpack.c.l.b16 %v1020
      %v1309 = vunpack.c.l.b16 %v1021
      %v1310 = vunpack.c.l.b16 %v1022
      %v1311 = vunpack.c.l.b16 %v1023
      %v1312 = vunpack.c.l.b16 %v1024
      %v1313 = vunpack.c.l.b16 %v1025
      %v1314 = vunpack.c.l.b16 %v1026
      %v1315 = vunpack.c.l.b16 %v1027
      %v1316 = vunpack.c.l.b16 %v1028
      %v1317 = vunpack.c.l.b16 %v1029
      %v1318 = vunpack.c.l.b16 %v1030
      %v1319 = vunpack.c.l.b16 %v1031
      %v1320 = vunpack.c.l.b16 %v1032
      %v1321 = vunpack.c.l.b16 %v1033
      %v1322 = vunpack.c.l.b16 %v1034
      %v1323 = vunpack.c.l.b16 %v1035
      %v1324 = vunpack.c.l.b16 %v1036
      %v1325 = vunpack.c.l.b16 %v1037
      %v1326 = vunpack.c.l.b16 %v1038
      %v1327 = vunpack.c.l.b16 %v1039
      %v1328 = vunpack.c.l.b16 %v1040
      %v1329 = vunpack.c.l.b16 %v1041
      %v1330 = vunpack.c.l.b16 %v1042
      %v1331 = vunpack.c.l.b16 %v1043
      %v1332 = vunpack.c.l.b16 %v1044
      %v1333 = vunpack.c.l.b16 %v1045
      %v1334 = vunpack.c.l.b16 %v1046
      %v1335 = vunpack.c.l.b16 %v1047
      %v1336 = vunpack.c.l.b16 %v1048
      %v1337 = vunpack.c.l.b16 %v1049
      %v1338 = vunpack.c.l.b16 %v1050
      %v1339 = vunpack.c.l.b16 %v1051
      %v1340 = vunpack.c.l.b16 %v1052
      %v1341 = vunpack.c.l.b16 %v1053
      %v1342 = vunpack.c.l.b16 %v1054
      %v1343 = vunpack.c.l.b16 %v1055
      %v1344 = vunpack.c.l.b16 %v1056
      %v1345 = vunpack.c.l.b16 %v1057
      %v1346 = vunpack.c.l.b16 %v1058
      %v1347 = vunpack.c.l.b16 %v1059
      %v1348 = vunpack.c.l.b16 %v1060
      %v1349 = vunpack.c.l.b16 %v1061
      %v1350 = vunpack.c.l.b16 %v1062
      %v1351 = vunpack.c.l.b16 %v1063
      %v1352 = vunpack.c.l.b16 %v1064
      %v1353 = vunpack.c.l.b16 %v1065
      %v1354 = vunpack.c.l.b16 %v1066
      %v1355 = vunpack.c.l.b16 %v1067
      %v1356 = vunpack.c.l.b16 %v1068
      %v1357 = vunpack.c.l.b16 %v1069
      %v1358 = vunpack.c.l.b16 %v1070
      %v1359 = vunpack.c.l.b16 %v1071
      %v1360 = vunpack.c.l.b16 %v1072
      %v1361 = vunpack.c.l.b16 %v1073
      %v1362 = vunpack.c.l.b16 %v1074
      %v1363 = vunpack.c.l.b16 %v1075
      %v1364 = vunpack.c.l.b16 %v1076
      %v1365 = vunpack.c.l.b16 %v1077
      %v1366 = vunpack.c.l.b16 %v1078
      %v1367 = vunpack.c.l.b16 %v1079
      %v1368 = vunpack.c.l.b16 %v1080
      %v1369 = vunpack.c.l.b16 %v1081
      %v1370 = vunpack.c.l.b16 %v1082
      %v1371 = vunpack.c.l.b16 %v1083
      %v1372 = vunpack.c.l.b16 %v1084
      %v1373 = vunpack.c.l.b16 %v1085
      %v1374 = vunpack.c.l.b16 %v1086
      %v1375 = vunpack.c.l.b16 %v1087
      %v1376 = vunpack.c.l.b16 %v1088
      %v1377 = vunpack.c.l.b16 %v1089
      %v1378 = vunpack.c.l.b16 %v1090
      %v1379 = vunpack.c.l.b16 %v1091
      %v1380 = vunpack.c.l.b16 %v1092
      %v1381 = vunpack.c.l.b16 %v1093
      %v1382 = vunpack.c.l.b16 %v1094
      %v1383 = vunpack.c.l.b16 %v1095
      %v1384 = vunpack.c.l.b16 %v1096
      %v1385 = vunpack.c.l.b16 %v1097
      %v1386 = vunpack.c.l.b16 %v1098
      %v1387 = vunpack.c.l.b16 %v1099
      %v1388 = vunpack.c.l.b16 %v1100
      %v1389 = vunpack.c.l.b16 %v1101
      %v1390 = vunpack.c.l.b16 %v1102
      %v1391 = vunpack.c.l.b16 %v1103
      %v1392 = vunpack.c.l.b16 %v1104
      %v1393 = vunpack.c.l.b16 %v1105
      %v1394 = vunpack.c.l.b16 %v1106
      %v1395 = vunpack.c.l.b16 %v1107
      %v1396 = vunpack.c.l.b16 %v1108
      %v1397 = vunpack.c.l.b16 %v1109
      %v1398 = vunpack.c.l.b16 %v1110
      %v1399 = vunpack.c.l.b16 %v1111
      %v1400 = vunpack.c.l.b16 %v1112
      %v1401 = vunpack.c.l.b16 %v1113
      %v1402 = vunpack.c.l.b16 %v1114
      %v1403 = vunpack.c.l.b16 %v1115
      %v1404 = vunpack.c.l.b16 %v1116
      %v1405 = vunpack.c.l.b16 %v1117
      %v1406 = vunpack.c.l.b16 %v1118
      %v1407 = vunpack.c.l.b16 %v1119
      %v1408 = vunpack.c.l.b16 %v1120
      %v1409 = vunpack.c.l.b16 %v1121
      %v1410 = vunpack.c.l.b16 %v1122
      %v1411 = vunpack.c.l.b16 %v1123
      %v1412 = vunpack.c.l.b16 %v1124
      %v1413 = vunpack.c.l.b16 %v1125
      %v1414 = vunpack.c.l.b16 %v1126
      %v1415 = vunpack.c.l.b16 %v1127
      %v1416 = vunpack.c.l.b16 %v1128
      %v1417 = vunpack.c.l.b16 %v1129
      %v1418 = vpack.c.b16 %v1275, %v1274
      %v1419 = vpack.c.b16 %v1277, %v1276
      %v1420 = vpack.c.b16 %v1279, %v1278
      %v1421 = vpack.c.b16 %v1281, %v1280
      %v1422 = vpack.c.b16 %v1283, %v1282
      %v1423 = vpack.c.b16 %v1285, %v1284
      %v1424 = vpack.c.b16 %v1287, %v1286
      %v1425 = vpack.c.b16 %v1289, %v1288
      %v1426 = vpack.c.b16 %v1291, %v1290
      %v1427 = vpack.c.b16 %v1293, %v1292
      %v1428 = vpack.c.b16 %v1295, %v1294
      %v1429 = vpack.c.b16 %v1297, %v1296
      %v1430 = vpack.c.b16 %v1299, %v1298
      %v1431 = vpack.c.b16 %v1301, %v1300
      %v1432 = vpack.c.b16 %v1303, %v1302
      %v1433 = vpack.c.b16 %v1305, %v1304
      %v1434 = vpack.c.b16 %v1307, %v1306
      %v1435 = vpack.c.b16 %v1309, %v1308
      %v1436 = vpack.c.b16 %v1311, %v1310
      %v1437 = vpack.c.b16 %v1313, %v1312
      %v1438 = vpack.c.b16 %v1315, %v1314
      %v1439 = vpack.c.b16 %v1317, %v1316
      %v1440 = vpack.c.b16 %v1319, %v1318
      %v1441 = vpack.c.b16 %v1321, %v1320
      %v1442 = vpack.c.b16 %v1323, %v1322
      %v1443 = vpack.c.b16 %v1325, %v1324
      %v1444 = vpack.c.b16 %v1327, %v1326
      %v1445 = vpack.c.b16 %v1329, %v1328
      %v1446 = vpack.c.b16 %v1331, %v1330
      %v1447 = vpack.c.b16 %v1333, %v1332
      %v1448 = vpack.c.b16 %v1335, %v1334
      %v1449 = vpack.c.b16 %v1337, %v1336
      %v1450 = vpack.c.b16 %v1339, %v1338
      %v1451 = vpack.c.b16 %v1341, %v1340
      %v1452 = vpack.c.b16 %v1343, %v1342
      %v1453 = vpack.c.b16 %v1345, %v1344
      %v1454 = vpack.c.b16 %v1347, %v1346
      %v1455 = vpack.c.b16 %v1349, %v1348
      %v1456 = vpack.c.b16 %v1351, %v1350
      %v1457 = vpack.c.b16 %v1353, %v1352
      %v1458 = vpack.c.b16 %v1355, %v1354
      %v1459 = vpack.c.b16 %v1357, %v1356
      %v1460 = vpack.c.b16 %v1359, %v1358
      %v1461 = vpack.c.b16 %v1361, %v1360
      %v1462 = vpack.c.b16 %v1363, %v1362
      %v1463 = vpack.c.b16 %v1365, %v1364
      %v1464 = vpack.c.b16 %v1367, %v1366
      %v1465 = vpack.c.b16 %v1369, %v1368
      %v1466 = vpack.c.b16 %v1371, %v1370
      %v1467 = vpack.c.b16 %v1373, %v1372
      %v1468 = vpack.c.b16 %v1375, %v1374
      %v1469 = vpack.c.b16 %v1377, %v1376
      %v1470 = vpack.c.b16 %v1379, %v1378
      %v1471 = vpack.c.b16 %v1381, %v1380
      %v1472 = vpack.c.b16 %v1383, %v1382
      %v1473 = vpack.c.b16 %v1385, %v1384
      %v1474 = vpack.c.b16 %v1387, %v1386
      %v1475 = vpack.c.b16 %v1389, %v1388
      %v1476 = vpack.c.b16 %v1391, %v1390
      %v1477 = vpack.c.b16 %v1393, %v1392
      %v1478 = vpack.c.b16 %v1395, %v1394
      %v1479 = vpack.c.b16 %v1397, %v1396
      %v1480 = vpack.c.b16 %v1399, %v1398
      %v1481 = vpack.c.b16 %v1401, %v1400
      %v1482 = vpack.c.b16 %v1403, %v1402
      %v1483 = vpack.c.b16 %v1405, %v1404
      %v1484 = vpack.c.b16 %v1407, %v1406
      %v1485 = vpack.c.b16 %v1409, %v1408
      %v1486 = vpack.c.b16 %v1411, %v1410
      %v1487 = vpack.c.b16 %v1413, %v1412
      %v1488 = vpack.c.b16 %v1415, %v1414
      %v1489 = vpack.c.b16 %v1417, %v1416
      %1562 = vmatprep.subr.bf16.mxu0 0
      %1563 = vmatpush1.bf16.msra.mxu0 %v1425
      %1564 = vmatprep.subr.bf16.mxu0 0
      %1565 = vmatpush1.bf16.msra.mxu0 %v1424
      %1566 = vmatprep.subr.bf16.mxu0 0
      %1567 = vmatpush1.bf16.msra.mxu0 %v1423
      %1568 = vmatprep.subr.bf16.mxu0 0
      %1569 = vmatpush1.bf16.msra.mxu0 %v1422
      %1570 = vmatprep.subr.bf16.mxu0 0
      %1571 = vmatpush1.bf16.msra.mxu0 %v1421
      %1572 = vmatprep.subr.bf16.mxu0 0
      %1573 = vmatpush1.bf16.msra.mxu0 %v1420
      %1574 = vmatprep.subr.bf16.mxu0 0
      %1575 = vmatpush1.bf16.msra.mxu0 %v1419
      %1576 = vmatprep.subr.bf16.mxu0 0
      %1577 = vmatpush1.bf16.msra.mxu0 %v1418
      %1578 = vmatprep.subr.bf16.mxu0 0
      %1579 = vmatpush2.bf16.msra.mxu0 %v1433
      %1580 = vmatprep.subr.bf16.mxu0 0
      %1581 = vmatpush2.bf16.msra.mxu0 %v1432
      %1582 = vmatprep.subr.bf16.mxu0 0
      %1583 = vmatpush2.bf16.msra.mxu0 %v1431
      %1584 = vmatprep.subr.bf16.mxu0 0
      %1585 = vmatpush2.bf16.msra.mxu0 %v1430
      %1586 = vmatprep.subr.bf16.mxu0 0
      %1587 = vmatpush2.bf16.msra.mxu0 %v1429
      %1588 = vmatprep.subr.bf16.mxu0 0
      %1589 = vmatpush2.bf16.msra.mxu0 %v1428
      %1590 = vmatprep.subr.bf16.mxu0 0
      %1591 = vmatpush2.bf16.msra.mxu0 %v1427
      %1592 = vmatprep.subr.bf16.mxu0 0
      %1593 = vmatpush2.bf16.msra.mxu0 %v1426
      %1594 = vmatprep.mubr.bf16.mxu0 %v654
      %1595 = vmatmul.mubr.bf16.gmra.mxu0 %v606
      %v1596 = vpop.f32.mrf.mxu0
      %v1597 = vadd.f32 0.0, %v1596
      %v1598 = vpop.f32.mrf.mxu0
      %v1599 = vpop.f32.mrf.mxu0
      %v1600 = vadd.f32 0.0, %v1599
      %v1601 = vpop.f32.mrf.mxu0
      %1602 = vmatprep.mubr.bf16.mxu0 %v666
      %1603 = vmatmul.mubr.bf16.gmra.mxu0 %v608
      %v1604 = vpop.f32.mrf.mxu0
      %v1605 = vadd.f32 0.0, %v1604
      %v1606 = vpop.f32.mrf.mxu0
      %v1607 = vpop.f32.mrf.mxu0
      %v1608 = vadd.f32 0.0, %v1607
      %v1609 = vpop.f32.mrf.mxu0
      %1610 = vmatprep.mubr.bf16.mxu0 %v678
      %1611 = vmatmul.mubr.bf16.gmra.mxu0 %v610
      %v1612 = vpop.f32.mrf.mxu0
      %v1613 = vadd.f32 0.0, %v1612
      %v1614 = vpop.f32.mrf.mxu0
      %v1615 = vpop.f32.mrf.mxu0
      %v1616 = vadd.f32 0.0, %v1615
      %v1617 = vpop.f32.mrf.mxu0
      %1618 = vmatprep.mubr.bf16.mxu0 %v690
      %1619 = vmatmul.mubr.bf16.gmra.mxu0 %v612
      %v1620 = vpop.f32.mrf.mxu0
      %v1621 = vadd.f32 0.0, %v1620
      %v1622 = vpop.f32.mrf.mxu0
      %v1623 = vpop.f32.mrf.mxu0
      %v1624 = vadd.f32 0.0, %v1623
      %v1625 = vpop.f32.mrf.mxu0
      %1626 = vmatprep.mubr.bf16.mxu0 %v702
      %1627 = vmatmul.mubr.bf16.gmra.mxu0 %v614
      %v1628 = vpop.f32.mrf.mxu0
      %v1629 = vadd.f32 0.0, %v1628
      %v1630 = vpop.f32.mrf.mxu0
      %v1631 = vpop.f32.mrf.mxu0
      %v1632 = vadd.f32 0.0, %v1631
      %v1633 = vpop.f32.mrf.mxu0
      %1634 = vmatprep.mubr.bf16.mxu0 %v714
      %1635 = vmatmul.mubr.bf16.gmra.mxu0 %v616
      %v1636 = vpop.f32.mrf.mxu0
      %v1637 = vadd.f32 0.0, %v1636
      %v1638 = vpop.f32.mrf.mxu0
      %v1639 = vpop.f32.mrf.mxu0
      %v1640 = vadd.f32 0.0, %v1639
      %v1641 = vpop.f32.mrf.mxu0
      %1642 = vmatprep.mubr.bf16.mxu0 %v726
      %1643 = vmatmul.mubr.bf16.gmra.mxu0 %v618
      %v1644 = vpop.f32.mrf.mxu0
      %v1645 = vadd.f32 0.0, %v1644
      %v1646 = vpop.f32.mrf.mxu0
      %v1647 = vpop.f32.mrf.mxu0
      %v1648 = vadd.f32 0.0, %v1647
      %v1649 = vpop.f32.mrf.mxu0
      %1650 = vmatprep.mubr.bf16.mxu0 %v738
      %1651 = vmatmul.mubr.bf16.gmra.mxu0 %v620
      %v1652 = vpop.f32.mrf.mxu0
      %v1653 = vadd.f32 0.0, %v1652
      %v1654 = vpop.f32.mrf.mxu0
      %v1655 = vpop.f32.mrf.mxu0
      %v1656 = vadd.f32 0.0, %v1655
      %v1657 = vpop.f32.mrf.mxu0
      %1658 = vmatprep.mubr.bf16.mxu0 %v750
      %1659 = vmatmul.mubr.bf16.gmra.mxu0 %v622
      %v1660 = vpop.f32.mrf.mxu0
      %v1661 = vadd.f32 0.0, %v1660
      %v1662 = vpop.f32.mrf.mxu0
      %v1663 = vpop.f32.mrf.mxu0
      %v1664 = vadd.f32 0.0, %v1663
      %v1665 = vpop.f32.mrf.mxu0
      %1666 = vmatprep.mubr.bf16.mxu0 %v762
      %1667 = vmatmul.mubr.bf16.gmra.mxu0 %v624
      %v1668 = vpop.f32.mrf.mxu0
      %v1669 = vadd.f32 0.0, %v1668
      %v1670 = vpop.f32.mrf.mxu0
      %v1671 = vpop.f32.mrf.mxu0
      %v1672 = vadd.f32 0.0, %v1671
      %v1673 = vpop.f32.mrf.mxu0
      %1674 = vmatprep.mubr.bf16.mxu0 %v774
      %1675 = vmatmul.mubr.bf16.gmra.mxu0 %v626
      %v1676 = vpop.f32.mrf.mxu0
      %v1677 = vadd.f32 0.0, %v1676
      %v1678 = vpop.f32.mrf.mxu0
      %v1679 = vpop.f32.mrf.mxu0
      %v1680 = vadd.f32 0.0, %v1679
      %v1681 = vpop.f32.mrf.mxu0
      %1682 = vmatprep.mubr.bf16.mxu0 %v786
      %1683 = vmatmul.mubr.bf16.gmra.mxu0 %v628
      %v1684 = vpop.f32.mrf.mxu0
      %v1685 = vadd.f32 0.0, %v1684
      %v1686 = vpop.f32.mrf.mxu0
      %v1687 = vpop.f32.mrf.mxu0
      %v1688 = vadd.f32 0.0, %v1687
      %v1689 = vpop.f32.mrf.mxu0
      %1690 = vmatprep.mubr.bf16.mxu0 %v798
      %1691 = vmatmul.mubr.bf16.gmra.mxu0 %v630
      %v1692 = vpop.f32.mrf.mxu0
      %v1693 = vadd.f32 0.0, %v1692
      %v1694 = vpop.f32.mrf.mxu0
      %v1695 = vpop.f32.mrf.mxu0
      %v1696 = vadd.f32 0.0, %v1695
      %v1697 = vpop.f32.mrf.mxu0
      %1698 = vmatprep.mubr.bf16.mxu0 %v810
      %1699 = vmatmul.mubr.bf16.gmra.mxu0 %v632
      %v1700 = vpop.f32.mrf.mxu0
      %v1701 = vadd.f32 0.0, %v1700
      %v1702 = vpop.f32.mrf.mxu0
      %v1703 = vpop.f32.mrf.mxu0
      %v1704 = vadd.f32 0.0, %v1703
      %v1705 = vpop.f32.mrf.mxu0
      %1706 = vmatprep.mubr.bf16.mxu0 %v822
      %1707 = vmatmul.mubr.bf16.gmra.mxu0 %v634
      %v1708 = vpop.f32.mrf.mxu0
      %v1709 = vadd.f32 0.0, %v1708
      %v1710 = vpop.f32.mrf.mxu0
      %v1711 = vpop.f32.mrf.mxu0
      %v1712 = vadd.f32 0.0, %v1711
      %v1713 = vpop.f32.mrf.mxu0
      %1714 = vmatprep.mubr.bf16.mxu0 %v834
      %1715 = vmatmul.mubr.bf16.gmra.mxu0 %v636
      %v1716 = vpop.f32.mrf.mxu0
      %v1717 = vadd.f32 0.0, %v1716
      %v1718 = vpop.f32.mrf.mxu0
      %v1719 = vpop.f32.mrf.mxu0
      %v1720 = vadd.f32 0.0, %v1719
      %v1721 = vpop.f32.mrf.mxu0
      %1722 = vdwg.mxu0
      %1723 = vmatprep.subr.bf16.mxu0 0
      %1724 = vmatpush1.bf16.msra.mxu0 %v1441
      %1725 = vmatprep.subr.bf16.mxu0 0
      %1726 = vmatpush1.bf16.msra.mxu0 %v1440
      %1727 = vmatprep.subr.bf16.mxu0 0
      %1728 = vmatpush1.bf16.msra.mxu0 %v1439
      %1729 = vmatprep.subr.bf16.mxu0 0
      %1730 = vmatpush1.bf16.msra.mxu0 %v1438
      %1731 = vmatprep.subr.bf16.mxu0 0
      %1732 = vmatpush1.bf16.msra.mxu0 %v1437
      %1733 = vmatprep.subr.bf16.mxu0 0
      %1734 = vmatpush1.bf16.msra.mxu0 %v1436
      %1735 = vmatprep.subr.bf16.mxu0 0
      %1736 = vmatpush1.bf16.msra.mxu0 %v1435
      %1737 = vmatprep.subr.bf16.mxu0 0
      %1738 = vmatpush1.bf16.msra.mxu0 %v1434
      %1739 = vmatprep.subr.bf16.mxu0 0
      %1740 = vmatpush2.bf16.msra.mxu0 %v1449
      %1741 = vmatprep.subr.bf16.mxu0 0
      %1742 = vmatpush2.bf16.msra.mxu0 %v1448
      %1743 = vmatprep.subr.bf16.mxu0 0
      %1744 = vmatpush2.bf16.msra.mxu0 %v1447
      %1745 = vmatprep.subr.bf16.mxu0 0
      %1746 = vmatpush2.bf16.msra.mxu0 %v1446
      %1747 = vmatprep.subr.bf16.mxu0 0
      %1748 = vmatpush2.bf16.msra.mxu0 %v1445
      %1749 = vmatprep.subr.bf16.mxu0 0
      %1750 = vmatpush2.bf16.msra.mxu0 %v1444
      %1751 = vmatprep.subr.bf16.mxu0 0
      %1752 = vmatpush2.bf16.msra.mxu0 %v1443
      %1753 = vmatprep.subr.bf16.mxu0 0
      %1754 = vmatpush2.bf16.msra.mxu0 %v1442
      %1755 = vmatprep.mubr.bf16.mxu0 %v608
      %1756 = vmatmul.mubr.bf16.gmra.mxu0 %v886
      %v1757 = vpop.f32.mrf.mxu0
      %v1758 = vadd.f32 %v1597, %v1757
      %v1759 = vpop.f32.mrf.mxu0
      %v1760 = vpop.f32.mrf.mxu0
      %v1761 = vadd.f32 %v1600, %v1760
      %v1762 = vpop.f32.mrf.mxu0
      %1763 = vmatprep.mubr.bf16.mxu0 %v610
      %1764 = vmatmul.mubr.bf16.gmra.mxu0 %v889
      %v1765 = vpop.f32.mrf.mxu0
      %v1766 = vadd.f32 %v1605, %v1765
      %v1767 = vpop.f32.mrf.mxu0
      %v1768 = vpop.f32.mrf.mxu0
      %v1769 = vadd.f32 %v1608, %v1768
      %v1770 = vpop.f32.mrf.mxu0
      %1771 = vmatprep.mubr.bf16.mxu0 %v612
      %1772 = vmatmul.mubr.bf16.gmra.mxu0 %v892
      %v1773 = vpop.f32.mrf.mxu0
      %v1774 = vadd.f32 %v1613, %v1773
      %v1775 = vpop.f32.mrf.mxu0
      %v1776 = vpop.f32.mrf.mxu0
      %v1777 = vadd.f32 %v1616, %v1776
      %v1778 = vpop.f32.mrf.mxu0
      %1779 = vmatprep.mubr.bf16.mxu0 %v614
      %1780 = vmatmul.mubr.bf16.gmra.mxu0 %v895
      %v1781 = vpop.f32.mrf.mxu0
      %v1782 = vadd.f32 %v1621, %v1781
      %v1783 = vpop.f32.mrf.mxu0
      %v1784 = vpop.f32.mrf.mxu0
      %v1785 = vadd.f32 %v1624, %v1784
      %v1786 = vpop.f32.mrf.mxu0
      %1787 = vmatprep.mubr.bf16.mxu0 %v616
      %1788 = vmatmul.mubr.bf16.gmra.mxu0 %v898
      %v1789 = vpop.f32.mrf.mxu0
      %v1790 = vadd.f32 %v1629, %v1789
      %v1791 = vpop.f32.mrf.mxu0
      %v1792 = vpop.f32.mrf.mxu0
      %v1793 = vadd.f32 %v1632, %v1792
      %v1794 = vpop.f32.mrf.mxu0
      %1795 = vmatprep.mubr.bf16.mxu0 %v618
      %1796 = vmatmul.mubr.bf16.gmra.mxu0 %v901
      %v1797 = vpop.f32.mrf.mxu0
      %v1798 = vadd.f32 %v1637, %v1797
      %v1799 = vpop.f32.mrf.mxu0
      %v1800 = vpop.f32.mrf.mxu0
      %v1801 = vadd.f32 %v1640, %v1800
      %v1802 = vpop.f32.mrf.mxu0
      %1803 = vmatprep.mubr.bf16.mxu0 %v620
      %1804 = vmatmul.mubr.bf16.gmra.mxu0 %v904
      %v1805 = vpop.f32.mrf.mxu0
      %v1806 = vadd.f32 %v1645, %v1805
      %v1807 = vpop.f32.mrf.mxu0
      %v1808 = vpop.f32.mrf.mxu0
      %v1809 = vadd.f32 %v1648, %v1808
      %v1810 = vpop.f32.mrf.mxu0
      %1811 = vmatprep.mubr.bf16.mxu0 %v622
      %1812 = vmatmul.mubr.bf16.gmra.mxu0 %v907
      %v1813 = vpop.f32.mrf.mxu0
      %v1814 = vadd.f32 %v1653, %v1813
      %v1815 = vpop.f32.mrf.mxu0
      %v1816 = vpop.f32.mrf.mxu0
      %v1817 = vadd.f32 %v1656, %v1816
      %v1818 = vpop.f32.mrf.mxu0
      %1819 = vmatprep.mubr.bf16.mxu0 %v624
      %1820 = vmatmul.mubr.bf16.gmra.mxu0 %v910
      %v1821 = vpop.f32.mrf.mxu0
      %v1822 = vadd.f32 %v1661, %v1821
      %v1823 = vpop.f32.mrf.mxu0
      %v1824 = vpop.f32.mrf.mxu0
      %v1825 = vadd.f32 %v1664, %v1824
      %v1826 = vpop.f32.mrf.mxu0
      %1827 = vmatprep.mubr.bf16.mxu0 %v626
      %1828 = vmatmul.mubr.bf16.gmra.mxu0 %v913
      %v1829 = vpop.f32.mrf.mxu0
      %v1830 = vadd.f32 %v1669, %v1829
      %v1831 = vpop.f32.mrf.mxu0
      %v1832 = vpop.f32.mrf.mxu0
      %v1833 = vadd.f32 %v1672, %v1832
      %v1834 = vpop.f32.mrf.mxu0
      %1835 = vmatprep.mubr.bf16.mxu0 %v628
      %1836 = vmatmul.mubr.bf16.gmra.mxu0 %v916
      %v1837 = vpop.f32.mrf.mxu0
      %v1838 = vadd.f32 %v1677, %v1837
      %v1839 = vpop.f32.mrf.mxu0
      %v1840 = vpop.f32.mrf.mxu0
      %v1841 = vadd.f32 %v1680, %v1840
      %v1842 = vpop.f32.mrf.mxu0
      %1843 = vmatprep.mubr.bf16.mxu0 %v630
      %1844 = vmatmul.mubr.bf16.gmra.mxu0 %v919
      %v1845 = vpop.f32.mrf.mxu0
      %v1846 = vadd.f32 %v1685, %v1845
      %v1847 = vpop.f32.mrf.mxu0
      %v1848 = vpop.f32.mrf.mxu0
      %v1849 = vadd.f32 %v1688, %v1848
      %v1850 = vpop.f32.mrf.mxu0
      %1851 = vmatprep.mubr.bf16.mxu0 %v632
      %1852 = vmatmul.mubr.bf16.gmra.mxu0 %v922
      %v1853 = vpop.f32.mrf.mxu0
      %v1854 = vadd.f32 %v1693, %v1853
      %v1855 = vpop.f32.mrf.mxu0
      %v1856 = vpop.f32.mrf.mxu0
      %v1857 = vadd.f32 %v1696, %v1856
      %v1858 = vpop.f32.mrf.mxu0
      %1859 = vmatprep.mubr.bf16.mxu0 %v634
      %1860 = vmatmul.mubr.bf16.gmra.mxu0 %v925
      %v1861 = vpop.f32.mrf.mxu0
      %v1862 = vadd.f32 %v1701, %v1861
      %v1863 = vpop.f32.mrf.mxu0
      %v1864 = vpop.f32.mrf.mxu0
      %v1865 = vadd.f32 %v1704, %v1864
      %v1866 = vpop.f32.mrf.mxu0
      %1867 = vmatprep.mubr.bf16.mxu0 %v636
      %1868 = vmatmul.mubr.bf16.gmra.mxu0 %v928
      %v1869 = vpop.f32.mrf.mxu0
      %v1870 = vadd.f32 %v1709, %v1869
      %v1871 = vpop.f32.mrf.mxu0
      %v1872 = vpop.f32.mrf.mxu0
      %v1873 = vadd.f32 %v1712, %v1872
      %v1874 = vpop.f32.mrf.mxu0
      %1875 = vmatprep.mubr.bf16.mxu0 %v638
      %1876 = vmatmul.mubr.bf16.gmra.mxu0 %v931
      %v1877 = vpop.f32.mrf.mxu0
      %v1878 = vadd.f32 %v1717, %v1877
      %v1879 = vpop.f32.mrf.mxu0
      %v1880 = vpop.f32.mrf.mxu0
      %v1881 = vadd.f32 %v1720, %v1880
      %v1882 = vpop.f32.mrf.mxu0
      %1883 = vdwg.mxu0
      %1884 = vmatprep.subr.bf16.mxu0 0
      %1885 = vmatpush1.bf16.msra.mxu0 %v1457
      %1886 = vmatprep.subr.bf16.mxu0 0
      %1887 = vmatpush1.bf16.msra.mxu0 %v1456
      %1888 = vmatprep.subr.bf16.mxu0 0
      %1889 = vmatpush1.bf16.msra.mxu0 %v1455
      %1890 = vmatprep.subr.bf16.mxu0 0
      %1891 = vmatpush1.bf16.msra.mxu0 %v1454
      %1892 = vmatprep.subr.bf16.mxu0 0
      %1893 = vmatpush1.bf16.msra.mxu0 %v1453
      %1894 = vmatprep.subr.bf16.mxu0 0
      %1895 = vmatpush1.bf16.msra.mxu0 %v1452
      %1896 = vmatprep.subr.bf16.mxu0 0
      %1897 = vmatpush1.bf16.msra.mxu0 %v1451
      %1898 = vmatprep.subr.bf16.mxu0 0
      %1899 = vmatpush1.bf16.msra.mxu0 %v1450
      %1900 = vmatprep.subr.bf16.mxu0 0
      %1901 = vmatpush2.bf16.msra.mxu0 %v1465
      %1902 = vmatprep.subr.bf16.mxu0 0
      %1903 = vmatpush2.bf16.msra.mxu0 %v1464
      %1904 = vmatprep.subr.bf16.mxu0 0
      %1905 = vmatpush2.bf16.msra.mxu0 %v1463
      %1906 = vmatprep.subr.bf16.mxu0 0
      %1907 = vmatpush2.bf16.msra.mxu0 %v1462
      %1908 = vmatprep.subr.bf16.mxu0 0
      %1909 = vmatpush2.bf16.msra.mxu0 %v1461
      %1910 = vmatprep.subr.bf16.mxu0 0
      %1911 = vmatpush2.bf16.msra.mxu0 %v1460
      %1912 = vmatprep.subr.bf16.mxu0 0
      %1913 = vmatpush2.bf16.msra.mxu0 %v1459
      %1914 = vmatprep.subr.bf16.mxu0 0
      %1915 = vmatpush2.bf16.msra.mxu0 %v1458
      %1916 = vmatprep.mubr.bf16.mxu0 %v889
      %1917 = vmatmul.mubr.bf16.gmra.mxu0 %v666
      %v1918 = vpop.f32.mrf.mxu0
      %v1919 = vadd.f32 %v1758, %v1918
      %v1920 = vpop.f32.mrf.mxu0
      %v1921 = vpop.f32.mrf.mxu0
      %v1922 = vadd.f32 %v1761, %v1921
      %v1923 = vpop.f32.mrf.mxu0
      %1924 = vmatprep.mubr.bf16.mxu0 %v892
      %1925 = vmatmul.mubr.bf16.gmra.mxu0 %v678
      %v1926 = vpop.f32.mrf.mxu0
      %v1927 = vadd.f32 %v1766, %v1926
      %v1928 = vpop.f32.mrf.mxu0
      %v1929 = vpop.f32.mrf.mxu0
      %v1930 = vadd.f32 %v1769, %v1929
      %v1931 = vpop.f32.mrf.mxu0
      %1932 = vmatprep.mubr.bf16.mxu0 %v895
      %1933 = vmatmul.mubr.bf16.gmra.mxu0 %v690
      %v1934 = vpop.f32.mrf.mxu0
      %v1935 = vadd.f32 %v1774, %v1934
      %v1936 = vpop.f32.mrf.mxu0
      %v1937 = vpop.f32.mrf.mxu0
      %v1938 = vadd.f32 %v1777, %v1937
      %v1939 = vpop.f32.mrf.mxu0
      %1940 = vmatprep.mubr.bf16.mxu0 %v898
      %1941 = vmatmul.mubr.bf16.gmra.mxu0 %v702
      %v1942 = vpop.f32.mrf.mxu0
      %v1943 = vadd.f32 %v1782, %v1942
      %v1944 = vpop.f32.mrf.mxu0
      %v1945 = vpop.f32.mrf.mxu0
      %v1946 = vadd.f32 %v1785, %v1945
      %v1947 = vpop.f32.mrf.mxu0
      %1948 = vmatprep.mubr.bf16.mxu0 %v901
      %1949 = vmatmul.mubr.bf16.gmra.mxu0 %v714
      %v1950 = vpop.f32.mrf.mxu0
      %v1951 = vadd.f32 %v1790, %v1950
      %v1952 = vpop.f32.mrf.mxu0
      %v1953 = vpop.f32.mrf.mxu0
      %v1954 = vadd.f32 %v1793, %v1953
      %v1955 = vpop.f32.mrf.mxu0
      %1956 = vmatprep.mubr.bf16.mxu0 %v904
      %1957 = vmatmul.mubr.bf16.gmra.mxu0 %v726
      %v1958 = vpop.f32.mrf.mxu0
      %v1959 = vadd.f32 %v1798, %v1958
      %v1960 = vpop.f32.mrf.mxu0
      %v1961 = vpop.f32.mrf.mxu0
      %v1962 = vadd.f32 %v1801, %v1961
      %v1963 = vpop.f32.mrf.mxu0
      %1964 = vmatprep.mubr.bf16.mxu0 %v907
      %1965 = vmatmul.mubr.bf16.gmra.mxu0 %v738
      %v1966 = vpop.f32.mrf.mxu0
      %v1967 = vadd.f32 %v1806, %v1966
      %v1968 = vpop.f32.mrf.mxu0
      %v1969 = vpop.f32.mrf.mxu0
      %v1970 = vadd.f32 %v1809, %v1969
      %v1971 = vpop.f32.mrf.mxu0
      %1972 = vmatprep.mubr.bf16.mxu0 %v910
      %1973 = vmatmul.mubr.bf16.gmra.mxu0 %v750
      %v1974 = vpop.f32.mrf.mxu0
      %v1975 = vadd.f32 %v1814, %v1974
      %v1976 = vpop.f32.mrf.mxu0
      %v1977 = vpop.f32.mrf.mxu0
      %v1978 = vadd.f32 %v1817, %v1977
      %v1979 = vpop.f32.mrf.mxu0
      %1980 = vmatprep.mubr.bf16.mxu0 %v913
      %1981 = vmatmul.mubr.bf16.gmra.mxu0 %v762
      %v1982 = vpop.f32.mrf.mxu0
      %v1983 = vadd.f32 %v1822, %v1982
      %v1984 = vpop.f32.mrf.mxu0
      %v1985 = vpop.f32.mrf.mxu0
      %v1986 = vadd.f32 %v1825, %v1985
      %v1987 = vpop.f32.mrf.mxu0
      %1988 = vmatprep.mubr.bf16.mxu0 %v916
      %1989 = vmatmul.mubr.bf16.gmra.mxu0 %v774
      %v1990 = vpop.f32.mrf.mxu0
      %v1991 = vadd.f32 %v1830, %v1990
      %v1992 = vpop.f32.mrf.mxu0
      %v1993 = vpop.f32.mrf.mxu0
      %v1994 = vadd.f32 %v1833, %v1993
      %v1995 = vpop.f32.mrf.mxu0
      %1996 = vmatprep.mubr.bf16.mxu0 %v919
      %1997 = vmatmul.mubr.bf16.gmra.mxu0 %v786
      %v1998 = vpop.f32.mrf.mxu0
      %v1999 = vadd.f32 %v1838, %v1998
      %v2000 = vpop.f32.mrf.mxu0
      %v2001 = vpop.f32.mrf.mxu0
      %v2002 = vadd.f32 %v1841, %v2001
      %v2003 = vpop.f32.mrf.mxu0
      %2004 = vmatprep.mubr.bf16.mxu0 %v922
      %2005 = vmatmul.mubr.bf16.gmra.mxu0 %v798
      %v2006 = vpop.f32.mrf.mxu0
      %v2007 = vadd.f32 %v1846, %v2006
      %v2008 = vpop.f32.mrf.mxu0
      %v2009 = vpop.f32.mrf.mxu0
      %v2010 = vadd.f32 %v1849, %v2009
      %v2011 = vpop.f32.mrf.mxu0
      %2012 = vmatprep.mubr.bf16.mxu0 %v925
      %2013 = vmatmul.mubr.bf16.gmra.mxu0 %v810
      %v2014 = vpop.f32.mrf.mxu0
      %v2015 = vadd.f32 %v1854, %v2014
      %v2016 = vpop.f32.mrf.mxu0
      %v2017 = vpop.f32.mrf.mxu0
      %v2018 = vadd.f32 %v1857, %v2017
      %v2019 = vpop.f32.mrf.mxu0
      %2020 = vmatprep.mubr.bf16.mxu0 %v928
      %2021 = vmatmul.mubr.bf16.gmra.mxu0 %v822
      %v2022 = vpop.f32.mrf.mxu0
      %v2023 = vadd.f32 %v1862, %v2022
      %v2024 = vpop.f32.mrf.mxu0
      %v2025 = vpop.f32.mrf.mxu0
      %v2026 = vadd.f32 %v1865, %v2025
      %v2027 = vpop.f32.mrf.mxu0
      %2028 = vmatprep.mubr.bf16.mxu0 %v931
      %2029 = vmatmul.mubr.bf16.gmra.mxu0 %v834
      %v2030 = vpop.f32.mrf.mxu0
      %v2031 = vadd.f32 %v1870, %v2030
      %v2032 = vpop.f32.mrf.mxu0
      %v2033 = vpop.f32.mrf.mxu0
      %v2034 = vadd.f32 %v1873, %v2033
      %v2035 = vpop.f32.mrf.mxu0
      %2036 = vmatprep.mubr.bf16.mxu0 %v965
      %2037 = vmatmul.mubr.bf16.gmra.mxu0 %v959
      %v2038 = vpop.f32.mrf.mxu0
      %v2039 = vadd.f32 %v1878, %v2038
      %v2040 = vpop.f32.mrf.mxu0
      %v2041 = vpop.f32.mrf.mxu0
      %v2042 = vadd.f32 %v1881, %v2041
      %v2043 = vpop.f32.mrf.mxu0
      %2044 = vdwg.mxu0
      %2045 = vmatprep.subr.bf16.mxu0 0
      %2046 = vmatpush1.bf16.msra.mxu0 %v1473
      %2047 = vmatprep.subr.bf16.mxu0 0
      %2048 = vmatpush1.bf16.msra.mxu0 %v1472
      %2049 = vmatprep.subr.bf16.mxu0 0
      %2050 = vmatpush1.bf16.msra.mxu0 %v1471
      %2051 = vmatprep.subr.bf16.mxu0 0
      %2052 = vmatpush1.bf16.msra.mxu0 %v1470
      %2053 = vmatprep.subr.bf16.mxu0 0
      %2054 = vmatpush1.bf16.msra.mxu0 %v1469
      %2055 = vmatprep.subr.bf16.mxu0 0
      %2056 = vmatpush1.bf16.msra.mxu0 %v1468
      %2057 = vmatprep.subr.bf16.mxu0 0
      %2058 = vmatpush1.bf16.msra.mxu0 %v1467
      %2059 = vmatprep.subr.bf16.mxu0 0
      %2060 = vmatpush1.bf16.msra.mxu0 %v1466
      %2061 = vmatprep.subr.bf16.mxu0 0
      %2062 = vmatpush2.bf16.msra.mxu0 %v1481
      %2063 = vmatprep.subr.bf16.mxu0 0
      %2064 = vmatpush2.bf16.msra.mxu0 %v1480
      %2065 = vmatprep.subr.bf16.mxu0 0
      %2066 = vmatpush2.bf16.msra.mxu0 %v1479
      %2067 = vmatprep.subr.bf16.mxu0 0
      %2068 = vmatpush2.bf16.msra.mxu0 %v1478
      %2069 = vmatprep.subr.bf16.mxu0 0
      %2070 = vmatpush2.bf16.msra.mxu0 %v1477
      %2071 = vmatprep.subr.bf16.mxu0 0
      %2072 = vmatpush2.bf16.msra.mxu0 %v1476
      %2073 = vmatprep.subr.bf16.mxu0 0
      %2074 = vmatpush2.bf16.msra.mxu0 %v1475
      %2075 = vmatprep.subr.bf16.mxu0 0
      %2076 = vmatpush2.bf16.msra.mxu0 %v1474
      %2077 = vmatprep.mubr.bf16.mxu0 %v678
      %2078 = vmatmul.mubr.bf16.gmra.mxu0 %v610
      %v2079 = vpop.f32.mrf.mxu0
      %v2080 = vadd.f32 %v1919, %v2079
      %v2081 = vpop.f32.mrf.mxu0
      %v2082 = vpop.f32.mrf.mxu0
      %v2083 = vadd.f32 %v1922, %v2082
      %v2084 = vpop.f32.mrf.mxu0
      %2085 = vmatprep.mubr.bf16.mxu0 %v690
      %2086 = vmatmul.mubr.bf16.gmra.mxu0 %v612
      %v2087 = vpop.f32.mrf.mxu0
      %v2088 = vadd.f32 %v1927, %v2087
      %v2089 = vpop.f32.mrf.mxu0
      %v2090 = vpop.f32.mrf.mxu0
      %v2091 = vadd.f32 %v1930, %v2090
      %v2092 = vpop.f32.mrf.mxu0
      %2093 = vmatprep.mubr.bf16.mxu0 %v702
      %2094 = vmatmul.mubr.bf16.gmra.mxu0 %v614
      %v2095 = vpop.f32.mrf.mxu0
      %v2096 = vadd.f32 %v1935, %v2095
      %v2097 = vpop.f32.mrf.mxu0
      %v2098 = vpop.f32.mrf.mxu0
      %v2099 = vadd.f32 %v1938, %v2098
      %v2100 = vpop.f32.mrf.mxu0
      %2101 = vmatprep.mubr.bf16.mxu0 %v714
      %2102 = vmatmul.mubr.bf16.gmra.mxu0 %v616
      %v2103 = vpop.f32.mrf.mxu0
      %v2104 = vadd.f32 %v1943, %v2103
      %v2105 = vpop.f32.mrf.mxu0
      %v2106 = vpop.f32.mrf.mxu0
      %v2107 = vadd.f32 %v1946, %v2106
      %v2108 = vpop.f32.mrf.mxu0
      %2109 = vmatprep.mubr.bf16.mxu0 %v726
      %2110 = vmatmul.mubr.bf16.gmra.mxu0 %v618
      %v2111 = vpop.f32.mrf.mxu0
      %v2112 = vadd.f32 %v1951, %v2111
      %v2113 = vpop.f32.mrf.mxu0
      %v2114 = vpop.f32.mrf.mxu0
      %v2115 = vadd.f32 %v1954, %v2114
      %v2116 = vpop.f32.mrf.mxu0
      %2117 = vmatprep.mubr.bf16.mxu0 %v738
      %2118 = vmatmul.mubr.bf16.gmra.mxu0 %v620
      %v2119 = vpop.f32.mrf.mxu0
      %v2120 = vadd.f32 %v1959, %v2119
      %v2121 = vpop.f32.mrf.mxu0
      %v2122 = vpop.f32.mrf.mxu0
      %v2123 = vadd.f32 %v1962, %v2122
      %v2124 = vpop.f32.mrf.mxu0
      %2125 = vmatprep.mubr.bf16.mxu0 %v750
      %2126 = vmatmul.mubr.bf16.gmra.mxu0 %v622
      %v2127 = vpop.f32.mrf.mxu0
      %v2128 = vadd.f32 %v1967, %v2127
      %v2129 = vpop.f32.mrf.mxu0
      %v2130 = vpop.f32.mrf.mxu0
      %v2131 = vadd.f32 %v1970, %v2130
      %v2132 = vpop.f32.mrf.mxu0
      %2133 = vmatprep.mubr.bf16.mxu0 %v762
      %2134 = vmatmul.mubr.bf16.gmra.mxu0 %v624
      %v2135 = vpop.f32.mrf.mxu0
      %v2136 = vadd.f32 %v1975, %v2135
      %v2137 = vpop.f32.mrf.mxu0
      %v2138 = vpop.f32.mrf.mxu0
      %v2139 = vadd.f32 %v1978, %v2138
      %v2140 = vpop.f32.mrf.mxu0
      %2141 = vmatprep.mubr.bf16.mxu0 %v774
      %2142 = vmatmul.mubr.bf16.gmra.mxu0 %v626
      %v2143 = vpop.f32.mrf.mxu0
      %v2144 = vadd.f32 %v1983, %v2143
      %v2145 = vpop.f32.mrf.mxu0
      %v2146 = vpop.f32.mrf.mxu0
      %v2147 = vadd.f32 %v1986, %v2146
      %v2148 = vpop.f32.mrf.mxu0
      %2149 = vmatprep.mubr.bf16.mxu0 %v786
      %2150 = vmatmul.mubr.bf16.gmra.mxu0 %v628
      %v2151 = vpop.f32.mrf.mxu0
      %v2152 = vadd.f32 %v1991, %v2151
      %v2153 = vpop.f32.mrf.mxu0
      %v2154 = vpop.f32.mrf.mxu0
      %v2155 = vadd.f32 %v1994, %v2154
      %v2156 = vpop.f32.mrf.mxu0
      %2157 = vmatprep.mubr.bf16.mxu0 %v798
      %2158 = vmatmul.mubr.bf16.gmra.mxu0 %v630
      %v2159 = vpop.f32.mrf.mxu0
      %v2160 = vadd.f32 %v1999, %v2159
      %v2161 = vpop.f32.mrf.mxu0
      %v2162 = vpop.f32.mrf.mxu0
      %v2163 = vadd.f32 %v2002, %v2162
      %v2164 = vpop.f32.mrf.mxu0
      %2165 = vmatprep.mubr.bf16.mxu0 %v810
      %2166 = vmatmul.mubr.bf16.gmra.mxu0 %v632
      %v2167 = vpop.f32.mrf.mxu0
      %v2168 = vadd.f32 %v2007, %v2167
      %v2169 = vpop.f32.mrf.mxu0
      %v2170 = vpop.f32.mrf.mxu0
      %v2171 = vadd.f32 %v2010, %v2170
      %v2172 = vpop.f32.mrf.mxu0
      %2173 = vmatprep.mubr.bf16.mxu0 %v822
      %2174 = vmatmul.mubr.bf16.gmra.mxu0 %v634
      %v2175 = vpop.f32.mrf.mxu0
      %v2176 = vadd.f32 %v2015, %v2175
      %v2177 = vpop.f32.mrf.mxu0
      %v2178 = vpop.f32.mrf.mxu0
      %v2179 = vadd.f32 %v2018, %v2178
      %v2180 = vpop.f32.mrf.mxu0
      %2181 = vmatprep.mubr.bf16.mxu0 %v834
      %2182 = vmatmul.mubr.bf16.gmra.mxu0 %v636
      %v2183 = vpop.f32.mrf.mxu0
      %v2184 = vadd.f32 %v2023, %v2183
      %v2185 = vpop.f32.mrf.mxu0
      %v2186 = vpop.f32.mrf.mxu0
      %v2187 = vadd.f32 %v2026, %v2186
      %v2188 = vpop.f32.mrf.mxu0
      %2189 = vmatprep.mubr.bf16.mxu0 %v959
      %2190 = vmatmul.mubr.bf16.gmra.mxu0 %v638
      %v2191 = vpop.f32.mrf.mxu0
      %v2192 = vadd.f32 %v2031, %v2191
      %v2193 = vpop.f32.mrf.mxu0
      %v2194 = vpop.f32.mrf.mxu0
      %v2195 = vadd.f32 %v2034, %v2194
      %v2196 = vpop.f32.mrf.mxu0
      %2197 = vmatprep.mubr.bf16.mxu0 %v978
      %2198 = vmatmul.mubr.bf16.gmra.mxu0 %v640
      %v2199 = vpop.f32.mrf.mxu0
      %v2200 = vadd.f32 %v2039, %v2199
      %v2201 = vpop.f32.mrf.mxu0
      %v2202 = vpop.f32.mrf.mxu0
      %v2203 = vadd.f32 %v2042, %v2202
      %v2204 = vpop.f32.mrf.mxu0
      %2205 = vdwg.mxu0
      %2206 = vmatprep.subr.bf16.mxu0 0
      %2207 = vmatpush1.bf16.msra.mxu0 %v1489
      %2208 = vmatprep.subr.bf16.mxu0 0
      %2209 = vmatpush1.bf16.msra.mxu0 %v1488
      %2210 = vmatprep.subr.bf16.mxu0 0
      %2211 = vmatpush1.bf16.msra.mxu0 %v1487
      %2212 = vmatprep.subr.bf16.mxu0 0
      %2213 = vmatpush1.bf16.msra.mxu0 %v1486
      %2214 = vmatprep.subr.bf16.mxu0 0
      %2215 = vmatpush1.bf16.msra.mxu0 %v1485
      %2216 = vmatprep.subr.bf16.mxu0 0
      %2217 = vmatpush1.bf16.msra.mxu0 %v1484
      %2218 = vmatprep.subr.bf16.mxu0 0
      %2219 = vmatpush1.bf16.msra.mxu0 %v1483
      %2220 = vmatprep.subr.bf16.mxu0 0
      %2221 = vmatpush1.bf16.msra.mxu0 %v1482
      %2222 = vmatprep.subr.bf16.mxu0 0
      %2223 = vmatpush2.bf16.msra.mxu0 0
      %2224 = vmatprep.subr.bf16.mxu0 0
      %2225 = vmatpush2.bf16.msra.mxu0 0
      %2226 = vmatprep.subr.bf16.mxu0 0
      %2227 = vmatpush2.bf16.msra.mxu0 0
      %2228 = vmatprep.subr.bf16.mxu0 0
      %2229 = vmatpush2.bf16.msra.mxu0 0
      %2230 = vmatprep.subr.bf16.mxu0 0
      %2231 = vmatpush2.bf16.msra.mxu0 0
      %2232 = vmatprep.subr.bf16.mxu0 0
      %2233 = vmatpush2.bf16.msra.mxu0 0
      %2234 = vmatprep.subr.bf16.mxu0 0
      %2235 = vmatpush2.bf16.msra.mxu0 0
      %2236 = vmatprep.subr.bf16.mxu0 0
      %2237 = vmatpush2.bf16.msra.mxu0 0
      %2238 = vmatprep.mubr.bf16.mxu0 0
      %2239 = vmatmul.mubr.bf16.gmra.mxu0 %v892
      %v2240 = vpop.f32.mrf.mxu0
      %v2241 = vadd.f32 %v2080, %v2240
      %v2242 = vpop.f32.mrf.mxu0
      %v2243 = vpop.f32.mrf.mxu0
      %v2244 = vadd.f32 %v2083, %v2243
      %v2245 = vpop.f32.mrf.mxu0
      %2246 = vmatprep.mubr.bf16.mxu0 0
      %2247 = vmatmul.mubr.bf16.gmra.mxu0 %v895
      %v2248 = vpop.f32.mrf.mxu0
      %v2249 = vadd.f32 %v2088, %v2248
      %v2250 = vpop.f32.mrf.mxu0
      %v2251 = vpop.f32.mrf.mxu0
      %v2252 = vadd.f32 %v2091, %v2251
      %v2253 = vpop.f32.mrf.mxu0
      %2254 = vmatprep.mubr.bf16.mxu0 0
      %2255 = vmatmul.mubr.bf16.gmra.mxu0 %v898
      %v2256 = vpop.f32.mrf.mxu0
      %v2257 = vadd.f32 %v2096, %v2256
      %v2258 = vpop.f32.mrf.mxu0
      %v2259 = vpop.f32.mrf.mxu0
      %v2260 = vadd.f32 %v2099, %v2259
      %v2261 = vpop.f32.mrf.mxu0
      %2262 = vmatprep.mubr.bf16.mxu0 0
      %2263 = vmatmul.mubr.bf16.gmra.mxu0 %v901
      %v2264 = vpop.f32.mrf.mxu0
      %v2265 = vadd.f32 %v2104, %v2264
      %v2266 = vpop.f32.mrf.mxu0
      %v2267 = vpop.f32.mrf.mxu0
      %v2268 = vadd.f32 %v2107, %v2267
      %v2269 = vpop.f32.mrf.mxu0
      %2270 = vmatprep.mubr.bf16.mxu0 0
      %2271 = vmatmul.mubr.bf16.gmra.mxu0 %v904
      %v2272 = vpop.f32.mrf.mxu0
      %v2273 = vadd.f32 %v2112, %v2272
      %v2274 = vpop.f32.mrf.mxu0
      %v2275 = vpop.f32.mrf.mxu0
      %v2276 = vadd.f32 %v2115, %v2275
      %v2277 = vpop.f32.mrf.mxu0
      %2278 = vmatprep.mubr.bf16.mxu0 0
      %2279 = vmatmul.mubr.bf16.gmra.mxu0 %v907
      %v2280 = vpop.f32.mrf.mxu0
      %v2281 = vadd.f32 %v2120, %v2280
      %v2282 = vpop.f32.mrf.mxu0
      %v2283 = vpop.f32.mrf.mxu0
      %v2284 = vadd.f32 %v2123, %v2283
      %v2285 = vpop.f32.mrf.mxu0
      %2286 = vmatprep.mubr.bf16.mxu0 0
      %2287 = vmatmul.mubr.bf16.gmra.mxu0 %v910
      %v2288 = vpop.f32.mrf.mxu0
      %v2289 = vadd.f32 %v2128, %v2288
      %v2290 = vpop.f32.mrf.mxu0
      %v2291 = vpop.f32.mrf.mxu0
      %v2292 = vadd.f32 %v2131, %v2291
      %v2293 = vpop.f32.mrf.mxu0
      %2294 = vmatprep.mubr.bf16.mxu0 0
      %2295 = vmatmul.mubr.bf16.gmra.mxu0 %v913
      %v2296 = vpop.f32.mrf.mxu0
      %v2297 = vadd.f32 %v2136, %v2296
      %v2298 = vpop.f32.mrf.mxu0
      %v2299 = vpop.f32.mrf.mxu0
      %v2300 = vadd.f32 %v2139, %v2299
      %v2301 = vpop.f32.mrf.mxu0
      %2302 = vmatprep.mubr.bf16.mxu0 0
      %2303 = vmatmul.mubr.bf16.gmra.mxu0 %v916
      %v2304 = vpop.f32.mrf.mxu0
      %v2305 = vadd.f32 %v2144, %v2304
      %v2306 = vpop.f32.mrf.mxu0
      %v2307 = vpop.f32.mrf.mxu0
      %v2308 = vadd.f32 %v2147, %v2307
      %v2309 = vpop.f32.mrf.mxu0
      %2310 = vmatprep.mubr.bf16.mxu0 0
      %2311 = vmatmul.mubr.bf16.gmra.mxu0 %v919
      %v2312 = vpop.f32.mrf.mxu0
      %v2313 = vadd.f32 %v2152, %v2312
      %v2314 = vpop.f32.mrf.mxu0
      %v2315 = vpop.f32.mrf.mxu0
      %v2316 = vadd.f32 %v2155, %v2315
      %v2317 = vpop.f32.mrf.mxu0
      %2318 = vmatprep.mubr.bf16.mxu0 0
      %2319 = vmatmul.mubr.bf16.gmra.mxu0 %v922
      %v2320 = vpop.f32.mrf.mxu0
      %v2321 = vadd.f32 %v2160, %v2320
      %v2322 = vpop.f32.mrf.mxu0
      %v2323 = vpop.f32.mrf.mxu0
      %v2324 = vadd.f32 %v2163, %v2323
      %v2325 = vpop.f32.mrf.mxu0
      %2326 = vmatprep.mubr.bf16.mxu0 0
      %2327 = vmatmul.mubr.bf16.gmra.mxu0 %v925
      %v2328 = vpop.f32.mrf.mxu0
      %v2329 = vadd.f32 %v2168, %v2328
      %v2330 = vpop.f32.mrf.mxu0
      %v2331 = vpop.f32.mrf.mxu0
      %v2332 = vadd.f32 %v2171, %v2331
      %v2333 = vpop.f32.mrf.mxu0
      %2334 = vmatprep.mubr.bf16.mxu0 0
      %2335 = vmatmul.mubr.bf16.gmra.mxu0 %v928
      %v2336 = vpop.f32.mrf.mxu0
      %v2337 = vadd.f32 %v2176, %v2336
      %v2338 = vpop.f32.mrf.mxu0
      %v2339 = vpop.f32.mrf.mxu0
      %v2340 = vadd.f32 %v2179, %v2339
      %v2341 = vpop.f32.mrf.mxu0
      %2342 = vmatprep.mubr.bf16.mxu0 0
      %2343 = vmatmul.mubr.bf16.gmra.mxu0 %v931
      %v2344 = vpop.f32.mrf.mxu0
      %v2345 = vadd.f32 %v2184, %v2344
      %v2346 = vpop.f32.mrf.mxu0
      %v2347 = vpop.f32.mrf.mxu0
      %v2348 = vadd.f32 %v2187, %v2347
      %v2349 = vpop.f32.mrf.mxu0
      %2350 = vmatprep.mubr.bf16.mxu0 0
      %2351 = vmatmul.mubr.bf16.gmra.mxu0 %v965
      %v2352 = vpop.f32.mrf.mxu0
      %v2353 = vadd.f32 %v2192, %v2352
      %v2354 = vpop.f32.mrf.mxu0
      %v2355 = vpop.f32.mrf.mxu0
      %v2356 = vadd.f32 %v2195, %v2355
      %v2357 = vpop.f32.mrf.mxu0
      %2358 = vmatprep.mubr.bf16.mxu0 0
      %2359 = vmatmul.mubr.bf16.gmra.mxu0 %v984
      %v2360 = vpop.f32.mrf.mxu0
      %v2361 = vadd.f32 %v2200, %v2360
      %v2362 = vpop.f32.mrf.mxu0
      %v2363 = vpop.f32.mrf.mxu0
      %v2364 = vadd.f32 %v2203, %v2363
      %v2365 = vpop.f32.mrf.mxu0
      %2366 = vdwg.mxu0
      %2367 = vst [vmem:[%s274] sm:$0xff] %v2241
      %2368 = vst [vmem:[%s274 + $0x8] sm:$0xff] %v2244
      %2369 = vst [vmem:[%s274 + $0x10] sm:$0xff] %v2249
      %2370 = vst [vmem:[%s274 + $0x18] sm:$0xff] %v2252
      %2371 = vst [vmem:[%s274 + $0x20] sm:$0xff] %v2257
      %2372 = vst [vmem:[%s274 + $0x28] sm:$0xff] %v2260
      %2373 = vst [vmem:[%s274 + $0x30] sm:$0xff] %v2265
      %2374 = vst [vmem:[%s274 + $0x38] sm:$0xff] %v2268
      %2375 = vst [vmem:[%s274 + $0x40] sm:$0xff] %v2273
      %2376 = vst [vmem:[%s274 + $0x48] sm:$0xff] %v2276
      %2377 = vst [vmem:[%s274 + $0x50] sm:$0xff] %v2281
      %2378 = vst [vmem:[%s274 + $0x58] sm:$0xff] %v2284
      %2379 = vst [vmem:[%s274 + $0x60] sm:$0xff] %v2289
      %2380 = vst [vmem:[%s274 + $0x68] sm:$0xff] %v2292
      %2381 = vst [vmem:[%s274 + $0x70] sm:$0xff] %v2297
      %2382 = vst [vmem:[%s274 + $0x78] sm:$0xff] %v2300
      %2383 = vst [vmem:[%s274 + $0x80] sm:$0xff] %v2305
      %2384 = vst [vmem:[%s274 + $0x88] sm:$0xff] %v2308
      %2385 = vst [vmem:[%s274 + $0x90] sm:$0xff] %v2313
      %2386 = vst [vmem:[%s274 + $0x98] sm:$0xff] %v2316
      %2387 = vst [vmem:[%s274 + $0xa0] sm:$0xff] %v2321
      %2388 = vst [vmem:[%s274 + $0xa8] sm:$0xff] %v2324
      %2389 = vst [vmem:[%s274 + $0xb0] sm:$0xff] %v2329
      %2390 = vst [vmem:[%s274 + $0xb8] sm:$0xff] %v2332
      %2391 = vst [vmem:[%s274 + $0xc0] sm:$0xff] %v2337
      %2392 = vst [vmem:[%s274 + $0xc8] sm:$0xff] %v2340
      %2393 = vst [vmem:[%s274 + $0xd0] sm:$0xff] %v2345
      %2394 = vst [vmem:[%s274 + $0xd8] sm:$0xff] %v2348
      %2395 = vst [vmem:[%s274 + $0xe0] sm:$0xff] %v2353
      %2396 = vst [vmem:[%s274 + $0xe8] sm:$0xff] %v2356
      %2397 = vst [vmem:[%s274 + $0xf0] sm:$0xff] %v2361
      %2398 = vst [vmem:[%s274 + $0xf8] sm:$0xff] %v2364
      %v2399 = vadd.f32 %v2241, %v2244
      %v2400 = vadd.f32 %v2399, %v2249
      %v2401 = vadd.f32 %v2400, %v2252
      %v2402 = vadd.f32 %v2401, %v2257
      %v2403 = vadd.f32 %v2402, %v2260
      %v2404 = vadd.f32 %v2403, %v2265
      %v2405 = vadd.f32 %v2404, %v2268
      %v2406 = vadd.f32 %v2405, %v2273
      %v2407 = vadd.f32 %v2406, %v2276
      %v2408 = vadd.f32 %v2407, %v2281
      %v2409 = vadd.f32 %v2408, %v2284
      %v2410 = vadd.f32 %v2409, %v2289
      %v2411 = vadd.f32 %v2410, %v2292
      %v2412 = vadd.f32 %v2411, %v2297
      %v2413 = vadd.f32 %v2412, %v2300
      %v2414 = vadd.f32 %v2413, %v2305
      %v2415 = vadd.f32 %v2414, %v2308
      %v2416 = vadd.f32 %v2415, %v2313
      %v2417 = vadd.f32 %v2416, %v2316
      %v2418 = vadd.f32 %v2417, %v2321
      %v2419 = vadd.f32 %v2418, %v2324
      %v2420 = vadd.f32 %v2419, %v2329
      %v2421 = vadd.f32 %v2420, %v2332
      %v2422 = vadd.f32 %v2421, %v2337
      %v2423 = vadd.f32 %v2422, %v2340
      %v2424 = vadd.f32 %v2423, %v2345
      %v2425 = vadd.f32 %v2424, %v2348
      %v2426 = vadd.f32 %v2425, %v2353
      %v2427 = vadd.f32 %v2426, %v2356
      %v2428 = vadd.f32 %v2427, %v2361
      %v2429 = vadd.f32 %v2428, %v2364
      %v2430 = vrot.slane %v2429, 4
      %v2431 = vadd.f32 %v2429, %v2430
      %v2432 = vrot.slane %v2431, 2
      %v2433 = vadd.f32 %v2431, %v2432
      %v2434 = vrot.slane %v2433, 1
      %v2435 = vadd.f32 %v2433, %v2434
      %v2436 = vrcp.pop 256.0
      %v2437 = vmul.f32 %v2435, %v2436
      %v2438 = vsub.f32 %v2241, %v2437
      %v2439 = vsub.f32 %v2244, %v2437
      %v2440 = vsub.f32 %v2249, %v2437
      %v2441 = vsub.f32 %v2252, %v2437
      %v2442 = vsub.f32 %v2257, %v2437
      %v2443 = vsub.f32 %v2260, %v2437
      %v2444 = vsub.f32 %v2265, %v2437
      %v2445 = vsub.f32 %v2268, %v2437
      %v2446 = vsub.f32 %v2273, %v2437
      %v2447 = vsub.f32 %v2276, %v2437
      %v2448 = vsub.f32 %v2281, %v2437
      %v2449 = vsub.f32 %v2284, %v2437
      %v2450 = vsub.f32 %v2289, %v2437
      %v2451 = vsub.f32 %v2292, %v2437
      %v2452 = vsub.f32 %v2297, %v2437
      %v2453 = vsub.f32 %v2300, %v2437
      %v2454 = vsub.f32 %v2305, %v2437
      %v2455 = vsub.f32 %v2308, %v2437
      %v2456 = vsub.f32 %v2313, %v2437
      %v2457 = vsub.f32 %v2316, %v2437
      %v2458 = vsub.f32 %v2321, %v2437
      %v2459 = vsub.f32 %v2324, %v2437
      %v2460 = vsub.f32 %v2329, %v2437
      %v2461 = vsub.f32 %v2332, %v2437
      %v2462 = vsub.f32 %v2337, %v2437
      %v2463 = vsub.f32 %v2340, %v2437
      %v2464 = vsub.f32 %v2345, %v2437
      %v2465 = vsub.f32 %v2348, %v2437
      %v2466 = vsub.f32 %v2353, %v2437
      %v2467 = vsub.f32 %v2356, %v2437
      %v2468 = vsub.f32 %v2361, %v2437
      %v2469 = vsub.f32 %v2364, %v2437
      %2470 = vst [vmem:[%s282] sm:$0x1] %v2435
      %v2471 = vmul.f32 %v2438, %v2438
      %v2472 = vmul.f32 %v2439, %v2439
      %v2473 = vmul.f32 %v2440, %v2440
      %v2474 = vmul.f32 %v2441, %v2441
      %v2475 = vmul.f32 %v2442, %v2442
      %v2476 = vmul.f32 %v2443, %v2443
      %v2477 = vmul.f32 %v2444, %v2444
      %v2478 = vmul.f32 %v2445, %v2445
      %v2479 = vmul.f32 %v2446, %v2446
      %v2480 = vmul.f32 %v2447, %v2447
      %v2481 = vmul.f32 %v2448, %v2448
      %v2482 = vmul.f32 %v2449, %v2449
      %v2483 = vmul.f32 %v2450, %v2450
      %v2484 = vmul.f32 %v2451, %v2451
      %v2485 = vmul.f32 %v2452, %v2452
      %v2486 = vmul.f32 %v2453, %v2453
      %v2487 = vmul.f32 %v2454, %v2454
      %v2488 = vmul.f32 %v2455, %v2455
      %v2489 = vmul.f32 %v2456, %v2456
      %v2490 = vmul.f32 %v2457, %v2457
      %v2491 = vmul.f32 %v2458, %v2458
      %v2492 = vmul.f32 %v2459, %v2459
      %v2493 = vmul.f32 %v2460, %v2460
      %v2494 = vmul.f32 %v2461, %v2461
      %v2495 = vmul.f32 %v2462, %v2462
      %v2496 = vmul.f32 %v2463, %v2463
      %v2497 = vmul.f32 %v2464, %v2464
      %v2498 = vmul.f32 %v2465, %v2465
      %v2499 = vmul.f32 %v2466, %v2466
      %v2500 = vmul.f32 %v2467, %v2467
      %v2501 = vmul.f32 %v2468, %v2468
      %v2502 = vmul.f32 %v2469, %v2469
      %v2503 = vadd.f32 %v2471, %v2472
      %v2504 = vadd.f32 %v2503, %v2473
      %v2505 = vadd.f32 %v2504, %v2474
      %v2506 = vadd.f32 %v2505, %v2475
      %v2507 = vadd.f32 %v2506, %v2476
      %v2508 = vadd.f32 %v2507, %v2477
      %v2509 = vadd.f32 %v2508, %v2478
      %v2510 = vadd.f32 %v2509, %v2479
      %v2511 = vadd.f32 %v2510, %v2480
      %v2512 = vadd.f32 %v2511, %v2481
      %v2513 = vadd.f32 %v2512, %v2482
      %v2514 = vadd.f32 %v2513, %v2483
      %v2515 = vadd.f32 %v2514, %v2484
      %v2516 = vadd.f32 %v2515, %v2485
      %v2517 = vadd.f32 %v2516, %v2486
      %v2518 = vadd.f32 %v2517, %v2487
      %v2519 = vadd.f32 %v2518, %v2488
      %v2520 = vadd.f32 %v2519, %v2489
      %v2521 = vadd.f32 %v2520, %v2490
      %v2522 = vadd.f32 %v2521, %v2491
      %v2523 = vadd.f32 %v2522, %v2492
      %v2524 = vadd.f32 %v2523, %v2493
      %v2525 = vadd.f32 %v2524, %v2494
      %v2526 = vadd.f32 %v2525, %v2495
      %v2527 = vadd.f32 %v2526, %v2496
      %v2528 = vadd.f32 %v2527, %v2497
      %v2529 = vadd.f32 %v2528, %v2498
      %v2530 = vadd.f32 %v2529, %v2499
      %v2531 = vadd.f32 %v2530, %v2500
      %v2532 = vadd.f32 %v2531, %v2501
      %v2533 = vadd.f32 %v2532, %v2502
      %v2534 = vrot.slane %v2533, 4
      %v2535 = vadd.f32 %v2533, %v2534
      %v2536 = vrot.slane %v2535, 2
      %v2537 = vadd.f32 %v2535, %v2536
      %v2538 = vrot.slane %v2537, 1
      %v2539 = vadd.f32 %v2537, %v2538
      %2540 = vst [vmem:[%s282 + $0x1] sm:$0x1] %v2539
      %s2541 = smul.u32 16, %s22
      %p2542 = scmp.lt.s32.totalorder %s21, 1
      %s2543 = scalar_select %p2542, %s21, 1
      %p2544 = scmp.lt.s32.totalorder %s2541, 15
      %s2545 = scalar_select %p2544, %s2541, 15
      %s2546 = smul.addr %s2545, 2
      %s2547 = smul.addr %s2543, 32
      %s2548 = sadd.s32 %s2546, %s2547
      %s2549 = smul.addr %s2548, 8
      %s2550 = scalar_lea.vmem %s4, %s2549
      %p2551 = scmp.lt.s32.totalorder %s21, 1
      %s2552 = scalar_select %p2551, %s21, 1
      %p2553 = scmp.lt.s32.totalorder %s22, 0
      %s2554 = scalar_select %p2553, %s22, 0
      %s2555 = sadd.s32 %s2554, %s2552
      %s2556 = smul.addr %s2555, 2
      %s2557 = scalar_lea.vmem %s5, %s2556
      // Predicated region
      $region37: #{decoder_block_forward.6} parent=35 // pred_check
        %p2558 = pneg %p140
      $region38: #{decoder_block_forward.6} parent=35 // pred_check_branch
        %2560 = sbr.rel (%p2558) target = $region40
      $region39: #{decoder_block_forward.6} parent=35 // pred_region
        %s2561 = smul.u32 16, %s22
      $region40: #{decoder_block_forward.6} parent=35 // pred_fallthru
        _
      // Predicated region
      $region41: #{decoder_block_forward.6} parent=35 // pred_check
        %p2562 = pneg %p168
      $region42: #{decoder_block_forward.6} parent=35 // pred_check_branch
        %2564 = sbr.rel (%p2562) target = $region44
      $region43: #{decoder_block_forward.6} parent=35 // pred_region
        _
      $region44: #{decoder_block_forward.6} parent=35 // pred_fallthru
        _
    $region36: #{decoder_block_forward.6} parent=5 // pred_fallthru
      _
    %p2565 = scmp.le.s32.totalorder 2, %s12
    // Predicated region
    $region45: #{decoder_block_forward.6} parent=5 // pred_check
      %p2566 = pneg %p2565
    $region46: #{decoder_block_forward.6} parent=5 // pred_check_branch
      %2568 = sbr.rel (%p2566) target = $region48
    $region47: #{decoder_block_forward.6} parent=5 // pred_region
      %s2569 = ssub.s32 %s12, 2
      // Predicated region
      $region49: #{decoder_block_forward.6} parent=47 // pred_check
        %p2570 = pneg %p146
      $region50: #{decoder_block_forward.6} parent=47 // pred_check_branch
        %2572 = sbr.rel (%p2570) target = $region52
      $region51: #{decoder_block_forward.6} parent=47 // pred_region
        %s2573 = smul.u32 16, %s24
        %p2574 = scmp.lt.s32.totalorder %s23, 1
        %s2575 = scalar_select %p2574, %s23, 1
        %p2576 = scmp.lt.s32.totalorder %s2573, 15
        %s2577 = scalar_select %p2576, %s2573, 15
        %s2578 = smul.addr %s2577, 2
        %s2579 = smul.addr %s2575, 32
        %s2580 = sadd.s32 %s2578, %s2579
        %s2581 = smul.addr %s2580, 8
        %s2582 = scalar_lea.vmem %s4, %s2581
      $region52: #{decoder_block_forward.6} parent=47 // pred_fallthru
        _
      // Predicated region
      $region53: #{decoder_block_forward.6} parent=47 // pred_check
        %p2583 = pneg %p174
      $region54: #{decoder_block_forward.6} parent=47 // pred_check_branch
        %2585 = sbr.rel (%p2583) target = $region56
      $region55: #{decoder_block_forward.6} parent=47 // pred_region
        %p2586 = scmp.lt.s32.totalorder %s23, 1
        %s2587 = scalar_select %p2586, %s23, 1
        %p2588 = scmp.lt.s32.totalorder %s24, 0
        %s2589 = scalar_select %p2588, %s24, 0
        %s2590 = sadd.s32 %s2589, %s2587
        %s2591 = smul.addr %s2590, 2
        %s2592 = scalar_lea.vmem %s5, %s2591
      $region56: #{decoder_block_forward.6} parent=47 // pred_fallthru
        _
    $region48: #{decoder_block_forward.6} parent=5 // pred_fallthru
      _
  $region6: #{decoder_block_forward.6} parent=0 // loop_footer
    %s16 = sadd.s32 1, %s12
  $region7: #{decoder_block_forward.6} parent=0 // loop_footer_branch
    %11 = sbr.rel target = $region3
  $region8: #{decoder_block_forward.6} parent=0 // loop_exit
    _

// kernel: decoder_block_forward.5
$region0: #{decoder_block_forward.5}
  #allocation0 [shape = 'u32[]', space=smem, size = 0x4, offset = 0x4, fixed_abs, tag = 'smem constant byte address 0x4 - core index']
  #allocation1 [shape = 'u32[144,128]{1,0:T(1,128)}', space=vmem, size = 0x12000, scoped, tag = 'internal scratch']
  %s0 = inlined_call_operand.vmem [shape: bf16[2,1,18,18,128], index: 0, kind: input, shape index: {}]
  %s1 = inlined_call_operand.vmem [shape: bf16[2,1,18,18,128], index: 1, kind: input, shape index: {}]
  %s2 = inlined_call_operand.vmem [shape: bf16[2304,128], index: 2, kind: input, shape index: {}]
  %s3 = inlined_call_operand.vmem [shape: f32[2,16,16,128], index: 3, kind: output, shape index: {0}]
  %s4 = inlined_call_operand.vmem [shape: f32[2,1,2,128], index: 4, kind: output, shape index: {1}]
  %5 = xla_tuple %s3, %s4
  %s6 = sld [smem:[#allocation0]]
  $region53: #{decoder_block_forward.5} parent=0
    _
  %s8 = ssub.s32 1, %s6
  %s9 = scalar_select 0, %s8, %s6
  loop: start=0, step=1, limit=4
  $region2: #{decoder_block_forward.5} parent=0 // loop_pre_header
    _
  $region3: #{decoder_block_forward.5} parent=0 // loop_header
    %s11 = sphi 0, %s15
    %p12 = scmp.ge.s32.totalorder %s11, 4
    %s18 = sphi 0, %s30
    %s19 = sphi 0, %s26
    %s20 = sphi 0, %s18
    %s21 = sphi 0, %s19
    %s22 = sphi 0, %s20
    %s23 = sphi 0, %s21
    %s35 = sphi 0, %s37
    %s38 = sphi 0, %s35
    %s39 = sphi 0, %s38
    %s55 = sphi 0, %s39
    %s63 = sphi 0, %s65
    %s66 = sphi 0, %s63
    %s67 = sphi 0, %s66
    %s83 = sphi 0, %s67
    %s87 = sphi 0, %s87
    %s89 = sphi 0, %s87
    %s90 = sphi 0, %s89
    %s104 = sphi 0, %s90
    %s112 = sphi 0, %s114
    %s115 = sphi 0, %s112
    %s116 = sphi 0, %s115
    %s132 = sphi 0, %s116
    %s140 = sphi 0, %s142
    %s143 = sphi 0, %s140
    %s144 = sphi 0, %s143
    %s160 = sphi 0, %s144
  $region4: #{decoder_block_forward.5} parent=0 // loop_header_branch
    %14 = sbr.rel (%p12) target = $region8
  $region5: #{decoder_block_forward.5} parent=0 // loop_body
    %s16 = ssub.s32 %s11, 1
    %s17 = ssub.s32 %s11, 2
    %s24 = sadd.s32 1, %s19
    %p25 = scmp.ge.s32.totalorder %s24, 1
    %s26 = scalar_select %p25, 0, %s24
    %s27 = sadd.s32 1, %s18
    %s28 = scalar_select %p25, %s27, %s18
    %p29 = scmp.ge.s32.totalorder %s28, 2
    %s30 = scalar_select %p29, 0, %s28
    %s31 = ssub.s32 %s18, %s30
    %s32 = ssub.s32 %s19, %s26
    %s33 = sor.u32 %s31, %s32
    %p34 = scmp.eq.s32.totalorder %s33, 0
    %s36 = sadd.s32 %s35, 1
    %s37 = scalar_select %p34, %s35, %s36
    %p40 = pneg %p34
    %p41 = scmp.eq.s32.totalorder %s11, 1
    %p42 = por %p40, %p41
    %p43 = scmp.ne.s32.totalorder %s35, %s38
    %p44 = scmp.eq.s32.totalorder %s11, 0
    %p45 = por %p43, %p44
    %p46 = scmp.ne.s32.totalorder %s35, %s38
    %p47 = scmp.eq.s32.totalorder %s16, 1
    %p48 = por %p46, %p47
    %p49 = scmp.ne.s32.totalorder %s38, %s39
    %p50 = scmp.eq.s32.totalorder %s16, 0
    %p51 = por %p49, %p50
    %p52 = scmp.ne.s32.totalorder %s38, %s39
    %p53 = scmp.eq.s32.totalorder %s17, 1
    %p54 = por %p52, %p53
    %p56 = scmp.ne.s32.totalorder %s39, %s55
    %p57 = scmp.eq.s32.totalorder %s17, 0
    %p58 = por %p56, %p57
    %s59 = ssub.s32 %s18, %s30
    %s60 = ssub.s32 %s19, %s26
    %s61 = sor.u32 %s59, %s60
    %p62 = scmp.eq.s32.totalorder %s61, 0
    %s64 = sadd.s32 %s63, 1
    %s65 = scalar_select %p62, %s63, %s64
    %p68 = pneg %p62
    %p69 = scmp.eq.s32.totalorder %s11, 1
    %p70 = por %p68, %p69
    %p71 = scmp.ne.s32.totalorder %s63, %s66
    %p72 = scmp.eq.s32.totalorder %s11, 0
    %p73 = por %p71, %p72
    %p74 = scmp.ne.s32.totalorder %s63, %s66
    %p75 = scmp.eq.s32.totalorder %s16, 1
    %p76 = por %p74, %p75
    %p77 = scmp.ne.s32.totalorder %s66, %s67
    %p78 = scmp.eq.s32.totalorder %s16, 0
    %p79 = por %p77, %p78
    %p80 = scmp.ne.s32.totalorder %s66, %s67
    %p81 = scmp.eq.s32.totalorder %s17, 1
    %p82 = por %p80, %p81
    %p84 = scmp.ne.s32.totalorder %s67, %s83
    %p85 = scmp.eq.s32.totalorder %s17, 0
    %p86 = por %p84, %p85
    %s88 = sadd.s32 %s87, 1
    %p91 = scmp.eq.s32.totalorder %s11, 1
    %p92 = scmp.ne.s32.totalorder %s87, %s89
    %p93 = scmp.eq.s32.totalorder %s11, 0
    %p94 = por %p92, %p93
    %p95 = scmp.ne.s32.totalorder %s87, %s89
    %p96 = scmp.eq.s32.totalorder %s16, 1
    %p97 = por %p95, %p96
    %p98 = scmp.ne.s32.totalorder %s89, %s90
    %p99 = scmp.eq.s32.totalorder %s16, 0
    %p100 = por %p98, %p99
    %p101 = scmp.ne.s32.totalorder %s89, %s90
    %p102 = scmp.eq.s32.totalorder %s17, 1
    %p103 = por %p101, %p102
    %p105 = scmp.ne.s32.totalorder %s90, %s104
    %p106 = scmp.eq.s32.totalorder %s17, 0
    %p107 = por %p105, %p106
    %s108 = ssub.s32 %s18, %s30
    %s109 = ssub.s32 %s19, %s26
    %s110 = sor.u32 %s108, %s109
    %p111 = scmp.eq.s32.totalorder %s110, 0
    %s113 = sadd.s32 %s112, 1
    %s114 = scalar_select %p111, %s112, %s113
    %p117 = pneg %p111
    %p118 = scmp.eq.s32.totalorder %s11, 1
    %p119 = por %p117, %p118
    %p120 = scmp.ne.s32.totalorder %s112, %s115
    %p121 = scmp.eq.s32.totalorder %s11, 0
    %p122 = por %p120, %p121
    %p123 = scmp.ne.s32.totalorder %s112, %s115
    %p124 = scmp.eq.s32.totalorder %s16, 1
    %p125 = por %p123, %p124
    %p126 = scmp.ne.s32.totalorder %s115, %s116
    %p127 = scmp.eq.s32.totalorder %s16, 0
    %p128 = por %p126, %p127
    %p129 = scmp.ne.s32.totalorder %s115, %s116
    %p130 = scmp.eq.s32.totalorder %s17, 1
    %p131 = por %p129, %p130
    %p133 = scmp.ne.s32.totalorder %s116, %s132
    %p134 = scmp.eq.s32.totalorder %s17, 0
    %p135 = por %p133, %p134
    %s136 = ssub.s32 %s18, %s30
    %s137 = ssub.s32 %s19, %s26
    %s138 = sor.u32 %s136, %s137
    %p139 = scmp.eq.s32.totalorder %s138, 0
    %s141 = sadd.s32 %s140, 1
    %s142 = scalar_select %p139, %s140, %s141
    %p145 = pneg %p139
    %p146 = scmp.eq.s32.totalorder %s11, 1
    %p147 = por %p145, %p146
    %p148 = scmp.ne.s32.totalorder %s140, %s143
    %p149 = scmp.eq.s32.totalorder %s11, 0
    %p150 = por %p148, %p149
    %p151 = scmp.ne.s32.totalorder %s140, %s143
    %p152 = scmp.eq.s32.totalorder %s16, 1
    %p153 = por %p151, %p152
    %p154 = scmp.ne.s32.totalorder %s143, %s144
    %p155 = scmp.eq.s32.totalorder %s16, 0
    %p156 = por %p154, %p155
    %p157 = scmp.ne.s32.totalorder %s143, %s144
    %p158 = scmp.eq.s32.totalorder %s17, 1
    %p159 = por %p157, %p158
    %p161 = scmp.ne.s32.totalorder %s144, %s160
    %p162 = scmp.eq.s32.totalorder %s17, 0
    %p163 = por %p161, %p162
    %p164 = scmp.le.s32.totalorder 1, %s11
    %p165 = scmp.lt.s32.totalorder %s11, 3
    %p166 = pnand %p164, %p165
    %p167 = pneg %p166
    // Predicated region
    $region9: #{decoder_block_forward.5} parent=5 // pred_check
      _
    $region10: #{decoder_block_forward.5} parent=5 // pred_check_branch
      %169 = sbr.rel (%p166) target = $region12
    $region11: #{decoder_block_forward.5} parent=5 // pred_region
      %s170 = ssub.s32 %s11, 1
      // Predicated region
      $region13: #{decoder_block_forward.5} parent=11 // pred_check
        %p171 = pneg %p100
      $region14: #{decoder_block_forward.5} parent=11 // pred_check_branch
        %173 = sbr.rel (%p171) target = $region16
      $region15: #{decoder_block_forward.5} parent=11 // pred_region
        _
      $region16: #{decoder_block_forward.5} parent=11 // pred_fallthru
        _
    $region12: #{decoder_block_forward.5} parent=5 // pred_fallthru
      _
    %p174 = scmp.lt.s32.totalorder %s11, 2
    // Predicated region
    $region17: #{decoder_block_forward.5} parent=5 // pred_check
      %p175 = pneg %p174
    $region18: #{decoder_block_forward.5} parent=5 // pred_check_branch
      %177 = sbr.rel (%p175) target = $region20
    $region19: #{decoder_block_forward.5} parent=5 // pred_region
      // Predicated region
      $region21: #{decoder_block_forward.5} parent=19 // pred_check
        %p178 = pneg %p45
      $region22: #{decoder_block_forward.5} parent=19 // pred_check_branch
        %180 = sbr.rel (%p178) target = $region24
      $region23: #{decoder_block_forward.5} parent=19 // pred_region
        %p181 = scmp.lt.s32.totalorder %s18, 1
        %s182 = scalar_select %p181, %s18, 1
        %p183 = scmp.lt.s32.totalorder %s19, 0
        %s184 = scalar_select %p183, %s19, 0
        %s185 = smul.addr %s184, 54
        %s186 = smul.addr %s182, 54
        %s187 = sadd.s32 %s185, %s186
        %s188 = smul.addr %s187, 4
        %s189 = scalar_lea.vmem %s0, %s188
      $region24: #{decoder_block_forward.5} parent=19 // pred_fallthru
        _
      // Predicated region
      $region25: #{decoder_block_forward.5} parent=19 // pred_check
        %p190 = pneg %p73
      $region26: #{decoder_block_forward.5} parent=19 // pred_check_branch
        %192 = sbr.rel (%p190) target = $region28
      $region27: #{decoder_block_forward.5} parent=19 // pred_region
        %p193 = scmp.lt.s32.totalorder %s18, 1
        %s194 = scalar_select %p193, %s18, 1
        %p195 = scmp.lt.s32.totalorder %s19, 0
        %s196 = scalar_select %p195, %s19, 0
        %s197 = smul.addr %s196, 54
        %s198 = smul.addr %s194, 54
        %s199 = sadd.s32 %s197, %s198
        %s200 = smul.addr %s199, 4
        %s201 = scalar_lea.vmem %s1, %s200
      $region28: #{decoder_block_forward.5} parent=19 // pred_fallthru
        _
    $region20: #{decoder_block_forward.5} parent=5 // pred_fallthru
      _
    %p202 = scmp.le.s32.totalorder 1, %s11
    %p203 = scmp.lt.s32.totalorder %s11, 3
    %p204 = pnand %p202, %p203
    %p205 = pneg %p204
    // Predicated region
    $region29: #{decoder_block_forward.5} parent=5 // pred_check
      _
    $region30: #{decoder_block_forward.5} parent=5 // pred_check_branch
      %207 = sbr.rel (%p204) target = $region32
    $region31: #{decoder_block_forward.5} parent=5 // pred_region
      %s208 = ssub.s32 %s11, 1
      %p209 = scmp.lt.s32.totalorder %s20, 1
      %s210 = scalar_select %p209, %s20, 1
      %p211 = scmp.lt.s32.totalorder %s21, 0
      %s212 = scalar_select %p211, %s21, 0
      %s213 = smul.addr %s212, 54
      %s214 = smul.addr %s210, 54
      %s215 = sadd.s32 %s213, %s214
      %s216 = smul.addr %s215, 4
      %s217 = scalar_lea.vmem %s0, %s216
      %p218 = pneg %p51
      %p219 = pneg %p48
      %p220 = scmp.lt.s32.totalorder %s20, 1
      %s221 = scalar_select %p220, %s20, 1
      %p222 = scmp.lt.s32.totalorder %s21, 0
      %s223 = scalar_select %p222, %s21, 0
      %s224 = smul.addr %s223, 54
      %s225 = smul.addr %s221, 54
      %s226 = sadd.s32 %s224, %s225
      %s227 = smul.addr %s226, 4
      %s228 = scalar_lea.vmem %s1, %s227
      %p229 = pneg %p79
      %p230 = pneg %p76
      %p231 = pneg %p100
      %p232 = pneg %p97
      %p233 = pneg %p128
      %p234 = pneg %p125
      %s235 = smul.u32 16, %s21
      %p236 = scmp.lt.s32.totalorder %s20, 1
      %s237 = scalar_select %p236, %s20, 1
      %p238 = scmp.lt.s32.totalorder %s235, 15
      %s239 = scalar_select %p238, %s235, 15
      %s240 = smul.addr %s239, 2
      %s241 = smul.addr %s237, 32
      %s242 = sadd.s32 %s240, %s241
      %s243 = smul.addr %s242, 8
      %s244 = scalar_lea.vmem %s3, %s243
      %p245 = pneg %p156
      %p246 = pneg %p153
      %p247 = scmp.lt.s32.totalorder %s20, 1
      %s248 = scalar_select %p247, %s20, 1
      %p249 = scmp.lt.s32.totalorder %s21, 0
      %s250 = scalar_select %p249, %s21, 0
      %s251 = sadd.s32 %s250, %s248
      %s252 = smul.addr %s251, 2
      %s253 = scalar_lea.vmem %s4, %s252
      %p254 = scmp.lt.s32.totalorder %s20, 1
      %s255 = scalar_select %p254, %s20, 1
      %p256 = scmp.lt.s32.totalorder %s21, 0
      %s257 = scalar_select %p256, %s21, 0
      %s258 = smul.addr %s257, 54
      %s259 = smul.addr %s255, 54
      %s260 = sadd.s32 %s258, %s259
      %s261 = smul.addr %s260, 4
      %s262 = scalar_lea.vmem %s0, %s261
      %p263 = scmp.lt.s32.totalorder %s20, 1
      %s264 = scalar_select %p263, %s20, 1
      %p265 = scmp.lt.s32.totalorder %s21, 0
      %s266 = scalar_select %p265, %s21, 0
      %s267 = smul.addr %s266, 54
      %s268 = smul.addr %s264, 54
      %s269 = sadd.s32 %s267, %s268
      %s270 = smul.addr %s269, 4
      %s271 = scalar_lea.vmem %s1, %s270
      %s272 = smul.u32 16, %s21
      %p273 = scmp.lt.s32.totalorder %s20, 1
      %s274 = scalar_select %p273, %s20, 1
      %p275 = scmp.lt.s32.totalorder %s272, 15
      %s276 = scalar_select %p275, %s272, 15
      %s277 = smul.addr %s276, 2
      %s278 = smul.addr %s274, 32
      %s279 = sadd.s32 %s277, %s278
      %s280 = smul.addr %s279, 8
      %s281 = scalar_lea.vmem %s3, %s280
      %s282 = smul.u32 16, %s21
      %p283 = scmp.lt.s32.totalorder %s20, 1
      %s284 = scalar_select %p283, %s20, 1
      %p285 = scmp.lt.s32.totalorder %s21, 0
      %s286 = scalar_select %p285, %s21, 0
      %s287 = sadd.s32 %s286, %s284
      %s288 = smul.addr %s287, 2
      %s289 = scalar_lea.vmem %s4, %s288
      %v291 = vld [vmem:[%s262] sm:$0xf]
      %v292 = vld [vmem:[%s262 + $0x4] sm:$0xf]
      %v293 = vld [vmem:[%s262 + $0xc] sm:$0xf]
      %v294 = vld [vmem:[%s262 + $0x10] sm:$0xf]
      %v295 = vld [vmem:[%s262 + $0x18] sm:$0xf]
      %v296 = vld [vmem:[%s262 + $0x1c] sm:$0xf]
      %v297 = vld [vmem:[%s262 + $0x24] sm:$0xf]
      %v298 = vld [vmem:[%s262 + $0x28] sm:$0xf]
      %v299 = vld [vmem:[%s262 + $0x30] sm:$0xf]
      %v300 = vld [vmem:[%s262 + $0x34] sm:$0xf]
      %v301 = vld [vmem:[%s262 + $0x3c] sm:$0xf]
      %v302 = vld [vmem:[%s262 + $0x40] sm:$0xf]
      %v303 = vld [vmem:[%s262 + $0x48] sm:$0xf]
      %v304 = vld [vmem:[%s262 + $0x4c] sm:$0xf]
      %v305 = vld [vmem:[%s262 + $0x54] sm:$0xf]
      %v306 = vld [vmem:[%s262 + $0x58] sm:$0xf]
      %v307 = vld [vmem:[%s262 + $0x60] sm:$0xf]
      %v308 = vld [vmem:[%s262 + $0x64] sm:$0xf]
      %v309 = vld [vmem:[%s262 + $0x6c] sm:$0xf]
      %v310 = vld [vmem:[%s262 + $0x70] sm:$0xf]
      %v311 = vld [vmem:[%s262 + $0x78] sm:$0xf]
      %v312 = vld [vmem:[%s262 + $0x7c] sm:$0xf]
      %v313 = vld [vmem:[%s262 + $0x84] sm:$0xf]
      %v314 = vld [vmem:[%s262 + $0x88] sm:$0xf]
      %v315 = vld [vmem:[%s262 + $0x90] sm:$0xf]
      %v316 = vld [vmem:[%s262 + $0x94] sm:$0xf]
      %v317 = vld [vmem:[%s262 + $0x9c] sm:$0xf]
      %v318 = vld [vmem:[%s262 + $0xa0] sm:$0xf]
      %v319 = vld [vmem:[%s262 + $0xa8] sm:$0xf]
      %v320 = vld [vmem:[%s262 + $0xac] sm:$0xf]
      %v321 = vld [vmem:[%s262 + $0xb4] sm:$0xf]
      %v322 = vld [vmem:[%s262 + $0xb8] sm:$0xf]
      %v323 = vld [vmem:[%s271] sm:$0xf]
      %v324 = vld [vmem:[%s271 + $0x4] sm:$0xf]
      %v325 = vld [vmem:[%s271 + $0xc] sm:$0xf]
      %v326 = vld [vmem:[%s271 + $0x10] sm:$0xf]
      %v327 = vld [vmem:[%s271 + $0x18] sm:$0xf]
      %v328 = vld [vmem:[%s271 + $0x1c] sm:$0xf]
      %v329 = vld [vmem:[%s271 + $0x24] sm:$0xf]
      %v330 = vld [vmem:[%s271 + $0x28] sm:$0xf]
      %v331 = vld [vmem:[%s271 + $0x30] sm:$0xf]
      %v332 = vld [vmem:[%s271 + $0x34] sm:$0xf]
      %v333 = vld [vmem:[%s271 + $0x3c] sm:$0xf]
      %v334 = vld [vmem:[%s271 + $0x40] sm:$0xf]
      %v335 = vld [vmem:[%s271 + $0x48] sm:$0xf]
      %v336 = vld [vmem:[%s271 + $0x4c] sm:$0xf]
      %v337 = vld [vmem:[%s271 + $0x54] sm:$0xf]
      %v338 = vld [vmem:[%s271 + $0x58] sm:$0xf]
      %v339 = vld [vmem:[%s271 + $0x60] sm:$0xf]
      %v340 = vld [vmem:[%s271 + $0x64] sm:$0xf]
      %v341 = vld [vmem:[%s271 + $0x6c] sm:$0xf]
      %v342 = vld [vmem:[%s271 + $0x70] sm:$0xf]
      %v343 = vld [vmem:[%s271 + $0x78] sm:$0xf]
      %v344 = vld [vmem:[%s271 + $0x7c] sm:$0xf]
      %v345 = vld [vmem:[%s271 + $0x84] sm:$0xf]
      %v346 = vld [vmem:[%s271 + $0x88] sm:$0xf]
      %v347 = vld [vmem:[%s271 + $0x90] sm:$0xf]
      %v348 = vld [vmem:[%s271 + $0x94] sm:$0xf]
      %v349 = vld [vmem:[%s271 + $0x9c] sm:$0xf]
      %v350 = vld [vmem:[%s271 + $0xa0] sm:$0xf]
      %v351 = vld [vmem:[%s271 + $0xa8] sm:$0xf]
      %v352 = vld [vmem:[%s271 + $0xac] sm:$0xf]
      %v353 = vld [vmem:[%s271 + $0xb4] sm:$0xf]
      %v354 = vld [vmem:[%s271 + $0xb8] sm:$0xf]
      %v355 = vld [vmem:[%s262 + $0x8] sm:$0x1]
      %v356 = vld [vmem:[%s262 + $0x14] sm:$0x1]
      %v357 = vld [vmem:[%s262 + $0x20] sm:$0x1]
      %v358 = vld [vmem:[%s262 + $0x2c] sm:$0x1]
      %v359 = vld [vmem:[%s262 + $0x38] sm:$0x1]
      %v360 = vld [vmem:[%s262 + $0x44] sm:$0x1]
      %v361 = vld [vmem:[%s262 + $0x50] sm:$0x1]
      %v362 = vld [vmem:[%s262 + $0x5c] sm:$0x1]
      %v363 = vld [vmem:[%s262 + $0x68] sm:$0x1]
      %v364 = vld [vmem:[%s262 + $0x74] sm:$0x1]
      %v365 = vld [vmem:[%s262 + $0x80] sm:$0x1]
      %v366 = vld [vmem:[%s262 + $0x8c] sm:$0x1]
      %v367 = vld [vmem:[%s262 + $0x98] sm:$0x1]
      %v368 = vld [vmem:[%s262 + $0xa4] sm:$0x1]
      %v369 = vld [vmem:[%s262 + $0xb0] sm:$0x1]
      %v370 = vld [vmem:[%s262 + $0xbc] sm:$0x1]
      %vm371 = vsmask.f32 3328
      %vm372 = vsmask.f32 7440
      %vm373 = vmor %vm371, %vm372
      %v375 = vshrl.u32 %v291, 16
      %v377 = vrot.slane %v375, 4
      %v378 = vshll.u32 %v291, 16
      %v380 = vrot.slane %v378, 5
      %v381 = vor.u32 %v377, %v380
      %v382 = vrot.slane %v381, 4
      %v384 = vshll.u32 %v292, 16
      %v386 = vrot.slane %v384, 5
      %v387 = vsel %vm373, %v382, %v386
      %v388 = vshrl.u32 %v292, 16
      %v390 = vrot.slane %v388, 4
      %v391 = vor.u32 %v390, %v386
      %v392 = vrot.slane %v391, 4
      %v394 = vshll.u32 %v355, 16
      %v396 = vrot.slane %v394, 5
      %v397 = vsel %vm373, %v392, %v396
      %v399 = vshrl.u32 %v293, 16
      %v401 = vrot.slane %v399, 4
      %v402 = vshll.u32 %v293, 16
      %v404 = vrot.slane %v402, 5
      %v405 = vor.u32 %v401, %v404
      %v406 = vrot.slane %v405, 4
      %v408 = vshll.u32 %v294, 16
      %v410 = vrot.slane %v408, 5
      %v411 = vsel %vm373, %v406, %v410
      %v412 = vshrl.u32 %v294, 16
      %v414 = vrot.slane %v412, 4
      %v415 = vor.u32 %v414, %v410
      %v416 = vrot.slane %v415, 4
      %v418 = vshll.u32 %v356, 16
      %v420 = vrot.slane %v418, 5
      %v421 = vsel %vm373, %v416, %v420
      %v423 = vshrl.u32 %v295, 16
      %v425 = vrot.slane %v423, 4
      %v426 = vshll.u32 %v295, 16
      %v428 = vrot.slane %v426, 5
      %v429 = vor.u32 %v425, %v428
      %v430 = vrot.slane %v429, 4
      %v432 = vshll.u32 %v296, 16
      %v434 = vrot.slane %v432, 5
      %v435 = vsel %vm373, %v430, %v434
      %v436 = vshrl.u32 %v296, 16
      %v438 = vrot.slane %v436, 4
      %v439 = vor.u32 %v438, %v434
      %v440 = vrot.slane %v439, 4
      %v442 = vshll.u32 %v357, 16
      %v444 = vrot.slane %v442, 5
      %v445 = vsel %vm373, %v440, %v444
      %v447 = vshrl.u32 %v297, 16
      %v449 = vrot.slane %v447, 4
      %v450 = vshll.u32 %v297, 16
      %v452 = vrot.slane %v450, 5
      %v453 = vor.u32 %v449, %v452
      %v454 = vrot.slane %v453, 4
      %v456 = vshll.u32 %v298, 16
      %v458 = vrot.slane %v456, 5
      %v459 = vsel %vm373, %v454, %v458
      %v460 = vshrl.u32 %v298, 16
      %v462 = vrot.slane %v460, 4
      %v463 = vor.u32 %v462, %v458
      %v464 = vrot.slane %v463, 4
      %v466 = vshll.u32 %v358, 16
      %v468 = vrot.slane %v466, 5
      %v469 = vsel %vm373, %v464, %v468
      %v471 = vshrl.u32 %v299, 16
      %v473 = vrot.slane %v471, 4
      %v474 = vshll.u32 %v299, 16
      %v476 = vrot.slane %v474, 5
      %v477 = vor.u32 %v473, %v476
      %v478 = vrot.slane %v477, 4
      %v480 = vshll.u32 %v300, 16
      %v482 = vrot.slane %v480, 5
      %v483 = vsel %vm373, %v478, %v482
      %v484 = vshrl.u32 %v300, 16
      %v486 = vrot.slane %v484, 4
      %v487 = vor.u32 %v486, %v482
      %v488 = vrot.slane %v487, 4
      %v490 = vshll.u32 %v359, 16
      %v492 = vrot.slane %v490, 5
      %v493 = vsel %vm373, %v488, %v492
      %v495 = vshrl.u32 %v301, 16
      %v497 = vrot.slane %v495, 4
      %v498 = vshll.u32 %v301, 16
      %v500 = vrot.slane %v498, 5
      %v501 = vor.u32 %v497, %v500
      %v502 = vrot.slane %v501, 4
      %v504 = vshll.u32 %v302, 16
      %v506 = vrot.slane %v504, 5
      %v507 = vsel %vm373, %v502, %v506
      %v508 = vshrl.u32 %v302, 16
      %v510 = vrot.slane %v508, 4
      %v511 = vor.u32 %v510, %v506
      %v512 = vrot.slane %v511, 4
      %v514 = vshll.u32 %v360, 16
      %v516 = vrot.slane %v514, 5
      %v517 = vsel %vm373, %v512, %v516
      %v519 = vshrl.u32 %v303, 16
      %v521 = vrot.slane %v519, 4
      %v522 = vshll.u32 %v303, 16
      %v524 = vrot.slane %v522, 5
      %v525 = vor.u32 %v521, %v524
      %v526 = vrot.slane %v525, 4
      %v528 = vshll.u32 %v304, 16
      %v530 = vrot.slane %v528, 5
      %v531 = vsel %vm373, %v526, %v530
      %v532 = vshrl.u32 %v304, 16
      %v534 = vrot.slane %v532, 4
      %v535 = vor.u32 %v534, %v530
      %v536 = vrot.slane %v535, 4
      %v538 = vshll.u32 %v361, 16
      %v540 = vrot.slane %v538, 5
      %v541 = vsel %vm373, %v536, %v540
      %v543 = vshrl.u32 %v305, 16
      %v545 = vrot.slane %v543, 4
      %v546 = vshll.u32 %v305, 16
      %v548 = vrot.slane %v546, 5
      %v549 = vor.u32 %v545, %v548
      %v550 = vrot.slane %v549, 4
      %v552 = vshll.u32 %v306, 16
      %v554 = vrot.slane %v552, 5
      %v555 = vsel %vm373, %v550, %v554
      %v556 = vshrl.u32 %v306, 16
      %v558 = vrot.slane %v556, 4
      %v559 = vor.u32 %v558, %v554
      %v560 = vrot.slane %v559, 4
      %v562 = vshll.u32 %v362, 16
      %v564 = vrot.slane %v562, 5
      %v565 = vsel %vm373, %v560, %v564
      %v567 = vshrl.u32 %v307, 16
      %v569 = vrot.slane %v567, 4
      %v570 = vshll.u32 %v307, 16
      %v572 = vrot.slane %v570, 5
      %v573 = vor.u32 %v569, %v572
      %v574 = vrot.slane %v573, 4
      %v576 = vshll.u32 %v308, 16
      %v578 = vrot.slane %v576, 5
      %v579 = vsel %vm373, %v574, %v578
      %v580 = vshrl.u32 %v308, 16
      %v582 = vrot.slane %v580, 4
      %v583 = vor.u32 %v582, %v578
      %v584 = vrot.slane %v583, 4
      %v586 = vshll.u32 %v363, 16
      %v588 = vrot.slane %v586, 5
      %v589 = vsel %vm373, %v584, %v588
      %v591 = vshrl.u32 %v309, 16
      %v593 = vrot.slane %v591, 4
      %v594 = vshll.u32 %v309, 16
      %v596 = vrot.slane %v594, 5
      %v597 = vor.u32 %v593, %v596
      %v598 = vrot.slane %v597, 4
      %v600 = vshll.u32 %v310, 16
      %v602 = vrot.slane %v600, 5
      %v603 = vsel %vm373, %v598, %v602
      %v604 = vshrl.u32 %v310, 16
      %v606 = vrot.slane %v604, 4
      %v607 = vor.u32 %v606, %v602
      %v608 = vrot.slane %v607, 4
      %v610 = vshll.u32 %v364, 16
      %v612 = vrot.slane %v610, 5
      %v613 = vsel %vm373, %v608, %v612
      %v615 = vshrl.u32 %v311, 16
      %v617 = vrot.slane %v615, 4
      %v618 = vshll.u32 %v311, 16
      %v620 = vrot.slane %v618, 5
      %v621 = vor.u32 %v617, %v620
      %v622 = vrot.slane %v621, 4
      %v624 = vshll.u32 %v312, 16
      %v626 = vrot.slane %v624, 5
      %v627 = vsel %vm373, %v622, %v626
      %v628 = vshrl.u32 %v312, 16
      %v630 = vrot.slane %v628, 4
      %v631 = vor.u32 %v630, %v626
      %v632 = vrot.slane %v631, 4
      %v634 = vshll.u32 %v365, 16
      %v636 = vrot.slane %v634, 5
      %v637 = vsel %vm373, %v632, %v636
      %v639 = vshrl.u32 %v313, 16
      %v641 = vrot.slane %v639, 4
      %v642 = vshll.u32 %v313, 16
      %v644 = vrot.slane %v642, 5
      %v645 = vor.u32 %v641, %v644
      %v646 = vrot.slane %v645, 4
      %v648 = vshll.u32 %v314, 16
      %v650 = vrot.slane %v648, 5
      %v651 = vsel %vm373, %v646, %v650
      %v652 = vshrl.u32 %v314, 16
      %v654 = vrot.slane %v652, 4
      %v655 = vor.u32 %v654, %v650
      %v656 = vrot.slane %v655, 4
      %v658 = vshll.u32 %v366, 16
      %v660 = vrot.slane %v658, 5
      %v661 = vsel %vm373, %v656, %v660
      %v663 = vshrl.u32 %v315, 16
      %v665 = vrot.slane %v663, 4
      %v666 = vshll.u32 %v315, 16
      %v668 = vrot.slane %v666, 5
      %v669 = vor.u32 %v665, %v668
      %v670 = vrot.slane %v669, 4
      %v672 = vshll.u32 %v316, 16
      %v674 = vrot.slane %v672, 5
      %v675 = vsel %vm373, %v670, %v674
      %v676 = vshrl.u32 %v316, 16
      %v678 = vrot.slane %v676, 4
      %v679 = vor.u32 %v678, %v674
      %v680 = vrot.slane %v679, 4
      %v682 = vshll.u32 %v367, 16
      %v684 = vrot.slane %v682, 5
      %v685 = vsel %vm373, %v680, %v684
      %v687 = vshrl.u32 %v317, 16
      %v689 = vrot.slane %v687, 4
      %v690 = vshll.u32 %v317, 16
      %v692 = vrot.slane %v690, 5
      %v693 = vor.u32 %v689, %v692
      %v694 = vrot.slane %v693, 4
      %v696 = vshll.u32 %v318, 16
      %v698 = vrot.slane %v696, 5
      %v699 = vsel %vm373, %v694, %v698
      %v700 = vshrl.u32 %v318, 16
      %v702 = vrot.slane %v700, 4
      %v703 = vor.u32 %v702, %v698
      %v704 = vrot.slane %v703, 4
      %v706 = vshll.u32 %v368, 16
      %v708 = vrot.slane %v706, 5
      %v709 = vsel %vm373, %v704, %v708
      %v711 = vshrl.u32 %v319, 16
      %v713 = vrot.slane %v711, 4
      %v714 = vshll.u32 %v319, 16
      %v716 = vrot.slane %v714, 5
      %v717 = vor.u32 %v713, %v716
      %v718 = vrot.slane %v717, 4
      %v720 = vshll.u32 %v320, 16
      %v722 = vrot.slane %v720, 5
      %v723 = vsel %vm373, %v718, %v722
      %v724 = vshrl.u32 %v320, 16
      %v726 = vrot.slane %v724, 4
      %v727 = vor.u32 %v726, %v722
      %v728 = vrot.slane %v727, 4
      %v730 = vshll.u32 %v369, 16
      %v732 = vrot.slane %v730, 5
      %v733 = vsel %vm373, %v728, %v732
      %v735 = vshrl.u32 %v321, 16
      %v737 = vrot.slane %v735, 4
      %v738 = vshll.u32 %v321, 16
      %v740 = vrot.slane %v738, 5
      %v741 = vor.u32 %v737, %v740
      %v742 = vrot.slane %v741, 4
      %v744 = vshll.u32 %v322, 16
      %v746 = vrot.slane %v744, 5
      %v747 = vsel %vm373, %v742, %v746
      %v748 = vshrl.u32 %v322, 16
      %v750 = vrot.slane %v748, 4
      %v751 = vor.u32 %v750, %v746
      %v752 = vrot.slane %v751, 4
      %v754 = vshll.u32 %v370, 16
      %v756 = vrot.slane %v754, 5
      %v757 = vsel %vm373, %v752, %v756
      %v758 = vld [vmem:[%s271 + $0x8] sm:$0x1]
      %v759 = vld [vmem:[%s271 + $0x14] sm:$0x1]
      %v760 = vld [vmem:[%s271 + $0x20] sm:$0x1]
      %v761 = vld [vmem:[%s271 + $0x2c] sm:$0x1]
      %v762 = vld [vmem:[%s271 + $0x38] sm:$0x1]
      %v763 = vld [vmem:[%s271 + $0x44] sm:$0x1]
      %v764 = vld [vmem:[%s271 + $0x50] sm:$0x1]
      %v765 = vld [vmem:[%s271 + $0x5c] sm:$0x1]
      %v766 = vld [vmem:[%s271 + $0x68] sm:$0x1]
      %v767 = vld [vmem:[%s271 + $0x74] sm:$0x1]
      %v768 = vld [vmem:[%s271 + $0x80] sm:$0x1]
      %v769 = vld [vmem:[%s271 + $0x8c] sm:$0x1]
      %v770 = vld [vmem:[%s271 + $0x98] sm:$0x1]
      %v771 = vld [vmem:[%s271 + $0xa4] sm:$0x1]
      %v772 = vld [vmem:[%s271 + $0xb0] sm:$0x1]
      %v773 = vld [vmem:[%s271 + $0xbc] sm:$0x1]
      %v775 = vshrl.u32 %v323, 16
      %v777 = vrot.slane %v775, 4
      %v778 = vshll.u32 %v323, 16
      %v780 = vrot.slane %v778, 5
      %v781 = vor.u32 %v777, %v780
      %v782 = vrot.slane %v781, 4
      %v784 = vshll.u32 %v324, 16
      %v786 = vrot.slane %v784, 5
      %v787 = vsel %vm373, %v782, %v786
      %v788 = vshrl.u32 %v324, 16
      %v790 = vrot.slane %v788, 4
      %v791 = vor.u32 %v790, %v786
      %v792 = vrot.slane %v791, 4
      %v794 = vshll.u32 %v758, 16
      %v796 = vrot.slane %v794, 5
      %v797 = vsel %vm373, %v792, %v796
      %v799 = vshrl.u32 %v325, 16
      %v801 = vrot.slane %v799, 4
      %v802 = vshll.u32 %v325, 16
      %v804 = vrot.slane %v802, 5
      %v805 = vor.u32 %v801, %v804
      %v806 = vrot.slane %v805, 4
      %v808 = vshll.u32 %v326, 16
      %v810 = vrot.slane %v808, 5
      %v811 = vsel %vm373, %v806, %v810
      %v812 = vshrl.u32 %v326, 16
      %v814 = vrot.slane %v812, 4
      %v815 = vor.u32 %v814, %v810
      %v816 = vrot.slane %v815, 4
      %v818 = vshll.u32 %v759, 16
      %v820 = vrot.slane %v818, 5
      %v821 = vsel %vm373, %v816, %v820
      %v823 = vshrl.u32 %v327, 16
      %v825 = vrot.slane %v823, 4
      %v826 = vshll.u32 %v327, 16
      %v828 = vrot.slane %v826, 5
      %v829 = vor.u32 %v825, %v828
      %v830 = vrot.slane %v829, 4
      %v832 = vshll.u32 %v328, 16
      %v834 = vrot.slane %v832, 5
      %v835 = vsel %vm373, %v830, %v834
      %v836 = vshrl.u32 %v328, 16
      %v838 = vrot.slane %v836, 4
      %v839 = vor.u32 %v838, %v834
      %v840 = vrot.slane %v839, 4
      %v842 = vshll.u32 %v760, 16
      %v844 = vrot.slane %v842, 5
      %v845 = vsel %vm373, %v840, %v844
      %v847 = vshrl.u32 %v329, 16
      %v849 = vrot.slane %v847, 4
      %v850 = vshll.u32 %v329, 16
      %v852 = vrot.slane %v850, 5
      %v853 = vor.u32 %v849, %v852
      %v854 = vrot.slane %v853, 4
      %v856 = vshll.u32 %v330, 16
      %v858 = vrot.slane %v856, 5
      %v859 = vsel %vm373, %v854, %v858
      %v860 = vshrl.u32 %v330, 16
      %v862 = vrot.slane %v860, 4
      %v863 = vor.u32 %v862, %v858
      %v864 = vrot.slane %v863, 4
      %v866 = vshll.u32 %v761, 16
      %v868 = vrot.slane %v866, 5
      %v869 = vsel %vm373, %v864, %v868
      %v871 = vshrl.u32 %v331, 16
      %v873 = vrot.slane %v871, 4
      %v874 = vshll.u32 %v331, 16
      %v876 = vrot.slane %v874, 5
      %v877 = vor.u32 %v873, %v876
      %v878 = vrot.slane %v877, 4
      %v880 = vshll.u32 %v332, 16
      %v882 = vrot.slane %v880, 5
      %v883 = vsel %vm373, %v878, %v882
      %v884 = vshrl.u32 %v332, 16
      %v886 = vrot.slane %v884, 4
      %v887 = vor.u32 %v886, %v882
      %v888 = vrot.slane %v887, 4
      %v890 = vshll.u32 %v762, 16
      %v892 = vrot.slane %v890, 5
      %v893 = vsel %vm373, %v888, %v892
      %v895 = vshrl.u32 %v333, 16
      %v897 = vrot.slane %v895, 4
      %v898 = vshll.u32 %v333, 16
      %v900 = vrot.slane %v898, 5
      %v901 = vor.u32 %v897, %v900
      %v902 = vrot.slane %v901, 4
      %v904 = vshll.u32 %v334, 16
      %v906 = vrot.slane %v904, 5
      %v907 = vsel %vm373, %v902, %v906
      %v908 = vshrl.u32 %v334, 16
      %v910 = vrot.slane %v908, 4
      %v911 = vor.u32 %v910, %v906
      %v912 = vrot.slane %v911, 4
      %v914 = vshll.u32 %v763, 16
      %v916 = vrot.slane %v914, 5
      %v917 = vsel %vm373, %v912, %v916
      %v919 = vshrl.u32 %v335, 16
      %v921 = vrot.slane %v919, 4
      %v922 = vshll.u32 %v335, 16
      %v924 = vrot.slane %v922, 5
      %v925 = vor.u32 %v921, %v924
      %v926 = vrot.slane %v925, 4
      %v928 = vshll.u32 %v336, 16
      %v930 = vrot.slane %v928, 5
      %v931 = vsel %vm373, %v926, %v930
      %v932 = vshrl.u32 %v336, 16
      %v934 = vrot.slane %v932, 4
      %v935 = vor.u32 %v934, %v930
      %v936 = vrot.slane %v935, 4
      %v938 = vshll.u32 %v764, 16
      %v940 = vrot.slane %v938, 5
      %v941 = vsel %vm373, %v936, %v940
      %v943 = vshrl.u32 %v337, 16
      %v945 = vrot.slane %v943, 4
      %v946 = vshll.u32 %v337, 16
      %v948 = vrot.slane %v946, 5
      %v949 = vor.u32 %v945, %v948
      %v950 = vrot.slane %v949, 4
      %v952 = vshll.u32 %v338, 16
      %v954 = vrot.slane %v952, 5
      %v955 = vsel %vm373, %v950, %v954
      %v956 = vshrl.u32 %v338, 16
      %v958 = vrot.slane %v956, 4
      %v959 = vor.u32 %v958, %v954
      %v960 = vrot.slane %v959, 4
      %v962 = vshll.u32 %v765, 16
      %v964 = vrot.slane %v962, 5
      %v965 = vsel %vm373, %v960, %v964
      %v967 = vshrl.u32 %v339, 16
      %v969 = vrot.slane %v967, 4
      %v970 = vshll.u32 %v339, 16
      %v972 = vrot.slane %v970, 5
      %v973 = vor.u32 %v969, %v972
      %v974 = vrot.slane %v973, 4
      %v976 = vshll.u32 %v340, 16
      %v978 = vrot.slane %v976, 5
      %v979 = vsel %vm373, %v974, %v978
      %v980 = vshrl.u32 %v340, 16
      %v982 = vrot.slane %v980, 4
      %v983 = vor.u32 %v982, %v978
      %v984 = vrot.slane %v983, 4
      %v986 = vshll.u32 %v766, 16
      %v988 = vrot.slane %v986, 5
      %v989 = vsel %vm373, %v984, %v988
      %v991 = vshrl.u32 %v341, 16
      %v993 = vrot.slane %v991, 4
      %v994 = vshll.u32 %v341, 16
      %v996 = vrot.slane %v994, 5
      %v997 = vor.u32 %v993, %v996
      %v998 = vrot.slane %v997, 4
      %v1000 = vshll.u32 %v342, 16
      %v1002 = vrot.slane %v1000, 5
      %v1003 = vsel %vm373, %v998, %v1002
      %v1004 = vshrl.u32 %v342, 16
      %v1006 = vrot.slane %v1004, 4
      %v1007 = vor.u32 %v1006, %v1002
      %v1008 = vrot.slane %v1007, 4
      %v1010 = vshll.u32 %v767, 16
      %v1012 = vrot.slane %v1010, 5
      %v1013 = vsel %vm373, %v1008, %v1012
      %v1015 = vshrl.u32 %v343, 16
      %v1017 = vrot.slane %v1015, 4
      %v1018 = vshll.u32 %v343, 16
      %v1020 = vrot.slane %v1018, 5
      %v1021 = vor.u32 %v1017, %v1020
      %v1022 = vrot.slane %v1021, 4
      %v1024 = vshll.u32 %v344, 16
      %v1026 = vrot.slane %v1024, 5
      %v1027 = vsel %vm373, %v1022, %v1026
      %v1028 = vshrl.u32 %v344, 16
      %v1030 = vrot.slane %v1028, 4
      %v1031 = vor.u32 %v1030, %v1026
      %v1032 = vrot.slane %v1031, 4
      %v1034 = vshll.u32 %v768, 16
      %v1036 = vrot.slane %v1034, 5
      %v1037 = vsel %vm373, %v1032, %v1036
      %v1039 = vshrl.u32 %v345, 16
      %v1041 = vrot.slane %v1039, 4
      %v1042 = vshll.u32 %v345, 16
      %v1044 = vrot.slane %v1042, 5
      %v1045 = vor.u32 %v1041, %v1044
      %v1046 = vrot.slane %v1045, 4
      %v1048 = vshll.u32 %v346, 16
      %v1050 = vrot.slane %v1048, 5
      %v1051 = vsel %vm373, %v1046, %v1050
      %v1052 = vshrl.u32 %v346, 16
      %v1054 = vrot.slane %v1052, 4
      %v1055 = vor.u32 %v1054, %v1050
      %v1056 = vrot.slane %v1055, 4
      %v1058 = vshll.u32 %v769, 16
      %v1060 = vrot.slane %v1058, 5
      %v1061 = vsel %vm373, %v1056, %v1060
      %v1063 = vshrl.u32 %v347, 16
      %v1065 = vrot.slane %v1063, 4
      %v1066 = vshll.u32 %v347, 16
      %v1068 = vrot.slane %v1066, 5
      %v1069 = vor.u32 %v1065, %v1068
      %v1070 = vrot.slane %v1069, 4
      %v1072 = vshll.u32 %v348, 16
      %v1074 = vrot.slane %v1072, 5
      %v1075 = vsel %vm373, %v1070, %v1074
      %v1076 = vshrl.u32 %v348, 16
      %v1078 = vrot.slane %v1076, 4
      %v1079 = vor.u32 %v1078, %v1074
      %v1080 = vrot.slane %v1079, 4
      %v1082 = vshll.u32 %v770, 16
      %v1084 = vrot.slane %v1082, 5
      %v1085 = vsel %vm373, %v1080, %v1084
      %v1087 = vshrl.u32 %v349, 16
      %v1089 = vrot.slane %v1087, 4
      %v1090 = vshll.u32 %v349, 16
      %v1092 = vrot.slane %v1090, 5
      %v1093 = vor.u32 %v1089, %v1092
      %v1094 = vrot.slane %v1093, 4
      %v1096 = vshll.u32 %v350, 16
      %v1098 = vrot.slane %v1096, 5
      %v1099 = vsel %vm373, %v1094, %v1098
      %v1100 = vshrl.u32 %v350, 16
      %v1102 = vrot.slane %v1100, 4
      %v1103 = vor.u32 %v1102, %v1098
      %v1104 = vrot.slane %v1103, 4
      %v1106 = vshll.u32 %v771, 16
      %v1108 = vrot.slane %v1106, 5
      %v1109 = vsel %vm373, %v1104, %v1108
      %v1111 = vshrl.u32 %v351, 16
      %v1113 = vrot.slane %v1111, 4
      %v1114 = vshll.u32 %v351, 16
      %v1116 = vrot.slane %v1114, 5
      %v1117 = vor.u32 %v1113, %v1116
      %v1118 = vrot.slane %v1117, 4
      %v1120 = vshll.u32 %v352, 16
      %v1122 = vrot.slane %v1120, 5
      %v1123 = vsel %vm373, %v1118, %v1122
      %v1124 = vshrl.u32 %v352, 16
      %v1126 = vrot.slane %v1124, 4
      %v1127 = vor.u32 %v1126, %v1122
      %v1128 = vrot.slane %v1127, 4
      %v1130 = vshll.u32 %v772, 16
      %v1132 = vrot.slane %v1130, 5
      %v1133 = vsel %vm373, %v1128, %v1132
      %v1135 = vshrl.u32 %v353, 16
      %v1137 = vrot.slane %v1135, 4
      %v1138 = vshll.u32 %v353, 16
      %v1140 = vrot.slane %v1138, 5
      %v1141 = vor.u32 %v1137, %v1140
      %v1142 = vrot.slane %v1141, 4
      %v1144 = vshll.u32 %v354, 16
      %v1146 = vrot.slane %v1144, 5
      %v1147 = vsel %vm373, %v1142, %v1146
      %v1148 = vshrl.u32 %v354, 16
      %v1150 = vrot.slane %v1148, 4
      %v1151 = vor.u32 %v1150, %v1146
      %v1152 = vrot.slane %v1151, 4
      %v1154 = vshll.u32 %v773, 16
      %v1156 = vrot.slane %v1154, 5
      %v1157 = vsel %vm373, %v1152, %v1156
      %v1158 = vld [vmem:[%s262] sm:$0xe]
      %v1159 = vld [vmem:[%s262 + $0xc] sm:$0xe]
      %v1160 = vld [vmem:[%s262 + $0x18] sm:$0xe]
      %v1161 = vld [vmem:[%s262 + $0x24] sm:$0xe]
      %v1162 = vld [vmem:[%s262 + $0x30] sm:$0xe]
      %v1163 = vld [vmem:[%s262 + $0x3c] sm:$0xe]
      %v1164 = vld [vmem:[%s262 + $0x48] sm:$0xe]
      %v1165 = vld [vmem:[%s262 + $0x54] sm:$0xe]
      %v1166 = vld [vmem:[%s262 + $0x60] sm:$0xe]
      %v1167 = vld [vmem:[%s262 + $0x6c] sm:$0xe]
      %v1168 = vld [vmem:[%s262 + $0x78] sm:$0xe]
      %v1169 = vld [vmem:[%s262 + $0x84] sm:$0xe]
      %v1170 = vld [vmem:[%s262 + $0x90] sm:$0xe]
      %v1171 = vld [vmem:[%s262 + $0x9c] sm:$0xe]
      %v1172 = vld [vmem:[%s262 + $0xa8] sm:$0xe]
      %v1173 = vld [vmem:[%s262 + $0xb4] sm:$0xe]
      %vm1222 = vcmask 1042432
      %vm1223 = vcmask 1046532
      %vm1224 = vmor %vm1222, %vm1223
      %v1225 = vrot.slane %v1158, 5
      %v1226 = vrot.slane %v1225, 4
      %v1227 = vrot.slane %v292, 5
      %v1228 = vsel %vm1224, %v1226, %v1227
      %v1229 = vrot.slane %v1227, 4
      %v1230 = vrot.slane %v355, 5
      %v1231 = vsel %vm1224, %v1229, %v1230
      %v1232 = vrot.slane %v1159, 5
      %v1233 = vrot.slane %v1232, 4
      %v1234 = vrot.slane %v294, 5
      %v1235 = vsel %vm1224, %v1233, %v1234
      %v1236 = vrot.slane %v1234, 4
      %v1237 = vrot.slane %v356, 5
      %v1238 = vsel %vm1224, %v1236, %v1237
      %v1239 = vrot.slane %v1160, 5
      %v1240 = vrot.slane %v1239, 4
      %v1241 = vrot.slane %v296, 5
      %v1242 = vsel %vm1224, %v1240, %v1241
      %v1243 = vrot.slane %v1241, 4
      %v1244 = vrot.slane %v357, 5
      %v1245 = vsel %vm1224, %v1243, %v1244
      %v1246 = vrot.slane %v1161, 5
      %v1247 = vrot.slane %v1246, 4
      %v1248 = vrot.slane %v298, 5
      %v1249 = vsel %vm1224, %v1247, %v1248
      %v1250 = vrot.slane %v1248, 4
      %v1251 = vrot.slane %v358, 5
      %v1252 = vsel %vm1224, %v1250, %v1251
      %v1253 = vrot.slane %v1162, 5
      %v1254 = vrot.slane %v1253, 4
      %v1255 = vrot.slane %v300, 5
      %v1256 = vsel %vm1224, %v1254, %v1255
      %v1257 = vrot.slane %v1255, 4
      %v1258 = vrot.slane %v359, 5
      %v1259 = vsel %vm1224, %v1257, %v1258
      %v1260 = vrot.slane %v1163, 5
      %v1261 = vrot.slane %v1260, 4
      %v1262 = vrot.slane %v302, 5
      %v1263 = vsel %vm1224, %v1261, %v1262
      %v1264 = vrot.slane %v1262, 4
      %v1265 = vrot.slane %v360, 5
      %v1266 = vsel %vm1224, %v1264, %v1265
      %v1267 = vrot.slane %v1164, 5
      %v1268 = vrot.slane %v1267, 4
      %v1269 = vrot.slane %v304, 5
      %v1270 = vsel %vm1224, %v1268, %v1269
      %v1271 = vrot.slane %v1269, 4
      %v1272 = vrot.slane %v361, 5
      %v1273 = vsel %vm1224, %v1271, %v1272
      %v1274 = vrot.slane %v1165, 5
      %v1275 = vrot.slane %v1274, 4
      %v1276 = vrot.slane %v306, 5
      %v1277 = vsel %vm1224, %v1275, %v1276
      %v1278 = vrot.slane %v1276, 4
      %v1279 = vrot.slane %v362, 5
      %v1280 = vsel %vm1224, %v1278, %v1279
      %v1281 = vrot.slane %v1166, 5
      %v1282 = vrot.slane %v1281, 4
      %v1283 = vrot.slane %v308, 5
      %v1284 = vsel %vm1224, %v1282, %v1283
      %v1285 = vrot.slane %v1283, 4
      %v1286 = vrot.slane %v363, 5
      %v1287 = vsel %vm1224, %v1285, %v1286
      %v1288 = vrot.slane %v1167, 5
      %v1289 = vrot.slane %v1288, 4
      %v1290 = vrot.slane %v310, 5
      %v1291 = vsel %vm1224, %v1289, %v1290
      %v1292 = vrot.slane %v1290, 4
      %v1293 = vrot.slane %v364, 5
      %v1294 = vsel %vm1224, %v1292, %v1293
      %v1295 = vrot.slane %v1168, 5
      %v1296 = vrot.slane %v1295, 4
      %v1297 = vrot.slane %v312, 5
      %v1298 = vsel %vm1224, %v1296, %v1297
      %v1299 = vrot.slane %v1297, 4
      %v1300 = vrot.slane %v365, 5
      %v1301 = vsel %vm1224, %v1299, %v1300
      %v1302 = vrot.slane %v1169, 5
      %v1303 = vrot.slane %v1302, 4
      %v1304 = vrot.slane %v314, 5
      %v1305 = vsel %vm1224, %v1303, %v1304
      %v1306 = vrot.slane %v1304, 4
      %v1307 = vrot.slane %v366, 5
      %v1308 = vsel %vm1224, %v1306, %v1307
      %v1309 = vrot.slane %v1170, 5
      %v1310 = vrot.slane %v1309, 4
      %v1311 = vrot.slane %v316, 5
      %v1312 = vsel %vm1224, %v1310, %v1311
      %v1313 = vrot.slane %v1311, 4
      %v1314 = vrot.slane %v367, 5
      %v1315 = vsel %vm1224, %v1313, %v1314
      %v1316 = vrot.slane %v1171, 5
      %v1317 = vrot.slane %v1316, 4
      %v1318 = vrot.slane %v318, 5
      %v1319 = vsel %vm1224, %v1317, %v1318
      %v1320 = vrot.slane %v1318, 4
      %v1321 = vrot.slane %v368, 5
      %v1322 = vsel %vm1224, %v1320, %v1321
      %v1323 = vrot.slane %v1172, 5
      %v1324 = vrot.slane %v1323, 4
      %v1325 = vrot.slane %v320, 5
      %v1326 = vsel %vm1224, %v1324, %v1325
      %v1327 = vrot.slane %v1325, 4
      %v1328 = vrot.slane %v369, 5
      %v1329 = vsel %vm1224, %v1327, %v1328
      %v1330 = vrot.slane %v1173, 5
      %v1331 = vrot.slane %v1330, 4
      %v1332 = vrot.slane %v322, 5
      %v1333 = vsel %vm1224, %v1331, %v1332
      %v1334 = vrot.slane %v1332, 4
      %v1335 = vrot.slane %v370, 5
      %v1336 = vsel %vm1224, %v1334, %v1335
      %v1337 = vld [vmem:[%s271] sm:$0xe]
      %v1338 = vld [vmem:[%s271 + $0xc] sm:$0xe]
      %v1339 = vld [vmem:[%s271 + $0x18] sm:$0xe]
      %v1340 = vld [vmem:[%s271 + $0x24] sm:$0xe]
      %v1341 = vld [vmem:[%s271 + $0x30] sm:$0xe]
      %v1342 = vld [vmem:[%s271 + $0x3c] sm:$0xe]
      %v1343 = vld [vmem:[%s271 + $0x48] sm:$0xe]
      %v1344 = vld [vmem:[%s271 + $0x54] sm:$0xe]
      %v1345 = vld [vmem:[%s271 + $0x60] sm:$0xe]
      %v1346 = vld [vmem:[%s271 + $0x6c] sm:$0xe]
      %v1347 = vld [vmem:[%s271 + $0x78] sm:$0xe]
      %v1348 = vld [vmem:[%s271 + $0x84] sm:$0xe]
      %v1349 = vld [vmem:[%s271 + $0x90] sm:$0xe]
      %v1350 = vld [vmem:[%s271 + $0x9c] sm:$0xe]
      %v1351 = vld [vmem:[%s271 + $0xa8] sm:$0xe]
      %v1352 = vld [vmem:[%s271 + $0xb4] sm:$0xe]
      %v1401 = vrot.slane %v1337, 5
      %v1402 = vrot.slane %v1401, 4
      %v1403 = vrot.slane %v324, 5
      %v1404 = vsel %vm1224, %v1402, %v1403
      %v1405 = vrot.slane %v1403, 4
      %v1406 = vrot.slane %v758, 5
      %v1407 = vsel %vm1224, %v1405, %v1406
      %v1408 = vrot.slane %v1338, 5
      %v1409 = vrot.slane %v1408, 4
      %v1410 = vrot.slane %v326, 5
      %v1411 = vsel %vm1224, %v1409, %v1410
      %v1412 = vrot.slane %v1410, 4
      %v1413 = vrot.slane %v759, 5
      %v1414 = vsel %vm1224, %v1412, %v1413
      %v1415 = vrot.slane %v1339, 5
      %v1416 = vrot.slane %v1415, 4
      %v1417 = vrot.slane %v328, 5
      %v1418 = vsel %vm1224, %v1416, %v1417
      %v1419 = vrot.slane %v1417, 4
      %v1420 = vrot.slane %v760, 5
      %v1421 = vsel %vm1224, %v1419, %v1420
      %v1422 = vrot.slane %v1340, 5
      %v1423 = vrot.slane %v1422, 4
      %v1424 = vrot.slane %v330, 5
      %v1425 = vsel %vm1224, %v1423, %v1424
      %v1426 = vrot.slane %v1424, 4
      %v1427 = vrot.slane %v761, 5
      %v1428 = vsel %vm1224, %v1426, %v1427
      %v1429 = vrot.slane %v1341, 5
      %v1430 = vrot.slane %v1429, 4
      %v1431 = vrot.slane %v332, 5
      %v1432 = vsel %vm1224, %v1430, %v1431
      %v1433 = vrot.slane %v1431, 4
      %v1434 = vrot.slane %v762, 5
      %v1435 = vsel %vm1224, %v1433, %v1434
      %v1436 = vrot.slane %v1342, 5
      %v1437 = vrot.slane %v1436, 4
      %v1438 = vrot.slane %v334, 5
      %v1439 = vsel %vm1224, %v1437, %v1438
      %v1440 = vrot.slane %v1438, 4
      %v1441 = vrot.slane %v763, 5
      %v1442 = vsel %vm1224, %v1440, %v1441
      %v1443 = vrot.slane %v1343, 5
      %v1444 = vrot.slane %v1443, 4
      %v1445 = vrot.slane %v336, 5
      %v1446 = vsel %vm1224, %v1444, %v1445
      %v1447 = vrot.slane %v1445, 4
      %v1448 = vrot.slane %v764, 5
      %v1449 = vsel %vm1224, %v1447, %v1448
      %v1450 = vrot.slane %v1344, 5
      %v1451 = vrot.slane %v1450, 4
      %v1452 = vrot.slane %v338, 5
      %v1453 = vsel %vm1224, %v1451, %v1452
      %v1454 = vrot.slane %v1452, 4
      %v1455 = vrot.slane %v765, 5
      %v1456 = vsel %vm1224, %v1454, %v1455
      %v1457 = vrot.slane %v1345, 5
      %v1458 = vrot.slane %v1457, 4
      %v1459 = vrot.slane %v340, 5
      %v1460 = vsel %vm1224, %v1458, %v1459
      %v1461 = vrot.slane %v1459, 4
      %v1462 = vrot.slane %v766, 5
      %v1463 = vsel %vm1224, %v1461, %v1462
      %v1464 = vrot.slane %v1346, 5
      %v1465 = vrot.slane %v1464, 4
      %v1466 = vrot.slane %v342, 5
      %v1467 = vsel %vm1224, %v1465, %v1466
      %v1468 = vrot.slane %v1466, 4
      %v1469 = vrot.slane %v767, 5
      %v1470 = vsel %vm1224, %v1468, %v1469
      %v1471 = vrot.slane %v1347, 5
      %v1472 = vrot.slane %v1471, 4
      %v1473 = vrot.slane %v344, 5
      %v1474 = vsel %vm1224, %v1472, %v1473
      %v1475 = vrot.slane %v1473, 4
      %v1476 = vrot.slane %v768, 5
      %v1477 = vsel %vm1224, %v1475, %v1476
      %v1478 = vrot.slane %v1348, 5
      %v1479 = vrot.slane %v1478, 4
      %v1480 = vrot.slane %v346, 5
      %v1481 = vsel %vm1224, %v1479, %v1480
      %v1482 = vrot.slane %v1480, 4
      %v1483 = vrot.slane %v769, 5
      %v1484 = vsel %vm1224, %v1482, %v1483
      %v1485 = vrot.slane %v1349, 5
      %v1486 = vrot.slane %v1485, 4
      %v1487 = vrot.slane %v348, 5
      %v1488 = vsel %vm1224, %v1486, %v1487
      %v1489 = vrot.slane %v1487, 4
      %v1490 = vrot.slane %v770, 5
      %v1491 = vsel %vm1224, %v1489, %v1490
      %v1492 = vrot.slane %v1350, 5
      %v1493 = vrot.slane %v1492, 4
      %v1494 = vrot.slane %v350, 5
      %v1495 = vsel %vm1224, %v1493, %v1494
      %v1496 = vrot.slane %v1494, 4
      %v1497 = vrot.slane %v771, 5
      %v1498 = vsel %vm1224, %v1496, %v1497
      %v1499 = vrot.slane %v1351, 5
      %v1500 = vrot.slane %v1499, 4
      %v1501 = vrot.slane %v352, 5
      %v1502 = vsel %vm1224, %v1500, %v1501
      %v1503 = vrot.slane %v1501, 4
      %v1504 = vrot.slane %v772, 5
      %v1505 = vsel %vm1224, %v1503, %v1504
      %v1506 = vrot.slane %v1352, 5
      %v1507 = vrot.slane %v1506, 4
      %v1508 = vrot.slane %v354, 5
      %v1509 = vsel %vm1224, %v1507, %v1508
      %v1510 = vrot.slane %v1508, 4
      %v1511 = vrot.slane %v773, 5
      %v1512 = vsel %vm1224, %v1510, %v1511
      %s1513 = scalar_lea.vmem %s262, 12
      %v1514 = vld [vmem:[%s1513] sm:$0xf]
      %v1515 = vld [vmem:[%s1513 + $0x4] sm:$0xf]
      %v1516 = vld [vmem:[%s1513 + $0xc] sm:$0xf]
      %v1517 = vld [vmem:[%s1513 + $0x10] sm:$0xf]
      %v1518 = vld [vmem:[%s1513 + $0x18] sm:$0xf]
      %v1519 = vld [vmem:[%s1513 + $0x1c] sm:$0xf]
      %v1520 = vld [vmem:[%s1513 + $0x24] sm:$0xf]
      %v1521 = vld [vmem:[%s1513 + $0x28] sm:$0xf]
      %v1522 = vld [vmem:[%s1513 + $0x30] sm:$0xf]
      %v1523 = vld [vmem:[%s1513 + $0x34] sm:$0xf]
      %v1524 = vld [vmem:[%s1513 + $0x3c] sm:$0xf]
      %v1525 = vld [vmem:[%s1513 + $0x40] sm:$0xf]
      %v1526 = vld [vmem:[%s1513 + $0x48] sm:$0xf]
      %v1527 = vld [vmem:[%s1513 + $0x4c] sm:$0xf]
      %v1528 = vld [vmem:[%s1513 + $0x54] sm:$0xf]
      %v1529 = vld [vmem:[%s1513 + $0x58] sm:$0xf]
      %v1530 = vld [vmem:[%s1513 + $0x60] sm:$0xf]
      %v1531 = vld [vmem:[%s1513 + $0x64] sm:$0xf]
      %v1532 = vld [vmem:[%s1513 + $0x6c] sm:$0xf]
      %v1533 = vld [vmem:[%s1513 + $0x70] sm:$0xf]
      %v1534 = vld [vmem:[%s1513 + $0x78] sm:$0xf]
      %v1535 = vld [vmem:[%s1513 + $0x7c] sm:$0xf]
      %v1536 = vld [vmem:[%s1513 + $0x84] sm:$0xf]
      %v1537 = vld [vmem:[%s1513 + $0x88] sm:$0xf]
      %v1538 = vld [vmem:[%s1513 + $0x90] sm:$0xf]
      %v1539 = vld [vmem:[%s1513 + $0x94] sm:$0xf]
      %v1540 = vld [vmem:[%s1513 + $0x9c] sm:$0xf]
      %v1541 = vld [vmem:[%s1513 + $0xa0] sm:$0xf]
      %v1542 = vld [vmem:[%s1513 + $0xa8] sm:$0xf]
      %v1543 = vld [vmem:[%s1513 + $0xac] sm:$0xf]
      %v1544 = vld [vmem:[%s1513 + $0xb4] sm:$0xf]
      %v1545 = vld [vmem:[%s1513 + $0xb8] sm:$0xf]
      %s1546 = scalar_lea.vmem %s271, 12
      %v1547 = vld [vmem:[%s1546] sm:$0xf]
      %v1548 = vld [vmem:[%s1546 + $0x4] sm:$0xf]
      %v1549 = vld [vmem:[%s1546 + $0xc] sm:$0xf]
      %v1550 = vld [vmem:[%s1546 + $0x10] sm:$0xf]
      %v1551 = vld [vmem:[%s1546 + $0x18] sm:$0xf]
      %v1552 = vld [vmem:[%s1546 + $0x1c] sm:$0xf]
      %v1553 = vld [vmem:[%s1546 + $0x24] sm:$0xf]
      %v1554 = vld [vmem:[%s1546 + $0x28] sm:$0xf]
      %v1555 = vld [vmem:[%s1546 + $0x30] sm:$0xf]
      %v1556 = vld [vmem:[%s1546 + $0x34] sm:$0xf]
      %v1557 = vld [vmem:[%s1546 + $0x3c] sm:$0xf]
      %v1558 = vld [vmem:[%s1546 + $0x40] sm:$0xf]
      %v1559 = vld [vmem:[%s1546 + $0x48] sm:$0xf]
      %v1560 = vld [vmem:[%s1546 + $0x4c] sm:$0xf]
      %v1561 = vld [vmem:[%s1546 + $0x54] sm:$0xf]
      %v1562 = vld [vmem:[%s1546 + $0x58] sm:$0xf]
      %v1563 = vld [vmem:[%s1546 + $0x60] sm:$0xf]
      %v1564 = vld [vmem:[%s1546 + $0x64] sm:$0xf]
      %v1565 = vld [vmem:[%s1546 + $0x6c] sm:$0xf]
      %v1566 = vld [vmem:[%s1546 + $0x70] sm:$0xf]
      %v1567 = vld [vmem:[%s1546 + $0x78] sm:$0xf]
      %v1568 = vld [vmem:[%s1546 + $0x7c] sm:$0xf]
      %v1569 = vld [vmem:[%s1546 + $0x84] sm:$0xf]
      %v1570 = vld [vmem:[%s1546 + $0x88] sm:$0xf]
      %v1571 = vld [vmem:[%s1546 + $0x90] sm:$0xf]
      %v1572 = vld [vmem:[%s1546 + $0x94] sm:$0xf]
      %v1573 = vld [vmem:[%s1546 + $0x9c] sm:$0xf]
      %v1574 = vld [vmem:[%s1546 + $0xa0] sm:$0xf]
      %v1575 = vld [vmem:[%s1546 + $0xa8] sm:$0xf]
      %v1576 = vld [vmem:[%s1546 + $0xac] sm:$0xf]
      %v1577 = vld [vmem:[%s1546 + $0xb4] sm:$0xf]
      %v1578 = vld [vmem:[%s1546 + $0xb8] sm:$0xf]
      %v1579 = vld [vmem:[%s1513 + $0x8] sm:$0x1]
      %v1580 = vld [vmem:[%s1513 + $0x14] sm:$0x1]
      %v1581 = vld [vmem:[%s1513 + $0x20] sm:$0x1]
      %v1582 = vld [vmem:[%s1513 + $0x2c] sm:$0x1]
      %v1583 = vld [vmem:[%s1513 + $0x38] sm:$0x1]
      %v1584 = vld [vmem:[%s1513 + $0x44] sm:$0x1]
      %v1585 = vld [vmem:[%s1513 + $0x50] sm:$0x1]
      %v1586 = vld [vmem:[%s1513 + $0x5c] sm:$0x1]
      %v1587 = vld [vmem:[%s1513 + $0x68] sm:$0x1]
      %v1588 = vld [vmem:[%s1513 + $0x74] sm:$0x1]
      %v1589 = vld [vmem:[%s1513 + $0x80] sm:$0x1]
      %v1590 = vld [vmem:[%s1513 + $0x8c] sm:$0x1]
      %v1591 = vld [vmem:[%s1513 + $0x98] sm:$0x1]
      %v1592 = vld [vmem:[%s1513 + $0xa4] sm:$0x1]
      %v1593 = vld [vmem:[%s1513 + $0xb0] sm:$0x1]
      %v1594 = vld [vmem:[%s1513 + $0xbc] sm:$0x1]
      %v1596 = vshrl.u32 %v1514, 16
      %v1598 = vrot.slane %v1596, 4
      %v1599 = vshll.u32 %v1514, 16
      %v1601 = vrot.slane %v1599, 5
      %v1602 = vor.u32 %v1598, %v1601
      %v1603 = vrot.slane %v1602, 4
      %v1605 = vshll.u32 %v1515, 16
      %v1607 = vrot.slane %v1605, 5
      %v1608 = vsel %vm373, %v1603, %v1607
      %v1609 = vshrl.u32 %v1515, 16
      %v1611 = vrot.slane %v1609, 4
      %v1612 = vor.u32 %v1611, %v1607
      %v1613 = vrot.slane %v1612, 4
      %v1615 = vshll.u32 %v1579, 16
      %v1617 = vrot.slane %v1615, 5
      %v1618 = vsel %vm373, %v1613, %v1617
      %v1620 = vshrl.u32 %v1516, 16
      %v1622 = vrot.slane %v1620, 4
      %v1623 = vshll.u32 %v1516, 16
      %v1625 = vrot.slane %v1623, 5
      %v1626 = vor.u32 %v1622, %v1625
      %v1627 = vrot.slane %v1626, 4
      %v1629 = vshll.u32 %v1517, 16
      %v1631 = vrot.slane %v1629, 5
      %v1632 = vsel %vm373, %v1627, %v1631
      %v1633 = vshrl.u32 %v1517, 16
      %v1635 = vrot.slane %v1633, 4
      %v1636 = vor.u32 %v1635, %v1631
      %v1637 = vrot.slane %v1636, 4
      %v1639 = vshll.u32 %v1580, 16
      %v1641 = vrot.slane %v1639, 5
      %v1642 = vsel %vm373, %v1637, %v1641
      %v1644 = vshrl.u32 %v1518, 16
      %v1646 = vrot.slane %v1644, 4
      %v1647 = vshll.u32 %v1518, 16
      %v1649 = vrot.slane %v1647, 5
      %v1650 = vor.u32 %v1646, %v1649
      %v1651 = vrot.slane %v1650, 4
      %v1653 = vshll.u32 %v1519, 16
      %v1655 = vrot.slane %v1653, 5
      %v1656 = vsel %vm373, %v1651, %v1655
      %v1657 = vshrl.u32 %v1519, 16
      %v1659 = vrot.slane %v1657, 4
      %v1660 = vor.u32 %v1659, %v1655
      %v1661 = vrot.slane %v1660, 4
      %v1663 = vshll.u32 %v1581, 16
      %v1665 = vrot.slane %v1663, 5
      %v1666 = vsel %vm373, %v1661, %v1665
      %v1668 = vshrl.u32 %v1520, 16
      %v1670 = vrot.slane %v1668, 4
      %v1671 = vshll.u32 %v1520, 16
      %v1673 = vrot.slane %v1671, 5
      %v1674 = vor.u32 %v1670, %v1673
      %v1675 = vrot.slane %v1674, 4
      %v1677 = vshll.u32 %v1521, 16
      %v1679 = vrot.slane %v1677, 5
      %v1680 = vsel %vm373, %v1675, %v1679
      %v1681 = vshrl.u32 %v1521, 16
      %v1683 = vrot.slane %v1681, 4
      %v1684 = vor.u32 %v1683, %v1679
      %v1685 = vrot.slane %v1684, 4
      %v1687 = vshll.u32 %v1582, 16
      %v1689 = vrot.slane %v1687, 5
      %v1690 = vsel %vm373, %v1685, %v1689
      %v1692 = vshrl.u32 %v1522, 16
      %v1694 = vrot.slane %v1692, 4
      %v1695 = vshll.u32 %v1522, 16
      %v1697 = vrot.slane %v1695, 5
      %v1698 = vor.u32 %v1694, %v1697
      %v1699 = vrot.slane %v1698, 4
      %v1701 = vshll.u32 %v1523, 16
      %v1703 = vrot.slane %v1701, 5
      %v1704 = vsel %vm373, %v1699, %v1703
      %v1705 = vshrl.u32 %v1523, 16
      %v1707 = vrot.slane %v1705, 4
      %v1708 = vor.u32 %v1707, %v1703
      %v1709 = vrot.slane %v1708, 4
      %v1711 = vshll.u32 %v1583, 16
      %v1713 = vrot.slane %v1711, 5
      %v1714 = vsel %vm373, %v1709, %v1713
      %v1716 = vshrl.u32 %v1524, 16
      %v1718 = vrot.slane %v1716, 4
      %v1719 = vshll.u32 %v1524, 16
      %v1721 = vrot.slane %v1719, 5
      %v1722 = vor.u32 %v1718, %v1721
      %v1723 = vrot.slane %v1722, 4
      %v1725 = vshll.u32 %v1525, 16
      %v1727 = vrot.slane %v1725, 5
      %v1728 = vsel %vm373, %v1723, %v1727
      %v1729 = vshrl.u32 %v1525, 16
      %v1731 = vrot.slane %v1729, 4
      %v1732 = vor.u32 %v1731, %v1727
      %v1733 = vrot.slane %v1732, 4
      %v1735 = vshll.u32 %v1584, 16
      %v1737 = vrot.slane %v1735, 5
      %v1738 = vsel %vm373, %v1733, %v1737
      %v1740 = vshrl.u32 %v1526, 16
      %v1742 = vrot.slane %v1740, 4
      %v1743 = vshll.u32 %v1526, 16
      %v1745 = vrot.slane %v1743, 5
      %v1746 = vor.u32 %v1742, %v1745
      %v1747 = vrot.slane %v1746, 4
      %v1749 = vshll.u32 %v1527, 16
      %v1751 = vrot.slane %v1749, 5
      %v1752 = vsel %vm373, %v1747, %v1751
      %v1753 = vshrl.u32 %v1527, 16
      %v1755 = vrot.slane %v1753, 4
      %v1756 = vor.u32 %v1755, %v1751
      %v1757 = vrot.slane %v1756, 4
      %v1759 = vshll.u32 %v1585, 16
      %v1761 = vrot.slane %v1759, 5
      %v1762 = vsel %vm373, %v1757, %v1761
      %v1764 = vshrl.u32 %v1528, 16
      %v1766 = vrot.slane %v1764, 4
      %v1767 = vshll.u32 %v1528, 16
      %v1769 = vrot.slane %v1767, 5
      %v1770 = vor.u32 %v1766, %v1769
      %v1771 = vrot.slane %v1770, 4
      %v1773 = vshll.u32 %v1529, 16
      %v1775 = vrot.slane %v1773, 5
      %v1776 = vsel %vm373, %v1771, %v1775
      %v1777 = vshrl.u32 %v1529, 16
      %v1779 = vrot.slane %v1777, 4
      %v1780 = vor.u32 %v1779, %v1775
      %v1781 = vrot.slane %v1780, 4
      %v1783 = vshll.u32 %v1586, 16
      %v1785 = vrot.slane %v1783, 5
      %v1786 = vsel %vm373, %v1781, %v1785
      %v1788 = vshrl.u32 %v1530, 16
      %v1790 = vrot.slane %v1788, 4
      %v1791 = vshll.u32 %v1530, 16
      %v1793 = vrot.slane %v1791, 5
      %v1794 = vor.u32 %v1790, %v1793
      %v1795 = vrot.slane %v1794, 4
      %v1797 = vshll.u32 %v1531, 16
      %v1799 = vrot.slane %v1797, 5
      %v1800 = vsel %vm373, %v1795, %v1799
      %v1801 = vshrl.u32 %v1531, 16
      %v1803 = vrot.slane %v1801, 4
      %v1804 = vor.u32 %v1803, %v1799
      %v1805 = vrot.slane %v1804, 4
      %v1807 = vshll.u32 %v1587, 16
      %v1809 = vrot.slane %v1807, 5
      %v1810 = vsel %vm373, %v1805, %v1809
      %v1812 = vshrl.u32 %v1532, 16
      %v1814 = vrot.slane %v1812, 4
      %v1815 = vshll.u32 %v1532, 16
      %v1817 = vrot.slane %v1815, 5
      %v1818 = vor.u32 %v1814, %v1817
      %v1819 = vrot.slane %v1818, 4
      %v1821 = vshll.u32 %v1533, 16
      %v1823 = vrot.slane %v1821, 5
      %v1824 = vsel %vm373, %v1819, %v1823
      %v1825 = vshrl.u32 %v1533, 16
      %v1827 = vrot.slane %v1825, 4
      %v1828 = vor.u32 %v1827, %v1823
      %v1829 = vrot.slane %v1828, 4
      %v1831 = vshll.u32 %v1588, 16
      %v1833 = vrot.slane %v1831, 5
      %v1834 = vsel %vm373, %v1829, %v1833
      %v1836 = vshrl.u32 %v1534, 16
      %v1838 = vrot.slane %v1836, 4
      %v1839 = vshll.u32 %v1534, 16
      %v1841 = vrot.slane %v1839, 5
      %v1842 = vor.u32 %v1838, %v1841
      %v1843 = vrot.slane %v1842, 4
      %v1845 = vshll.u32 %v1535, 16
      %v1847 = vrot.slane %v1845, 5
      %v1848 = vsel %vm373, %v1843, %v1847
      %v1849 = vshrl.u32 %v1535, 16
      %v1851 = vrot.slane %v1849, 4
      %v1852 = vor.u32 %v1851, %v1847
      %v1853 = vrot.slane %v1852, 4
      %v1855 = vshll.u32 %v1589, 16
      %v1857 = vrot.slane %v1855, 5
      %v1858 = vsel %vm373, %v1853, %v1857
      %v1860 = vshrl.u32 %v1536, 16
      %v1862 = vrot.slane %v1860, 4
      %v1863 = vshll.u32 %v1536, 16
      %v1865 = vrot.slane %v1863, 5
      %v1866 = vor.u32 %v1862, %v1865
      %v1867 = vrot.slane %v1866, 4
      %v1869 = vshll.u32 %v1537, 16
      %v1871 = vrot.slane %v1869, 5
      %v1872 = vsel %vm373, %v1867, %v1871
      %v1873 = vshrl.u32 %v1537, 16
      %v1875 = vrot.slane %v1873, 4
      %v1876 = vor.u32 %v1875, %v1871
      %v1877 = vrot.slane %v1876, 4
      %v1879 = vshll.u32 %v1590, 16
      %v1881 = vrot.slane %v1879, 5
      %v1882 = vsel %vm373, %v1877, %v1881
      %v1884 = vshrl.u32 %v1538, 16
      %v1886 = vrot.slane %v1884, 4
      %v1887 = vshll.u32 %v1538, 16
      %v1889 = vrot.slane %v1887, 5
      %v1890 = vor.u32 %v1886, %v1889
      %v1891 = vrot.slane %v1890, 4
      %v1893 = vshll.u32 %v1539, 16
      %v1895 = vrot.slane %v1893, 5
      %v1896 = vsel %vm373, %v1891, %v1895
      %v1897 = vshrl.u32 %v1539, 16
      %v1899 = vrot.slane %v1897, 4
      %v1900 = vor.u32 %v1899, %v1895
      %v1901 = vrot.slane %v1900, 4
      %v1903 = vshll.u32 %v1591, 16
      %v1905 = vrot.slane %v1903, 5
      %v1906 = vsel %vm373, %v1901, %v1905
      %v1908 = vshrl.u32 %v1540, 16
      %v1910 = vrot.slane %v1908, 4
      %v1911 = vshll.u32 %v1540, 16
      %v1913 = vrot.slane %v1911, 5
      %v1914 = vor.u32 %v1910, %v1913
      %v1915 = vrot.slane %v1914, 4
      %v1917 = vshll.u32 %v1541, 16
      %v1919 = vrot.slane %v1917, 5
      %v1920 = vsel %vm373, %v1915, %v1919
      %v1921 = vshrl.u32 %v1541, 16
      %v1923 = vrot.slane %v1921, 4
      %v1924 = vor.u32 %v1923, %v1919
      %v1925 = vrot.slane %v1924, 4
      %v1927 = vshll.u32 %v1592, 16
      %v1929 = vrot.slane %v1927, 5
      %v1930 = vsel %vm373, %v1925, %v1929
      %v1932 = vshrl.u32 %v1542, 16
      %v1934 = vrot.slane %v1932, 4
      %v1935 = vshll.u32 %v1542, 16
      %v1937 = vrot.slane %v1935, 5
      %v1938 = vor.u32 %v1934, %v1937
      %v1939 = vrot.slane %v1938, 4
      %v1941 = vshll.u32 %v1543, 16
      %v1943 = vrot.slane %v1941, 5
      %v1944 = vsel %vm373, %v1939, %v1943
      %v1945 = vshrl.u32 %v1543, 16
      %v1947 = vrot.slane %v1945, 4
      %v1948 = vor.u32 %v1947, %v1943
      %v1949 = vrot.slane %v1948, 4
      %v1951 = vshll.u32 %v1593, 16
      %v1953 = vrot.slane %v1951, 5
      %v1954 = vsel %vm373, %v1949, %v1953
      %v1956 = vshrl.u32 %v1544, 16
      %v1958 = vrot.slane %v1956, 4
      %v1959 = vshll.u32 %v1544, 16
      %v1961 = vrot.slane %v1959, 5
      %v1962 = vor.u32 %v1958, %v1961
      %v1963 = vrot.slane %v1962, 4
      %v1965 = vshll.u32 %v1545, 16
      %v1967 = vrot.slane %v1965, 5
      %v1968 = vsel %vm373, %v1963, %v1967
      %v1969 = vshrl.u32 %v1545, 16
      %v1971 = vrot.slane %v1969, 4
      %v1972 = vor.u32 %v1971, %v1967
      %v1973 = vrot.slane %v1972, 4
      %v1975 = vshll.u32 %v1594, 16
      %v1977 = vrot.slane %v1975, 5
      %v1978 = vsel %vm373, %v1973, %v1977
      %v1979 = vld [vmem:[%s1546 + $0x8] sm:$0x1]
      %v1980 = vld [vmem:[%s1546 + $0x14] sm:$0x1]
      %v1981 = vld [vmem:[%s1546 + $0x20] sm:$0x1]
      %v1982 = vld [vmem:[%s1546 + $0x2c] sm:$0x1]
      %v1983 = vld [vmem:[%s1546 + $0x38] sm:$0x1]
      %v1984 = vld [vmem:[%s1546 + $0x44] sm:$0x1]
      %v1985 = vld [vmem:[%s1546 + $0x50] sm:$0x1]
      %v1986 = vld [vmem:[%s1546 + $0x5c] sm:$0x1]
      %v1987 = vld [vmem:[%s1546 + $0x68] sm:$0x1]
      %v1988 = vld [vmem:[%s1546 + $0x74] sm:$0x1]
      %v1989 = vld [vmem:[%s1546 + $0x80] sm:$0x1]
      %v1990 = vld [vmem:[%s1546 + $0x8c] sm:$0x1]
      %v1991 = vld [vmem:[%s1546 + $0x98] sm:$0x1]
      %v1992 = vld [vmem:[%s1546 + $0xa4] sm:$0x1]
      %v1993 = vld [vmem:[%s1546 + $0xb0] sm:$0x1]
      %v1994 = vld [vmem:[%s1546 + $0xbc] sm:$0x1]
      %v1996 = vshrl.u32 %v1547, 16
      %v1998 = vrot.slane %v1996, 4
      %v1999 = vshll.u32 %v1547, 16
      %v2001 = vrot.slane %v1999, 5
      %v2002 = vor.u32 %v1998, %v2001
      %v2003 = vrot.slane %v2002, 4
      %v2005 = vshll.u32 %v1548, 16
      %v2007 = vrot.slane %v2005, 5
      %v2008 = vsel %vm373, %v2003, %v2007
      %v2009 = vshrl.u32 %v1548, 16
      %v2011 = vrot.slane %v2009, 4
      %v2012 = vor.u32 %v2011, %v2007
      %v2013 = vrot.slane %v2012, 4
      %v2015 = vshll.u32 %v1979, 16
      %v2017 = vrot.slane %v2015, 5
      %v2018 = vsel %vm373, %v2013, %v2017
      %v2020 = vshrl.u32 %v1549, 16
      %v2022 = vrot.slane %v2020, 4
      %v2023 = vshll.u32 %v1549, 16
      %v2025 = vrot.slane %v2023, 5
      %v2026 = vor.u32 %v2022, %v2025
      %v2027 = vrot.slane %v2026, 4
      %v2029 = vshll.u32 %v1550, 16
      %v2031 = vrot.slane %v2029, 5
      %v2032 = vsel %vm373, %v2027, %v2031
      %v2033 = vshrl.u32 %v1550, 16
      %v2035 = vrot.slane %v2033, 4
      %v2036 = vor.u32 %v2035, %v2031
      %v2037 = vrot.slane %v2036, 4
      %v2039 = vshll.u32 %v1980, 16
      %v2041 = vrot.slane %v2039, 5
      %v2042 = vsel %vm373, %v2037, %v2041
      %v2044 = vshrl.u32 %v1551, 16
      %v2046 = vrot.slane %v2044, 4
      %v2047 = vshll.u32 %v1551, 16
      %v2049 = vrot.slane %v2047, 5
      %v2050 = vor.u32 %v2046, %v2049
      %v2051 = vrot.slane %v2050, 4
      %v2053 = vshll.u32 %v1552, 16
      %v2055 = vrot.slane %v2053, 5
      %v2056 = vsel %vm373, %v2051, %v2055
      %v2057 = vshrl.u32 %v1552, 16
      %v2059 = vrot.slane %v2057, 4
      %v2060 = vor.u32 %v2059, %v2055
      %v2061 = vrot.slane %v2060, 4
      %v2063 = vshll.u32 %v1981, 16
      %v2065 = vrot.slane %v2063, 5
      %v2066 = vsel %vm373, %v2061, %v2065
      %v2068 = vshrl.u32 %v1553, 16
      %v2070 = vrot.slane %v2068, 4
      %v2071 = vshll.u32 %v1553, 16
      %v2073 = vrot.slane %v2071, 5
      %v2074 = vor.u32 %v2070, %v2073
      %v2075 = vrot.slane %v2074, 4
      %v2077 = vshll.u32 %v1554, 16
      %v2079 = vrot.slane %v2077, 5
      %v2080 = vsel %vm373, %v2075, %v2079
      %v2081 = vshrl.u32 %v1554, 16
      %v2083 = vrot.slane %v2081, 4
      %v2084 = vor.u32 %v2083, %v2079
      %v2085 = vrot.slane %v2084, 4
      %v2087 = vshll.u32 %v1982, 16
      %v2089 = vrot.slane %v2087, 5
      %v2090 = vsel %vm373, %v2085, %v2089
      %v2092 = vshrl.u32 %v1555, 16
      %v2094 = vrot.slane %v2092, 4
      %v2095 = vshll.u32 %v1555, 16
      %v2097 = vrot.slane %v2095, 5
      %v2098 = vor.u32 %v2094, %v2097
      %v2099 = vrot.slane %v2098, 4
      %v2101 = vshll.u32 %v1556, 16
      %v2103 = vrot.slane %v2101, 5
      %v2104 = vsel %vm373, %v2099, %v2103
      %v2105 = vshrl.u32 %v1556, 16
      %v2107 = vrot.slane %v2105, 4
      %v2108 = vor.u32 %v2107, %v2103
      %v2109 = vrot.slane %v2108, 4
      %v2111 = vshll.u32 %v1983, 16
      %v2113 = vrot.slane %v2111, 5
      %v2114 = vsel %vm373, %v2109, %v2113
      %v2116 = vshrl.u32 %v1557, 16
      %v2118 = vrot.slane %v2116, 4
      %v2119 = vshll.u32 %v1557, 16
      %v2121 = vrot.slane %v2119, 5
      %v2122 = vor.u32 %v2118, %v2121
      %v2123 = vrot.slane %v2122, 4
      %v2125 = vshll.u32 %v1558, 16
      %v2127 = vrot.slane %v2125, 5
      %v2128 = vsel %vm373, %v2123, %v2127
      %v2129 = vshrl.u32 %v1558, 16
      %v2131 = vrot.slane %v2129, 4
      %v2132 = vor.u32 %v2131, %v2127
      %v2133 = vrot.slane %v2132, 4
      %v2135 = vshll.u32 %v1984, 16
      %v2137 = vrot.slane %v2135, 5
      %v2138 = vsel %vm373, %v2133, %v2137
      %v2140 = vshrl.u32 %v1559, 16
      %v2142 = vrot.slane %v2140, 4
      %v2143 = vshll.u32 %v1559, 16
      %v2145 = vrot.slane %v2143, 5
      %v2146 = vor.u32 %v2142, %v2145
      %v2147 = vrot.slane %v2146, 4
      %v2149 = vshll.u32 %v1560, 16
      %v2151 = vrot.slane %v2149, 5
      %v2152 = vsel %vm373, %v2147, %v2151
      %v2153 = vshrl.u32 %v1560, 16
      %v2155 = vrot.slane %v2153, 4
      %v2156 = vor.u32 %v2155, %v2151
      %v2157 = vrot.slane %v2156, 4
      %v2159 = vshll.u32 %v1985, 16
      %v2161 = vrot.slane %v2159, 5
      %v2162 = vsel %vm373, %v2157, %v2161
      %v2164 = vshrl.u32 %v1561, 16
      %v2166 = vrot.slane %v2164, 4
      %v2167 = vshll.u32 %v1561, 16
      %v2169 = vrot.slane %v2167, 5
      %v2170 = vor.u32 %v2166, %v2169
      %v2171 = vrot.slane %v2170, 4
      %v2173 = vshll.u32 %v1562, 16
      %v2175 = vrot.slane %v2173, 5
      %v2176 = vsel %vm373, %v2171, %v2175
      %v2177 = vshrl.u32 %v1562, 16
      %v2179 = vrot.slane %v2177, 4
      %v2180 = vor.u32 %v2179, %v2175
      %v2181 = vrot.slane %v2180, 4
      %v2183 = vshll.u32 %v1986, 16
      %v2185 = vrot.slane %v2183, 5
      %v2186 = vsel %vm373, %v2181, %v2185
      %v2188 = vshrl.u32 %v1563, 16
      %v2190 = vrot.slane %v2188, 4
      %v2191 = vshll.u32 %v1563, 16
      %v2193 = vrot.slane %v2191, 5
      %v2194 = vor.u32 %v2190, %v2193
      %v2195 = vrot.slane %v2194, 4
      %v2197 = vshll.u32 %v1564, 16
      %v2199 = vrot.slane %v2197, 5
      %v2200 = vsel %vm373, %v2195, %v2199
      %v2201 = vshrl.u32 %v1564, 16
      %v2203 = vrot.slane %v2201, 4
      %v2204 = vor.u32 %v2203, %v2199
      %v2205 = vrot.slane %v2204, 4
      %v2207 = vshll.u32 %v1987, 16
      %v2209 = vrot.slane %v2207, 5
      %v2210 = vsel %vm373, %v2205, %v2209
      %v2212 = vshrl.u32 %v1565, 16
      %v2214 = vrot.slane %v2212, 4
      %v2215 = vshll.u32 %v1565, 16
      %v2217 = vrot.slane %v2215, 5
      %v2218 = vor.u32 %v2214, %v2217
      %v2219 = vrot.slane %v2218, 4
      %v2221 = vshll.u32 %v1566, 16
      %v2223 = vrot.slane %v2221, 5
      %v2224 = vsel %vm373, %v2219, %v2223
      %v2225 = vshrl.u32 %v1566, 16
      %v2227 = vrot.slane %v2225, 4
      %v2228 = vor.u32 %v2227, %v2223
      %v2229 = vrot.slane %v2228, 4
      %v2231 = vshll.u32 %v1988, 16
      %v2233 = vrot.slane %v2231, 5
      %v2234 = vsel %vm373, %v2229, %v2233
      %v2236 = vshrl.u32 %v1567, 16
      %v2238 = vrot.slane %v2236, 4
      %v2239 = vshll.u32 %v1567, 16
      %v2241 = vrot.slane %v2239, 5
      %v2242 = vor.u32 %v2238, %v2241
      %v2243 = vrot.slane %v2242, 4
      %v2245 = vshll.u32 %v1568, 16
      %v2247 = vrot.slane %v2245, 5
      %v2248 = vsel %vm373, %v2243, %v2247
      %v2249 = vshrl.u32 %v1568, 16
      %v2251 = vrot.slane %v2249, 4
      %v2252 = vor.u32 %v2251, %v2247
      %v2253 = vrot.slane %v2252, 4
      %v2255 = vshll.u32 %v1989, 16
      %v2257 = vrot.slane %v2255, 5
      %v2258 = vsel %vm373, %v2253, %v2257
      %v2260 = vshrl.u32 %v1569, 16
      %v2262 = vrot.slane %v2260, 4
      %v2263 = vshll.u32 %v1569, 16
      %v2265 = vrot.slane %v2263, 5
      %v2266 = vor.u32 %v2262, %v2265
      %v2267 = vrot.slane %v2266, 4
      %v2269 = vshll.u32 %v1570, 16
      %v2271 = vrot.slane %v2269, 5
      %v2272 = vsel %vm373, %v2267, %v2271
      %v2273 = vshrl.u32 %v1570, 16
      %v2275 = vrot.slane %v2273, 4
      %v2276 = vor.u32 %v2275, %v2271
      %v2277 = vrot.slane %v2276, 4
      %v2279 = vshll.u32 %v1990, 16
      %v2281 = vrot.slane %v2279, 5
      %v2282 = vsel %vm373, %v2277, %v2281
      %v2284 = vshrl.u32 %v1571, 16
      %v2286 = vrot.slane %v2284, 4
      %v2287 = vshll.u32 %v1571, 16
      %v2289 = vrot.slane %v2287, 5
      %v2290 = vor.u32 %v2286, %v2289
      %v2291 = vrot.slane %v2290, 4
      %v2293 = vshll.u32 %v1572, 16
      %v2295 = vrot.slane %v2293, 5
      %v2296 = vsel %vm373, %v2291, %v2295
      %v2297 = vshrl.u32 %v1572, 16
      %v2299 = vrot.slane %v2297, 4
      %v2300 = vor.u32 %v2299, %v2295
      %v2301 = vrot.slane %v2300, 4
      %v2303 = vshll.u32 %v1991, 16
      %v2305 = vrot.slane %v2303, 5
      %v2306 = vsel %vm373, %v2301, %v2305
      %v2308 = vshrl.u32 %v1573, 16
      %v2310 = vrot.slane %v2308, 4
      %v2311 = vshll.u32 %v1573, 16
      %v2313 = vrot.slane %v2311, 5
      %v2314 = vor.u32 %v2310, %v2313
      %v2315 = vrot.slane %v2314, 4
      %v2317 = vshll.u32 %v1574, 16
      %v2319 = vrot.slane %v2317, 5
      %v2320 = vsel %vm373, %v2315, %v2319
      %v2321 = vshrl.u32 %v1574, 16
      %v2323 = vrot.slane %v2321, 4
      %v2324 = vor.u32 %v2323, %v2319
      %v2325 = vrot.slane %v2324, 4
      %v2327 = vshll.u32 %v1992, 16
      %v2329 = vrot.slane %v2327, 5
      %v2330 = vsel %vm373, %v2325, %v2329
      %v2332 = vshrl.u32 %v1575, 16
      %v2334 = vrot.slane %v2332, 4
      %v2335 = vshll.u32 %v1575, 16
      %v2337 = vrot.slane %v2335, 5
      %v2338 = vor.u32 %v2334, %v2337
      %v2339 = vrot.slane %v2338, 4
      %v2341 = vshll.u32 %v1576, 16
      %v2343 = vrot.slane %v2341, 5
      %v2344 = vsel %vm373, %v2339, %v2343
      %v2345 = vshrl.u32 %v1576, 16
      %v2347 = vrot.slane %v2345, 4
      %v2348 = vor.u32 %v2347, %v2343
      %v2349 = vrot.slane %v2348, 4
      %v2351 = vshll.u32 %v1993, 16
      %v2353 = vrot.slane %v2351, 5
      %v2354 = vsel %vm373, %v2349, %v2353
      %v2356 = vshrl.u32 %v1577, 16
      %v2358 = vrot.slane %v2356, 4
      %v2359 = vshll.u32 %v1577, 16
      %v2361 = vrot.slane %v2359, 5
      %v2362 = vor.u32 %v2358, %v2361
      %v2363 = vrot.slane %v2362, 4
      %v2365 = vshll.u32 %v1578, 16
      %v2367 = vrot.slane %v2365, 5
      %v2368 = vsel %vm373, %v2363, %v2367
      %v2369 = vshrl.u32 %v1578, 16
      %v2371 = vrot.slane %v2369, 4
      %v2372 = vor.u32 %v2371, %v2367
      %v2373 = vrot.slane %v2372, 4
      %v2375 = vshll.u32 %v1994, 16
      %v2377 = vrot.slane %v2375, 5
      %v2378 = vsel %vm373, %v2373, %v2377
      %v2379 = vld [vmem:[%s1513] sm:$0xe]
      %v2380 = vld [vmem:[%s1513 + $0xc] sm:$0xe]
      %v2381 = vld [vmem:[%s1513 + $0x18] sm:$0xe]
      %v2382 = vld [vmem:[%s1513 + $0x24] sm:$0xe]
      %v2383 = vld [vmem:[%s1513 + $0x30] sm:$0xe]
      %v2384 = vld [vmem:[%s1513 + $0x3c] sm:$0xe]
      %v2385 = vld [vmem:[%s1513 + $0x48] sm:$0xe]
      %v2386 = vld [vmem:[%s1513 + $0x54] sm:$0xe]
      %v2387 = vld [vmem:[%s1513 + $0x60] sm:$0xe]
      %v2388 = vld [vmem:[%s1513 + $0x6c] sm:$0xe]
      %v2389 = vld [vmem:[%s1513 + $0x78] sm:$0xe]
      %v2390 = vld [vmem:[%s1513 + $0x84] sm:$0xe]
      %v2391 = vld [vmem:[%s1513 + $0x90] sm:$0xe]
      %v2392 = vld [vmem:[%s1513 + $0x9c] sm:$0xe]
      %v2393 = vld [vmem:[%s1513 + $0xa8] sm:$0xe]
      %v2394 = vld [vmem:[%s1513 + $0xb4] sm:$0xe]
      %v2443 = vrot.slane %v2379, 5
      %v2444 = vrot.slane %v2443, 4
      %v2445 = vrot.slane %v1515, 5
      %v2446 = vsel %vm1224, %v2444, %v2445
      %v2447 = vrot.slane %v2445, 4
      %v2448 = vrot.slane %v1579, 5
      %v2449 = vsel %vm1224, %v2447, %v2448
      %v2450 = vrot.slane %v2380, 5
      %v2451 = vrot.slane %v2450, 4
      %v2452 = vrot.slane %v1517, 5
      %v2453 = vsel %vm1224, %v2451, %v2452
      %v2454 = vrot.slane %v2452, 4
      %v2455 = vrot.slane %v1580, 5
      %v2456 = vsel %vm1224, %v2454, %v2455
      %v2457 = vrot.slane %v2381, 5
      %v2458 = vrot.slane %v2457, 4
      %v2459 = vrot.slane %v1519, 5
      %v2460 = vsel %vm1224, %v2458, %v2459
      %v2461 = vrot.slane %v2459, 4
      %v2462 = vrot.slane %v1581, 5
      %v2463 = vsel %vm1224, %v2461, %v2462
      %v2464 = vrot.slane %v2382, 5
      %v2465 = vrot.slane %v2464, 4
      %v2466 = vrot.slane %v1521, 5
      %v2467 = vsel %vm1224, %v2465, %v2466
      %v2468 = vrot.slane %v2466, 4
      %v2469 = vrot.slane %v1582, 5
      %v2470 = vsel %vm1224, %v2468, %v2469
      %v2471 = vrot.slane %v2383, 5
      %v2472 = vrot.slane %v2471, 4
      %v2473 = vrot.slane %v1523, 5
      %v2474 = vsel %vm1224, %v2472, %v2473
      %v2475 = vrot.slane %v2473, 4
      %v2476 = vrot.slane %v1583, 5
      %v2477 = vsel %vm1224, %v2475, %v2476
      %v2478 = vrot.slane %v2384, 5
      %v2479 = vrot.slane %v2478, 4
      %v2480 = vrot.slane %v1525, 5
      %v2481 = vsel %vm1224, %v2479, %v2480
      %v2482 = vrot.slane %v2480, 4
      %v2483 = vrot.slane %v1584, 5
      %v2484 = vsel %vm1224, %v2482, %v2483
      %v2485 = vrot.slane %v2385, 5
      %v2486 = vrot.slane %v2485, 4
      %v2487 = vrot.slane %v1527, 5
      %v2488 = vsel %vm1224, %v2486, %v2487
      %v2489 = vrot.slane %v2487, 4
      %v2490 = vrot.slane %v1585, 5
      %v2491 = vsel %vm1224, %v2489, %v2490
      %v2492 = vrot.slane %v2386, 5
      %v2493 = vrot.slane %v2492, 4
      %v2494 = vrot.slane %v1529, 5
      %v2495 = vsel %vm1224, %v2493, %v2494
      %v2496 = vrot.slane %v2494, 4
      %v2497 = vrot.slane %v1586, 5
      %v2498 = vsel %vm1224, %v2496, %v2497
      %v2499 = vrot.slane %v2387, 5
      %v2500 = vrot.slane %v2499, 4
      %v2501 = vrot.slane %v1531, 5
      %v2502 = vsel %vm1224, %v2500, %v2501
      %v2503 = vrot.slane %v2501, 4
      %v2504 = vrot.slane %v1587, 5
      %v2505 = vsel %vm1224, %v2503, %v2504
      %v2506 = vrot.slane %v2388, 5
      %v2507 = vrot.slane %v2506, 4
      %v2508 = vrot.slane %v1533, 5
      %v2509 = vsel %vm1224, %v2507, %v2508
      %v2510 = vrot.slane %v2508, 4
      %v2511 = vrot.slane %v1588, 5
      %v2512 = vsel %vm1224, %v2510, %v2511
      %v2513 = vrot.slane %v2389, 5
      %v2514 = vrot.slane %v2513, 4
      %v2515 = vrot.slane %v1535, 5
      %v2516 = vsel %vm1224, %v2514, %v2515
      %v2517 = vrot.slane %v2515, 4
      %v2518 = vrot.slane %v1589, 5
      %v2519 = vsel %vm1224, %v2517, %v2518
      %v2520 = vrot.slane %v2390, 5
      %v2521 = vrot.slane %v2520, 4
      %v2522 = vrot.slane %v1537, 5
      %v2523 = vsel %vm1224, %v2521, %v2522
      %v2524 = vrot.slane %v2522, 4
      %v2525 = vrot.slane %v1590, 5
      %v2526 = vsel %vm1224, %v2524, %v2525
      %v2527 = vrot.slane %v2391, 5
      %v2528 = vrot.slane %v2527, 4
      %v2529 = vrot.slane %v1539, 5
      %v2530 = vsel %vm1224, %v2528, %v2529
      %v2531 = vrot.slane %v2529, 4
      %v2532 = vrot.slane %v1591, 5
      %v2533 = vsel %vm1224, %v2531, %v2532
      %v2534 = vrot.slane %v2392, 5
      %v2535 = vrot.slane %v2534, 4
      %v2536 = vrot.slane %v1541, 5
      %v2537 = vsel %vm1224, %v2535, %v2536
      %v2538 = vrot.slane %v2536, 4
      %v2539 = vrot.slane %v1592, 5
      %v2540 = vsel %vm1224, %v2538, %v2539
      %v2541 = vrot.slane %v2393, 5
      %v2542 = vrot.slane %v2541, 4
      %v2543 = vrot.slane %v1543, 5
      %v2544 = vsel %vm1224, %v2542, %v2543
      %v2545 = vrot.slane %v2543, 4
      %v2546 = vrot.slane %v1593, 5
      %v2547 = vsel %vm1224, %v2545, %v2546
      %v2548 = vrot.slane %v2394, 5
      %v2549 = vrot.slane %v2548, 4
      %v2550 = vrot.slane %v1545, 5
      %v2551 = vsel %vm1224, %v2549, %v2550
      %v2552 = vrot.slane %v2550, 4
      %v2553 = vrot.slane %v1594, 5
      %v2554 = vsel %vm1224, %v2552, %v2553
      %v2555 = vld [vmem:[%s1546] sm:$0xe]
      %v2556 = vld [vmem:[%s1546 + $0xc] sm:$0xe]
      %v2557 = vld [vmem:[%s1546 + $0x18] sm:$0xe]
      %v2558 = vld [vmem:[%s1546 + $0x24] sm:$0xe]
      %v2559 = vld [vmem:[%s1546 + $0x30] sm:$0xe]
      %v2560 = vld [vmem:[%s1546 + $0x3c] sm:$0xe]
      %v2561 = vld [vmem:[%s1546 + $0x48] sm:$0xe]
      %v2562 = vld [vmem:[%s1546 + $0x54] sm:$0xe]
      %v2563 = vld [vmem:[%s1546 + $0x60] sm:$0xe]
      %v2564 = vld [vmem:[%s1546 + $0x6c] sm:$0xe]
      %v2565 = vld [vmem:[%s1546 + $0x78] sm:$0xe]
      %v2566 = vld [vmem:[%s1546 + $0x84] sm:$0xe]
      %v2567 = vld [vmem:[%s1546 + $0x90] sm:$0xe]
      %v2568 = vld [vmem:[%s1546 + $0x9c] sm:$0xe]
      %v2569 = vld [vmem:[%s1546 + $0xa8] sm:$0xe]
      %v2570 = vld [vmem:[%s1546 + $0xb4] sm:$0xe]
      %v2619 = vrot.slane %v2555, 5
      %v2620 = vrot.slane %v2619, 4
      %v2621 = vrot.slane %v1548, 5
      %v2622 = vsel %vm1224, %v2620, %v2621
      %v2623 = vrot.slane %v2621, 4
      %v2624 = vrot.slane %v1979, 5
      %v2625 = vsel %vm1224, %v2623, %v2624
      %v2626 = vrot.slane %v2556, 5
      %v2627 = vrot.slane %v2626, 4
      %v2628 = vrot.slane %v1550, 5
      %v2629 = vsel %vm1224, %v2627, %v2628
      %v2630 = vrot.slane %v2628, 4
      %v2631 = vrot.slane %v1980, 5
      %v2632 = vsel %vm1224, %v2630, %v2631
      %v2633 = vrot.slane %v2557, 5
      %v2634 = vrot.slane %v2633, 4
      %v2635 = vrot.slane %v1552, 5
      %v2636 = vsel %vm1224, %v2634, %v2635
      %v2637 = vrot.slane %v2635, 4
      %v2638 = vrot.slane %v1981, 5
      %v2639 = vsel %vm1224, %v2637, %v2638
      %v2640 = vrot.slane %v2558, 5
      %v2641 = vrot.slane %v2640, 4
      %v2642 = vrot.slane %v1554, 5
      %v2643 = vsel %vm1224, %v2641, %v2642
      %v2644 = vrot.slane %v2642, 4
      %v2645 = vrot.slane %v1982, 5
      %v2646 = vsel %vm1224, %v2644, %v2645
      %v2647 = vrot.slane %v2559, 5
      %v2648 = vrot.slane %v2647, 4
      %v2649 = vrot.slane %v1556, 5
      %v2650 = vsel %vm1224, %v2648, %v2649
      %v2651 = vrot.slane %v2649, 4
      %v2652 = vrot.slane %v1983, 5
      %v2653 = vsel %vm1224, %v2651, %v2652
      %v2654 = vrot.slane %v2560, 5
      %v2655 = vrot.slane %v2654, 4
      %v2656 = vrot.slane %v1558, 5
      %v2657 = vsel %vm1224, %v2655, %v2656
      %v2658 = vrot.slane %v2656, 4
      %v2659 = vrot.slane %v1984, 5
      %v2660 = vsel %vm1224, %v2658, %v2659
      %v2661 = vrot.slane %v2561, 5
      %v2662 = vrot.slane %v2661, 4
      %v2663 = vrot.slane %v1560, 5
      %v2664 = vsel %vm1224, %v2662, %v2663
      %v2665 = vrot.slane %v2663, 4
      %v2666 = vrot.slane %v1985, 5
      %v2667 = vsel %vm1224, %v2665, %v2666
      %v2668 = vrot.slane %v2562, 5
      %v2669 = vrot.slane %v2668, 4
      %v2670 = vrot.slane %v1562, 5
      %v2671 = vsel %vm1224, %v2669, %v2670
      %v2672 = vrot.slane %v2670, 4
      %v2673 = vrot.slane %v1986, 5
      %v2674 = vsel %vm1224, %v2672, %v2673
      %v2675 = vrot.slane %v2563, 5
      %v2676 = vrot.slane %v2675, 4
      %v2677 = vrot.slane %v1564, 5
      %v2678 = vsel %vm1224, %v2676, %v2677
      %v2679 = vrot.slane %v2677, 4
      %v2680 = vrot.slane %v1987, 5
      %v2681 = vsel %vm1224, %v2679, %v2680
      %v2682 = vrot.slane %v2564, 5
      %v2683 = vrot.slane %v2682, 4
      %v2684 = vrot.slane %v1566, 5
      %v2685 = vsel %vm1224, %v2683, %v2684
      %v2686 = vrot.slane %v2684, 4
      %v2687 = vrot.slane %v1988, 5
      %v2688 = vsel %vm1224, %v2686, %v2687
      %v2689 = vrot.slane %v2565, 5
      %v2690 = vrot.slane %v2689, 4
      %v2691 = vrot.slane %v1568, 5
      %v2692 = vsel %vm1224, %v2690, %v2691
      %v2693 = vrot.slane %v2691, 4
      %v2694 = vrot.slane %v1989, 5
      %v2695 = vsel %vm1224, %v2693, %v2694
      %v2696 = vrot.slane %v2566, 5
      %v2697 = vrot.slane %v2696, 4
      %v2698 = vrot.slane %v1570, 5
      %v2699 = vsel %vm1224, %v2697, %v2698
      %v2700 = vrot.slane %v2698, 4
      %v2701 = vrot.slane %v1990, 5
      %v2702 = vsel %vm1224, %v2700, %v2701
      %v2703 = vrot.slane %v2567, 5
      %v2704 = vrot.slane %v2703, 4
      %v2705 = vrot.slane %v1572, 5
      %v2706 = vsel %vm1224, %v2704, %v2705
      %v2707 = vrot.slane %v2705, 4
      %v2708 = vrot.slane %v1991, 5
      %v2709 = vsel %vm1224, %v2707, %v2708
      %v2710 = vrot.slane %v2568, 5
      %v2711 = vrot.slane %v2710, 4
      %v2712 = vrot.slane %v1574, 5
      %v2713 = vsel %vm1224, %v2711, %v2712
      %v2714 = vrot.slane %v2712, 4
      %v2715 = vrot.slane %v1992, 5
      %v2716 = vsel %vm1224, %v2714, %v2715
      %v2717 = vrot.slane %v2569, 5
      %v2718 = vrot.slane %v2717, 4
      %v2719 = vrot.slane %v1576, 5
      %v2720 = vsel %vm1224, %v2718, %v2719
      %v2721 = vrot.slane %v2719, 4
      %v2722 = vrot.slane %v1993, 5
      %v2723 = vsel %vm1224, %v2721, %v2722
      %v2724 = vrot.slane %v2570, 5
      %v2725 = vrot.slane %v2724, 4
      %v2726 = vrot.slane %v1578, 5
      %v2727 = vsel %vm1224, %v2725, %v2726
      %v2728 = vrot.slane %v2726, 4
      %v2729 = vrot.slane %v1994, 5
      %v2730 = vsel %vm1224, %v2728, %v2729
      %s2731 = scalar_lea.vmem %s262, 24
      %v2732 = vld [vmem:[%s2731] sm:$0xf]
      %v2733 = vld [vmem:[%s2731 + $0x4] sm:$0xf]
      %v2734 = vld [vmem:[%s2731 + $0xc] sm:$0xf]
      %v2735 = vld [vmem:[%s2731 + $0x10] sm:$0xf]
      %v2736 = vld [vmem:[%s2731 + $0x18] sm:$0xf]
      %v2737 = vld [vmem:[%s2731 + $0x1c] sm:$0xf]
      %v2738 = vld [vmem:[%s2731 + $0x24] sm:$0xf]
      %v2739 = vld [vmem:[%s2731 + $0x28] sm:$0xf]
      %v2740 = vld [vmem:[%s2731 + $0x30] sm:$0xf]
      %v2741 = vld [vmem:[%s2731 + $0x34] sm:$0xf]
      %v2742 = vld [vmem:[%s2731 + $0x3c] sm:$0xf]
      %v2743 = vld [vmem:[%s2731 + $0x40] sm:$0xf]
      %v2744 = vld [vmem:[%s2731 + $0x48] sm:$0xf]
      %v2745 = vld [vmem:[%s2731 + $0x4c] sm:$0xf]
      %v2746 = vld [vmem:[%s2731 + $0x54] sm:$0xf]
      %v2747 = vld [vmem:[%s2731 + $0x58] sm:$0xf]
      %v2748 = vld [vmem:[%s2731 + $0x60] sm:$0xf]
      %v2749 = vld [vmem:[%s2731 + $0x64] sm:$0xf]
      %v2750 = vld [vmem:[%s2731 + $0x6c] sm:$0xf]
      %v2751 = vld [vmem:[%s2731 + $0x70] sm:$0xf]
      %v2752 = vld [vmem:[%s2731 + $0x78] sm:$0xf]
      %v2753 = vld [vmem:[%s2731 + $0x7c] sm:$0xf]
      %v2754 = vld [vmem:[%s2731 + $0x84] sm:$0xf]
      %v2755 = vld [vmem:[%s2731 + $0x88] sm:$0xf]
      %v2756 = vld [vmem:[%s2731 + $0x90] sm:$0xf]
      %v2757 = vld [vmem:[%s2731 + $0x94] sm:$0xf]
      %v2758 = vld [vmem:[%s2731 + $0x9c] sm:$0xf]
      %v2759 = vld [vmem:[%s2731 + $0xa0] sm:$0xf]
      %v2760 = vld [vmem:[%s2731 + $0xa8] sm:$0xf]
      %v2761 = vld [vmem:[%s2731 + $0xac] sm:$0xf]
      %v2762 = vld [vmem:[%s2731 + $0xb4] sm:$0xf]
      %v2763 = vld [vmem:[%s2731 + $0xb8] sm:$0xf]
      %s2764 = scalar_lea.vmem %s271, 24
      %v2765 = vld [vmem:[%s2764] sm:$0xf]
      %v2766 = vld [vmem:[%s2764 + $0x4] sm:$0xf]
      %v2767 = vld [vmem:[%s2764 + $0xc] sm:$0xf]
      %v2768 = vld [vmem:[%s2764 + $0x10] sm:$0xf]
      %v2769 = vld [vmem:[%s2764 + $0x18] sm:$0xf]
      %v2770 = vld [vmem:[%s2764 + $0x1c] sm:$0xf]
      %v2771 = vld [vmem:[%s2764 + $0x24] sm:$0xf]
      %v2772 = vld [vmem:[%s2764 + $0x28] sm:$0xf]
      %v2773 = vld [vmem:[%s2764 + $0x30] sm:$0xf]
      %v2774 = vld [vmem:[%s2764 + $0x34] sm:$0xf]
      %v2775 = vld [vmem:[%s2764 + $0x3c] sm:$0xf]
      %v2776 = vld [vmem:[%s2764 + $0x40] sm:$0xf]
      %v2777 = vld [vmem:[%s2764 + $0x48] sm:$0xf]
      %v2778 = vld [vmem:[%s2764 + $0x4c] sm:$0xf]
      %v2779 = vld [vmem:[%s2764 + $0x54] sm:$0xf]
      %v2780 = vld [vmem:[%s2764 + $0x58] sm:$0xf]
      %v2781 = vld [vmem:[%s2764 + $0x60] sm:$0xf]
      %v2782 = vld [vmem:[%s2764 + $0x64] sm:$0xf]
      %v2783 = vld [vmem:[%s2764 + $0x6c] sm:$0xf]
      %v2784 = vld [vmem:[%s2764 + $0x70] sm:$0xf]
      %v2785 = vld [vmem:[%s2764 + $0x78] sm:$0xf]
      %v2786 = vld [vmem:[%s2764 + $0x7c] sm:$0xf]
      %v2787 = vld [vmem:[%s2764 + $0x84] sm:$0xf]
      %v2788 = vld [vmem:[%s2764 + $0x88] sm:$0xf]
      %v2789 = vld [vmem:[%s2764 + $0x90] sm:$0xf]
      %v2790 = vld [vmem:[%s2764 + $0x94] sm:$0xf]
      %v2791 = vld [vmem:[%s2764 + $0x9c] sm:$0xf]
      %v2792 = vld [vmem:[%s2764 + $0xa0] sm:$0xf]
      %v2793 = vld [vmem:[%s2764 + $0xa8] sm:$0xf]
      %v2794 = vld [vmem:[%s2764 + $0xac] sm:$0xf]
      %v2795 = vld [vmem:[%s2764 + $0xb4] sm:$0xf]
      %v2796 = vld [vmem:[%s2764 + $0xb8] sm:$0xf]
      %v2797 = vld [vmem:[%s2731 + $0x8] sm:$0x1]
      %v2798 = vld [vmem:[%s2731 + $0x14] sm:$0x1]
      %v2799 = vld [vmem:[%s2731 + $0x20] sm:$0x1]
      %v2800 = vld [vmem:[%s2731 + $0x2c] sm:$0x1]
      %v2801 = vld [vmem:[%s2731 + $0x38] sm:$0x1]
      %v2802 = vld [vmem:[%s2731 + $0x44] sm:$0x1]
      %v2803 = vld [vmem:[%s2731 + $0x50] sm:$0x1]
      %v2804 = vld [vmem:[%s2731 + $0x5c] sm:$0x1]
      %v2805 = vld [vmem:[%s2731 + $0x68] sm:$0x1]
      %v2806 = vld [vmem:[%s2731 + $0x74] sm:$0x1]
      %v2807 = vld [vmem:[%s2731 + $0x80] sm:$0x1]
      %v2808 = vld [vmem:[%s2731 + $0x8c] sm:$0x1]
      %v2809 = vld [vmem:[%s2731 + $0x98] sm:$0x1]
      %v2810 = vld [vmem:[%s2731 + $0xa4] sm:$0x1]
      %v2811 = vld [vmem:[%s2731 + $0xb0] sm:$0x1]
      %v2812 = vld [vmem:[%s2731 + $0xbc] sm:$0x1]
      %v2814 = vshrl.u32 %v2732, 16
      %v2816 = vrot.slane %v2814, 4
      %v2817 = vshll.u32 %v2732, 16
      %v2819 = vrot.slane %v2817, 5
      %v2820 = vor.u32 %v2816, %v2819
      %v2821 = vrot.slane %v2820, 4
      %v2823 = vshll.u32 %v2733, 16
      %v2825 = vrot.slane %v2823, 5
      %v2826 = vsel %vm373, %v2821, %v2825
      %v2827 = vshrl.u32 %v2733, 16
      %v2829 = vrot.slane %v2827, 4
      %v2830 = vor.u32 %v2829, %v2825
      %v2831 = vrot.slane %v2830, 4
      %v2833 = vshll.u32 %v2797, 16
      %v2835 = vrot.slane %v2833, 5
      %v2836 = vsel %vm373, %v2831, %v2835
      %v2838 = vshrl.u32 %v2734, 16
      %v2840 = vrot.slane %v2838, 4
      %v2841 = vshll.u32 %v2734, 16
      %v2843 = vrot.slane %v2841, 5
      %v2844 = vor.u32 %v2840, %v2843
      %v2845 = vrot.slane %v2844, 4
      %v2847 = vshll.u32 %v2735, 16
      %v2849 = vrot.slane %v2847, 5
      %v2850 = vsel %vm373, %v2845, %v2849
      %v2851 = vshrl.u32 %v2735, 16
      %v2853 = vrot.slane %v2851, 4
      %v2854 = vor.u32 %v2853, %v2849
      %v2855 = vrot.slane %v2854, 4
      %v2857 = vshll.u32 %v2798, 16
      %v2859 = vrot.slane %v2857, 5
      %v2860 = vsel %vm373, %v2855, %v2859
      %v2862 = vshrl.u32 %v2736, 16
      %v2864 = vrot.slane %v2862, 4
      %v2865 = vshll.u32 %v2736, 16
      %v2867 = vrot.slane %v2865, 5
      %v2868 = vor.u32 %v2864, %v2867
      %v2869 = vrot.slane %v2868, 4
      %v2871 = vshll.u32 %v2737, 16
      %v2873 = vrot.slane %v2871, 5
      %v2874 = vsel %vm373, %v2869, %v2873
      %v2875 = vshrl.u32 %v2737, 16
      %v2877 = vrot.slane %v2875, 4
      %v2878 = vor.u32 %v2877, %v2873
      %v2879 = vrot.slane %v2878, 4
      %v2881 = vshll.u32 %v2799, 16
      %v2883 = vrot.slane %v2881, 5
      %v2884 = vsel %vm373, %v2879, %v2883
      %v2886 = vshrl.u32 %v2738, 16
      %v2888 = vrot.slane %v2886, 4
      %v2889 = vshll.u32 %v2738, 16
      %v2891 = vrot.slane %v2889, 5
      %v2892 = vor.u32 %v2888, %v2891
      %v2893 = vrot.slane %v2892, 4
      %v2895 = vshll.u32 %v2739, 16
      %v2897 = vrot.slane %v2895, 5
      %v2898 = vsel %vm373, %v2893, %v2897
      %v2899 = vshrl.u32 %v2739, 16
      %v2901 = vrot.slane %v2899, 4
      %v2902 = vor.u32 %v2901, %v2897
      %v2903 = vrot.slane %v2902, 4
      %v2905 = vshll.u32 %v2800, 16
      %v2907 = vrot.slane %v2905, 5
      %v2908 = vsel %vm373, %v2903, %v2907
      %v2910 = vshrl.u32 %v2740, 16
      %v2912 = vrot.slane %v2910, 4
      %v2913 = vshll.u32 %v2740, 16
      %v2915 = vrot.slane %v2913, 5
      %v2916 = vor.u32 %v2912, %v2915
      %v2917 = vrot.slane %v2916, 4
      %v2919 = vshll.u32 %v2741, 16
      %v2921 = vrot.slane %v2919, 5
      %v2922 = vsel %vm373, %v2917, %v2921
      %v2923 = vshrl.u32 %v2741, 16
      %v2925 = vrot.slane %v2923, 4
      %v2926 = vor.u32 %v2925, %v2921
      %v2927 = vrot.slane %v2926, 4
      %v2929 = vshll.u32 %v2801, 16
      %v2931 = vrot.slane %v2929, 5
      %v2932 = vsel %vm373, %v2927, %v2931
      %v2934 = vshrl.u32 %v2742, 16
      %v2936 = vrot.slane %v2934, 4
      %v2937 = vshll.u32 %v2742, 16
      %v2939 = vrot.slane %v2937, 5
      %v2940 = vor.u32 %v2936, %v2939
      %v2941 = vrot.slane %v2940, 4
      %v2943 = vshll.u32 %v2743, 16
      %v2945 = vrot.slane %v2943, 5
      %v2946 = vsel %vm373, %v2941, %v2945
      %v2947 = vshrl.u32 %v2743, 16
      %v2949 = vrot.slane %v2947, 4
      %v2950 = vor.u32 %v2949, %v2945
      %v2951 = vrot.slane %v2950, 4
      %v2953 = vshll.u32 %v2802, 16
      %v2955 = vrot.slane %v2953, 5
      %v2956 = vsel %vm373, %v2951, %v2955
      %v2958 = vshrl.u32 %v2744, 16
      %v2960 = vrot.slane %v2958, 4
      %v2961 = vshll.u32 %v2744, 16
      %v2963 = vrot.slane %v2961, 5
      %v2964 = vor.u32 %v2960, %v2963
      %v2965 = vrot.slane %v2964, 4
      %v2967 = vshll.u32 %v2745, 16
      %v2969 = vrot.slane %v2967, 5
      %v2970 = vsel %vm373, %v2965, %v2969
      %v2971 = vshrl.u32 %v2745, 16
      %v2973 = vrot.slane %v2971, 4
      %v2974 = vor.u32 %v2973, %v2969
      %v2975 = vrot.slane %v2974, 4
      %v2977 = vshll.u32 %v2803, 16
      %v2979 = vrot.slane %v2977, 5
      %v2980 = vsel %vm373, %v2975, %v2979
      %v2982 = vshrl.u32 %v2746, 16
      %v2984 = vrot.slane %v2982, 4
      %v2985 = vshll.u32 %v2746, 16
      %v2987 = vrot.slane %v2985, 5
      %v2988 = vor.u32 %v2984, %v2987
      %v2989 = vrot.slane %v2988, 4
      %v2991 = vshll.u32 %v2747, 16
      %v2993 = vrot.slane %v2991, 5
      %v2994 = vsel %vm373, %v2989, %v2993
      %v2995 = vshrl.u32 %v2747, 16
      %v2997 = vrot.slane %v2995, 4
      %v2998 = vor.u32 %v2997, %v2993
      %v2999 = vrot.slane %v2998, 4
      %v3001 = vshll.u32 %v2804, 16
      %v3003 = vrot.slane %v3001, 5
      %v3004 = vsel %vm373, %v2999, %v3003
      %v3006 = vshrl.u32 %v2748, 16
      %v3008 = vrot.slane %v3006, 4
      %v3009 = vshll.u32 %v2748, 16
      %v3011 = vrot.slane %v3009, 5
      %v3012 = vor.u32 %v3008, %v3011
      %v3013 = vrot.slane %v3012, 4
      %v3015 = vshll.u32 %v2749, 16
      %v3017 = vrot.slane %v3015, 5
      %v3018 = vsel %vm373, %v3013, %v3017
      %v3019 = vshrl.u32 %v2749, 16
      %v3021 = vrot.slane %v3019, 4
      %v3022 = vor.u32 %v3021, %v3017
      %v3023 = vrot.slane %v3022, 4
      %v3025 = vshll.u32 %v2805, 16
      %v3027 = vrot.slane %v3025, 5
      %v3028 = vsel %vm373, %v3023, %v3027
      %v3030 = vshrl.u32 %v2750, 16
      %v3032 = vrot.slane %v3030, 4
      %v3033 = vshll.u32 %v2750, 16
      %v3035 = vrot.slane %v3033, 5
      %v3036 = vor.u32 %v3032, %v3035
      %v3037 = vrot.slane %v3036, 4
      %v3039 = vshll.u32 %v2751, 16
      %v3041 = vrot.slane %v3039, 5
      %v3042 = vsel %vm373, %v3037, %v3041
      %v3043 = vshrl.u32 %v2751, 16
      %v3045 = vrot.slane %v3043, 4
      %v3046 = vor.u32 %v3045, %v3041
      %v3047 = vrot.slane %v3046, 4
      %v3049 = vshll.u32 %v2806, 16
      %v3051 = vrot.slane %v3049, 5
      %v3052 = vsel %vm373, %v3047, %v3051
      %v3054 = vshrl.u32 %v2752, 16
      %v3056 = vrot.slane %v3054, 4
      %v3057 = vshll.u32 %v2752, 16
      %v3059 = vrot.slane %v3057, 5
      %v3060 = vor.u32 %v3056, %v3059
      %v3061 = vrot.slane %v3060, 4
      %v3063 = vshll.u32 %v2753, 16
      %v3065 = vrot.slane %v3063, 5
      %v3066 = vsel %vm373, %v3061, %v3065
      %v3067 = vshrl.u32 %v2753, 16
      %v3069 = vrot.slane %v3067, 4
      %v3070 = vor.u32 %v3069, %v3065
      %v3071 = vrot.slane %v3070, 4
      %v3073 = vshll.u32 %v2807, 16
      %v3075 = vrot.slane %v3073, 5
      %v3076 = vsel %vm373, %v3071, %v3075
      %v3078 = vshrl.u32 %v2754, 16
      %v3080 = vrot.slane %v3078, 4
      %v3081 = vshll.u32 %v2754, 16
      %v3083 = vrot.slane %v3081, 5
      %v3084 = vor.u32 %v3080, %v3083
      %v3085 = vrot.slane %v3084, 4
      %v3087 = vshll.u32 %v2755, 16
      %v3089 = vrot.slane %v3087, 5
      %v3090 = vsel %vm373, %v3085, %v3089
      %v3091 = vshrl.u32 %v2755, 16
      %v3093 = vrot.slane %v3091, 4
      %v3094 = vor.u32 %v3093, %v3089
      %v3095 = vrot.slane %v3094, 4
      %v3097 = vshll.u32 %v2808, 16
      %v3099 = vrot.slane %v3097, 5
      %v3100 = vsel %vm373, %v3095, %v3099
      %v3102 = vshrl.u32 %v2756, 16
      %v3104 = vrot.slane %v3102, 4
      %v3105 = vshll.u32 %v2756, 16
      %v3107 = vrot.slane %v3105, 5
      %v3108 = vor.u32 %v3104, %v3107
      %v3109 = vrot.slane %v3108, 4
      %v3111 = vshll.u32 %v2757, 16
      %v3113 = vrot.slane %v3111, 5
      %v3114 = vsel %vm373, %v3109, %v3113
      %v3115 = vshrl.u32 %v2757, 16
      %v3117 = vrot.slane %v3115, 4
      %v3118 = vor.u32 %v3117, %v3113
      %v3119 = vrot.slane %v3118, 4
      %v3121 = vshll.u32 %v2809, 16
      %v3123 = vrot.slane %v3121, 5
      %v3124 = vsel %vm373, %v3119, %v3123
      %v3126 = vshrl.u32 %v2758, 16
      %v3128 = vrot.slane %v3126, 4
      %v3129 = vshll.u32 %v2758, 16
      %v3131 = vrot.slane %v3129, 5
      %v3132 = vor.u32 %v3128, %v3131
      %v3133 = vrot.slane %v3132, 4
      %v3135 = vshll.u32 %v2759, 16
      %v3137 = vrot.slane %v3135, 5
      %v3138 = vsel %vm373, %v3133, %v3137
      %v3139 = vshrl.u32 %v2759, 16
      %v3141 = vrot.slane %v3139, 4
      %v3142 = vor.u32 %v3141, %v3137
      %v3143 = vrot.slane %v3142, 4
      %v3145 = vshll.u32 %v2810, 16
      %v3147 = vrot.slane %v3145, 5
      %v3148 = vsel %vm373, %v3143, %v3147
      %v3150 = vshrl.u32 %v2760, 16
      %v3152 = vrot.slane %v3150, 4
      %v3153 = vshll.u32 %v2760, 16
      %v3155 = vrot.slane %v3153, 5
      %v3156 = vor.u32 %v3152, %v3155
      %v3157 = vrot.slane %v3156, 4
      %v3159 = vshll.u32 %v2761, 16
      %v3161 = vrot.slane %v3159, 5
      %v3162 = vsel %vm373, %v3157, %v3161
      %v3163 = vshrl.u32 %v2761, 16
      %v3165 = vrot.slane %v3163, 4
      %v3166 = vor.u32 %v3165, %v3161
      %v3167 = vrot.slane %v3166, 4
      %v3169 = vshll.u32 %v2811, 16
      %v3171 = vrot.slane %v3169, 5
      %v3172 = vsel %vm373, %v3167, %v3171
      %v3174 = vshrl.u32 %v2762, 16
      %v3176 = vrot.slane %v3174, 4
      %v3177 = vshll.u32 %v2762, 16
      %v3179 = vrot.slane %v3177, 5
      %v3180 = vor.u32 %v3176, %v3179
      %v3181 = vrot.slane %v3180, 4
      %v3183 = vshll.u32 %v2763, 16
      %v3185 = vrot.slane %v3183, 5
      %v3186 = vsel %vm373, %v3181, %v3185
      %v3187 = vshrl.u32 %v2763, 16
      %v3189 = vrot.slane %v3187, 4
      %v3190 = vor.u32 %v3189, %v3185
      %v3191 = vrot.slane %v3190, 4
      %v3193 = vshll.u32 %v2812, 16
      %v3195 = vrot.slane %v3193, 5
      %v3196 = vsel %vm373, %v3191, %v3195
      %v3197 = vld [vmem:[%s2764 + $0x8] sm:$0x1]
      %v3198 = vld [vmem:[%s2764 + $0x14] sm:$0x1]
      %v3199 = vld [vmem:[%s2764 + $0x20] sm:$0x1]
      %v3200 = vld [vmem:[%s2764 + $0x2c] sm:$0x1]
      %v3201 = vld [vmem:[%s2764 + $0x38] sm:$0x1]
      %v3202 = vld [vmem:[%s2764 + $0x44] sm:$0x1]
      %v3203 = vld [vmem:[%s2764 + $0x50] sm:$0x1]
      %v3204 = vld [vmem:[%s2764 + $0x5c] sm:$0x1]
      %v3205 = vld [vmem:[%s2764 + $0x68] sm:$0x1]
      %v3206 = vld [vmem:[%s2764 + $0x74] sm:$0x1]
      %v3207 = vld [vmem:[%s2764 + $0x80] sm:$0x1]
      %v3208 = vld [vmem:[%s2764 + $0x8c] sm:$0x1]
      %v3209 = vld [vmem:[%s2764 + $0x98] sm:$0x1]
      %v3210 = vld [vmem:[%s2764 + $0xa4] sm:$0x1]
      %v3211 = vld [vmem:[%s2764 + $0xb0] sm:$0x1]
      %v3212 = vld [vmem:[%s2764 + $0xbc] sm:$0x1]
      %v3214 = vshrl.u32 %v2765, 16
      %v3216 = vrot.slane %v3214, 4
      %v3217 = vshll.u32 %v2765, 16
      %v3219 = vrot.slane %v3217, 5
      %v3220 = vor.u32 %v3216, %v3219
      %v3221 = vrot.slane %v3220, 4
      %v3223 = vshll.u32 %v2766, 16
      %v3225 = vrot.slane %v3223, 5
      %v3226 = vsel %vm373, %v3221, %v3225
      %v3227 = vshrl.u32 %v2766, 16
      %v3229 = vrot.slane %v3227, 4
      %v3230 = vor.u32 %v3229, %v3225
      %v3231 = vrot.slane %v3230, 4
      %v3233 = vshll.u32 %v3197, 16
      %v3235 = vrot.slane %v3233, 5
      %v3236 = vsel %vm373, %v3231, %v3235
      %v3238 = vshrl.u32 %v2767, 16
      %v3240 = vrot.slane %v3238, 4
      %v3241 = vshll.u32 %v2767, 16
      %v3243 = vrot.slane %v3241, 5
      %v3244 = vor.u32 %v3240, %v3243
      %v3245 = vrot.slane %v3244, 4
      %v3247 = vshll.u32 %v2768, 16
      %v3249 = vrot.slane %v3247, 5
      %v3250 = vsel %vm373, %v3245, %v3249
      %v3251 = vshrl.u32 %v2768, 16
      %v3253 = vrot.slane %v3251, 4
      %v3254 = vor.u32 %v3253, %v3249
      %v3255 = vrot.slane %v3254, 4
      %v3257 = vshll.u32 %v3198, 16
      %v3259 = vrot.slane %v3257, 5
      %v3260 = vsel %vm373, %v3255, %v3259
      %v3262 = vshrl.u32 %v2769, 16
      %v3264 = vrot.slane %v3262, 4
      %v3265 = vshll.u32 %v2769, 16
      %v3267 = vrot.slane %v3265, 5
      %v3268 = vor.u32 %v3264, %v3267
      %v3269 = vrot.slane %v3268, 4
      %v3271 = vshll.u32 %v2770, 16
      %v3273 = vrot.slane %v3271, 5
      %v3274 = vsel %vm373, %v3269, %v3273
      %v3275 = vshrl.u32 %v2770, 16
      %v3277 = vrot.slane %v3275, 4
      %v3278 = vor.u32 %v3277, %v3273
      %v3279 = vrot.slane %v3278, 4
      %v3281 = vshll.u32 %v3199, 16
      %v3283 = vrot.slane %v3281, 5
      %v3284 = vsel %vm373, %v3279, %v3283
      %v3286 = vshrl.u32 %v2771, 16
      %v3288 = vrot.slane %v3286, 4
      %v3289 = vshll.u32 %v2771, 16
      %v3291 = vrot.slane %v3289, 5
      %v3292 = vor.u32 %v3288, %v3291
      %v3293 = vrot.slane %v3292, 4
      %v3295 = vshll.u32 %v2772, 16
      %v3297 = vrot.slane %v3295, 5
      %v3298 = vsel %vm373, %v3293, %v3297
      %v3299 = vshrl.u32 %v2772, 16
      %v3301 = vrot.slane %v3299, 4
      %v3302 = vor.u32 %v3301, %v3297
      %v3303 = vrot.slane %v3302, 4
      %v3305 = vshll.u32 %v3200, 16
      %v3307 = vrot.slane %v3305, 5
      %v3308 = vsel %vm373, %v3303, %v3307
      %v3310 = vshrl.u32 %v2773, 16
      %v3312 = vrot.slane %v3310, 4
      %v3313 = vshll.u32 %v2773, 16
      %v3315 = vrot.slane %v3313, 5
      %v3316 = vor.u32 %v3312, %v3315
      %v3317 = vrot.slane %v3316, 4
      %v3319 = vshll.u32 %v2774, 16
      %v3321 = vrot.slane %v3319, 5
      %v3322 = vsel %vm373, %v3317, %v3321
      %v3323 = vshrl.u32 %v2774, 16
      %v3325 = vrot.slane %v3323, 4
      %v3326 = vor.u32 %v3325, %v3321
      %v3327 = vrot.slane %v3326, 4
      %v3329 = vshll.u32 %v3201, 16
      %v3331 = vrot.slane %v3329, 5
      %v3332 = vsel %vm373, %v3327, %v3331
      %v3334 = vshrl.u32 %v2775, 16
      %v3336 = vrot.slane %v3334, 4
      %v3337 = vshll.u32 %v2775, 16
      %v3339 = vrot.slane %v3337, 5
      %v3340 = vor.u32 %v3336, %v3339
      %v3341 = vrot.slane %v3340, 4
      %v3343 = vshll.u32 %v2776, 16
      %v3345 = vrot.slane %v3343, 5
      %v3346 = vsel %vm373, %v3341, %v3345
      %v3347 = vshrl.u32 %v2776, 16
      %v3349 = vrot.slane %v3347, 4
      %v3350 = vor.u32 %v3349, %v3345
      %v3351 = vrot.slane %v3350, 4
      %v3353 = vshll.u32 %v3202, 16
      %v3355 = vrot.slane %v3353, 5
      %v3356 = vsel %vm373, %v3351, %v3355
      %v3358 = vshrl.u32 %v2777, 16
      %v3360 = vrot.slane %v3358, 4
      %v3361 = vshll.u32 %v2777, 16
      %v3363 = vrot.slane %v3361, 5
      %v3364 = vor.u32 %v3360, %v3363
      %v3365 = vrot.slane %v3364, 4
      %v3367 = vshll.u32 %v2778, 16
      %v3369 = vrot.slane %v3367, 5
      %v3370 = vsel %vm373, %v3365, %v3369
      %v3371 = vshrl.u32 %v2778, 16
      %v3373 = vrot.slane %v3371, 4
      %v3374 = vor.u32 %v3373, %v3369
      %v3375 = vrot.slane %v3374, 4
      %v3377 = vshll.u32 %v3203, 16
      %v3379 = vrot.slane %v3377, 5
      %v3380 = vsel %vm373, %v3375, %v3379
      %v3382 = vshrl.u32 %v2779, 16
      %v3384 = vrot.slane %v3382, 4
      %v3385 = vshll.u32 %v2779, 16
      %v3387 = vrot.slane %v3385, 5
      %v3388 = vor.u32 %v3384, %v3387
      %v3389 = vrot.slane %v3388, 4
      %v3391 = vshll.u32 %v2780, 16
      %v3393 = vrot.slane %v3391, 5
      %v3394 = vsel %vm373, %v3389, %v3393
      %v3395 = vshrl.u32 %v2780, 16
      %v3397 = vrot.slane %v3395, 4
      %v3398 = vor.u32 %v3397, %v3393
      %v3399 = vrot.slane %v3398, 4
      %v3401 = vshll.u32 %v3204, 16
      %v3403 = vrot.slane %v3401, 5
      %v3404 = vsel %vm373, %v3399, %v3403
      %v3406 = vshrl.u32 %v2781, 16
      %v3408 = vrot.slane %v3406, 4
      %v3409 = vshll.u32 %v2781, 16
      %v3411 = vrot.slane %v3409, 5
      %v3412 = vor.u32 %v3408, %v3411
      %v3413 = vrot.slane %v3412, 4
      %v3415 = vshll.u32 %v2782, 16
      %v3417 = vrot.slane %v3415, 5
      %v3418 = vsel %vm373, %v3413, %v3417
      %v3419 = vshrl.u32 %v2782, 16
      %v3421 = vrot.slane %v3419, 4
      %v3422 = vor.u32 %v3421, %v3417
      %v3423 = vrot.slane %v3422, 4
      %v3425 = vshll.u32 %v3205, 16
      %v3427 = vrot.slane %v3425, 5
      %v3428 = vsel %vm373, %v3423, %v3427
      %v3430 = vshrl.u32 %v2783, 16
      %v3432 = vrot.slane %v3430, 4
      %v3433 = vshll.u32 %v2783, 16
      %v3435 = vrot.slane %v3433, 5
      %v3436 = vor.u32 %v3432, %v3435
      %v3437 = vrot.slane %v3436, 4
      %v3439 = vshll.u32 %v2784, 16
      %v3441 = vrot.slane %v3439, 5
      %v3442 = vsel %vm373, %v3437, %v3441
      %v3443 = vshrl.u32 %v2784, 16
      %v3445 = vrot.slane %v3443, 4
      %v3446 = vor.u32 %v3445, %v3441
      %v3447 = vrot.slane %v3446, 4
      %v3449 = vshll.u32 %v3206, 16
      %v3451 = vrot.slane %v3449, 5
      %v3452 = vsel %vm373, %v3447, %v3451
      %v3454 = vshrl.u32 %v2785, 16
      %v3456 = vrot.slane %v3454, 4
      %v3457 = vshll.u32 %v2785, 16
      %v3459 = vrot.slane %v3457, 5
      %v3460 = vor.u32 %v3456, %v3459
      %v3461 = vrot.slane %v3460, 4
      %v3463 = vshll.u32 %v2786, 16
      %v3465 = vrot.slane %v3463, 5
      %v3466 = vsel %vm373, %v3461, %v3465
      %v3467 = vshrl.u32 %v2786, 16
      %v3469 = vrot.slane %v3467, 4
      %v3470 = vor.u32 %v3469, %v3465
      %v3471 = vrot.slane %v3470, 4
      %v3473 = vshll.u32 %v3207, 16
      %v3475 = vrot.slane %v3473, 5
      %v3476 = vsel %vm373, %v3471, %v3475
      %v3478 = vshrl.u32 %v2787, 16
      %v3480 = vrot.slane %v3478, 4
      %v3481 = vshll.u32 %v2787, 16
      %v3483 = vrot.slane %v3481, 5
      %v3484 = vor.u32 %v3480, %v3483
      %v3485 = vrot.slane %v3484, 4
      %v3487 = vshll.u32 %v2788, 16
      %v3489 = vrot.slane %v3487, 5
      %v3490 = vsel %vm373, %v3485, %v3489
      %v3491 = vshrl.u32 %v2788, 16
      %v3493 = vrot.slane %v3491, 4
      %v3494 = vor.u32 %v3493, %v3489
      %v3495 = vrot.slane %v3494, 4
      %v3497 = vshll.u32 %v3208, 16
      %v3499 = vrot.slane %v3497, 5
      %v3500 = vsel %vm373, %v3495, %v3499
      %v3502 = vshrl.u32 %v2789, 16
      %v3504 = vrot.slane %v3502, 4
      %v3505 = vshll.u32 %v2789, 16
      %v3507 = vrot.slane %v3505, 5
      %v3508 = vor.u32 %v3504, %v3507
      %v3509 = vrot.slane %v3508, 4
      %v3511 = vshll.u32 %v2790, 16
      %v3513 = vrot.slane %v3511, 5
      %v3514 = vsel %vm373, %v3509, %v3513
      %v3515 = vshrl.u32 %v2790, 16
      %v3517 = vrot.slane %v3515, 4
      %v3518 = vor.u32 %v3517, %v3513
      %v3519 = vrot.slane %v3518, 4
      %v3521 = vshll.u32 %v3209, 16
      %v3523 = vrot.slane %v3521, 5
      %v3524 = vsel %vm373, %v3519, %v3523
      %v3526 = vshrl.u32 %v2791, 16
      %v3528 = vrot.slane %v3526, 4
      %v3529 = vshll.u32 %v2791, 16
      %v3531 = vrot.slane %v3529, 5
      %v3532 = vor.u32 %v3528, %v3531
      %v3533 = vrot.slane %v3532, 4
      %v3535 = vshll.u32 %v2792, 16
      %v3537 = vrot.slane %v3535, 5
      %v3538 = vsel %vm373, %v3533, %v3537
      %v3539 = vshrl.u32 %v2792, 16
      %v3541 = vrot.slane %v3539, 4
      %v3542 = vor.u32 %v3541, %v3537
      %v3543 = vrot.slane %v3542, 4
      %v3545 = vshll.u32 %v3210, 16
      %v3547 = vrot.slane %v3545, 5
      %v3548 = vsel %vm373, %v3543, %v3547
      %v3550 = vshrl.u32 %v2793, 16
      %v3552 = vrot.slane %v3550, 4
      %v3553 = vshll.u32 %v2793, 16
      %v3555 = vrot.slane %v3553, 5
      %v3556 = vor.u32 %v3552, %v3555
      %v3557 = vrot.slane %v3556, 4
      %v3559 = vshll.u32 %v2794, 16
      %v3561 = vrot.slane %v3559, 5
      %v3562 = vsel %vm373, %v3557, %v3561
      %v3563 = vshrl.u32 %v2794, 16
      %v3565 = vrot.slane %v3563, 4
      %v3566 = vor.u32 %v3565, %v3561
      %v3567 = vrot.slane %v3566, 4
      %v3569 = vshll.u32 %v3211, 16
      %v3571 = vrot.slane %v3569, 5
      %v3572 = vsel %vm373, %v3567, %v3571
      %v3574 = vshrl.u32 %v2795, 16
      %v3576 = vrot.slane %v3574, 4
      %v3577 = vshll.u32 %v2795, 16
      %v3579 = vrot.slane %v3577, 5
      %v3580 = vor.u32 %v3576, %v3579
      %v3581 = vrot.slane %v3580, 4
      %v3583 = vshll.u32 %v2796, 16
      %v3585 = vrot.slane %v3583, 5
      %v3586 = vsel %vm373, %v3581, %v3585
      %v3587 = vshrl.u32 %v2796, 16
      %v3589 = vrot.slane %v3587, 4
      %v3590 = vor.u32 %v3589, %v3585
      %v3591 = vrot.slane %v3590, 4
      %v3593 = vshll.u32 %v3212, 16
      %v3595 = vrot.slane %v3593, 5
      %v3596 = vsel %vm373, %v3591, %v3595
      %v3597 = vld [vmem:[%s2731] sm:$0xe]
      %v3598 = vld [vmem:[%s2731 + $0xc] sm:$0xe]
      %v3599 = vld [vmem:[%s2731 + $0x18] sm:$0xe]
      %v3600 = vld [vmem:[%s2731 + $0x24] sm:$0xe]
      %v3601 = vld [vmem:[%s2731 + $0x30] sm:$0xe]
      %v3602 = vld [vmem:[%s2731 + $0x3c] sm:$0xe]
      %v3603 = vld [vmem:[%s2731 + $0x48] sm:$0xe]
      %v3604 = vld [vmem:[%s2731 + $0x54] sm:$0xe]
      %v3605 = vld [vmem:[%s2731 + $0x60] sm:$0xe]
      %v3606 = vld [vmem:[%s2731 + $0x6c] sm:$0xe]
      %v3607 = vld [vmem:[%s2731 + $0x78] sm:$0xe]
      %v3608 = vld [vmem:[%s2731 + $0x84] sm:$0xe]
      %v3609 = vld [vmem:[%s2731 + $0x90] sm:$0xe]
      %v3610 = vld [vmem:[%s2731 + $0x9c] sm:$0xe]
      %v3611 = vld [vmem:[%s2731 + $0xa8] sm:$0xe]
      %v3612 = vld [vmem:[%s2731 + $0xb4] sm:$0xe]
      %v3661 = vrot.slane %v3597, 5
      %v3662 = vrot.slane %v3661, 4
      %v3663 = vrot.slane %v2733, 5
      %v3664 = vsel %vm1224, %v3662, %v3663
      %v3665 = vrot.slane %v3663, 4
      %v3666 = vrot.slane %v2797, 5
      %v3667 = vsel %vm1224, %v3665, %v3666
      %v3668 = vrot.slane %v3598, 5
      %v3669 = vrot.slane %v3668, 4
      %v3670 = vrot.slane %v2735, 5
      %v3671 = vsel %vm1224, %v3669, %v3670
      %v3672 = vrot.slane %v3670, 4
      %v3673 = vrot.slane %v2798, 5
      %v3674 = vsel %vm1224, %v3672, %v3673
      %v3675 = vrot.slane %v3599, 5
      %v3676 = vrot.slane %v3675, 4
      %v3677 = vrot.slane %v2737, 5
      %v3678 = vsel %vm1224, %v3676, %v3677
      %v3679 = vrot.slane %v3677, 4
      %v3680 = vrot.slane %v2799, 5
      %v3681 = vsel %vm1224, %v3679, %v3680
      %v3682 = vrot.slane %v3600, 5
      %v3683 = vrot.slane %v3682, 4
      %v3684 = vrot.slane %v2739, 5
      %v3685 = vsel %vm1224, %v3683, %v3684
      %v3686 = vrot.slane %v3684, 4
      %v3687 = vrot.slane %v2800, 5
      %v3688 = vsel %vm1224, %v3686, %v3687
      %v3689 = vrot.slane %v3601, 5
      %v3690 = vrot.slane %v3689, 4
      %v3691 = vrot.slane %v2741, 5
      %v3692 = vsel %vm1224, %v3690, %v3691
      %v3693 = vrot.slane %v3691, 4
      %v3694 = vrot.slane %v2801, 5
      %v3695 = vsel %vm1224, %v3693, %v3694
      %v3696 = vrot.slane %v3602, 5
      %v3697 = vrot.slane %v3696, 4
      %v3698 = vrot.slane %v2743, 5
      %v3699 = vsel %vm1224, %v3697, %v3698
      %v3700 = vrot.slane %v3698, 4
      %v3701 = vrot.slane %v2802, 5
      %v3702 = vsel %vm1224, %v3700, %v3701
      %v3703 = vrot.slane %v3603, 5
      %v3704 = vrot.slane %v3703, 4
      %v3705 = vrot.slane %v2745, 5
      %v3706 = vsel %vm1224, %v3704, %v3705
      %v3707 = vrot.slane %v3705, 4
      %v3708 = vrot.slane %v2803, 5
      %v3709 = vsel %vm1224, %v3707, %v3708
      %v3710 = vrot.slane %v3604, 5
      %v3711 = vrot.slane %v3710, 4
      %v3712 = vrot.slane %v2747, 5
      %v3713 = vsel %vm1224, %v3711, %v3712
      %v3714 = vrot.slane %v3712, 4
      %v3715 = vrot.slane %v2804, 5
      %v3716 = vsel %vm1224, %v3714, %v3715
      %v3717 = vrot.slane %v3605, 5
      %v3718 = vrot.slane %v3717, 4
      %v3719 = vrot.slane %v2749, 5
      %v3720 = vsel %vm1224, %v3718, %v3719
      %v3721 = vrot.slane %v3719, 4
      %v3722 = vrot.slane %v2805, 5
      %v3723 = vsel %vm1224, %v3721, %v3722
      %v3724 = vrot.slane %v3606, 5
      %v3725 = vrot.slane %v3724, 4
      %v3726 = vrot.slane %v2751, 5
      %v3727 = vsel %vm1224, %v3725, %v3726
      %v3728 = vrot.slane %v3726, 4
      %v3729 = vrot.slane %v2806, 5
      %v3730 = vsel %vm1224, %v3728, %v3729
      %v3731 = vrot.slane %v3607, 5
      %v3732 = vrot.slane %v3731, 4
      %v3733 = vrot.slane %v2753, 5
      %v3734 = vsel %vm1224, %v3732, %v3733
      %v3735 = vrot.slane %v3733, 4
      %v3736 = vrot.slane %v2807, 5
      %v3737 = vsel %vm1224, %v3735, %v3736
      %v3738 = vrot.slane %v3608, 5
      %v3739 = vrot.slane %v3738, 4
      %v3740 = vrot.slane %v2755, 5
      %v3741 = vsel %vm1224, %v3739, %v3740
      %v3742 = vrot.slane %v3740, 4
      %v3743 = vrot.slane %v2808, 5
      %v3744 = vsel %vm1224, %v3742, %v3743
      %v3745 = vrot.slane %v3609, 5
      %v3746 = vrot.slane %v3745, 4
      %v3747 = vrot.slane %v2757, 5
      %v3748 = vsel %vm1224, %v3746, %v3747
      %v3749 = vrot.slane %v3747, 4
      %v3750 = vrot.slane %v2809, 5
      %v3751 = vsel %vm1224, %v3749, %v3750
      %v3752 = vrot.slane %v3610, 5
      %v3753 = vrot.slane %v3752, 4
      %v3754 = vrot.slane %v2759, 5
      %v3755 = vsel %vm1224, %v3753, %v3754
      %v3756 = vrot.slane %v3754, 4
      %v3757 = vrot.slane %v2810, 5
      %v3758 = vsel %vm1224, %v3756, %v3757
      %v3759 = vrot.slane %v3611, 5
      %v3760 = vrot.slane %v3759, 4
      %v3761 = vrot.slane %v2761, 5
      %v3762 = vsel %vm1224, %v3760, %v3761
      %v3763 = vrot.slane %v3761, 4
      %v3764 = vrot.slane %v2811, 5
      %v3765 = vsel %vm1224, %v3763, %v3764
      %v3766 = vrot.slane %v3612, 5
      %v3767 = vrot.slane %v3766, 4
      %v3768 = vrot.slane %v2763, 5
      %v3769 = vsel %vm1224, %v3767, %v3768
      %v3770 = vrot.slane %v3768, 4
      %v3771 = vrot.slane %v2812, 5
      %v3772 = vsel %vm1224, %v3770, %v3771
      %v3773 = vld [vmem:[%s2764] sm:$0xe]
      %v3774 = vld [vmem:[%s2764 + $0xc] sm:$0xe]
      %v3775 = vld [vmem:[%s2764 + $0x18] sm:$0xe]
      %v3776 = vld [vmem:[%s2764 + $0x24] sm:$0xe]
      %v3777 = vld [vmem:[%s2764 + $0x30] sm:$0xe]
      %v3778 = vld [vmem:[%s2764 + $0x3c] sm:$0xe]
      %v3779 = vld [vmem:[%s2764 + $0x48] sm:$0xe]
      %v3780 = vld [vmem:[%s2764 + $0x54] sm:$0xe]
      %v3781 = vld [vmem:[%s2764 + $0x60] sm:$0xe]
      %v3782 = vld [vmem:[%s2764 + $0x6c] sm:$0xe]
      %v3783 = vld [vmem:[%s2764 + $0x78] sm:$0xe]
      %v3784 = vld [vmem:[%s2764 + $0x84] sm:$0xe]
      %v3785 = vld [vmem:[%s2764 + $0x90] sm:$0xe]
      %v3786 = vld [vmem:[%s2764 + $0x9c] sm:$0xe]
      %v3787 = vld [vmem:[%s2764 + $0xa8] sm:$0xe]
      %v3788 = vld [vmem:[%s2764 + $0xb4] sm:$0xe]
      %v3837 = vrot.slane %v3773, 5
      %v3838 = vrot.slane %v3837, 4
      %v3839 = vrot.slane %v2766, 5
      %v3840 = vsel %vm1224, %v3838, %v3839
      %v3841 = vrot.slane %v3839, 4
      %v3842 = vrot.slane %v3197, 5
      %v3843 = vsel %vm1224, %v3841, %v3842
      %v3844 = vrot.slane %v3774, 5
      %v3845 = vrot.slane %v3844, 4
      %v3846 = vrot.slane %v2768, 5
      %v3847 = vsel %vm1224, %v3845, %v3846
      %v3848 = vrot.slane %v3846, 4
      %v3849 = vrot.slane %v3198, 5
      %v3850 = vsel %vm1224, %v3848, %v3849
      %v3851 = vrot.slane %v3775, 5
      %v3852 = vrot.slane %v3851, 4
      %v3853 = vrot.slane %v2770, 5
      %v3854 = vsel %vm1224, %v3852, %v3853
      %v3855 = vrot.slane %v3853, 4
      %v3856 = vrot.slane %v3199, 5
      %v3857 = vsel %vm1224, %v3855, %v3856
      %v3858 = vrot.slane %v3776, 5
      %v3859 = vrot.slane %v3858, 4
      %v3860 = vrot.slane %v2772, 5
      %v3861 = vsel %vm1224, %v3859, %v3860
      %v3862 = vrot.slane %v3860, 4
      %v3863 = vrot.slane %v3200, 5
      %v3864 = vsel %vm1224, %v3862, %v3863
      %v3865 = vrot.slane %v3777, 5
      %v3866 = vrot.slane %v3865, 4
      %v3867 = vrot.slane %v2774, 5
      %v3868 = vsel %vm1224, %v3866, %v3867
      %v3869 = vrot.slane %v3867, 4
      %v3870 = vrot.slane %v3201, 5
      %v3871 = vsel %vm1224, %v3869, %v3870
      %v3872 = vrot.slane %v3778, 5
      %v3873 = vrot.slane %v3872, 4
      %v3874 = vrot.slane %v2776, 5
      %v3875 = vsel %vm1224, %v3873, %v3874
      %v3876 = vrot.slane %v3874, 4
      %v3877 = vrot.slane %v3202, 5
      %v3878 = vsel %vm1224, %v3876, %v3877
      %v3879 = vrot.slane %v3779, 5
      %v3880 = vrot.slane %v3879, 4
      %v3881 = vrot.slane %v2778, 5
      %v3882 = vsel %vm1224, %v3880, %v3881
      %v3883 = vrot.slane %v3881, 4
      %v3884 = vrot.slane %v3203, 5
      %v3885 = vsel %vm1224, %v3883, %v3884
      %v3886 = vrot.slane %v3780, 5
      %v3887 = vrot.slane %v3886, 4
      %v3888 = vrot.slane %v2780, 5
      %v3889 = vsel %vm1224, %v3887, %v3888
      %v3890 = vrot.slane %v3888, 4
      %v3891 = vrot.slane %v3204, 5
      %v3892 = vsel %vm1224, %v3890, %v3891
      %v3893 = vrot.slane %v3781, 5
      %v3894 = vrot.slane %v3893, 4
      %v3895 = vrot.slane %v2782, 5
      %v3896 = vsel %vm1224, %v3894, %v3895
      %v3897 = vrot.slane %v3895, 4
      %v3898 = vrot.slane %v3205, 5
      %v3899 = vsel %vm1224, %v3897, %v3898
      %v3900 = vrot.slane %v3782, 5
      %v3901 = vrot.slane %v3900, 4
      %v3902 = vrot.slane %v2784, 5
      %v3903 = vsel %vm1224, %v3901, %v3902
      %v3904 = vrot.slane %v3902, 4
      %v3905 = vrot.slane %v3206, 5
      %v3906 = vsel %vm1224, %v3904, %v3905
      %v3907 = vrot.slane %v3783, 5
      %v3908 = vrot.slane %v3907, 4
      %v3909 = vrot.slane %v2786, 5
      %v3910 = vsel %vm1224, %v3908, %v3909
      %v3911 = vrot.slane %v3909, 4
      %v3912 = vrot.slane %v3207, 5
      %v3913 = vsel %vm1224, %v3911, %v3912
      %v3914 = vrot.slane %v3784, 5
      %v3915 = vrot.slane %v3914, 4
      %v3916 = vrot.slane %v2788, 5
      %v3917 = vsel %vm1224, %v3915, %v3916
      %v3918 = vrot.slane %v3916, 4
      %v3919 = vrot.slane %v3208, 5
      %v3920 = vsel %vm1224, %v3918, %v3919
      %v3921 = vrot.slane %v3785, 5
      %v3922 = vrot.slane %v3921, 4
      %v3923 = vrot.slane %v2790, 5
      %v3924 = vsel %vm1224, %v3922, %v3923
      %v3925 = vrot.slane %v3923, 4
      %v3926 = vrot.slane %v3209, 5
      %v3927 = vsel %vm1224, %v3925, %v3926
      %v3928 = vrot.slane %v3786, 5
      %v3929 = vrot.slane %v3928, 4
      %v3930 = vrot.slane %v2792, 5
      %v3931 = vsel %vm1224, %v3929, %v3930
      %v3932 = vrot.slane %v3930, 4
      %v3933 = vrot.slane %v3210, 5
      %v3934 = vsel %vm1224, %v3932, %v3933
      %v3935 = vrot.slane %v3787, 5
      %v3936 = vrot.slane %v3935, 4
      %v3937 = vrot.slane %v2794, 5
      %v3938 = vsel %vm1224, %v3936, %v3937
      %v3939 = vrot.slane %v3937, 4
      %v3940 = vrot.slane %v3211, 5
      %v3941 = vsel %vm1224, %v3939, %v3940
      %v3942 = vrot.slane %v3788, 5
      %v3943 = vrot.slane %v3942, 4
      %v3944 = vrot.slane %v2796, 5
      %v3945 = vsel %vm1224, %v3943, %v3944
      %v3946 = vrot.slane %v3944, 4
      %v3947 = vrot.slane %v3212, 5
      %v3948 = vsel %vm1224, %v3946, %v3947
      %v3965 = vunpack.c.l.b16 %v291
      %v3966 = vunpack.c.l.b16 %v292
      %v3967 = vunpack.c.l.b16 %v293
      %v3968 = vunpack.c.l.b16 %v294
      %v3969 = vunpack.c.l.b16 %v295
      %v3970 = vunpack.c.l.b16 %v296
      %v3971 = vunpack.c.l.b16 %v297
      %v3972 = vunpack.c.l.b16 %v298
      %v3973 = vunpack.c.l.b16 %v299
      %v3974 = vunpack.c.l.b16 %v300
      %v3975 = vunpack.c.l.b16 %v301
      %v3976 = vunpack.c.l.b16 %v302
      %v3977 = vunpack.c.l.b16 %v303
      %v3978 = vunpack.c.l.b16 %v304
      %v3979 = vunpack.c.l.b16 %v305
      %v3980 = vunpack.c.l.b16 %v306
      %v3981 = vunpack.c.l.b16 %v307
      %v3982 = vunpack.c.l.b16 %v308
      %v3983 = vunpack.c.l.b16 %v309
      %v3984 = vunpack.c.l.b16 %v310
      %v3985 = vunpack.c.l.b16 %v311
      %v3986 = vunpack.c.l.b16 %v312
      %v3987 = vunpack.c.l.b16 %v313
      %v3988 = vunpack.c.l.b16 %v314
      %v3989 = vunpack.c.l.b16 %v315
      %v3990 = vunpack.c.l.b16 %v316
      %v3991 = vunpack.c.l.b16 %v317
      %v3992 = vunpack.c.l.b16 %v318
      %v3993 = vunpack.c.l.b16 %v319
      %v3994 = vunpack.c.l.b16 %v320
      %v3995 = vunpack.c.l.b16 %v321
      %v3996 = vunpack.c.l.b16 %v322
      %v3997 = vpack.c.b16 %v3966, %v3965
      %v3998 = vpack.c.b16 %v3968, %v3967
      %v3999 = vpack.c.b16 %v3970, %v3969
      %v4000 = vpack.c.b16 %v3972, %v3971
      %v4001 = vpack.c.b16 %v3974, %v3973
      %v4002 = vpack.c.b16 %v3976, %v3975
      %v4003 = vpack.c.b16 %v3978, %v3977
      %v4004 = vpack.c.b16 %v3980, %v3979
      %v4005 = vpack.c.b16 %v3982, %v3981
      %v4006 = vpack.c.b16 %v3984, %v3983
      %v4007 = vpack.c.b16 %v3986, %v3985
      %v4008 = vpack.c.b16 %v3988, %v3987
      %v4009 = vpack.c.b16 %v3990, %v3989
      %v4010 = vpack.c.b16 %v3992, %v3991
      %v4011 = vpack.c.b16 %v3994, %v3993
      %v4012 = vpack.c.b16 %v3996, %v3995
      %v4045 = vunpack.c.l.b16 %v323
      %v4046 = vunpack.c.l.b16 %v324
      %v4047 = vunpack.c.l.b16 %v325
      %v4048 = vunpack.c.l.b16 %v326
      %v4049 = vunpack.c.l.b16 %v327
      %v4050 = vunpack.c.l.b16 %v328
      %v4051 = vunpack.c.l.b16 %v329
      %v4052 = vunpack.c.l.b16 %v330
      %v4053 = vunpack.c.l.b16 %v331
      %v4054 = vunpack.c.l.b16 %v332
      %v4055 = vunpack.c.l.b16 %v333
      %v4056 = vunpack.c.l.b16 %v334
      %v4057 = vunpack.c.l.b16 %v335
      %v4058 = vunpack.c.l.b16 %v336
      %v4059 = vunpack.c.l.b16 %v337
      %v4060 = vunpack.c.l.b16 %v338
      %v4061 = vunpack.c.l.b16 %v339
      %v4062 = vunpack.c.l.b16 %v340
      %v4063 = vunpack.c.l.b16 %v341
      %v4064 = vunpack.c.l.b16 %v342
      %v4065 = vunpack.c.l.b16 %v343
      %v4066 = vunpack.c.l.b16 %v344
      %v4067 = vunpack.c.l.b16 %v345
      %v4068 = vunpack.c.l.b16 %v346
      %v4069 = vunpack.c.l.b16 %v347
      %v4070 = vunpack.c.l.b16 %v348
      %v4071 = vunpack.c.l.b16 %v349
      %v4072 = vunpack.c.l.b16 %v350
      %v4073 = vunpack.c.l.b16 %v351
      %v4074 = vunpack.c.l.b16 %v352
      %v4075 = vunpack.c.l.b16 %v353
      %v4076 = vunpack.c.l.b16 %v354
      %v4077 = vpack.c.b16 %v4046, %v4045
      %v4078 = vpack.c.b16 %v4048, %v4047
      %v4079 = vpack.c.b16 %v4050, %v4049
      %v4080 = vpack.c.b16 %v4052, %v4051
      %v4081 = vpack.c.b16 %v4054, %v4053
      %v4082 = vpack.c.b16 %v4056, %v4055
      %v4083 = vpack.c.b16 %v4058, %v4057
      %v4084 = vpack.c.b16 %v4060, %v4059
      %v4085 = vpack.c.b16 %v4062, %v4061
      %v4086 = vpack.c.b16 %v4064, %v4063
      %v4087 = vpack.c.b16 %v4066, %v4065
      %v4088 = vpack.c.b16 %v4068, %v4067
      %v4089 = vpack.c.b16 %v4070, %v4069
      %v4090 = vpack.c.b16 %v4072, %v4071
      %v4091 = vpack.c.b16 %v4074, %v4073
      %v4092 = vpack.c.b16 %v4076, %v4075
      %v4109 = vunpack.c.l.b16 %v387
      %v4110 = vunpack.c.l.b16 %v397
      %v4111 = vunpack.c.l.b16 %v411
      %v4112 = vunpack.c.l.b16 %v421
      %v4113 = vunpack.c.l.b16 %v435
      %v4114 = vunpack.c.l.b16 %v445
      %v4115 = vunpack.c.l.b16 %v459
      %v4116 = vunpack.c.l.b16 %v469
      %v4117 = vunpack.c.l.b16 %v483
      %v4118 = vunpack.c.l.b16 %v493
      %v4119 = vunpack.c.l.b16 %v507
      %v4120 = vunpack.c.l.b16 %v517
      %v4121 = vunpack.c.l.b16 %v531
      %v4122 = vunpack.c.l.b16 %v541
      %v4123 = vunpack.c.l.b16 %v555
      %v4124 = vunpack.c.l.b16 %v565
      %v4125 = vunpack.c.l.b16 %v579
      %v4126 = vunpack.c.l.b16 %v589
      %v4127 = vunpack.c.l.b16 %v603
      %v4128 = vunpack.c.l.b16 %v613
      %v4129 = vunpack.c.l.b16 %v627
      %v4130 = vunpack.c.l.b16 %v637
      %v4131 = vunpack.c.l.b16 %v651
      %v4132 = vunpack.c.l.b16 %v661
      %v4133 = vunpack.c.l.b16 %v675
      %v4134 = vunpack.c.l.b16 %v685
      %v4135 = vunpack.c.l.b16 %v699
      %v4136 = vunpack.c.l.b16 %v709
      %v4137 = vunpack.c.l.b16 %v723
      %v4138 = vunpack.c.l.b16 %v733
      %v4139 = vunpack.c.l.b16 %v747
      %v4140 = vunpack.c.l.b16 %v757
      %v4141 = vpack.c.b16 %v4110, %v4109
      %v4142 = vpack.c.b16 %v4112, %v4111
      %v4143 = vpack.c.b16 %v4114, %v4113
      %v4144 = vpack.c.b16 %v4116, %v4115
      %v4145 = vpack.c.b16 %v4118, %v4117
      %v4146 = vpack.c.b16 %v4120, %v4119
      %v4147 = vpack.c.b16 %v4122, %v4121
      %v4148 = vpack.c.b16 %v4124, %v4123
      %v4149 = vpack.c.b16 %v4126, %v4125
      %v4150 = vpack.c.b16 %v4128, %v4127
      %v4151 = vpack.c.b16 %v4130, %v4129
      %v4152 = vpack.c.b16 %v4132, %v4131
      %v4153 = vpack.c.b16 %v4134, %v4133
      %v4154 = vpack.c.b16 %v4136, %v4135
      %v4155 = vpack.c.b16 %v4138, %v4137
      %v4156 = vpack.c.b16 %v4140, %v4139
      %v4173 = vunpack.c.l.b16 %v787
      %v4174 = vunpack.c.l.b16 %v797
      %v4175 = vunpack.c.l.b16 %v811
      %v4176 = vunpack.c.l.b16 %v821
      %v4177 = vunpack.c.l.b16 %v835
      %v4178 = vunpack.c.l.b16 %v845
      %v4179 = vunpack.c.l.b16 %v859
      %v4180 = vunpack.c.l.b16 %v869
      %v4181 = vunpack.c.l.b16 %v883
      %v4182 = vunpack.c.l.b16 %v893
      %v4183 = vunpack.c.l.b16 %v907
      %v4184 = vunpack.c.l.b16 %v917
      %v4185 = vunpack.c.l.b16 %v931
      %v4186 = vunpack.c.l.b16 %v941
      %v4187 = vunpack.c.l.b16 %v955
      %v4188 = vunpack.c.l.b16 %v965
      %v4189 = vunpack.c.l.b16 %v979
      %v4190 = vunpack.c.l.b16 %v989
      %v4191 = vunpack.c.l.b16 %v1003
      %v4192 = vunpack.c.l.b16 %v1013
      %v4193 = vunpack.c.l.b16 %v1027
      %v4194 = vunpack.c.l.b16 %v1037
      %v4195 = vunpack.c.l.b16 %v1051
      %v4196 = vunpack.c.l.b16 %v1061
      %v4197 = vunpack.c.l.b16 %v1075
      %v4198 = vunpack.c.l.b16 %v1085
      %v4199 = vunpack.c.l.b16 %v1099
      %v4200 = vunpack.c.l.b16 %v1109
      %v4201 = vunpack.c.l.b16 %v1123
      %v4202 = vunpack.c.l.b16 %v1133
      %v4203 = vunpack.c.l.b16 %v1147
      %v4204 = vunpack.c.l.b16 %v1157
      %v4205 = vpack.c.b16 %v4174, %v4173
      %v4206 = vpack.c.b16 %v4176, %v4175
      %v4207 = vpack.c.b16 %v4178, %v4177
      %v4208 = vpack.c.b16 %v4180, %v4179
      %v4209 = vpack.c.b16 %v4182, %v4181
      %v4210 = vpack.c.b16 %v4184, %v4183
      %v4211 = vpack.c.b16 %v4186, %v4185
      %v4212 = vpack.c.b16 %v4188, %v4187
      %v4213 = vpack.c.b16 %v4190, %v4189
      %v4214 = vpack.c.b16 %v4192, %v4191
      %v4215 = vpack.c.b16 %v4194, %v4193
      %v4216 = vpack.c.b16 %v4196, %v4195
      %v4217 = vpack.c.b16 %v4198, %v4197
      %v4218 = vpack.c.b16 %v4200, %v4199
      %v4219 = vpack.c.b16 %v4202, %v4201
      %v4220 = vpack.c.b16 %v4204, %v4203
      %v4237 = vunpack.c.l.b16 %v1228
      %v4238 = vunpack.c.l.b16 %v1231
      %v4239 = vunpack.c.l.b16 %v1235
      %v4240 = vunpack.c.l.b16 %v1238
      %v4241 = vunpack.c.l.b16 %v1242
      %v4242 = vunpack.c.l.b16 %v1245
      %v4243 = vunpack.c.l.b16 %v1249
      %v4244 = vunpack.c.l.b16 %v1252
      %v4245 = vunpack.c.l.b16 %v1256
      %v4246 = vunpack.c.l.b16 %v1259
      %v4247 = vunpack.c.l.b16 %v1263
      %v4248 = vunpack.c.l.b16 %v1266
      %v4249 = vunpack.c.l.b16 %v1270
      %v4250 = vunpack.c.l.b16 %v1273
      %v4251 = vunpack.c.l.b16 %v1277
      %v4252 = vunpack.c.l.b16 %v1280
      %v4253 = vunpack.c.l.b16 %v1284
      %v4254 = vunpack.c.l.b16 %v1287
      %v4255 = vunpack.c.l.b16 %v1291
      %v4256 = vunpack.c.l.b16 %v1294
      %v4257 = vunpack.c.l.b16 %v1298
      %v4258 = vunpack.c.l.b16 %v1301
      %v4259 = vunpack.c.l.b16 %v1305
      %v4260 = vunpack.c.l.b16 %v1308
      %v4261 = vunpack.c.l.b16 %v1312
      %v4262 = vunpack.c.l.b16 %v1315
      %v4263 = vunpack.c.l.b16 %v1319
      %v4264 = vunpack.c.l.b16 %v1322
      %v4265 = vunpack.c.l.b16 %v1326
      %v4266 = vunpack.c.l.b16 %v1329
      %v4267 = vunpack.c.l.b16 %v1333
      %v4268 = vunpack.c.l.b16 %v1336
      %v4269 = vpack.c.b16 %v4238, %v4237
      %v4270 = vpack.c.b16 %v4240, %v4239
      %v4271 = vpack.c.b16 %v4242, %v4241
      %v4272 = vpack.c.b16 %v4244, %v4243
      %v4273 = vpack.c.b16 %v4246, %v4245
      %v4274 = vpack.c.b16 %v4248, %v4247
      %v4275 = vpack.c.b16 %v4250, %v4249
      %v4276 = vpack.c.b16 %v4252, %v4251
      %v4277 = vpack.c.b16 %v4254, %v4253
      %v4278 = vpack.c.b16 %v4256, %v4255
      %v4279 = vpack.c.b16 %v4258, %v4257
      %v4280 = vpack.c.b16 %v4260, %v4259
      %v4281 = vpack.c.b16 %v4262, %v4261
      %v4282 = vpack.c.b16 %v4264, %v4263
      %v4283 = vpack.c.b16 %v4266, %v4265
      %v4284 = vpack.c.b16 %v4268, %v4267
      %v4301 = vunpack.c.l.b16 %v1404
      %v4302 = vunpack.c.l.b16 %v1407
      %v4303 = vunpack.c.l.b16 %v1411
      %v4304 = vunpack.c.l.b16 %v1414
      %v4305 = vunpack.c.l.b16 %v1418
      %v4306 = vunpack.c.l.b16 %v1421
      %v4307 = vunpack.c.l.b16 %v1425
      %v4308 = vunpack.c.l.b16 %v1428
      %v4309 = vunpack.c.l.b16 %v1432
      %v4310 = vunpack.c.l.b16 %v1435
      %v4311 = vunpack.c.l.b16 %v1439
      %v4312 = vunpack.c.l.b16 %v1442
      %v4313 = vunpack.c.l.b16 %v1446
      %v4314 = vunpack.c.l.b16 %v1449
      %v4315 = vunpack.c.l.b16 %v1453
      %v4316 = vunpack.c.l.b16 %v1456
      %v4317 = vunpack.c.l.b16 %v1460
      %v4318 = vunpack.c.l.b16 %v1463
      %v4319 = vunpack.c.l.b16 %v1467
      %v4320 = vunpack.c.l.b16 %v1470
      %v4321 = vunpack.c.l.b16 %v1474
      %v4322 = vunpack.c.l.b16 %v1477
      %v4323 = vunpack.c.l.b16 %v1481
      %v4324 = vunpack.c.l.b16 %v1484
      %v4325 = vunpack.c.l.b16 %v1488
      %v4326 = vunpack.c.l.b16 %v1491
      %v4327 = vunpack.c.l.b16 %v1495
      %v4328 = vunpack.c.l.b16 %v1498
      %v4329 = vunpack.c.l.b16 %v1502
      %v4330 = vunpack.c.l.b16 %v1505
      %v4331 = vunpack.c.l.b16 %v1509
      %v4332 = vunpack.c.l.b16 %v1512
      %v4333 = vpack.c.b16 %v4302, %v4301
      %v4334 = vpack.c.b16 %v4304, %v4303
      %v4335 = vpack.c.b16 %v4306, %v4305
      %v4336 = vpack.c.b16 %v4308, %v4307
      %v4337 = vpack.c.b16 %v4310, %v4309
      %v4338 = vpack.c.b16 %v4312, %v4311
      %v4339 = vpack.c.b16 %v4314, %v4313
      %v4340 = vpack.c.b16 %v4316, %v4315
      %v4341 = vpack.c.b16 %v4318, %v4317
      %v4342 = vpack.c.b16 %v4320, %v4319
      %v4343 = vpack.c.b16 %v4322, %v4321
      %v4344 = vpack.c.b16 %v4324, %v4323
      %v4345 = vpack.c.b16 %v4326, %v4325
      %v4346 = vpack.c.b16 %v4328, %v4327
      %v4347 = vpack.c.b16 %v4330, %v4329
      %v4348 = vpack.c.b16 %v4332, %v4331
      %v4381 = vunpack.c.l.b16 %v1514
      %v4382 = vunpack.c.l.b16 %v1515
      %v4383 = vunpack.c.l.b16 %v1516
      %v4384 = vunpack.c.l.b16 %v1517
      %v4385 = vunpack.c.l.b16 %v1518
      %v4386 = vunpack.c.l.b16 %v1519
      %v4387 = vunpack.c.l.b16 %v1520
      %v4388 = vunpack.c.l.b16 %v1521
      %v4389 = vunpack.c.l.b16 %v1522
      %v4390 = vunpack.c.l.b16 %v1523
      %v4391 = vunpack.c.l.b16 %v1524
      %v4392 = vunpack.c.l.b16 %v1525
      %v4393 = vunpack.c.l.b16 %v1526
      %v4394 = vunpack.c.l.b16 %v1527
      %v4395 = vunpack.c.l.b16 %v1528
      %v4396 = vunpack.c.l.b16 %v1529
      %v4397 = vunpack.c.l.b16 %v1530
      %v4398 = vunpack.c.l.b16 %v1531
      %v4399 = vunpack.c.l.b16 %v1532
      %v4400 = vunpack.c.l.b16 %v1533
      %v4401 = vunpack.c.l.b16 %v1534
      %v4402 = vunpack.c.l.b16 %v1535
      %v4403 = vunpack.c.l.b16 %v1536
      %v4404 = vunpack.c.l.b16 %v1537
      %v4405 = vunpack.c.l.b16 %v1538
      %v4406 = vunpack.c.l.b16 %v1539
      %v4407 = vunpack.c.l.b16 %v1540
      %v4408 = vunpack.c.l.b16 %v1541
      %v4409 = vunpack.c.l.b16 %v1542
      %v4410 = vunpack.c.l.b16 %v1543
      %v4411 = vunpack.c.l.b16 %v1544
      %v4412 = vunpack.c.l.b16 %v1545
      %v4413 = vpack.c.b16 %v4382, %v4381
      %v4414 = vpack.c.b16 %v4384, %v4383
      %v4415 = vpack.c.b16 %v4386, %v4385
      %v4416 = vpack.c.b16 %v4388, %v4387
      %v4417 = vpack.c.b16 %v4390, %v4389
      %v4418 = vpack.c.b16 %v4392, %v4391
      %v4419 = vpack.c.b16 %v4394, %v4393
      %v4420 = vpack.c.b16 %v4396, %v4395
      %v4421 = vpack.c.b16 %v4398, %v4397
      %v4422 = vpack.c.b16 %v4400, %v4399
      %v4423 = vpack.c.b16 %v4402, %v4401
      %v4424 = vpack.c.b16 %v4404, %v4403
      %v4425 = vpack.c.b16 %v4406, %v4405
      %v4426 = vpack.c.b16 %v4408, %v4407
      %v4427 = vpack.c.b16 %v4410, %v4409
      %v4428 = vpack.c.b16 %v4412, %v4411
      %v4461 = vunpack.c.l.b16 %v1547
      %v4462 = vunpack.c.l.b16 %v1548
      %v4463 = vunpack.c.l.b16 %v1549
      %v4464 = vunpack.c.l.b16 %v1550
      %v4465 = vunpack.c.l.b16 %v1551
      %v4466 = vunpack.c.l.b16 %v1552
      %v4467 = vunpack.c.l.b16 %v1553
      %v4468 = vunpack.c.l.b16 %v1554
      %v4469 = vunpack.c.l.b16 %v1555
      %v4470 = vunpack.c.l.b16 %v1556
      %v4471 = vunpack.c.l.b16 %v1557
      %v4472 = vunpack.c.l.b16 %v1558
      %v4473 = vunpack.c.l.b16 %v1559
      %v4474 = vunpack.c.l.b16 %v1560
      %v4475 = vunpack.c.l.b16 %v1561
      %v4476 = vunpack.c.l.b16 %v1562
      %v4477 = vunpack.c.l.b16 %v1563
      %v4478 = vunpack.c.l.b16 %v1564
      %v4479 = vunpack.c.l.b16 %v1565
      %v4480 = vunpack.c.l.b16 %v1566
      %v4481 = vunpack.c.l.b16 %v1567
      %v4482 = vunpack.c.l.b16 %v1568
      %v4483 = vunpack.c.l.b16 %v1569
      %v4484 = vunpack.c.l.b16 %v1570
      %v4485 = vunpack.c.l.b16 %v1571
      %v4486 = vunpack.c.l.b16 %v1572
      %v4487 = vunpack.c.l.b16 %v1573
      %v4488 = vunpack.c.l.b16 %v1574
      %v4489 = vunpack.c.l.b16 %v1575
      %v4490 = vunpack.c.l.b16 %v1576
      %v4491 = vunpack.c.l.b16 %v1577
      %v4492 = vunpack.c.l.b16 %v1578
      %v4493 = vpack.c.b16 %v4462, %v4461
      %v4494 = vpack.c.b16 %v4464, %v4463
      %v4495 = vpack.c.b16 %v4466, %v4465
      %v4496 = vpack.c.b16 %v4468, %v4467
      %v4497 = vpack.c.b16 %v4470, %v4469
      %v4498 = vpack.c.b16 %v4472, %v4471
      %v4499 = vpack.c.b16 %v4474, %v4473
      %v4500 = vpack.c.b16 %v4476, %v4475
      %v4501 = vpack.c.b16 %v4478, %v4477
      %v4502 = vpack.c.b16 %v4480, %v4479
      %v4503 = vpack.c.b16 %v4482, %v4481
      %v4504 = vpack.c.b16 %v4484, %v4483
      %v4505 = vpack.c.b16 %v4486, %v4485
      %v4506 = vpack.c.b16 %v4488, %v4487
      %v4507 = vpack.c.b16 %v4490, %v4489
      %v4508 = vpack.c.b16 %v4492, %v4491
      %v4525 = vunpack.c.l.b16 %v1608
      %v4526 = vunpack.c.l.b16 %v1618
      %v4527 = vunpack.c.l.b16 %v1632
      %v4528 = vunpack.c.l.b16 %v1642
      %v4529 = vunpack.c.l.b16 %v1656
      %v4530 = vunpack.c.l.b16 %v1666
      %v4531 = vunpack.c.l.b16 %v1680
      %v4532 = vunpack.c.l.b16 %v1690
      %v4533 = vunpack.c.l.b16 %v1704
      %v4534 = vunpack.c.l.b16 %v1714
      %v4535 = vunpack.c.l.b16 %v1728
      %v4536 = vunpack.c.l.b16 %v1738
      %v4537 = vunpack.c.l.b16 %v1752
      %v4538 = vunpack.c.l.b16 %v1762
      %v4539 = vunpack.c.l.b16 %v1776
      %v4540 = vunpack.c.l.b16 %v1786
      %v4541 = vunpack.c.l.b16 %v1800
      %v4542 = vunpack.c.l.b16 %v1810
      %v4543 = vunpack.c.l.b16 %v1824
      %v4544 = vunpack.c.l.b16 %v1834
      %v4545 = vunpack.c.l.b16 %v1848
      %v4546 = vunpack.c.l.b16 %v1858
      %v4547 = vunpack.c.l.b16 %v1872
      %v4548 = vunpack.c.l.b16 %v1882
      %v4549 = vunpack.c.l.b16 %v1896
      %v4550 = vunpack.c.l.b16 %v1906
      %v4551 = vunpack.c.l.b16 %v1920
      %v4552 = vunpack.c.l.b16 %v1930
      %v4553 = vunpack.c.l.b16 %v1944
      %v4554 = vunpack.c.l.b16 %v1954
      %v4555 = vunpack.c.l.b16 %v1968
      %v4556 = vunpack.c.l.b16 %v1978
      %v4557 = vpack.c.b16 %v4526, %v4525
      %v4558 = vpack.c.b16 %v4528, %v4527
      %v4559 = vpack.c.b16 %v4530, %v4529
      %v4560 = vpack.c.b16 %v4532, %v4531
      %v4561 = vpack.c.b16 %v4534, %v4533
      %v4562 = vpack.c.b16 %v4536, %v4535
      %v4563 = vpack.c.b16 %v4538, %v4537
      %v4564 = vpack.c.b16 %v4540, %v4539
      %v4565 = vpack.c.b16 %v4542, %v4541
      %v4566 = vpack.c.b16 %v4544, %v4543
      %v4567 = vpack.c.b16 %v4546, %v4545
      %v4568 = vpack.c.b16 %v4548, %v4547
      %v4569 = vpack.c.b16 %v4550, %v4549
      %v4570 = vpack.c.b16 %v4552, %v4551
      %v4571 = vpack.c.b16 %v4554, %v4553
      %v4572 = vpack.c.b16 %v4556, %v4555
      %v4589 = vunpack.c.l.b16 %v2008
      %v4590 = vunpack.c.l.b16 %v2018
      %v4591 = vunpack.c.l.b16 %v2032
      %v4592 = vunpack.c.l.b16 %v2042
      %v4593 = vunpack.c.l.b16 %v2056
      %v4594 = vunpack.c.l.b16 %v2066
      %v4595 = vunpack.c.l.b16 %v2080
      %v4596 = vunpack.c.l.b16 %v2090
      %v4597 = vunpack.c.l.b16 %v2104
      %v4598 = vunpack.c.l.b16 %v2114
      %v4599 = vunpack.c.l.b16 %v2128
      %v4600 = vunpack.c.l.b16 %v2138
      %v4601 = vunpack.c.l.b16 %v2152
      %v4602 = vunpack.c.l.b16 %v2162
      %v4603 = vunpack.c.l.b16 %v2176
      %v4604 = vunpack.c.l.b16 %v2186
      %v4605 = vunpack.c.l.b16 %v2200
      %v4606 = vunpack.c.l.b16 %v2210
      %v4607 = vunpack.c.l.b16 %v2224
      %v4608 = vunpack.c.l.b16 %v2234
      %v4609 = vunpack.c.l.b16 %v2248
      %v4610 = vunpack.c.l.b16 %v2258
      %v4611 = vunpack.c.l.b16 %v2272
      %v4612 = vunpack.c.l.b16 %v2282
      %v4613 = vunpack.c.l.b16 %v2296
      %v4614 = vunpack.c.l.b16 %v2306
      %v4615 = vunpack.c.l.b16 %v2320
      %v4616 = vunpack.c.l.b16 %v2330
      %v4617 = vunpack.c.l.b16 %v2344
      %v4618 = vunpack.c.l.b16 %v2354
      %v4619 = vunpack.c.l.b16 %v2368
      %v4620 = vunpack.c.l.b16 %v2378
      %v4621 = vpack.c.b16 %v4590, %v4589
      %v4622 = vpack.c.b16 %v4592, %v4591
      %v4623 = vpack.c.b16 %v4594, %v4593
      %v4624 = vpack.c.b16 %v4596, %v4595
      %v4625 = vpack.c.b16 %v4598, %v4597
      %v4626 = vpack.c.b16 %v4600, %v4599
      %v4627 = vpack.c.b16 %v4602, %v4601
      %v4628 = vpack.c.b16 %v4604, %v4603
      %v4629 = vpack.c.b16 %v4606, %v4605
      %v4630 = vpack.c.b16 %v4608, %v4607
      %v4631 = vpack.c.b16 %v4610, %v4609
      %v4632 = vpack.c.b16 %v4612, %v4611
      %v4633 = vpack.c.b16 %v4614, %v4613
      %v4634 = vpack.c.b16 %v4616, %v4615
      %v4635 = vpack.c.b16 %v4618, %v4617
      %v4636 = vpack.c.b16 %v4620, %v4619
      %v4653 = vunpack.c.l.b16 %v2446
      %v4654 = vunpack.c.l.b16 %v2449
      %v4655 = vunpack.c.l.b16 %v2453
      %v4656 = vunpack.c.l.b16 %v2456
      %v4657 = vunpack.c.l.b16 %v2460
      %v4658 = vunpack.c.l.b16 %v2463
      %v4659 = vunpack.c.l.b16 %v2467
      %v4660 = vunpack.c.l.b16 %v2470
      %v4661 = vunpack.c.l.b16 %v2474
      %v4662 = vunpack.c.l.b16 %v2477
      %v4663 = vunpack.c.l.b16 %v2481
      %v4664 = vunpack.c.l.b16 %v2484
      %v4665 = vunpack.c.l.b16 %v2488
      %v4666 = vunpack.c.l.b16 %v2491
      %v4667 = vunpack.c.l.b16 %v2495
      %v4668 = vunpack.c.l.b16 %v2498
      %v4669 = vunpack.c.l.b16 %v2502
      %v4670 = vunpack.c.l.b16 %v2505
      %v4671 = vunpack.c.l.b16 %v2509
      %v4672 = vunpack.c.l.b16 %v2512
      %v4673 = vunpack.c.l.b16 %v2516
      %v4674 = vunpack.c.l.b16 %v2519
      %v4675 = vunpack.c.l.b16 %v2523
      %v4676 = vunpack.c.l.b16 %v2526
      %v4677 = vunpack.c.l.b16 %v2530
      %v4678 = vunpack.c.l.b16 %v2533
      %v4679 = vunpack.c.l.b16 %v2537
      %v4680 = vunpack.c.l.b16 %v2540
      %v4681 = vunpack.c.l.b16 %v2544
      %v4682 = vunpack.c.l.b16 %v2547
      %v4683 = vunpack.c.l.b16 %v2551
      %v4684 = vunpack.c.l.b16 %v2554
      %v4685 = vpack.c.b16 %v4654, %v4653
      %v4686 = vpack.c.b16 %v4656, %v4655
      %v4687 = vpack.c.b16 %v4658, %v4657
      %v4688 = vpack.c.b16 %v4660, %v4659
      %v4689 = vpack.c.b16 %v4662, %v4661
      %v4690 = vpack.c.b16 %v4664, %v4663
      %v4691 = vpack.c.b16 %v4666, %v4665
      %v4692 = vpack.c.b16 %v4668, %v4667
      %v4693 = vpack.c.b16 %v4670, %v4669
      %v4694 = vpack.c.b16 %v4672, %v4671
      %v4695 = vpack.c.b16 %v4674, %v4673
      %v4696 = vpack.c.b16 %v4676, %v4675
      %v4697 = vpack.c.b16 %v4678, %v4677
      %v4698 = vpack.c.b16 %v4680, %v4679
      %v4699 = vpack.c.b16 %v4682, %v4681
      %v4700 = vpack.c.b16 %v4684, %v4683
      %v4717 = vunpack.c.l.b16 %v2622
      %v4718 = vunpack.c.l.b16 %v2625
      %v4719 = vunpack.c.l.b16 %v2629
      %v4720 = vunpack.c.l.b16 %v2632
      %v4721 = vunpack.c.l.b16 %v2636
      %v4722 = vunpack.c.l.b16 %v2639
      %v4723 = vunpack.c.l.b16 %v2643
      %v4724 = vunpack.c.l.b16 %v2646
      %v4725 = vunpack.c.l.b16 %v2650
      %v4726 = vunpack.c.l.b16 %v2653
      %v4727 = vunpack.c.l.b16 %v2657
      %v4728 = vunpack.c.l.b16 %v2660
      %v4729 = vunpack.c.l.b16 %v2664
      %v4730 = vunpack.c.l.b16 %v2667
      %v4731 = vunpack.c.l.b16 %v2671
      %v4732 = vunpack.c.l.b16 %v2674
      %v4733 = vunpack.c.l.b16 %v2678
      %v4734 = vunpack.c.l.b16 %v2681
      %v4735 = vunpack.c.l.b16 %v2685
      %v4736 = vunpack.c.l.b16 %v2688
      %v4737 = vunpack.c.l.b16 %v2692
      %v4738 = vunpack.c.l.b16 %v2695
      %v4739 = vunpack.c.l.b16 %v2699
      %v4740 = vunpack.c.l.b16 %v2702
      %v4741 = vunpack.c.l.b16 %v2706
      %v4742 = vunpack.c.l.b16 %v2709
      %v4743 = vunpack.c.l.b16 %v2713
      %v4744 = vunpack.c.l.b16 %v2716
      %v4745 = vunpack.c.l.b16 %v2720
      %v4746 = vunpack.c.l.b16 %v2723
      %v4747 = vunpack.c.l.b16 %v2727
      %v4748 = vunpack.c.l.b16 %v2730
      %v4749 = vpack.c.b16 %v4718, %v4717
      %v4750 = vpack.c.b16 %v4720, %v4719
      %v4751 = vpack.c.b16 %v4722, %v4721
      %v4752 = vpack.c.b16 %v4724, %v4723
      %v4753 = vpack.c.b16 %v4726, %v4725
      %v4754 = vpack.c.b16 %v4728, %v4727
      %v4755 = vpack.c.b16 %v4730, %v4729
      %v4756 = vpack.c.b16 %v4732, %v4731
      %v4757 = vpack.c.b16 %v4734, %v4733
      %v4758 = vpack.c.b16 %v4736, %v4735
      %v4759 = vpack.c.b16 %v4738, %v4737
      %v4760 = vpack.c.b16 %v4740, %v4739
      %v4761 = vpack.c.b16 %v4742, %v4741
      %v4762 = vpack.c.b16 %v4744, %v4743
      %v4763 = vpack.c.b16 %v4746, %v4745
      %v4764 = vpack.c.b16 %v4748, %v4747
      %v4797 = vunpack.c.l.b16 %v2732
      %v4798 = vunpack.c.l.b16 %v2733
      %v4799 = vunpack.c.l.b16 %v2734
      %v4800 = vunpack.c.l.b16 %v2735
      %v4801 = vunpack.c.l.b16 %v2736
      %v4802 = vunpack.c.l.b16 %v2737
      %v4803 = vunpack.c.l.b16 %v2738
      %v4804 = vunpack.c.l.b16 %v2739
      %v4805 = vunpack.c.l.b16 %v2740
      %v4806 = vunpack.c.l.b16 %v2741
      %v4807 = vunpack.c.l.b16 %v2742
      %v4808 = vunpack.c.l.b16 %v2743
      %v4809 = vunpack.c.l.b16 %v2744
      %v4810 = vunpack.c.l.b16 %v2745
      %v4811 = vunpack.c.l.b16 %v2746
      %v4812 = vunpack.c.l.b16 %v2747
      %v4813 = vunpack.c.l.b16 %v2748
      %v4814 = vunpack.c.l.b16 %v2749
      %v4815 = vunpack.c.l.b16 %v2750
      %v4816 = vunpack.c.l.b16 %v2751
      %v4817 = vunpack.c.l.b16 %v2752
      %v4818 = vunpack.c.l.b16 %v2753
      %v4819 = vunpack.c.l.b16 %v2754
      %v4820 = vunpack.c.l.b16 %v2755
      %v4821 = vunpack.c.l.b16 %v2756
      %v4822 = vunpack.c.l.b16 %v2757
      %v4823 = vunpack.c.l.b16 %v2758
      %v4824 = vunpack.c.l.b16 %v2759
      %v4825 = vunpack.c.l.b16 %v2760
      %v4826 = vunpack.c.l.b16 %v2761
      %v4827 = vunpack.c.l.b16 %v2762
      %v4828 = vunpack.c.l.b16 %v2763
      %v4829 = vpack.c.b16 %v4798, %v4797
      %v4830 = vpack.c.b16 %v4800, %v4799
      %v4831 = vpack.c.b16 %v4802, %v4801
      %v4832 = vpack.c.b16 %v4804, %v4803
      %v4833 = vpack.c.b16 %v4806, %v4805
      %v4834 = vpack.c.b16 %v4808, %v4807
      %v4835 = vpack.c.b16 %v4810, %v4809
      %v4836 = vpack.c.b16 %v4812, %v4811
      %v4837 = vpack.c.b16 %v4814, %v4813
      %v4838 = vpack.c.b16 %v4816, %v4815
      %v4839 = vpack.c.b16 %v4818, %v4817
      %v4840 = vpack.c.b16 %v4820, %v4819
      %v4841 = vpack.c.b16 %v4822, %v4821
      %v4842 = vpack.c.b16 %v4824, %v4823
      %v4843 = vpack.c.b16 %v4826, %v4825
      %v4844 = vpack.c.b16 %v4828, %v4827
      %v4877 = vunpack.c.l.b16 %v2765
      %v4878 = vunpack.c.l.b16 %v2766
      %v4879 = vunpack.c.l.b16 %v2767
      %v4880 = vunpack.c.l.b16 %v2768
      %v4881 = vunpack.c.l.b16 %v2769
      %v4882 = vunpack.c.l.b16 %v2770
      %v4883 = vunpack.c.l.b16 %v2771
      %v4884 = vunpack.c.l.b16 %v2772
      %v4885 = vunpack.c.l.b16 %v2773
      %v4886 = vunpack.c.l.b16 %v2774
      %v4887 = vunpack.c.l.b16 %v2775
      %v4888 = vunpack.c.l.b16 %v2776
      %v4889 = vunpack.c.l.b16 %v2777
      %v4890 = vunpack.c.l.b16 %v2778
      %v4891 = vunpack.c.l.b16 %v2779
      %v4892 = vunpack.c.l.b16 %v2780
      %v4893 = vunpack.c.l.b16 %v2781
      %v4894 = vunpack.c.l.b16 %v2782
      %v4895 = vunpack.c.l.b16 %v2783
      %v4896 = vunpack.c.l.b16 %v2784
      %v4897 = vunpack.c.l.b16 %v2785
      %v4898 = vunpack.c.l.b16 %v2786
      %v4899 = vunpack.c.l.b16 %v2787
      %v4900 = vunpack.c.l.b16 %v2788
      %v4901 = vunpack.c.l.b16 %v2789
      %v4902 = vunpack.c.l.b16 %v2790
      %v4903 = vunpack.c.l.b16 %v2791
      %v4904 = vunpack.c.l.b16 %v2792
      %v4905 = vunpack.c.l.b16 %v2793
      %v4906 = vunpack.c.l.b16 %v2794
      %v4907 = vunpack.c.l.b16 %v2795
      %v4908 = vunpack.c.l.b16 %v2796
      %v4909 = vpack.c.b16 %v4878, %v4877
      %v4910 = vpack.c.b16 %v4880, %v4879
      %v4911 = vpack.c.b16 %v4882, %v4881
      %v4912 = vpack.c.b16 %v4884, %v4883
      %v4913 = vpack.c.b16 %v4886, %v4885
      %v4914 = vpack.c.b16 %v4888, %v4887
      %v4915 = vpack.c.b16 %v4890, %v4889
      %v4916 = vpack.c.b16 %v4892, %v4891
      %v4917 = vpack.c.b16 %v4894, %v4893
      %v4918 = vpack.c.b16 %v4896, %v4895
      %v4919 = vpack.c.b16 %v4898, %v4897
      %v4920 = vpack.c.b16 %v4900, %v4899
      %v4921 = vpack.c.b16 %v4902, %v4901
      %v4922 = vpack.c.b16 %v4904, %v4903
      %v4923 = vpack.c.b16 %v4906, %v4905
      %v4924 = vpack.c.b16 %v4908, %v4907
      %v4941 = vunpack.c.l.b16 %v2826
      %v4942 = vunpack.c.l.b16 %v2836
      %v4943 = vunpack.c.l.b16 %v2850
      %v4944 = vunpack.c.l.b16 %v2860
      %v4945 = vunpack.c.l.b16 %v2874
      %v4946 = vunpack.c.l.b16 %v2884
      %v4947 = vunpack.c.l.b16 %v2898
      %v4948 = vunpack.c.l.b16 %v2908
      %v4949 = vunpack.c.l.b16 %v2922
      %v4950 = vunpack.c.l.b16 %v2932
      %v4951 = vunpack.c.l.b16 %v2946
      %v4952 = vunpack.c.l.b16 %v2956
      %v4953 = vunpack.c.l.b16 %v2970
      %v4954 = vunpack.c.l.b16 %v2980
      %v4955 = vunpack.c.l.b16 %v2994
      %v4956 = vunpack.c.l.b16 %v3004
      %v4957 = vunpack.c.l.b16 %v3018
      %v4958 = vunpack.c.l.b16 %v3028
      %v4959 = vunpack.c.l.b16 %v3042
      %v4960 = vunpack.c.l.b16 %v3052
      %v4961 = vunpack.c.l.b16 %v3066
      %v4962 = vunpack.c.l.b16 %v3076
      %v4963 = vunpack.c.l.b16 %v3090
      %v4964 = vunpack.c.l.b16 %v3100
      %v4965 = vunpack.c.l.b16 %v3114
      %v4966 = vunpack.c.l.b16 %v3124
      %v4967 = vunpack.c.l.b16 %v3138
      %v4968 = vunpack.c.l.b16 %v3148
      %v4969 = vunpack.c.l.b16 %v3162
      %v4970 = vunpack.c.l.b16 %v3172
      %v4971 = vunpack.c.l.b16 %v3186
      %v4972 = vunpack.c.l.b16 %v3196
      %v4973 = vpack.c.b16 %v4942, %v4941
      %v4974 = vpack.c.b16 %v4944, %v4943
      %v4975 = vpack.c.b16 %v4946, %v4945
      %v4976 = vpack.c.b16 %v4948, %v4947
      %v4977 = vpack.c.b16 %v4950, %v4949
      %v4978 = vpack.c.b16 %v4952, %v4951
      %v4979 = vpack.c.b16 %v4954, %v4953
      %v4980 = vpack.c.b16 %v4956, %v4955
      %v4981 = vpack.c.b16 %v4958, %v4957
      %v4982 = vpack.c.b16 %v4960, %v4959
      %v4983 = vpack.c.b16 %v4962, %v4961
      %v4984 = vpack.c.b16 %v4964, %v4963
      %v4985 = vpack.c.b16 %v4966, %v4965
      %v4986 = vpack.c.b16 %v4968, %v4967
      %v4987 = vpack.c.b16 %v4970, %v4969
      %v4988 = vpack.c.b16 %v4972, %v4971
      %v5005 = vunpack.c.l.b16 %v3226
      %v5006 = vunpack.c.l.b16 %v3236
      %v5007 = vunpack.c.l.b16 %v3250
      %v5008 = vunpack.c.l.b16 %v3260
      %v5009 = vunpack.c.l.b16 %v3274
      %v5010 = vunpack.c.l.b16 %v3284
      %v5011 = vunpack.c.l.b16 %v3298
      %v5012 = vunpack.c.l.b16 %v3308
      %v5013 = vunpack.c.l.b16 %v3322
      %v5014 = vunpack.c.l.b16 %v3332
      %v5015 = vunpack.c.l.b16 %v3346
      %v5016 = vunpack.c.l.b16 %v3356
      %v5017 = vunpack.c.l.b16 %v3370
      %v5018 = vunpack.c.l.b16 %v3380
      %v5019 = vunpack.c.l.b16 %v3394
      %v5020 = vunpack.c.l.b16 %v3404
      %v5021 = vunpack.c.l.b16 %v3418
      %v5022 = vunpack.c.l.b16 %v3428
      %v5023 = vunpack.c.l.b16 %v3442
      %v5024 = vunpack.c.l.b16 %v3452
      %v5025 = vunpack.c.l.b16 %v3466
      %v5026 = vunpack.c.l.b16 %v3476
      %v5027 = vunpack.c.l.b16 %v3490
      %v5028 = vunpack.c.l.b16 %v3500
      %v5029 = vunpack.c.l.b16 %v3514
      %v5030 = vunpack.c.l.b16 %v3524
      %v5031 = vunpack.c.l.b16 %v3538
      %v5032 = vunpack.c.l.b16 %v3548
      %v5033 = vunpack.c.l.b16 %v3562
      %v5034 = vunpack.c.l.b16 %v3572
      %v5035 = vunpack.c.l.b16 %v3586
      %v5036 = vunpack.c.l.b16 %v3596
      %v5037 = vpack.c.b16 %v5006, %v5005
      %v5038 = vpack.c.b16 %v5008, %v5007
      %v5039 = vpack.c.b16 %v5010, %v5009
      %v5040 = vpack.c.b16 %v5012, %v5011
      %v5041 = vpack.c.b16 %v5014, %v5013
      %v5042 = vpack.c.b16 %v5016, %v5015
      %v5043 = vpack.c.b16 %v5018, %v5017
      %v5044 = vpack.c.b16 %v5020, %v5019
      %v5045 = vpack.c.b16 %v5022, %v5021
      %v5046 = vpack.c.b16 %v5024, %v5023
      %v5047 = vpack.c.b16 %v5026, %v5025
      %v5048 = vpack.c.b16 %v5028, %v5027
      %v5049 = vpack.c.b16 %v5030, %v5029
      %v5050 = vpack.c.b16 %v5032, %v5031
      %v5051 = vpack.c.b16 %v5034, %v5033
      %v5052 = vpack.c.b16 %v5036, %v5035
      %v5069 = vunpack.c.l.b16 %v3664
      %v5070 = vunpack.c.l.b16 %v3667
      %v5071 = vunpack.c.l.b16 %v3671
      %v5072 = vunpack.c.l.b16 %v3674
      %v5073 = vunpack.c.l.b16 %v3678
      %v5074 = vunpack.c.l.b16 %v3681
      %v5075 = vunpack.c.l.b16 %v3685
      %v5076 = vunpack.c.l.b16 %v3688
      %v5077 = vunpack.c.l.b16 %v3692
      %v5078 = vunpack.c.l.b16 %v3695
      %v5079 = vunpack.c.l.b16 %v3699
      %v5080 = vunpack.c.l.b16 %v3702
      %v5081 = vunpack.c.l.b16 %v3706
      %v5082 = vunpack.c.l.b16 %v3709
      %v5083 = vunpack.c.l.b16 %v3713
      %v5084 = vunpack.c.l.b16 %v3716
      %v5085 = vunpack.c.l.b16 %v3720
      %v5086 = vunpack.c.l.b16 %v3723
      %v5087 = vunpack.c.l.b16 %v3727
      %v5088 = vunpack.c.l.b16 %v3730
      %v5089 = vunpack.c.l.b16 %v3734
      %v5090 = vunpack.c.l.b16 %v3737
      %v5091 = vunpack.c.l.b16 %v3741
      %v5092 = vunpack.c.l.b16 %v3744
      %v5093 = vunpack.c.l.b16 %v3748
      %v5094 = vunpack.c.l.b16 %v3751
      %v5095 = vunpack.c.l.b16 %v3755
      %v5096 = vunpack.c.l.b16 %v3758
      %v5097 = vunpack.c.l.b16 %v3762
      %v5098 = vunpack.c.l.b16 %v3765
      %v5099 = vunpack.c.l.b16 %v3769
      %v5100 = vunpack.c.l.b16 %v3772
      %v5101 = vpack.c.b16 %v5070, %v5069
      %v5102 = vpack.c.b16 %v5072, %v5071
      %v5103 = vpack.c.b16 %v5074, %v5073
      %v5104 = vpack.c.b16 %v5076, %v5075
      %v5105 = vpack.c.b16 %v5078, %v5077
      %v5106 = vpack.c.b16 %v5080, %v5079
      %v5107 = vpack.c.b16 %v5082, %v5081
      %v5108 = vpack.c.b16 %v5084, %v5083
      %v5109 = vpack.c.b16 %v5086, %v5085
      %v5110 = vpack.c.b16 %v5088, %v5087
      %v5111 = vpack.c.b16 %v5090, %v5089
      %v5112 = vpack.c.b16 %v5092, %v5091
      %v5113 = vpack.c.b16 %v5094, %v5093
      %v5114 = vpack.c.b16 %v5096, %v5095
      %v5115 = vpack.c.b16 %v5098, %v5097
      %v5116 = vpack.c.b16 %v5100, %v5099
      %v5133 = vunpack.c.l.b16 %v3840
      %v5134 = vunpack.c.l.b16 %v3843
      %v5135 = vunpack.c.l.b16 %v3847
      %v5136 = vunpack.c.l.b16 %v3850
      %v5137 = vunpack.c.l.b16 %v3854
      %v5138 = vunpack.c.l.b16 %v3857
      %v5139 = vunpack.c.l.b16 %v3861
      %v5140 = vunpack.c.l.b16 %v3864
      %v5141 = vunpack.c.l.b16 %v3868
      %v5142 = vunpack.c.l.b16 %v3871
      %v5143 = vunpack.c.l.b16 %v3875
      %v5144 = vunpack.c.l.b16 %v3878
      %v5145 = vunpack.c.l.b16 %v3882
      %v5146 = vunpack.c.l.b16 %v3885
      %v5147 = vunpack.c.l.b16 %v3889
      %v5148 = vunpack.c.l.b16 %v3892
      %v5149 = vunpack.c.l.b16 %v3896
      %v5150 = vunpack.c.l.b16 %v3899
      %v5151 = vunpack.c.l.b16 %v3903
      %v5152 = vunpack.c.l.b16 %v3906
      %v5153 = vunpack.c.l.b16 %v3910
      %v5154 = vunpack.c.l.b16 %v3913
      %v5155 = vunpack.c.l.b16 %v3917
      %v5156 = vunpack.c.l.b16 %v3920
      %v5157 = vunpack.c.l.b16 %v3924
      %v5158 = vunpack.c.l.b16 %v3927
      %v5159 = vunpack.c.l.b16 %v3931
      %v5160 = vunpack.c.l.b16 %v3934
      %v5161 = vunpack.c.l.b16 %v3938
      %v5162 = vunpack.c.l.b16 %v3941
      %v5163 = vunpack.c.l.b16 %v3945
      %v5164 = vunpack.c.l.b16 %v3948
      %v5165 = vpack.c.b16 %v5134, %v5133
      %v5166 = vpack.c.b16 %v5136, %v5135
      %v5167 = vpack.c.b16 %v5138, %v5137
      %v5168 = vpack.c.b16 %v5140, %v5139
      %v5169 = vpack.c.b16 %v5142, %v5141
      %v5170 = vpack.c.b16 %v5144, %v5143
      %v5171 = vpack.c.b16 %v5146, %v5145
      %v5172 = vpack.c.b16 %v5148, %v5147
      %v5173 = vpack.c.b16 %v5150, %v5149
      %v5174 = vpack.c.b16 %v5152, %v5151
      %v5175 = vpack.c.b16 %v5154, %v5153
      %v5176 = vpack.c.b16 %v5156, %v5155
      %v5177 = vpack.c.b16 %v5158, %v5157
      %v5178 = vpack.c.b16 %v5160, %v5159
      %v5179 = vpack.c.b16 %v5162, %v5161
      %v5180 = vpack.c.b16 %v5164, %v5163
      %v5197 = vld [vmem:[%s2] sm:$0xf]
      %v5198 = vld [vmem:[%s2 + $0x4] sm:$0xf]
      %v5199 = vld [vmem:[%s2 + $0x8] sm:$0xf]
      %v5200 = vld [vmem:[%s2 + $0xc] sm:$0xf]
      %v5201 = vld [vmem:[%s2 + $0x10] sm:$0xf]
      %v5202 = vld [vmem:[%s2 + $0x14] sm:$0xf]
      %v5203 = vld [vmem:[%s2 + $0x18] sm:$0xf]
      %v5204 = vld [vmem:[%s2 + $0x1c] sm:$0xf]
      %v5205 = vld [vmem:[%s2 + $0x20] sm:$0xf]
      %v5206 = vld [vmem:[%s2 + $0x24] sm:$0xf]
      %v5207 = vld [vmem:[%s2 + $0x28] sm:$0xf]
      %v5208 = vld [vmem:[%s2 + $0x2c] sm:$0xf]
      %v5209 = vld [vmem:[%s2 + $0x30] sm:$0xf]
      %v5210 = vld [vmem:[%s2 + $0x34] sm:$0xf]
      %v5211 = vld [vmem:[%s2 + $0x38] sm:$0xf]
      %v5212 = vld [vmem:[%s2 + $0x3c] sm:$0xf]
      %v5213 = vld [vmem:[%s2 + $0x40] sm:$0xf]
      %v5214 = vld [vmem:[%s2 + $0x44] sm:$0xf]
      %v5215 = vld [vmem:[%s2 + $0x48] sm:$0xf]
      %v5216 = vld [vmem:[%s2 + $0x4c] sm:$0xf]
      %v5217 = vld [vmem:[%s2 + $0x50] sm:$0xf]
      %v5218 = vld [vmem:[%s2 + $0x54] sm:$0xf]
      %v5219 = vld [vmem:[%s2 + $0x58] sm:$0xf]
      %v5220 = vld [vmem:[%s2 + $0x5c] sm:$0xf]
      %v5221 = vld [vmem:[%s2 + $0x60] sm:$0xf]
      %v5222 = vld [vmem:[%s2 + $0x64] sm:$0xf]
      %v5223 = vld [vmem:[%s2 + $0x68] sm:$0xf]
      %v5224 = vld [vmem:[%s2 + $0x6c] sm:$0xf]
      %v5225 = vld [vmem:[%s2 + $0x70] sm:$0xf]
      %v5226 = vld [vmem:[%s2 + $0x74] sm:$0xf]
      %v5227 = vld [vmem:[%s2 + $0x78] sm:$0xf]
      %v5228 = vld [vmem:[%s2 + $0x7c] sm:$0xf]
      %v5229 = vld [vmem:[%s2 + $0x80] sm:$0xf]
      %v5230 = vld [vmem:[%s2 + $0x84] sm:$0xf]
      %v5231 = vld [vmem:[%s2 + $0x88] sm:$0xf]
      %v5232 = vld [vmem:[%s2 + $0x8c] sm:$0xf]
      %v5233 = vld [vmem:[%s2 + $0x90] sm:$0xf]
      %v5234 = vld [vmem:[%s2 + $0x94] sm:$0xf]
      %v5235 = vld [vmem:[%s2 + $0x98] sm:$0xf]
      %v5236 = vld [vmem:[%s2 + $0x9c] sm:$0xf]
      %v5237 = vld [vmem:[%s2 + $0xa0] sm:$0xf]
      %v5238 = vld [vmem:[%s2 + $0xa4] sm:$0xf]
      %v5239 = vld [vmem:[%s2 + $0xa8] sm:$0xf]
      %v5240 = vld [vmem:[%s2 + $0xac] sm:$0xf]
      %v5241 = vld [vmem:[%s2 + $0xb0] sm:$0xf]
      %v5242 = vld [vmem:[%s2 + $0xb4] sm:$0xf]
      %v5243 = vld [vmem:[%s2 + $0xb8] sm:$0xf]
      %v5244 = vld [vmem:[%s2 + $0xbc] sm:$0xf]
      %v5245 = vld [vmem:[%s2 + $0xc0] sm:$0xf]
      %v5246 = vld [vmem:[%s2 + $0xc4] sm:$0xf]
      %v5247 = vld [vmem:[%s2 + $0xc8] sm:$0xf]
      %v5248 = vld [vmem:[%s2 + $0xcc] sm:$0xf]
      %v5249 = vld [vmem:[%s2 + $0xd0] sm:$0xf]
      %v5250 = vld [vmem:[%s2 + $0xd4] sm:$0xf]
      %v5251 = vld [vmem:[%s2 + $0xd8] sm:$0xf]
      %v5252 = vld [vmem:[%s2 + $0xdc] sm:$0xf]
      %v5253 = vld [vmem:[%s2 + $0xe0] sm:$0xf]
      %v5254 = vld [vmem:[%s2 + $0xe4] sm:$0xf]
      %v5255 = vld [vmem:[%s2 + $0xe8] sm:$0xf]
      %v5256 = vld [vmem:[%s2 + $0xec] sm:$0xf]
      %v5257 = vld [vmem:[%s2 + $0xf0] sm:$0xf]
      %v5258 = vld [vmem:[%s2 + $0xf4] sm:$0xf]
      %v5259 = vld [vmem:[%s2 + $0xf8] sm:$0xf]
      %v5260 = vld [vmem:[%s2 + $0xfc] sm:$0xf]
      %v5261 = vld [vmem:[%s2 + $0x100] sm:$0xf]
      %v5262 = vld [vmem:[%s2 + $0x104] sm:$0xf]
      %v5263 = vld [vmem:[%s2 + $0x108] sm:$0xf]
      %v5264 = vld [vmem:[%s2 + $0x10c] sm:$0xf]
      %v5265 = vld [vmem:[%s2 + $0x110] sm:$0xf]
      %v5266 = vld [vmem:[%s2 + $0x114] sm:$0xf]
      %v5267 = vld [vmem:[%s2 + $0x118] sm:$0xf]
      %v5268 = vld [vmem:[%s2 + $0x11c] sm:$0xf]
      %v5269 = vld [vmem:[%s2 + $0x120] sm:$0xf]
      %v5270 = vld [vmem:[%s2 + $0x124] sm:$0xf]
      %v5271 = vld [vmem:[%s2 + $0x128] sm:$0xf]
      %v5272 = vld [vmem:[%s2 + $0x12c] sm:$0xf]
      %v5273 = vld [vmem:[%s2 + $0x130] sm:$0xf]
      %v5274 = vld [vmem:[%s2 + $0x134] sm:$0xf]
      %v5275 = vld [vmem:[%s2 + $0x138] sm:$0xf]
      %v5276 = vld [vmem:[%s2 + $0x13c] sm:$0xf]
      %v5277 = vld [vmem:[%s2 + $0x140] sm:$0xf]
      %v5278 = vld [vmem:[%s2 + $0x144] sm:$0xf]
      %v5279 = vld [vmem:[%s2 + $0x148] sm:$0xf]
      %v5280 = vld [vmem:[%s2 + $0x14c] sm:$0xf]
      %v5281 = vld [vmem:[%s2 + $0x150] sm:$0xf]
      %v5282 = vld [vmem:[%s2 + $0x154] sm:$0xf]
      %v5283 = vld [vmem:[%s2 + $0x158] sm:$0xf]
      %v5284 = vld [vmem:[%s2 + $0x15c] sm:$0xf]
      %v5285 = vld [vmem:[%s2 + $0x160] sm:$0xf]
      %v5286 = vld [vmem:[%s2 + $0x164] sm:$0xf]
      %v5287 = vld [vmem:[%s2 + $0x168] sm:$0xf]
      %v5288 = vld [vmem:[%s2 + $0x16c] sm:$0xf]
      %v5289 = vld [vmem:[%s2 + $0x170] sm:$0xf]
      %v5290 = vld [vmem:[%s2 + $0x174] sm:$0xf]
      %v5291 = vld [vmem:[%s2 + $0x178] sm:$0xf]
      %v5292 = vld [vmem:[%s2 + $0x17c] sm:$0xf]
      %v5293 = vld [vmem:[%s2 + $0x180] sm:$0xf]
      %v5294 = vld [vmem:[%s2 + $0x184] sm:$0xf]
      %v5295 = vld [vmem:[%s2 + $0x188] sm:$0xf]
      %v5296 = vld [vmem:[%s2 + $0x18c] sm:$0xf]
      %v5297 = vld [vmem:[%s2 + $0x190] sm:$0xf]
      %v5298 = vld [vmem:[%s2 + $0x194] sm:$0xf]
      %v5299 = vld [vmem:[%s2 + $0x198] sm:$0xf]
      %v5300 = vld [vmem:[%s2 + $0x19c] sm:$0xf]
      %v5301 = vld [vmem:[%s2 + $0x1a0] sm:$0xf]
      %v5302 = vld [vmem:[%s2 + $0x1a4] sm:$0xf]
      %v5303 = vld [vmem:[%s2 + $0x1a8] sm:$0xf]
      %v5304 = vld [vmem:[%s2 + $0x1ac] sm:$0xf]
      %v5305 = vld [vmem:[%s2 + $0x1b0] sm:$0xf]
      %v5306 = vld [vmem:[%s2 + $0x1b4] sm:$0xf]
      %v5307 = vld [vmem:[%s2 + $0x1b8] sm:$0xf]
      %v5308 = vld [vmem:[%s2 + $0x1bc] sm:$0xf]
      %v5309 = vld [vmem:[%s2 + $0x1c0] sm:$0xf]
      %v5310 = vld [vmem:[%s2 + $0x1c4] sm:$0xf]
      %v5311 = vld [vmem:[%s2 + $0x1c8] sm:$0xf]
      %v5312 = vld [vmem:[%s2 + $0x1cc] sm:$0xf]
      %v5313 = vld [vmem:[%s2 + $0x1d0] sm:$0xf]
      %v5314 = vld [vmem:[%s2 + $0x1d4] sm:$0xf]
      %v5315 = vld [vmem:[%s2 + $0x1d8] sm:$0xf]
      %v5316 = vld [vmem:[%s2 + $0x1dc] sm:$0xf]
      %v5317 = vld [vmem:[%s2 + $0x1e0] sm:$0xf]
      %v5318 = vld [vmem:[%s2 + $0x1e4] sm:$0xf]
      %v5319 = vld [vmem:[%s2 + $0x1e8] sm:$0xf]
      %v5320 = vld [vmem:[%s2 + $0x1ec] sm:$0xf]
      %v5321 = vld [vmem:[%s2 + $0x1f0] sm:$0xf]
      %v5322 = vld [vmem:[%s2 + $0x1f4] sm:$0xf]
      %v5323 = vld [vmem:[%s2 + $0x1f8] sm:$0xf]
      %v5324 = vld [vmem:[%s2 + $0x1fc] sm:$0xf]
      %v5325 = vld [vmem:[%s2 + $0x200] sm:$0xf]
      %v5326 = vld [vmem:[%s2 + $0x204] sm:$0xf]
      %v5327 = vld [vmem:[%s2 + $0x208] sm:$0xf]
      %v5328 = vld [vmem:[%s2 + $0x20c] sm:$0xf]
      %v5329 = vld [vmem:[%s2 + $0x210] sm:$0xf]
      %v5330 = vld [vmem:[%s2 + $0x214] sm:$0xf]
      %v5331 = vld [vmem:[%s2 + $0x218] sm:$0xf]
      %v5332 = vld [vmem:[%s2 + $0x21c] sm:$0xf]
      %v5333 = vld [vmem:[%s2 + $0x220] sm:$0xf]
      %v5334 = vld [vmem:[%s2 + $0x224] sm:$0xf]
      %v5335 = vld [vmem:[%s2 + $0x228] sm:$0xf]
      %v5336 = vld [vmem:[%s2 + $0x22c] sm:$0xf]
      %v5337 = vld [vmem:[%s2 + $0x230] sm:$0xf]
      %v5338 = vld [vmem:[%s2 + $0x234] sm:$0xf]
      %v5339 = vld [vmem:[%s2 + $0x238] sm:$0xf]
      %v5340 = vld [vmem:[%s2 + $0x23c] sm:$0xf]
      %v5341 = vld [vmem:[%s2 + $0x240] sm:$0xf]
      %v5342 = vld [vmem:[%s2 + $0x244] sm:$0xf]
      %v5343 = vld [vmem:[%s2 + $0x248] sm:$0xf]
      %v5344 = vld [vmem:[%s2 + $0x24c] sm:$0xf]
      %v5345 = vld [vmem:[%s2 + $0x250] sm:$0xf]
      %v5346 = vld [vmem:[%s2 + $0x254] sm:$0xf]
      %v5347 = vld [vmem:[%s2 + $0x258] sm:$0xf]
      %v5348 = vld [vmem:[%s2 + $0x25c] sm:$0xf]
      %v5349 = vld [vmem:[%s2 + $0x260] sm:$0xf]
      %v5350 = vld [vmem:[%s2 + $0x264] sm:$0xf]
      %v5351 = vld [vmem:[%s2 + $0x268] sm:$0xf]
      %v5352 = vld [vmem:[%s2 + $0x26c] sm:$0xf]
      %v5353 = vld [vmem:[%s2 + $0x270] sm:$0xf]
      %v5354 = vld [vmem:[%s2 + $0x274] sm:$0xf]
      %v5355 = vld [vmem:[%s2 + $0x278] sm:$0xf]
      %v5356 = vld [vmem:[%s2 + $0x27c] sm:$0xf]
      %v5357 = vld [vmem:[%s2 + $0x280] sm:$0xf]
      %v5358 = vld [vmem:[%s2 + $0x284] sm:$0xf]
      %v5359 = vld [vmem:[%s2 + $0x288] sm:$0xf]
      %v5360 = vld [vmem:[%s2 + $0x28c] sm:$0xf]
      %v5361 = vld [vmem:[%s2 + $0x290] sm:$0xf]
      %v5362 = vld [vmem:[%s2 + $0x294] sm:$0xf]
      %v5363 = vld [vmem:[%s2 + $0x298] sm:$0xf]
      %v5364 = vld [vmem:[%s2 + $0x29c] sm:$0xf]
      %v5365 = vld [vmem:[%s2 + $0x2a0] sm:$0xf]
      %v5366 = vld [vmem:[%s2 + $0x2a4] sm:$0xf]
      %v5367 = vld [vmem:[%s2 + $0x2a8] sm:$0xf]
      %v5368 = vld [vmem:[%s2 + $0x2ac] sm:$0xf]
      %v5369 = vld [vmem:[%s2 + $0x2b0] sm:$0xf]
      %v5370 = vld [vmem:[%s2 + $0x2b4] sm:$0xf]
      %v5371 = vld [vmem:[%s2 + $0x2b8] sm:$0xf]
      %v5372 = vld [vmem:[%s2 + $0x2bc] sm:$0xf]
      %v5373 = vld [vmem:[%s2 + $0x2c0] sm:$0xf]
      %v5374 = vld [vmem:[%s2 + $0x2c4] sm:$0xf]
      %v5375 = vld [vmem:[%s2 + $0x2c8] sm:$0xf]
      %v5376 = vld [vmem:[%s2 + $0x2cc] sm:$0xf]
      %v5377 = vld [vmem:[%s2 + $0x2d0] sm:$0xf]
      %v5378 = vld [vmem:[%s2 + $0x2d4] sm:$0xf]
      %v5379 = vld [vmem:[%s2 + $0x2d8] sm:$0xf]
      %v5380 = vld [vmem:[%s2 + $0x2dc] sm:$0xf]
      %v5381 = vld [vmem:[%s2 + $0x2e0] sm:$0xf]
      %v5382 = vld [vmem:[%s2 + $0x2e4] sm:$0xf]
      %v5383 = vld [vmem:[%s2 + $0x2e8] sm:$0xf]
      %v5384 = vld [vmem:[%s2 + $0x2ec] sm:$0xf]
      %v5385 = vld [vmem:[%s2 + $0x2f0] sm:$0xf]
      %v5386 = vld [vmem:[%s2 + $0x2f4] sm:$0xf]
      %v5387 = vld [vmem:[%s2 + $0x2f8] sm:$0xf]
      %v5388 = vld [vmem:[%s2 + $0x2fc] sm:$0xf]
      %v5389 = vld [vmem:[%s2 + $0x300] sm:$0xf]
      %v5390 = vld [vmem:[%s2 + $0x304] sm:$0xf]
      %v5391 = vld [vmem:[%s2 + $0x308] sm:$0xf]
      %v5392 = vld [vmem:[%s2 + $0x30c] sm:$0xf]
      %v5393 = vld [vmem:[%s2 + $0x310] sm:$0xf]
      %v5394 = vld [vmem:[%s2 + $0x314] sm:$0xf]
      %v5395 = vld [vmem:[%s2 + $0x318] sm:$0xf]
      %v5396 = vld [vmem:[%s2 + $0x31c] sm:$0xf]
      %v5397 = vld [vmem:[%s2 + $0x320] sm:$0xf]
      %v5398 = vld [vmem:[%s2 + $0x324] sm:$0xf]
      %v5399 = vld [vmem:[%s2 + $0x328] sm:$0xf]
      %v5400 = vld [vmem:[%s2 + $0x32c] sm:$0xf]
      %v5401 = vld [vmem:[%s2 + $0x330] sm:$0xf]
      %v5402 = vld [vmem:[%s2 + $0x334] sm:$0xf]
      %v5403 = vld [vmem:[%s2 + $0x338] sm:$0xf]
      %v5404 = vld [vmem:[%s2 + $0x33c] sm:$0xf]
      %v5405 = vld [vmem:[%s2 + $0x340] sm:$0xf]
      %v5406 = vld [vmem:[%s2 + $0x344] sm:$0xf]
      %v5407 = vld [vmem:[%s2 + $0x348] sm:$0xf]
      %v5408 = vld [vmem:[%s2 + $0x34c] sm:$0xf]
      %v5409 = vld [vmem:[%s2 + $0x350] sm:$0xf]
      %v5410 = vld [vmem:[%s2 + $0x354] sm:$0xf]
      %v5411 = vld [vmem:[%s2 + $0x358] sm:$0xf]
      %v5412 = vld [vmem:[%s2 + $0x35c] sm:$0xf]
      %v5413 = vld [vmem:[%s2 + $0x360] sm:$0xf]
      %v5414 = vld [vmem:[%s2 + $0x364] sm:$0xf]
      %v5415 = vld [vmem:[%s2 + $0x368] sm:$0xf]
      %v5416 = vld [vmem:[%s2 + $0x36c] sm:$0xf]
      %v5417 = vld [vmem:[%s2 + $0x370] sm:$0xf]
      %v5418 = vld [vmem:[%s2 + $0x374] sm:$0xf]
      %v5419 = vld [vmem:[%s2 + $0x378] sm:$0xf]
      %v5420 = vld [vmem:[%s2 + $0x37c] sm:$0xf]
      %v5421 = vld [vmem:[%s2 + $0x380] sm:$0xf]
      %v5422 = vld [vmem:[%s2 + $0x384] sm:$0xf]
      %v5423 = vld [vmem:[%s2 + $0x388] sm:$0xf]
      %v5424 = vld [vmem:[%s2 + $0x38c] sm:$0xf]
      %v5425 = vld [vmem:[%s2 + $0x390] sm:$0xf]
      %v5426 = vld [vmem:[%s2 + $0x394] sm:$0xf]
      %v5427 = vld [vmem:[%s2 + $0x398] sm:$0xf]
      %v5428 = vld [vmem:[%s2 + $0x39c] sm:$0xf]
      %v5429 = vld [vmem:[%s2 + $0x3a0] sm:$0xf]
      %v5430 = vld [vmem:[%s2 + $0x3a4] sm:$0xf]
      %v5431 = vld [vmem:[%s2 + $0x3a8] sm:$0xf]
      %v5432 = vld [vmem:[%s2 + $0x3ac] sm:$0xf]
      %v5433 = vld [vmem:[%s2 + $0x3b0] sm:$0xf]
      %v5434 = vld [vmem:[%s2 + $0x3b4] sm:$0xf]
      %v5435 = vld [vmem:[%s2 + $0x3b8] sm:$0xf]
      %v5436 = vld [vmem:[%s2 + $0x3bc] sm:$0xf]
      %v5437 = vld [vmem:[%s2 + $0x3c0] sm:$0xf]
      %v5438 = vld [vmem:[%s2 + $0x3c4] sm:$0xf]
      %v5439 = vld [vmem:[%s2 + $0x3c8] sm:$0xf]
      %v5440 = vld [vmem:[%s2 + $0x3cc] sm:$0xf]
      %v5441 = vld [vmem:[%s2 + $0x3d0] sm:$0xf]
      %v5442 = vld [vmem:[%s2 + $0x3d4] sm:$0xf]
      %v5443 = vld [vmem:[%s2 + $0x3d8] sm:$0xf]
      %v5444 = vld [vmem:[%s2 + $0x3dc] sm:$0xf]
      %v5445 = vld [vmem:[%s2 + $0x3e0] sm:$0xf]
      %v5446 = vld [vmem:[%s2 + $0x3e4] sm:$0xf]
      %v5447 = vld [vmem:[%s2 + $0x3e8] sm:$0xf]
      %v5448 = vld [vmem:[%s2 + $0x3ec] sm:$0xf]
      %v5449 = vld [vmem:[%s2 + $0x3f0] sm:$0xf]
      %v5450 = vld [vmem:[%s2 + $0x3f4] sm:$0xf]
      %v5451 = vld [vmem:[%s2 + $0x3f8] sm:$0xf]
      %v5452 = vld [vmem:[%s2 + $0x3fc] sm:$0xf]
      %v5453 = vld [vmem:[%s2 + $0x400] sm:$0xf]
      %v5454 = vld [vmem:[%s2 + $0x404] sm:$0xf]
      %v5455 = vld [vmem:[%s2 + $0x408] sm:$0xf]
      %v5456 = vld [vmem:[%s2 + $0x40c] sm:$0xf]
      %v5457 = vld [vmem:[%s2 + $0x410] sm:$0xf]
      %v5458 = vld [vmem:[%s2 + $0x414] sm:$0xf]
      %v5459 = vld [vmem:[%s2 + $0x418] sm:$0xf]
      %v5460 = vld [vmem:[%s2 + $0x41c] sm:$0xf]
      %v5461 = vld [vmem:[%s2 + $0x420] sm:$0xf]
      %v5462 = vld [vmem:[%s2 + $0x424] sm:$0xf]
      %v5463 = vld [vmem:[%s2 + $0x428] sm:$0xf]
      %v5464 = vld [vmem:[%s2 + $0x42c] sm:$0xf]
      %v5465 = vld [vmem:[%s2 + $0x430] sm:$0xf]
      %v5466 = vld [vmem:[%s2 + $0x434] sm:$0xf]
      %v5467 = vld [vmem:[%s2 + $0x438] sm:$0xf]
      %v5468 = vld [vmem:[%s2 + $0x43c] sm:$0xf]
      %v5469 = vld [vmem:[%s2 + $0x440] sm:$0xf]
      %v5470 = vld [vmem:[%s2 + $0x444] sm:$0xf]
      %v5471 = vld [vmem:[%s2 + $0x448] sm:$0xf]
      %v5472 = vld [vmem:[%s2 + $0x44c] sm:$0xf]
      %v5473 = vld [vmem:[%s2 + $0x450] sm:$0xf]
      %v5474 = vld [vmem:[%s2 + $0x454] sm:$0xf]
      %v5475 = vld [vmem:[%s2 + $0x458] sm:$0xf]
      %v5476 = vld [vmem:[%s2 + $0x45c] sm:$0xf]
      %v5477 = vld [vmem:[%s2 + $0x460] sm:$0xf]
      %v5478 = vld [vmem:[%s2 + $0x464] sm:$0xf]
      %v5479 = vld [vmem:[%s2 + $0x468] sm:$0xf]
      %v5480 = vld [vmem:[%s2 + $0x46c] sm:$0xf]
      %v5481 = vld [vmem:[%s2 + $0x470] sm:$0xf]
      %v5482 = vld [vmem:[%s2 + $0x474] sm:$0xf]
      %v5483 = vld [vmem:[%s2 + $0x478] sm:$0xf]
      %v5484 = vld [vmem:[%s2 + $0x47c] sm:$0xf]
      %v5773 = vunpack.c.l.b16 %v5197
      %v5774 = vunpack.c.l.b16 %v5198
      %v5775 = vunpack.c.l.b16 %v5199
      %v5776 = vunpack.c.l.b16 %v5200
      %v5777 = vunpack.c.l.b16 %v5201
      %v5778 = vunpack.c.l.b16 %v5202
      %v5779 = vunpack.c.l.b16 %v5203
      %v5780 = vunpack.c.l.b16 %v5204
      %v5781 = vunpack.c.l.b16 %v5205
      %v5782 = vunpack.c.l.b16 %v5206
      %v5783 = vunpack.c.l.b16 %v5207
      %v5784 = vunpack.c.l.b16 %v5208
      %v5785 = vunpack.c.l.b16 %v5209
      %v5786 = vunpack.c.l.b16 %v5210
      %v5787 = vunpack.c.l.b16 %v5211
      %v5788 = vunpack.c.l.b16 %v5212
      %v5789 = vunpack.c.l.b16 %v5213
      %v5790 = vunpack.c.l.b16 %v5214
      %v5791 = vunpack.c.l.b16 %v5215
      %v5792 = vunpack.c.l.b16 %v5216
      %v5793 = vunpack.c.l.b16 %v5217
      %v5794 = vunpack.c.l.b16 %v5218
      %v5795 = vunpack.c.l.b16 %v5219
      %v5796 = vunpack.c.l.b16 %v5220
      %v5797 = vunpack.c.l.b16 %v5221
      %v5798 = vunpack.c.l.b16 %v5222
      %v5799 = vunpack.c.l.b16 %v5223
      %v5800 = vunpack.c.l.b16 %v5224
      %v5801 = vunpack.c.l.b16 %v5225
      %v5802 = vunpack.c.l.b16 %v5226
      %v5803 = vunpack.c.l.b16 %v5227
      %v5804 = vunpack.c.l.b16 %v5228
      %v5805 = vunpack.c.l.b16 %v5229
      %v5806 = vunpack.c.l.b16 %v5230
      %v5807 = vunpack.c.l.b16 %v5231
      %v5808 = vunpack.c.l.b16 %v5232
      %v5809 = vunpack.c.l.b16 %v5233
      %v5810 = vunpack.c.l.b16 %v5234
      %v5811 = vunpack.c.l.b16 %v5235
      %v5812 = vunpack.c.l.b16 %v5236
      %v5813 = vunpack.c.l.b16 %v5237
      %v5814 = vunpack.c.l.b16 %v5238
      %v5815 = vunpack.c.l.b16 %v5239
      %v5816 = vunpack.c.l.b16 %v5240
      %v5817 = vunpack.c.l.b16 %v5241
      %v5818 = vunpack.c.l.b16 %v5242
      %v5819 = vunpack.c.l.b16 %v5243
      %v5820 = vunpack.c.l.b16 %v5244
      %v5821 = vunpack.c.l.b16 %v5245
      %v5822 = vunpack.c.l.b16 %v5246
      %v5823 = vunpack.c.l.b16 %v5247
      %v5824 = vunpack.c.l.b16 %v5248
      %v5825 = vunpack.c.l.b16 %v5249
      %v5826 = vunpack.c.l.b16 %v5250
      %v5827 = vunpack.c.l.b16 %v5251
      %v5828 = vunpack.c.l.b16 %v5252
      %v5829 = vunpack.c.l.b16 %v5253
      %v5830 = vunpack.c.l.b16 %v5254
      %v5831 = vunpack.c.l.b16 %v5255
      %v5832 = vunpack.c.l.b16 %v5256
      %v5833 = vunpack.c.l.b16 %v5257
      %v5834 = vunpack.c.l.b16 %v5258
      %v5835 = vunpack.c.l.b16 %v5259
      %v5836 = vunpack.c.l.b16 %v5260
      %v5837 = vunpack.c.l.b16 %v5261
      %v5838 = vunpack.c.l.b16 %v5262
      %v5839 = vunpack.c.l.b16 %v5263
      %v5840 = vunpack.c.l.b16 %v5264
      %v5841 = vunpack.c.l.b16 %v5265
      %v5842 = vunpack.c.l.b16 %v5266
      %v5843 = vunpack.c.l.b16 %v5267
      %v5844 = vunpack.c.l.b16 %v5268
      %v5845 = vunpack.c.l.b16 %v5269
      %v5846 = vunpack.c.l.b16 %v5270
      %v5847 = vunpack.c.l.b16 %v5271
      %v5848 = vunpack.c.l.b16 %v5272
      %v5849 = vunpack.c.l.b16 %v5273
      %v5850 = vunpack.c.l.b16 %v5274
      %v5851 = vunpack.c.l.b16 %v5275
      %v5852 = vunpack.c.l.b16 %v5276
      %v5853 = vunpack.c.l.b16 %v5277
      %v5854 = vunpack.c.l.b16 %v5278
      %v5855 = vunpack.c.l.b16 %v5279
      %v5856 = vunpack.c.l.b16 %v5280
      %v5857 = vunpack.c.l.b16 %v5281
      %v5858 = vunpack.c.l.b16 %v5282
      %v5859 = vunpack.c.l.b16 %v5283
      %v5860 = vunpack.c.l.b16 %v5284
      %v5861 = vunpack.c.l.b16 %v5285
      %v5862 = vunpack.c.l.b16 %v5286
      %v5863 = vunpack.c.l.b16 %v5287
      %v5864 = vunpack.c.l.b16 %v5288
      %v5865 = vunpack.c.l.b16 %v5289
      %v5866 = vunpack.c.l.b16 %v5290
      %v5867 = vunpack.c.l.b16 %v5291
      %v5868 = vunpack.c.l.b16 %v5292
      %v5869 = vunpack.c.l.b16 %v5293
      %v5870 = vunpack.c.l.b16 %v5294
      %v5871 = vunpack.c.l.b16 %v5295
      %v5872 = vunpack.c.l.b16 %v5296
      %v5873 = vunpack.c.l.b16 %v5297
      %v5874 = vunpack.c.l.b16 %v5298
      %v5875 = vunpack.c.l.b16 %v5299
      %v5876 = vunpack.c.l.b16 %v5300
      %v5877 = vunpack.c.l.b16 %v5301
      %v5878 = vunpack.c.l.b16 %v5302
      %v5879 = vunpack.c.l.b16 %v5303
      %v5880 = vunpack.c.l.b16 %v5304
      %v5881 = vunpack.c.l.b16 %v5305
      %v5882 = vunpack.c.l.b16 %v5306
      %v5883 = vunpack.c.l.b16 %v5307
      %v5884 = vunpack.c.l.b16 %v5308
      %v5885 = vunpack.c.l.b16 %v5309
      %v5886 = vunpack.c.l.b16 %v5310
      %v5887 = vunpack.c.l.b16 %v5311
      %v5888 = vunpack.c.l.b16 %v5312
      %v5889 = vunpack.c.l.b16 %v5313
      %v5890 = vunpack.c.l.b16 %v5314
      %v5891 = vunpack.c.l.b16 %v5315
      %v5892 = vunpack.c.l.b16 %v5316
      %v5893 = vunpack.c.l.b16 %v5317
      %v5894 = vunpack.c.l.b16 %v5318
      %v5895 = vunpack.c.l.b16 %v5319
      %v5896 = vunpack.c.l.b16 %v5320
      %v5897 = vunpack.c.l.b16 %v5321
      %v5898 = vunpack.c.l.b16 %v5322
      %v5899 = vunpack.c.l.b16 %v5323
      %v5900 = vunpack.c.l.b16 %v5324
      %v5901 = vunpack.c.l.b16 %v5325
      %v5902 = vunpack.c.l.b16 %v5326
      %v5903 = vunpack.c.l.b16 %v5327
      %v5904 = vunpack.c.l.b16 %v5328
      %v5905 = vunpack.c.l.b16 %v5329
      %v5906 = vunpack.c.l.b16 %v5330
      %v5907 = vunpack.c.l.b16 %v5331
      %v5908 = vunpack.c.l.b16 %v5332
      %v5909 = vunpack.c.l.b16 %v5333
      %v5910 = vunpack.c.l.b16 %v5334
      %v5911 = vunpack.c.l.b16 %v5335
      %v5912 = vunpack.c.l.b16 %v5336
      %v5913 = vunpack.c.l.b16 %v5337
      %v5914 = vunpack.c.l.b16 %v5338
      %v5915 = vunpack.c.l.b16 %v5339
      %v5916 = vunpack.c.l.b16 %v5340
      %v5917 = vunpack.c.l.b16 %v5341
      %v5918 = vunpack.c.l.b16 %v5342
      %v5919 = vunpack.c.l.b16 %v5343
      %v5920 = vunpack.c.l.b16 %v5344
      %v5921 = vunpack.c.l.b16 %v5345
      %v5922 = vunpack.c.l.b16 %v5346
      %v5923 = vunpack.c.l.b16 %v5347
      %v5924 = vunpack.c.l.b16 %v5348
      %v5925 = vunpack.c.l.b16 %v5349
      %v5926 = vunpack.c.l.b16 %v5350
      %v5927 = vunpack.c.l.b16 %v5351
      %v5928 = vunpack.c.l.b16 %v5352
      %v5929 = vunpack.c.l.b16 %v5353
      %v5930 = vunpack.c.l.b16 %v5354
      %v5931 = vunpack.c.l.b16 %v5355
      %v5932 = vunpack.c.l.b16 %v5356
      %v5933 = vunpack.c.l.b16 %v5357
      %v5934 = vunpack.c.l.b16 %v5358
      %v5935 = vunpack.c.l.b16 %v5359
      %v5936 = vunpack.c.l.b16 %v5360
      %v5937 = vunpack.c.l.b16 %v5361
      %v5938 = vunpack.c.l.b16 %v5362
      %v5939 = vunpack.c.l.b16 %v5363
      %v5940 = vunpack.c.l.b16 %v5364
      %v5941 = vunpack.c.l.b16 %v5365
      %v5942 = vunpack.c.l.b16 %v5366
      %v5943 = vunpack.c.l.b16 %v5367
      %v5944 = vunpack.c.l.b16 %v5368
      %v5945 = vunpack.c.l.b16 %v5369
      %v5946 = vunpack.c.l.b16 %v5370
      %v5947 = vunpack.c.l.b16 %v5371
      %v5948 = vunpack.c.l.b16 %v5372
      %v5949 = vunpack.c.l.b16 %v5373
      %v5950 = vunpack.c.l.b16 %v5374
      %v5951 = vunpack.c.l.b16 %v5375
      %v5952 = vunpack.c.l.b16 %v5376
      %v5953 = vunpack.c.l.b16 %v5377
      %v5954 = vunpack.c.l.b16 %v5378
      %v5955 = vunpack.c.l.b16 %v5379
      %v5956 = vunpack.c.l.b16 %v5380
      %v5957 = vunpack.c.l.b16 %v5381
      %v5958 = vunpack.c.l.b16 %v5382
      %v5959 = vunpack.c.l.b16 %v5383
      %v5960 = vunpack.c.l.b16 %v5384
      %v5961 = vunpack.c.l.b16 %v5385
      %v5962 = vunpack.c.l.b16 %v5386
      %v5963 = vunpack.c.l.b16 %v5387
      %v5964 = vunpack.c.l.b16 %v5388
      %v5965 = vunpack.c.l.b16 %v5389
      %v5966 = vunpack.c.l.b16 %v5390
      %v5967 = vunpack.c.l.b16 %v5391
      %v5968 = vunpack.c.l.b16 %v5392
      %v5969 = vunpack.c.l.b16 %v5393
      %v5970 = vunpack.c.l.b16 %v5394
      %v5971 = vunpack.c.l.b16 %v5395
      %v5972 = vunpack.c.l.b16 %v5396
      %v5973 = vunpack.c.l.b16 %v5397
      %v5974 = vunpack.c.l.b16 %v5398
      %v5975 = vunpack.c.l.b16 %v5399
      %v5976 = vunpack.c.l.b16 %v5400
      %v5977 = vunpack.c.l.b16 %v5401
      %v5978 = vunpack.c.l.b16 %v5402
      %v5979 = vunpack.c.l.b16 %v5403
      %v5980 = vunpack.c.l.b16 %v5404
      %v5981 = vunpack.c.l.b16 %v5405
      %v5982 = vunpack.c.l.b16 %v5406
      %v5983 = vunpack.c.l.b16 %v5407
      %v5984 = vunpack.c.l.b16 %v5408
      %v5985 = vunpack.c.l.b16 %v5409
      %v5986 = vunpack.c.l.b16 %v5410
      %v5987 = vunpack.c.l.b16 %v5411
      %v5988 = vunpack.c.l.b16 %v5412
      %v5989 = vunpack.c.l.b16 %v5413
      %v5990 = vunpack.c.l.b16 %v5414
      %v5991 = vunpack.c.l.b16 %v5415
      %v5992 = vunpack.c.l.b16 %v5416
      %v5993 = vunpack.c.l.b16 %v5417
      %v5994 = vunpack.c.l.b16 %v5418
      %v5995 = vunpack.c.l.b16 %v5419
      %v5996 = vunpack.c.l.b16 %v5420
      %v5997 = vunpack.c.l.b16 %v5421
      %v5998 = vunpack.c.l.b16 %v5422
      %v5999 = vunpack.c.l.b16 %v5423
      %v6000 = vunpack.c.l.b16 %v5424
      %v6001 = vunpack.c.l.b16 %v5425
      %v6002 = vunpack.c.l.b16 %v5426
      %v6003 = vunpack.c.l.b16 %v5427
      %v6004 = vunpack.c.l.b16 %v5428
      %v6005 = vunpack.c.l.b16 %v5429
      %v6006 = vunpack.c.l.b16 %v5430
      %v6007 = vunpack.c.l.b16 %v5431
      %v6008 = vunpack.c.l.b16 %v5432
      %v6009 = vunpack.c.l.b16 %v5433
      %v6010 = vunpack.c.l.b16 %v5434
      %v6011 = vunpack.c.l.b16 %v5435
      %v6012 = vunpack.c.l.b16 %v5436
      %v6013 = vunpack.c.l.b16 %v5437
      %v6014 = vunpack.c.l.b16 %v5438
      %v6015 = vunpack.c.l.b16 %v5439
      %v6016 = vunpack.c.l.b16 %v5440
      %v6017 = vunpack.c.l.b16 %v5441
      %v6018 = vunpack.c.l.b16 %v5442
      %v6019 = vunpack.c.l.b16 %v5443
      %v6020 = vunpack.c.l.b16 %v5444
      %v6021 = vunpack.c.l.b16 %v5445
      %v6022 = vunpack.c.l.b16 %v5446
      %v6023 = vunpack.c.l.b16 %v5447
      %v6024 = vunpack.c.l.b16 %v5448
      %v6025 = vunpack.c.l.b16 %v5449
      %v6026 = vunpack.c.l.b16 %v5450
      %v6027 = vunpack.c.l.b16 %v5451
      %v6028 = vunpack.c.l.b16 %v5452
      %v6029 = vunpack.c.l.b16 %v5453
      %v6030 = vunpack.c.l.b16 %v5454
      %v6031 = vunpack.c.l.b16 %v5455
      %v6032 = vunpack.c.l.b16 %v5456
      %v6033 = vunpack.c.l.b16 %v5457
      %v6034 = vunpack.c.l.b16 %v5458
      %v6035 = vunpack.c.l.b16 %v5459
      %v6036 = vunpack.c.l.b16 %v5460
      %v6037 = vunpack.c.l.b16 %v5461
      %v6038 = vunpack.c.l.b16 %v5462
      %v6039 = vunpack.c.l.b16 %v5463
      %v6040 = vunpack.c.l.b16 %v5464
      %v6041 = vunpack.c.l.b16 %v5465
      %v6042 = vunpack.c.l.b16 %v5466
      %v6043 = vunpack.c.l.b16 %v5467
      %v6044 = vunpack.c.l.b16 %v5468
      %v6045 = vunpack.c.l.b16 %v5469
      %v6046 = vunpack.c.l.b16 %v5470
      %v6047 = vunpack.c.l.b16 %v5471
      %v6048 = vunpack.c.l.b16 %v5472
      %v6049 = vunpack.c.l.b16 %v5473
      %v6050 = vunpack.c.l.b16 %v5474
      %v6051 = vunpack.c.l.b16 %v5475
      %v6052 = vunpack.c.l.b16 %v5476
      %v6053 = vunpack.c.l.b16 %v5477
      %v6054 = vunpack.c.l.b16 %v5478
      %v6055 = vunpack.c.l.b16 %v5479
      %v6056 = vunpack.c.l.b16 %v5480
      %v6057 = vunpack.c.l.b16 %v5481
      %v6058 = vunpack.c.l.b16 %v5482
      %v6059 = vunpack.c.l.b16 %v5483
      %v6060 = vunpack.c.l.b16 %v5484
      %v6061 = vpack.c.b16 %v5774, %v5773
      %v6062 = vpack.c.b16 %v5776, %v5775
      %v6063 = vpack.c.b16 %v5778, %v5777
      %v6064 = vpack.c.b16 %v5780, %v5779
      %v6065 = vpack.c.b16 %v5782, %v5781
      %v6066 = vpack.c.b16 %v5784, %v5783
      %v6067 = vpack.c.b16 %v5786, %v5785
      %v6068 = vpack.c.b16 %v5788, %v5787
      %v6069 = vpack.c.b16 %v5790, %v5789
      %v6070 = vpack.c.b16 %v5792, %v5791
      %v6071 = vpack.c.b16 %v5794, %v5793
      %v6072 = vpack.c.b16 %v5796, %v5795
      %v6073 = vpack.c.b16 %v5798, %v5797
      %v6074 = vpack.c.b16 %v5800, %v5799
      %v6075 = vpack.c.b16 %v5802, %v5801
      %v6076 = vpack.c.b16 %v5804, %v5803
      %v6077 = vpack.c.b16 %v5806, %v5805
      %v6078 = vpack.c.b16 %v5808, %v5807
      %v6079 = vpack.c.b16 %v5810, %v5809
      %v6080 = vpack.c.b16 %v5812, %v5811
      %v6081 = vpack.c.b16 %v5814, %v5813
      %v6082 = vpack.c.b16 %v5816, %v5815
      %v6083 = vpack.c.b16 %v5818, %v5817
      %v6084 = vpack.c.b16 %v5820, %v5819
      %v6085 = vpack.c.b16 %v5822, %v5821
      %v6086 = vpack.c.b16 %v5824, %v5823
      %v6087 = vpack.c.b16 %v5826, %v5825
      %v6088 = vpack.c.b16 %v5828, %v5827
      %v6089 = vpack.c.b16 %v5830, %v5829
      %v6090 = vpack.c.b16 %v5832, %v5831
      %v6091 = vpack.c.b16 %v5834, %v5833
      %v6092 = vpack.c.b16 %v5836, %v5835
      %v6093 = vpack.c.b16 %v5838, %v5837
      %v6094 = vpack.c.b16 %v5840, %v5839
      %v6095 = vpack.c.b16 %v5842, %v5841
      %v6096 = vpack.c.b16 %v5844, %v5843
      %v6097 = vpack.c.b16 %v5846, %v5845
      %v6098 = vpack.c.b16 %v5848, %v5847
      %v6099 = vpack.c.b16 %v5850, %v5849
      %v6100 = vpack.c.b16 %v5852, %v5851
      %v6101 = vpack.c.b16 %v5854, %v5853
      %v6102 = vpack.c.b16 %v5856, %v5855
      %v6103 = vpack.c.b16 %v5858, %v5857
      %v6104 = vpack.c.b16 %v5860, %v5859
      %v6105 = vpack.c.b16 %v5862, %v5861
      %v6106 = vpack.c.b16 %v5864, %v5863
      %v6107 = vpack.c.b16 %v5866, %v5865
      %v6108 = vpack.c.b16 %v5868, %v5867
      %v6109 = vpack.c.b16 %v5870, %v5869
      %v6110 = vpack.c.b16 %v5872, %v5871
      %v6111 = vpack.c.b16 %v5874, %v5873
      %v6112 = vpack.c.b16 %v5876, %v5875
      %v6113 = vpack.c.b16 %v5878, %v5877
      %v6114 = vpack.c.b16 %v5880, %v5879
      %v6115 = vpack.c.b16 %v5882, %v5881
      %v6116 = vpack.c.b16 %v5884, %v5883
      %v6117 = vpack.c.b16 %v5886, %v5885
      %v6118 = vpack.c.b16 %v5888, %v5887
      %v6119 = vpack.c.b16 %v5890, %v5889
      %v6120 = vpack.c.b16 %v5892, %v5891
      %v6121 = vpack.c.b16 %v5894, %v5893
      %v6122 = vpack.c.b16 %v5896, %v5895
      %v6123 = vpack.c.b16 %v5898, %v5897
      %v6124 = vpack.c.b16 %v5900, %v5899
      %v6125 = vpack.c.b16 %v5902, %v5901
      %v6126 = vpack.c.b16 %v5904, %v5903
      %v6127 = vpack.c.b16 %v5906, %v5905
      %v6128 = vpack.c.b16 %v5908, %v5907
      %v6129 = vpack.c.b16 %v5910, %v5909
      %v6130 = vpack.c.b16 %v5912, %v5911
      %v6131 = vpack.c.b16 %v5914, %v5913
      %v6132 = vpack.c.b16 %v5916, %v5915
      %v6133 = vpack.c.b16 %v5918, %v5917
      %v6134 = vpack.c.b16 %v5920, %v5919
      %v6135 = vpack.c.b16 %v5922, %v5921
      %v6136 = vpack.c.b16 %v5924, %v5923
      %v6137 = vpack.c.b16 %v5926, %v5925
      %v6138 = vpack.c.b16 %v5928, %v5927
      %v6139 = vpack.c.b16 %v5930, %v5929
      %v6140 = vpack.c.b16 %v5932, %v5931
      %v6141 = vpack.c.b16 %v5934, %v5933
      %v6142 = vpack.c.b16 %v5936, %v5935
      %v6143 = vpack.c.b16 %v5938, %v5937
      %v6144 = vpack.c.b16 %v5940, %v5939
      %v6145 = vpack.c.b16 %v5942, %v5941
      %v6146 = vpack.c.b16 %v5944, %v5943
      %v6147 = vpack.c.b16 %v5946, %v5945
      %v6148 = vpack.c.b16 %v5948, %v5947
      %v6149 = vpack.c.b16 %v5950, %v5949
      %v6150 = vpack.c.b16 %v5952, %v5951
      %v6151 = vpack.c.b16 %v5954, %v5953
      %v6152 = vpack.c.b16 %v5956, %v5955
      %v6153 = vpack.c.b16 %v5958, %v5957
      %v6154 = vpack.c.b16 %v5960, %v5959
      %v6155 = vpack.c.b16 %v5962, %v5961
      %v6156 = vpack.c.b16 %v5964, %v5963
      %v6157 = vpack.c.b16 %v5966, %v5965
      %v6158 = vpack.c.b16 %v5968, %v5967
      %v6159 = vpack.c.b16 %v5970, %v5969
      %v6160 = vpack.c.b16 %v5972, %v5971
      %v6161 = vpack.c.b16 %v5974, %v5973
      %v6162 = vpack.c.b16 %v5976, %v5975
      %v6163 = vpack.c.b16 %v5978, %v5977
      %v6164 = vpack.c.b16 %v5980, %v5979
      %v6165 = vpack.c.b16 %v5982, %v5981
      %v6166 = vpack.c.b16 %v5984, %v5983
      %v6167 = vpack.c.b16 %v5986, %v5985
      %v6168 = vpack.c.b16 %v5988, %v5987
      %v6169 = vpack.c.b16 %v5990, %v5989
      %v6170 = vpack.c.b16 %v5992, %v5991
      %v6171 = vpack.c.b16 %v5994, %v5993
      %v6172 = vpack.c.b16 %v5996, %v5995
      %v6173 = vpack.c.b16 %v5998, %v5997
      %v6174 = vpack.c.b16 %v6000, %v5999
      %v6175 = vpack.c.b16 %v6002, %v6001
      %v6176 = vpack.c.b16 %v6004, %v6003
      %v6177 = vpack.c.b16 %v6006, %v6005
      %v6178 = vpack.c.b16 %v6008, %v6007
      %v6179 = vpack.c.b16 %v6010, %v6009
      %v6180 = vpack.c.b16 %v6012, %v6011
      %v6181 = vpack.c.b16 %v6014, %v6013
      %v6182 = vpack.c.b16 %v6016, %v6015
      %v6183 = vpack.c.b16 %v6018, %v6017
      %v6184 = vpack.c.b16 %v6020, %v6019
      %v6185 = vpack.c.b16 %v6022, %v6021
      %v6186 = vpack.c.b16 %v6024, %v6023
      %v6187 = vpack.c.b16 %v6026, %v6025
      %v6188 = vpack.c.b16 %v6028, %v6027
      %v6189 = vpack.c.b16 %v6030, %v6029
      %v6190 = vpack.c.b16 %v6032, %v6031
      %v6191 = vpack.c.b16 %v6034, %v6033
      %v6192 = vpack.c.b16 %v6036, %v6035
      %v6193 = vpack.c.b16 %v6038, %v6037
      %v6194 = vpack.c.b16 %v6040, %v6039
      %v6195 = vpack.c.b16 %v6042, %v6041
      %v6196 = vpack.c.b16 %v6044, %v6043
      %v6197 = vpack.c.b16 %v6046, %v6045
      %v6198 = vpack.c.b16 %v6048, %v6047
      %v6199 = vpack.c.b16 %v6050, %v6049
      %v6200 = vpack.c.b16 %v6052, %v6051
      %v6201 = vpack.c.b16 %v6054, %v6053
      %v6202 = vpack.c.b16 %v6056, %v6055
      %v6203 = vpack.c.b16 %v6058, %v6057
      %v6204 = vpack.c.b16 %v6060, %v6059
      %6349 = vmatprep.subr.bf16.mxu0 0
      %6350 = vmatpush1.bf16.msra.mxu0 %v6068
      %6351 = vmatprep.subr.bf16.mxu0 0
      %6352 = vmatpush1.bf16.msra.mxu0 %v6067
      %6353 = vmatprep.subr.bf16.mxu0 0
      %6354 = vmatpush1.bf16.msra.mxu0 %v6066
      %6355 = vmatprep.subr.bf16.mxu0 0
      %6356 = vmatpush1.bf16.msra.mxu0 %v6065
      %6357 = vmatprep.subr.bf16.mxu0 0
      %6358 = vmatpush1.bf16.msra.mxu0 %v6064
      %6359 = vmatprep.subr.bf16.mxu0 0
      %6360 = vmatpush1.bf16.msra.mxu0 %v6063
      %6361 = vmatprep.subr.bf16.mxu0 0
      %6362 = vmatpush1.bf16.msra.mxu0 %v6062
      %6363 = vmatprep.subr.bf16.mxu0 0
      %6364 = vmatpush1.bf16.msra.mxu0 %v6061
      %6365 = vmatprep.subr.bf16.mxu0 0
      %6366 = vmatpush2.bf16.msra.mxu0 %v6076
      %6367 = vmatprep.subr.bf16.mxu0 0
      %6368 = vmatpush2.bf16.msra.mxu0 %v6075
      %6369 = vmatprep.subr.bf16.mxu0 0
      %6370 = vmatpush2.bf16.msra.mxu0 %v6074
      %6371 = vmatprep.subr.bf16.mxu0 0
      %6372 = vmatpush2.bf16.msra.mxu0 %v6073
      %6373 = vmatprep.subr.bf16.mxu0 0
      %6374 = vmatpush2.bf16.msra.mxu0 %v6072
      %6375 = vmatprep.subr.bf16.mxu0 0
      %6376 = vmatpush2.bf16.msra.mxu0 %v6071
      %6377 = vmatprep.subr.bf16.mxu0 0
      %6378 = vmatpush2.bf16.msra.mxu0 %v6070
      %6379 = vmatprep.subr.bf16.mxu0 0
      %6380 = vmatpush2.bf16.msra.mxu0 %v6069
      %6381 = vmatprep.mubr.bf16.mxu0 %v4077
      %6382 = vmatmul.mubr.bf16.gmra.mxu0 %v3997
      %v6383 = vpop.f32.mrf.mxu0
      %v6384 = vadd.f32 0.0, %v6383
      %v6385 = vpop.f32.mrf.mxu0
      %v6386 = vpop.f32.mrf.mxu0
      %v6387 = vadd.f32 0.0, %v6386
      %v6388 = vpop.f32.mrf.mxu0
      %6389 = vmatprep.mubr.bf16.mxu0 %v4078
      %6390 = vmatmul.mubr.bf16.gmra.mxu0 %v3998
      %v6391 = vpop.f32.mrf.mxu0
      %v6392 = vadd.f32 0.0, %v6391
      %v6393 = vpop.f32.mrf.mxu0
      %v6394 = vpop.f32.mrf.mxu0
      %v6395 = vadd.f32 0.0, %v6394
      %v6396 = vpop.f32.mrf.mxu0
      %6397 = vmatprep.mubr.bf16.mxu0 %v4079
      %6398 = vmatmul.mubr.bf16.gmra.mxu0 %v3999
      %v6399 = vpop.f32.mrf.mxu0
      %v6400 = vadd.f32 0.0, %v6399
      %v6401 = vpop.f32.mrf.mxu0
      %v6402 = vpop.f32.mrf.mxu0
      %v6403 = vadd.f32 0.0, %v6402
      %v6404 = vpop.f32.mrf.mxu0
      %6405 = vmatprep.mubr.bf16.mxu0 %v4080
      %6406 = vmatmul.mubr.bf16.gmra.mxu0 %v4000
      %v6407 = vpop.f32.mrf.mxu0
      %v6408 = vadd.f32 0.0, %v6407
      %v6409 = vpop.f32.mrf.mxu0
      %v6410 = vpop.f32.mrf.mxu0
      %v6411 = vadd.f32 0.0, %v6410
      %v6412 = vpop.f32.mrf.mxu0
      %6413 = vmatprep.mubr.bf16.mxu0 %v4081
      %6414 = vmatmul.mubr.bf16.gmra.mxu0 %v4001
      %v6415 = vpop.f32.mrf.mxu0
      %v6416 = vadd.f32 0.0, %v6415
      %v6417 = vpop.f32.mrf.mxu0
      %v6418 = vpop.f32.mrf.mxu0
      %v6419 = vadd.f32 0.0, %v6418
      %v6420 = vpop.f32.mrf.mxu0
      %6421 = vmatprep.mubr.bf16.mxu0 %v4082
      %6422 = vmatmul.mubr.bf16.gmra.mxu0 %v4002
      %v6423 = vpop.f32.mrf.mxu0
      %v6424 = vadd.f32 0.0, %v6423
      %v6425 = vpop.f32.mrf.mxu0
      %v6426 = vpop.f32.mrf.mxu0
      %v6427 = vadd.f32 0.0, %v6426
      %v6428 = vpop.f32.mrf.mxu0
      %6429 = vmatprep.mubr.bf16.mxu0 %v4083
      %6430 = vmatmul.mubr.bf16.gmra.mxu0 %v4003
      %v6431 = vpop.f32.mrf.mxu0
      %v6432 = vadd.f32 0.0, %v6431
      %v6433 = vpop.f32.mrf.mxu0
      %v6434 = vpop.f32.mrf.mxu0
      %v6435 = vadd.f32 0.0, %v6434
      %v6436 = vpop.f32.mrf.mxu0
      %6437 = vmatprep.mubr.bf16.mxu0 %v4084
      %6438 = vmatmul.mubr.bf16.gmra.mxu0 %v4004
      %v6439 = vpop.f32.mrf.mxu0
      %v6440 = vadd.f32 0.0, %v6439
      %v6441 = vpop.f32.mrf.mxu0
      %v6442 = vpop.f32.mrf.mxu0
      %v6443 = vadd.f32 0.0, %v6442
      %v6444 = vpop.f32.mrf.mxu0
      %6445 = vmatprep.mubr.bf16.mxu0 %v4085
      %6446 = vmatmul.mubr.bf16.gmra.mxu0 %v4005
      %v6447 = vpop.f32.mrf.mxu0
      %v6448 = vadd.f32 0.0, %v6447
      %v6449 = vpop.f32.mrf.mxu0
      %v6450 = vpop.f32.mrf.mxu0
      %v6451 = vadd.f32 0.0, %v6450
      %v6452 = vpop.f32.mrf.mxu0
      %6453 = vmatprep.mubr.bf16.mxu0 %v4086
      %6454 = vmatmul.mubr.bf16.gmra.mxu0 %v4006
      %v6455 = vpop.f32.mrf.mxu0
      %v6456 = vadd.f32 0.0, %v6455
      %v6457 = vpop.f32.mrf.mxu0
      %v6458 = vpop.f32.mrf.mxu0
      %v6459 = vadd.f32 0.0, %v6458
      %v6460 = vpop.f32.mrf.mxu0
      %6461 = vmatprep.mubr.bf16.mxu0 %v4087
      %6462 = vmatmul.mubr.bf16.gmra.mxu0 %v4007
      %v6463 = vpop.f32.mrf.mxu0
      %v6464 = vadd.f32 0.0, %v6463
      %v6465 = vpop.f32.mrf.mxu0
      %v6466 = vpop.f32.mrf.mxu0
      %v6467 = vadd.f32 0.0, %v6466
      %v6468 = vpop.f32.mrf.mxu0
      %6469 = vmatprep.mubr.bf16.mxu0 %v4088
      %6470 = vmatmul.mubr.bf16.gmra.mxu0 %v4008
      %v6471 = vpop.f32.mrf.mxu0
      %v6472 = vadd.f32 0.0, %v6471
      %v6473 = vpop.f32.mrf.mxu0
      %v6474 = vpop.f32.mrf.mxu0
      %v6475 = vadd.f32 0.0, %v6474
      %v6476 = vpop.f32.mrf.mxu0
      %6477 = vmatprep.mubr.bf16.mxu0 %v4089
      %6478 = vmatmul.mubr.bf16.gmra.mxu0 %v4009
      %v6479 = vpop.f32.mrf.mxu0
      %v6480 = vadd.f32 0.0, %v6479
      %v6481 = vpop.f32.mrf.mxu0
      %v6482 = vpop.f32.mrf.mxu0
      %v6483 = vadd.f32 0.0, %v6482
      %v6484 = vpop.f32.mrf.mxu0
      %6485 = vmatprep.mubr.bf16.mxu0 %v4090
      %6486 = vmatmul.mubr.bf16.gmra.mxu0 %v4010
      %v6487 = vpop.f32.mrf.mxu0
      %v6488 = vadd.f32 0.0, %v6487
      %v6489 = vpop.f32.mrf.mxu0
      %v6490 = vpop.f32.mrf.mxu0
      %v6491 = vadd.f32 0.0, %v6490
      %v6492 = vpop.f32.mrf.mxu0
      %6493 = vmatprep.mubr.bf16.mxu0 %v4091
      %6494 = vmatmul.mubr.bf16.gmra.mxu0 %v4011
      %v6495 = vpop.f32.mrf.mxu0
      %v6496 = vadd.f32 0.0, %v6495
      %v6497 = vpop.f32.mrf.mxu0
      %v6498 = vpop.f32.mrf.mxu0
      %v6499 = vadd.f32 0.0, %v6498
      %v6500 = vpop.f32.mrf.mxu0
      %6501 = vmatprep.mubr.bf16.mxu0 %v4092
      %6502 = vmatmul.mubr.bf16.gmra.mxu0 %v4012
      %v6503 = vpop.f32.mrf.mxu0
      %v6504 = vadd.f32 0.0, %v6503
      %v6505 = vpop.f32.mrf.mxu0
      %v6506 = vpop.f32.mrf.mxu0
      %v6507 = vadd.f32 0.0, %v6506
      %v6508 = vpop.f32.mrf.mxu0
      %6509 = vdwg.mxu0
      %6510 = vmatprep.subr.bf16.mxu0 0
      %6511 = vmatpush1.bf16.msra.mxu0 %v6084
      %6512 = vmatprep.subr.bf16.mxu0 0
      %6513 = vmatpush1.bf16.msra.mxu0 %v6083
      %6514 = vmatprep.subr.bf16.mxu0 0
      %6515 = vmatpush1.bf16.msra.mxu0 %v6082
      %6516 = vmatprep.subr.bf16.mxu0 0
      %6517 = vmatpush1.bf16.msra.mxu0 %v6081
      %6518 = vmatprep.subr.bf16.mxu0 0
      %6519 = vmatpush1.bf16.msra.mxu0 %v6080
      %6520 = vmatprep.subr.bf16.mxu0 0
      %6521 = vmatpush1.bf16.msra.mxu0 %v6079
      %6522 = vmatprep.subr.bf16.mxu0 0
      %6523 = vmatpush1.bf16.msra.mxu0 %v6078
      %6524 = vmatprep.subr.bf16.mxu0 0
      %6525 = vmatpush1.bf16.msra.mxu0 %v6077
      %6526 = vmatprep.subr.bf16.mxu0 0
      %6527 = vmatpush2.bf16.msra.mxu0 %v6092
      %6528 = vmatprep.subr.bf16.mxu0 0
      %6529 = vmatpush2.bf16.msra.mxu0 %v6091
      %6530 = vmatprep.subr.bf16.mxu0 0
      %6531 = vmatpush2.bf16.msra.mxu0 %v6090
      %6532 = vmatprep.subr.bf16.mxu0 0
      %6533 = vmatpush2.bf16.msra.mxu0 %v6089
      %6534 = vmatprep.subr.bf16.mxu0 0
      %6535 = vmatpush2.bf16.msra.mxu0 %v6088
      %6536 = vmatprep.subr.bf16.mxu0 0
      %6537 = vmatpush2.bf16.msra.mxu0 %v6087
      %6538 = vmatprep.subr.bf16.mxu0 0
      %6539 = vmatpush2.bf16.msra.mxu0 %v6086
      %6540 = vmatprep.subr.bf16.mxu0 0
      %6541 = vmatpush2.bf16.msra.mxu0 %v6085
      %6542 = vmatprep.mubr.bf16.mxu0 %v4205
      %6543 = vmatmul.mubr.bf16.gmra.mxu0 %v4141
      %v6544 = vpop.f32.mrf.mxu0
      %v6545 = vadd.f32 %v6384, %v6544
      %v6546 = vpop.f32.mrf.mxu0
      %v6547 = vpop.f32.mrf.mxu0
      %v6548 = vadd.f32 %v6387, %v6547
      %v6549 = vpop.f32.mrf.mxu0
      %6550 = vmatprep.mubr.bf16.mxu0 %v4206
      %6551 = vmatmul.mubr.bf16.gmra.mxu0 %v4142
      %v6552 = vpop.f32.mrf.mxu0
      %v6553 = vadd.f32 %v6392, %v6552
      %v6554 = vpop.f32.mrf.mxu0
      %v6555 = vpop.f32.mrf.mxu0
      %v6556 = vadd.f32 %v6395, %v6555
      %v6557 = vpop.f32.mrf.mxu0
      %6558 = vmatprep.mubr.bf16.mxu0 %v4207
      %6559 = vmatmul.mubr.bf16.gmra.mxu0 %v4143
      %v6560 = vpop.f32.mrf.mxu0
      %v6561 = vadd.f32 %v6400, %v6560
      %v6562 = vpop.f32.mrf.mxu0
      %v6563 = vpop.f32.mrf.mxu0
      %v6564 = vadd.f32 %v6403, %v6563
      %v6565 = vpop.f32.mrf.mxu0
      %6566 = vmatprep.mubr.bf16.mxu0 %v4208
      %6567 = vmatmul.mubr.bf16.gmra.mxu0 %v4144
      %v6568 = vpop.f32.mrf.mxu0
      %v6569 = vadd.f32 %v6408, %v6568
      %v6570 = vpop.f32.mrf.mxu0
      %v6571 = vpop.f32.mrf.mxu0
      %v6572 = vadd.f32 %v6411, %v6571
      %v6573 = vpop.f32.mrf.mxu0
      %6574 = vmatprep.mubr.bf16.mxu0 %v4209
      %6575 = vmatmul.mubr.bf16.gmra.mxu0 %v4145
      %v6576 = vpop.f32.mrf.mxu0
      %v6577 = vadd.f32 %v6416, %v6576
      %v6578 = vpop.f32.mrf.mxu0
      %v6579 = vpop.f32.mrf.mxu0
      %v6580 = vadd.f32 %v6419, %v6579
      %v6581 = vpop.f32.mrf.mxu0
      %6582 = vmatprep.mubr.bf16.mxu0 %v4210
      %6583 = vmatmul.mubr.bf16.gmra.mxu0 %v4146
      %v6584 = vpop.f32.mrf.mxu0
      %v6585 = vadd.f32 %v6424, %v6584
      %v6586 = vpop.f32.mrf.mxu0
      %v6587 = vpop.f32.mrf.mxu0
      %v6588 = vadd.f32 %v6427, %v6587
      %v6589 = vpop.f32.mrf.mxu0
      %6590 = vmatprep.mubr.bf16.mxu0 %v4211
      %6591 = vmatmul.mubr.bf16.gmra.mxu0 %v4147
      %v6592 = vpop.f32.mrf.mxu0
      %v6593 = vadd.f32 %v6432, %v6592
      %v6594 = vpop.f32.mrf.mxu0
      %v6595 = vpop.f32.mrf.mxu0
      %v6596 = vadd.f32 %v6435, %v6595
      %v6597 = vpop.f32.mrf.mxu0
      %6598 = vmatprep.mubr.bf16.mxu0 %v4212
      %6599 = vmatmul.mubr.bf16.gmra.mxu0 %v4148
      %v6600 = vpop.f32.mrf.mxu0
      %v6601 = vadd.f32 %v6440, %v6600
      %v6602 = vpop.f32.mrf.mxu0
      %v6603 = vpop.f32.mrf.mxu0
      %v6604 = vadd.f32 %v6443, %v6603
      %v6605 = vpop.f32.mrf.mxu0
      %6606 = vmatprep.mubr.bf16.mxu0 %v4213
      %6607 = vmatmul.mubr.bf16.gmra.mxu0 %v4149
      %v6608 = vpop.f32.mrf.mxu0
      %v6609 = vadd.f32 %v6448, %v6608
      %v6610 = vpop.f32.mrf.mxu0
      %v6611 = vpop.f32.mrf.mxu0
      %v6612 = vadd.f32 %v6451, %v6611
      %v6613 = vpop.f32.mrf.mxu0
      %6614 = vmatprep.mubr.bf16.mxu0 %v4214
      %6615 = vmatmul.mubr.bf16.gmra.mxu0 %v4150
      %v6616 = vpop.f32.mrf.mxu0
      %v6617 = vadd.f32 %v6456, %v6616
      %v6618 = vpop.f32.mrf.mxu0
      %v6619 = vpop.f32.mrf.mxu0
      %v6620 = vadd.f32 %v6459, %v6619
      %v6621 = vpop.f32.mrf.mxu0
      %6622 = vmatprep.mubr.bf16.mxu0 %v4215
      %6623 = vmatmul.mubr.bf16.gmra.mxu0 %v4151
      %v6624 = vpop.f32.mrf.mxu0
      %v6625 = vadd.f32 %v6464, %v6624
      %v6626 = vpop.f32.mrf.mxu0
      %v6627 = vpop.f32.mrf.mxu0
      %v6628 = vadd.f32 %v6467, %v6627
      %v6629 = vpop.f32.mrf.mxu0
      %6630 = vmatprep.mubr.bf16.mxu0 %v4216
      %6631 = vmatmul.mubr.bf16.gmra.mxu0 %v4152
      %v6632 = vpop.f32.mrf.mxu0
      %v6633 = vadd.f32 %v6472, %v6632
      %v6634 = vpop.f32.mrf.mxu0
      %v6635 = vpop.f32.mrf.mxu0
      %v6636 = vadd.f32 %v6475, %v6635
      %v6637 = vpop.f32.mrf.mxu0
      %6638 = vmatprep.mubr.bf16.mxu0 %v4217
      %6639 = vmatmul.mubr.bf16.gmra.mxu0 %v4153
      %v6640 = vpop.f32.mrf.mxu0
      %v6641 = vadd.f32 %v6480, %v6640
      %v6642 = vpop.f32.mrf.mxu0
      %v6643 = vpop.f32.mrf.mxu0
      %v6644 = vadd.f32 %v6483, %v6643
      %v6645 = vpop.f32.mrf.mxu0
      %6646 = vmatprep.mubr.bf16.mxu0 %v4218
      %6647 = vmatmul.mubr.bf16.gmra.mxu0 %v4154
      %v6648 = vpop.f32.mrf.mxu0
      %v6649 = vadd.f32 %v6488, %v6648
      %v6650 = vpop.f32.mrf.mxu0
      %v6651 = vpop.f32.mrf.mxu0
      %v6652 = vadd.f32 %v6491, %v6651
      %v6653 = vpop.f32.mrf.mxu0
      %6654 = vmatprep.mubr.bf16.mxu0 %v4219
      %6655 = vmatmul.mubr.bf16.gmra.mxu0 %v4155
      %v6656 = vpop.f32.mrf.mxu0
      %v6657 = vadd.f32 %v6496, %v6656
      %v6658 = vpop.f32.mrf.mxu0
      %v6659 = vpop.f32.mrf.mxu0
      %v6660 = vadd.f32 %v6499, %v6659
      %v6661 = vpop.f32.mrf.mxu0
      %6662 = vmatprep.mubr.bf16.mxu0 %v4220
      %6663 = vmatmul.mubr.bf16.gmra.mxu0 %v4156
      %v6664 = vpop.f32.mrf.mxu0
      %v6665 = vadd.f32 %v6504, %v6664
      %v6666 = vpop.f32.mrf.mxu0
      %v6667 = vpop.f32.mrf.mxu0
      %v6668 = vadd.f32 %v6507, %v6667
      %v6669 = vpop.f32.mrf.mxu0
      %6670 = vdwg.mxu0
      %6671 = vmatprep.subr.bf16.mxu0 0
      %6672 = vmatpush1.bf16.msra.mxu0 %v6100
      %6673 = vmatprep.subr.bf16.mxu0 0
      %6674 = vmatpush1.bf16.msra.mxu0 %v6099
      %6675 = vmatprep.subr.bf16.mxu0 0
      %6676 = vmatpush1.bf16.msra.mxu0 %v6098
      %6677 = vmatprep.subr.bf16.mxu0 0
      %6678 = vmatpush1.bf16.msra.mxu0 %v6097
      %6679 = vmatprep.subr.bf16.mxu0 0
      %6680 = vmatpush1.bf16.msra.mxu0 %v6096
      %6681 = vmatprep.subr.bf16.mxu0 0
      %6682 = vmatpush1.bf16.msra.mxu0 %v6095
      %6683 = vmatprep.subr.bf16.mxu0 0
      %6684 = vmatpush1.bf16.msra.mxu0 %v6094
      %6685 = vmatprep.subr.bf16.mxu0 0
      %6686 = vmatpush1.bf16.msra.mxu0 %v6093
      %6687 = vmatprep.subr.bf16.mxu0 0
      %6688 = vmatpush2.bf16.msra.mxu0 %v6108
      %6689 = vmatprep.subr.bf16.mxu0 0
      %6690 = vmatpush2.bf16.msra.mxu0 %v6107
      %6691 = vmatprep.subr.bf16.mxu0 0
      %6692 = vmatpush2.bf16.msra.mxu0 %v6106
      %6693 = vmatprep.subr.bf16.mxu0 0
      %6694 = vmatpush2.bf16.msra.mxu0 %v6105
      %6695 = vmatprep.subr.bf16.mxu0 0
      %6696 = vmatpush2.bf16.msra.mxu0 %v6104
      %6697 = vmatprep.subr.bf16.mxu0 0
      %6698 = vmatpush2.bf16.msra.mxu0 %v6103
      %6699 = vmatprep.subr.bf16.mxu0 0
      %6700 = vmatpush2.bf16.msra.mxu0 %v6102
      %6701 = vmatprep.subr.bf16.mxu0 0
      %6702 = vmatpush2.bf16.msra.mxu0 %v6101
      %6703 = vmatprep.mubr.bf16.mxu0 %v4333
      %6704 = vmatmul.mubr.bf16.gmra.mxu0 %v4269
      %v6705 = vpop.f32.mrf.mxu0
      %v6706 = vadd.f32 %v6545, %v6705
      %v6707 = vpop.f32.mrf.mxu0
      %v6708 = vpop.f32.mrf.mxu0
      %v6709 = vadd.f32 %v6548, %v6708
      %v6710 = vpop.f32.mrf.mxu0
      %6711 = vmatprep.mubr.bf16.mxu0 %v4334
      %6712 = vmatmul.mubr.bf16.gmra.mxu0 %v4270
      %v6713 = vpop.f32.mrf.mxu0
      %v6714 = vadd.f32 %v6553, %v6713
      %v6715 = vpop.f32.mrf.mxu0
      %v6716 = vpop.f32.mrf.mxu0
      %v6717 = vadd.f32 %v6556, %v6716
      %v6718 = vpop.f32.mrf.mxu0
      %6719 = vmatprep.mubr.bf16.mxu0 %v4335
      %6720 = vmatmul.mubr.bf16.gmra.mxu0 %v4271
      %v6721 = vpop.f32.mrf.mxu0
      %v6722 = vadd.f32 %v6561, %v6721
      %v6723 = vpop.f32.mrf.mxu0
      %v6724 = vpop.f32.mrf.mxu0
      %v6725 = vadd.f32 %v6564, %v6724
      %v6726 = vpop.f32.mrf.mxu0
      %6727 = vmatprep.mubr.bf16.mxu0 %v4336
      %6728 = vmatmul.mubr.bf16.gmra.mxu0 %v4272
      %v6729 = vpop.f32.mrf.mxu0
      %v6730 = vadd.f32 %v6569, %v6729
      %v6731 = vpop.f32.mrf.mxu0
      %v6732 = vpop.f32.mrf.mxu0
      %v6733 = vadd.f32 %v6572, %v6732
      %v6734 = vpop.f32.mrf.mxu0
      %6735 = vmatprep.mubr.bf16.mxu0 %v4337
      %6736 = vmatmul.mubr.bf16.gmra.mxu0 %v4273
      %v6737 = vpop.f32.mrf.mxu0
      %v6738 = vadd.f32 %v6577, %v6737
      %v6739 = vpop.f32.mrf.mxu0
      %v6740 = vpop.f32.mrf.mxu0
      %v6741 = vadd.f32 %v6580, %v6740
      %v6742 = vpop.f32.mrf.mxu0
      %6743 = vmatprep.mubr.bf16.mxu0 %v4338
      %6744 = vmatmul.mubr.bf16.gmra.mxu0 %v4274
      %v6745 = vpop.f32.mrf.mxu0
      %v6746 = vadd.f32 %v6585, %v6745
      %v6747 = vpop.f32.mrf.mxu0
      %v6748 = vpop.f32.mrf.mxu0
      %v6749 = vadd.f32 %v6588, %v6748
      %v6750 = vpop.f32.mrf.mxu0
      %6751 = vmatprep.mubr.bf16.mxu0 %v4339
      %6752 = vmatmul.mubr.bf16.gmra.mxu0 %v4275
      %v6753 = vpop.f32.mrf.mxu0
      %v6754 = vadd.f32 %v6593, %v6753
      %v6755 = vpop.f32.mrf.mxu0
      %v6756 = vpop.f32.mrf.mxu0
      %v6757 = vadd.f32 %v6596, %v6756
      %v6758 = vpop.f32.mrf.mxu0
      %6759 = vmatprep.mubr.bf16.mxu0 %v4340
      %6760 = vmatmul.mubr.bf16.gmra.mxu0 %v4276
      %v6761 = vpop.f32.mrf.mxu0
      %v6762 = vadd.f32 %v6601, %v6761
      %v6763 = vpop.f32.mrf.mxu0
      %v6764 = vpop.f32.mrf.mxu0
      %v6765 = vadd.f32 %v6604, %v6764
      %v6766 = vpop.f32.mrf.mxu0
      %6767 = vmatprep.mubr.bf16.mxu0 %v4341
      %6768 = vmatmul.mubr.bf16.gmra.mxu0 %v4277
      %v6769 = vpop.f32.mrf.mxu0
      %v6770 = vadd.f32 %v6609, %v6769
      %v6771 = vpop.f32.mrf.mxu0
      %v6772 = vpop.f32.mrf.mxu0
      %v6773 = vadd.f32 %v6612, %v6772
      %v6774 = vpop.f32.mrf.mxu0
      %6775 = vmatprep.mubr.bf16.mxu0 %v4342
      %6776 = vmatmul.mubr.bf16.gmra.mxu0 %v4278
      %v6777 = vpop.f32.mrf.mxu0
      %v6778 = vadd.f32 %v6617, %v6777
      %v6779 = vpop.f32.mrf.mxu0
      %v6780 = vpop.f32.mrf.mxu0
      %v6781 = vadd.f32 %v6620, %v6780
      %v6782 = vpop.f32.mrf.mxu0
      %6783 = vmatprep.mubr.bf16.mxu0 %v4343
      %6784 = vmatmul.mubr.bf16.gmra.mxu0 %v4279
      %v6785 = vpop.f32.mrf.mxu0
      %v6786 = vadd.f32 %v6625, %v6785
      %v6787 = vpop.f32.mrf.mxu0
      %v6788 = vpop.f32.mrf.mxu0
      %v6789 = vadd.f32 %v6628, %v6788
      %v6790 = vpop.f32.mrf.mxu0
      %6791 = vmatprep.mubr.bf16.mxu0 %v4344
      %6792 = vmatmul.mubr.bf16.gmra.mxu0 %v4280
      %v6793 = vpop.f32.mrf.mxu0
      %v6794 = vadd.f32 %v6633, %v6793
      %v6795 = vpop.f32.mrf.mxu0
      %v6796 = vpop.f32.mrf.mxu0
      %v6797 = vadd.f32 %v6636, %v6796
      %v6798 = vpop.f32.mrf.mxu0
      %6799 = vmatprep.mubr.bf16.mxu0 %v4345
      %6800 = vmatmul.mubr.bf16.gmra.mxu0 %v4281
      %v6801 = vpop.f32.mrf.mxu0
      %v6802 = vadd.f32 %v6641, %v6801
      %v6803 = vpop.f32.mrf.mxu0
      %v6804 = vpop.f32.mrf.mxu0
      %v6805 = vadd.f32 %v6644, %v6804
      %v6806 = vpop.f32.mrf.mxu0
      %6807 = vmatprep.mubr.bf16.mxu0 %v4346
      %6808 = vmatmul.mubr.bf16.gmra.mxu0 %v4282
      %v6809 = vpop.f32.mrf.mxu0
      %v6810 = vadd.f32 %v6649, %v6809
      %v6811 = vpop.f32.mrf.mxu0
      %v6812 = vpop.f32.mrf.mxu0
      %v6813 = vadd.f32 %v6652, %v6812
      %v6814 = vpop.f32.mrf.mxu0
      %6815 = vmatprep.mubr.bf16.mxu0 %v4347
      %6816 = vmatmul.mubr.bf16.gmra.mxu0 %v4283
      %v6817 = vpop.f32.mrf.mxu0
      %v6818 = vadd.f32 %v6657, %v6817
      %v6819 = vpop.f32.mrf.mxu0
      %v6820 = vpop.f32.mrf.mxu0
      %v6821 = vadd.f32 %v6660, %v6820
      %v6822 = vpop.f32.mrf.mxu0
      %6823 = vmatprep.mubr.bf16.mxu0 %v4348
      %6824 = vmatmul.mubr.bf16.gmra.mxu0 %v4284
      %v6825 = vpop.f32.mrf.mxu0
      %v6826 = vadd.f32 %v6665, %v6825
      %v6827 = vpop.f32.mrf.mxu0
      %v6828 = vpop.f32.mrf.mxu0
      %v6829 = vadd.f32 %v6668, %v6828
      %v6830 = vpop.f32.mrf.mxu0
      %6831 = vdwg.mxu0
      %6832 = vmatprep.subr.bf16.mxu0 0
      %6833 = vmatpush1.bf16.msra.mxu0 %v6116
      %6834 = vmatprep.subr.bf16.mxu0 0
      %6835 = vmatpush1.bf16.msra.mxu0 %v6115
      %6836 = vmatprep.subr.bf16.mxu0 0
      %6837 = vmatpush1.bf16.msra.mxu0 %v6114
      %6838 = vmatprep.subr.bf16.mxu0 0
      %6839 = vmatpush1.bf16.msra.mxu0 %v6113
      %6840 = vmatprep.subr.bf16.mxu0 0
      %6841 = vmatpush1.bf16.msra.mxu0 %v6112
      %6842 = vmatprep.subr.bf16.mxu0 0
      %6843 = vmatpush1.bf16.msra.mxu0 %v6111
      %6844 = vmatprep.subr.bf16.mxu0 0
      %6845 = vmatpush1.bf16.msra.mxu0 %v6110
      %6846 = vmatprep.subr.bf16.mxu0 0
      %6847 = vmatpush1.bf16.msra.mxu0 %v6109
      %6848 = vmatprep.subr.bf16.mxu0 0
      %6849 = vmatpush2.bf16.msra.mxu0 %v6124
      %6850 = vmatprep.subr.bf16.mxu0 0
      %6851 = vmatpush2.bf16.msra.mxu0 %v6123
      %6852 = vmatprep.subr.bf16.mxu0 0
      %6853 = vmatpush2.bf16.msra.mxu0 %v6122
      %6854 = vmatprep.subr.bf16.mxu0 0
      %6855 = vmatpush2.bf16.msra.mxu0 %v6121
      %6856 = vmatprep.subr.bf16.mxu0 0
      %6857 = vmatpush2.bf16.msra.mxu0 %v6120
      %6858 = vmatprep.subr.bf16.mxu0 0
      %6859 = vmatpush2.bf16.msra.mxu0 %v6119
      %6860 = vmatprep.subr.bf16.mxu0 0
      %6861 = vmatpush2.bf16.msra.mxu0 %v6118
      %6862 = vmatprep.subr.bf16.mxu0 0
      %6863 = vmatpush2.bf16.msra.mxu0 %v6117
      %6864 = vmatprep.mubr.bf16.mxu0 %v4493
      %6865 = vmatmul.mubr.bf16.gmra.mxu0 %v4413
      %v6866 = vpop.f32.mrf.mxu0
      %v6867 = vadd.f32 %v6706, %v6866
      %v6868 = vpop.f32.mrf.mxu0
      %v6869 = vpop.f32.mrf.mxu0
      %v6870 = vadd.f32 %v6709, %v6869
      %v6871 = vpop.f32.mrf.mxu0
      %6872 = vmatprep.mubr.bf16.mxu0 %v4494
      %6873 = vmatmul.mubr.bf16.gmra.mxu0 %v4414
      %v6874 = vpop.f32.mrf.mxu0
      %v6875 = vadd.f32 %v6714, %v6874
      %v6876 = vpop.f32.mrf.mxu0
      %v6877 = vpop.f32.mrf.mxu0
      %v6878 = vadd.f32 %v6717, %v6877
      %v6879 = vpop.f32.mrf.mxu0
      %6880 = vmatprep.mubr.bf16.mxu0 %v4495
      %6881 = vmatmul.mubr.bf16.gmra.mxu0 %v4415
      %v6882 = vpop.f32.mrf.mxu0
      %v6883 = vadd.f32 %v6722, %v6882
      %v6884 = vpop.f32.mrf.mxu0
      %v6885 = vpop.f32.mrf.mxu0
      %v6886 = vadd.f32 %v6725, %v6885
      %v6887 = vpop.f32.mrf.mxu0
      %6888 = vmatprep.mubr.bf16.mxu0 %v4496
      %6889 = vmatmul.mubr.bf16.gmra.mxu0 %v4416
      %v6890 = vpop.f32.mrf.mxu0
      %v6891 = vadd.f32 %v6730, %v6890
      %v6892 = vpop.f32.mrf.mxu0
      %v6893 = vpop.f32.mrf.mxu0
      %v6894 = vadd.f32 %v6733, %v6893
      %v6895 = vpop.f32.mrf.mxu0
      %6896 = vmatprep.mubr.bf16.mxu0 %v4497
      %6897 = vmatmul.mubr.bf16.gmra.mxu0 %v4417
      %v6898 = vpop.f32.mrf.mxu0
      %v6899 = vadd.f32 %v6738, %v6898
      %v6900 = vpop.f32.mrf.mxu0
      %v6901 = vpop.f32.mrf.mxu0
      %v6902 = vadd.f32 %v6741, %v6901
      %v6903 = vpop.f32.mrf.mxu0
      %6904 = vmatprep.mubr.bf16.mxu0 %v4498
      %6905 = vmatmul.mubr.bf16.gmra.mxu0 %v4418
      %v6906 = vpop.f32.mrf.mxu0
      %v6907 = vadd.f32 %v6746, %v6906
      %v6908 = vpop.f32.mrf.mxu0
      %v6909 = vpop.f32.mrf.mxu0
      %v6910 = vadd.f32 %v6749, %v6909
      %v6911 = vpop.f32.mrf.mxu0
      %6912 = vmatprep.mubr.bf16.mxu0 %v4499
      %6913 = vmatmul.mubr.bf16.gmra.mxu0 %v4419
      %v6914 = vpop.f32.mrf.mxu0
      %v6915 = vadd.f32 %v6754, %v6914
      %v6916 = vpop.f32.mrf.mxu0
      %v6917 = vpop.f32.mrf.mxu0
      %v6918 = vadd.f32 %v6757, %v6917
      %v6919 = vpop.f32.mrf.mxu0
      %6920 = vmatprep.mubr.bf16.mxu0 %v4500
      %6921 = vmatmul.mubr.bf16.gmra.mxu0 %v4420
      %v6922 = vpop.f32.mrf.mxu0
      %v6923 = vadd.f32 %v6762, %v6922
      %v6924 = vpop.f32.mrf.mxu0
      %v6925 = vpop.f32.mrf.mxu0
      %v6926 = vadd.f32 %v6765, %v6925
      %v6927 = vpop.f32.mrf.mxu0
      %6928 = vmatprep.mubr.bf16.mxu0 %v4501
      %6929 = vmatmul.mubr.bf16.gmra.mxu0 %v4421
      %v6930 = vpop.f32.mrf.mxu0
      %v6931 = vadd.f32 %v6770, %v6930
      %v6932 = vpop.f32.mrf.mxu0
      %v6933 = vpop.f32.mrf.mxu0
      %v6934 = vadd.f32 %v6773, %v6933
      %v6935 = vpop.f32.mrf.mxu0
      %6936 = vmatprep.mubr.bf16.mxu0 %v4502
      %6937 = vmatmul.mubr.bf16.gmra.mxu0 %v4422
      %v6938 = vpop.f32.mrf.mxu0
      %v6939 = vadd.f32 %v6778, %v6938
      %v6940 = vpop.f32.mrf.mxu0
      %v6941 = vpop.f32.mrf.mxu0
      %v6942 = vadd.f32 %v6781, %v6941
      %v6943 = vpop.f32.mrf.mxu0
      %6944 = vmatprep.mubr.bf16.mxu0 %v4503
      %6945 = vmatmul.mubr.bf16.gmra.mxu0 %v4423
      %v6946 = vpop.f32.mrf.mxu0
      %v6947 = vadd.f32 %v6786, %v6946
      %v6948 = vpop.f32.mrf.mxu0
      %v6949 = vpop.f32.mrf.mxu0
      %v6950 = vadd.f32 %v6789, %v6949
      %v6951 = vpop.f32.mrf.mxu0
      %6952 = vmatprep.mubr.bf16.mxu0 %v4504
      %6953 = vmatmul.mubr.bf16.gmra.mxu0 %v4424
      %v6954 = vpop.f32.mrf.mxu0
      %v6955 = vadd.f32 %v6794, %v6954
      %v6956 = vpop.f32.mrf.mxu0
      %v6957 = vpop.f32.mrf.mxu0
      %v6958 = vadd.f32 %v6797, %v6957
      %v6959 = vpop.f32.mrf.mxu0
      %6960 = vmatprep.mubr.bf16.mxu0 %v4505
      %6961 = vmatmul.mubr.bf16.gmra.mxu0 %v4425
      %v6962 = vpop.f32.mrf.mxu0
      %v6963 = vadd.f32 %v6802, %v6962
      %v6964 = vpop.f32.mrf.mxu0
      %v6965 = vpop.f32.mrf.mxu0
      %v6966 = vadd.f32 %v6805, %v6965
      %v6967 = vpop.f32.mrf.mxu0
      %6968 = vmatprep.mubr.bf16.mxu0 %v4506
      %6969 = vmatmul.mubr.bf16.gmra.mxu0 %v4426
      %v6970 = vpop.f32.mrf.mxu0
      %v6971 = vadd.f32 %v6810, %v6970
      %v6972 = vpop.f32.mrf.mxu0
      %v6973 = vpop.f32.mrf.mxu0
      %v6974 = vadd.f32 %v6813, %v6973
      %v6975 = vpop.f32.mrf.mxu0
      %6976 = vmatprep.mubr.bf16.mxu0 %v4507
      %6977 = vmatmul.mubr.bf16.gmra.mxu0 %v4427
      %v6978 = vpop.f32.mrf.mxu0
      %v6979 = vadd.f32 %v6818, %v6978
      %v6980 = vpop.f32.mrf.mxu0
      %v6981 = vpop.f32.mrf.mxu0
      %v6982 = vadd.f32 %v6821, %v6981
      %v6983 = vpop.f32.mrf.mxu0
      %6984 = vmatprep.mubr.bf16.mxu0 %v4508
      %6985 = vmatmul.mubr.bf16.gmra.mxu0 %v4428
      %v6986 = vpop.f32.mrf.mxu0
      %v6987 = vadd.f32 %v6826, %v6986
      %v6988 = vpop.f32.mrf.mxu0
      %v6989 = vpop.f32.mrf.mxu0
      %v6990 = vadd.f32 %v6829, %v6989
      %v6991 = vpop.f32.mrf.mxu0
      %6992 = vdwg.mxu0
      %6993 = vmatprep.subr.bf16.mxu0 0
      %6994 = vmatpush1.bf16.msra.mxu0 %v6132
      %6995 = vmatprep.subr.bf16.mxu0 0
      %6996 = vmatpush1.bf16.msra.mxu0 %v6131
      %6997 = vmatprep.subr.bf16.mxu0 0
      %6998 = vmatpush1.bf16.msra.mxu0 %v6130
      %6999 = vmatprep.subr.bf16.mxu0 0
      %7000 = vmatpush1.bf16.msra.mxu0 %v6129
      %7001 = vmatprep.subr.bf16.mxu0 0
      %7002 = vmatpush1.bf16.msra.mxu0 %v6128
      %7003 = vmatprep.subr.bf16.mxu0 0
      %7004 = vmatpush1.bf16.msra.mxu0 %v6127
      %7005 = vmatprep.subr.bf16.mxu0 0
      %7006 = vmatpush1.bf16.msra.mxu0 %v6126
      %7007 = vmatprep.subr.bf16.mxu0 0
      %7008 = vmatpush1.bf16.msra.mxu0 %v6125
      %7009 = vmatprep.subr.bf16.mxu0 0
      %7010 = vmatpush2.bf16.msra.mxu0 %v6140
      %7011 = vmatprep.subr.bf16.mxu0 0
      %7012 = vmatpush2.bf16.msra.mxu0 %v6139
      %7013 = vmatprep.subr.bf16.mxu0 0
      %7014 = vmatpush2.bf16.msra.mxu0 %v6138
      %7015 = vmatprep.subr.bf16.mxu0 0
      %7016 = vmatpush2.bf16.msra.mxu0 %v6137
      %7017 = vmatprep.subr.bf16.mxu0 0
      %7018 = vmatpush2.bf16.msra.mxu0 %v6136
      %7019 = vmatprep.subr.bf16.mxu0 0
      %7020 = vmatpush2.bf16.msra.mxu0 %v6135
      %7021 = vmatprep.subr.bf16.mxu0 0
      %7022 = vmatpush2.bf16.msra.mxu0 %v6134
      %7023 = vmatprep.subr.bf16.mxu0 0
      %7024 = vmatpush2.bf16.msra.mxu0 %v6133
      %7025 = vmatprep.mubr.bf16.mxu0 %v4621
      %7026 = vmatmul.mubr.bf16.gmra.mxu0 %v4557
      %v7027 = vpop.f32.mrf.mxu0
      %v7028 = vadd.f32 %v6867, %v7027
      %v7029 = vpop.f32.mrf.mxu0
      %v7030 = vpop.f32.mrf.mxu0
      %v7031 = vadd.f32 %v6870, %v7030
      %v7032 = vpop.f32.mrf.mxu0
      %7033 = vmatprep.mubr.bf16.mxu0 %v4622
      %7034 = vmatmul.mubr.bf16.gmra.mxu0 %v4558
      %v7035 = vpop.f32.mrf.mxu0
      %v7036 = vadd.f32 %v6875, %v7035
      %v7037 = vpop.f32.mrf.mxu0
      %v7038 = vpop.f32.mrf.mxu0
      %v7039 = vadd.f32 %v6878, %v7038
      %v7040 = vpop.f32.mrf.mxu0
      %7041 = vmatprep.mubr.bf16.mxu0 %v4623
      %7042 = vmatmul.mubr.bf16.gmra.mxu0 %v4559
      %v7043 = vpop.f32.mrf.mxu0
      %v7044 = vadd.f32 %v6883, %v7043
      %v7045 = vpop.f32.mrf.mxu0
      %v7046 = vpop.f32.mrf.mxu0
      %v7047 = vadd.f32 %v6886, %v7046
      %v7048 = vpop.f32.mrf.mxu0
      %7049 = vmatprep.mubr.bf16.mxu0 %v4624
      %7050 = vmatmul.mubr.bf16.gmra.mxu0 %v4560
      %v7051 = vpop.f32.mrf.mxu0
      %v7052 = vadd.f32 %v6891, %v7051
      %v7053 = vpop.f32.mrf.mxu0
      %v7054 = vpop.f32.mrf.mxu0
      %v7055 = vadd.f32 %v6894, %v7054
      %v7056 = vpop.f32.mrf.mxu0
      %7057 = vmatprep.mubr.bf16.mxu0 %v4625
      %7058 = vmatmul.mubr.bf16.gmra.mxu0 %v4561
      %v7059 = vpop.f32.mrf.mxu0
      %v7060 = vadd.f32 %v6899, %v7059
      %v7061 = vpop.f32.mrf.mxu0
      %v7062 = vpop.f32.mrf.mxu0
      %v7063 = vadd.f32 %v6902, %v7062
      %v7064 = vpop.f32.mrf.mxu0
      %7065 = vmatprep.mubr.bf16.mxu0 %v4626
      %7066 = vmatmul.mubr.bf16.gmra.mxu0 %v4562
      %v7067 = vpop.f32.mrf.mxu0
      %v7068 = vadd.f32 %v6907, %v7067
      %v7069 = vpop.f32.mrf.mxu0
      %v7070 = vpop.f32.mrf.mxu0
      %v7071 = vadd.f32 %v6910, %v7070
      %v7072 = vpop.f32.mrf.mxu0
      %7073 = vmatprep.mubr.bf16.mxu0 %v4627
      %7074 = vmatmul.mubr.bf16.gmra.mxu0 %v4563
      %v7075 = vpop.f32.mrf.mxu0
      %v7076 = vadd.f32 %v6915, %v7075
      %v7077 = vpop.f32.mrf.mxu0
      %v7078 = vpop.f32.mrf.mxu0
      %v7079 = vadd.f32 %v6918, %v7078
      %v7080 = vpop.f32.mrf.mxu0
      %7081 = vmatprep.mubr.bf16.mxu0 %v4628
      %7082 = vmatmul.mubr.bf16.gmra.mxu0 %v4564
      %v7083 = vpop.f32.mrf.mxu0
      %v7084 = vadd.f32 %v6923, %v7083
      %v7085 = vpop.f32.mrf.mxu0
      %v7086 = vpop.f32.mrf.mxu0
      %v7087 = vadd.f32 %v6926, %v7086
      %v7088 = vpop.f32.mrf.mxu0
      %7089 = vmatprep.mubr.bf16.mxu0 %v4629
      %7090 = vmatmul.mubr.bf16.gmra.mxu0 %v4565
      %v7091 = vpop.f32.mrf.mxu0
      %v7092 = vadd.f32 %v6931, %v7091
      %v7093 = vpop.f32.mrf.mxu0
      %v7094 = vpop.f32.mrf.mxu0
      %v7095 = vadd.f32 %v6934, %v7094
      %v7096 = vpop.f32.mrf.mxu0
      %7097 = vmatprep.mubr.bf16.mxu0 %v4630
      %7098 = vmatmul.mubr.bf16.gmra.mxu0 %v4566
      %v7099 = vpop.f32.mrf.mxu0
      %v7100 = vadd.f32 %v6939, %v7099
      %v7101 = vpop.f32.mrf.mxu0
      %v7102 = vpop.f32.mrf.mxu0
      %v7103 = vadd.f32 %v6942, %v7102
      %v7104 = vpop.f32.mrf.mxu0
      %7105 = vmatprep.mubr.bf16.mxu0 %v4631
      %7106 = vmatmul.mubr.bf16.gmra.mxu0 %v4567
      %v7107 = vpop.f32.mrf.mxu0
      %v7108 = vadd.f32 %v6947, %v7107
      %v7109 = vpop.f32.mrf.mxu0
      %v7110 = vpop.f32.mrf.mxu0
      %v7111 = vadd.f32 %v6950, %v7110
      %v7112 = vpop.f32.mrf.mxu0
      %7113 = vmatprep.mubr.bf16.mxu0 %v4632
      %7114 = vmatmul.mubr.bf16.gmra.mxu0 %v4568
      %v7115 = vpop.f32.mrf.mxu0
      %v7116 = vadd.f32 %v6955, %v7115
      %v7117 = vpop.f32.mrf.mxu0
      %v7118 = vpop.f32.mrf.mxu0
      %v7119 = vadd.f32 %v6958, %v7118
      %v7120 = vpop.f32.mrf.mxu0
      %7121 = vmatprep.mubr.bf16.mxu0 %v4633
      %7122 = vmatmul.mubr.bf16.gmra.mxu0 %v4569
      %v7123 = vpop.f32.mrf.mxu0
      %v7124 = vadd.f32 %v6963, %v7123
      %v7125 = vpop.f32.mrf.mxu0
      %v7126 = vpop.f32.mrf.mxu0
      %v7127 = vadd.f32 %v6966, %v7126
      %v7128 = vpop.f32.mrf.mxu0
      %7129 = vmatprep.mubr.bf16.mxu0 %v4634
      %7130 = vmatmul.mubr.bf16.gmra.mxu0 %v4570
      %v7131 = vpop.f32.mrf.mxu0
      %v7132 = vadd.f32 %v6971, %v7131
      %v7133 = vpop.f32.mrf.mxu0
      %v7134 = vpop.f32.mrf.mxu0
      %v7135 = vadd.f32 %v6974, %v7134
      %v7136 = vpop.f32.mrf.mxu0
      %7137 = vmatprep.mubr.bf16.mxu0 %v4635
      %7138 = vmatmul.mubr.bf16.gmra.mxu0 %v4571
      %v7139 = vpop.f32.mrf.mxu0
      %v7140 = vadd.f32 %v6979, %v7139
      %v7141 = vpop.f32.mrf.mxu0
      %v7142 = vpop.f32.mrf.mxu0
      %v7143 = vadd.f32 %v6982, %v7142
      %v7144 = vpop.f32.mrf.mxu0
      %7145 = vmatprep.mubr.bf16.mxu0 %v4636
      %7146 = vmatmul.mubr.bf16.gmra.mxu0 %v4572
      %v7147 = vpop.f32.mrf.mxu0
      %v7148 = vadd.f32 %v6987, %v7147
      %v7149 = vpop.f32.mrf.mxu0
      %v7150 = vpop.f32.mrf.mxu0
      %v7151 = vadd.f32 %v6990, %v7150
      %v7152 = vpop.f32.mrf.mxu0
      %7153 = vdwg.mxu0
      %7154 = vmatprep.subr.bf16.mxu0 0
      %7155 = vmatpush1.bf16.msra.mxu0 %v6148
      %7156 = vmatprep.subr.bf16.mxu0 0
      %7157 = vmatpush1.bf16.msra.mxu0 %v6147
      %7158 = vmatprep.subr.bf16.mxu0 0
      %7159 = vmatpush1.bf16.msra.mxu0 %v6146
      %7160 = vmatprep.subr.bf16.mxu0 0
      %7161 = vmatpush1.bf16.msra.mxu0 %v6145
      %7162 = vmatprep.subr.bf16.mxu0 0
      %7163 = vmatpush1.bf16.msra.mxu0 %v6144
      %7164 = vmatprep.subr.bf16.mxu0 0
      %7165 = vmatpush1.bf16.msra.mxu0 %v6143
      %7166 = vmatprep.subr.bf16.mxu0 0
      %7167 = vmatpush1.bf16.msra.mxu0 %v6142
      %7168 = vmatprep.subr.bf16.mxu0 0
      %7169 = vmatpush1.bf16.msra.mxu0 %v6141
      %7170 = vmatprep.subr.bf16.mxu0 0
      %7171 = vmatpush2.bf16.msra.mxu0 %v6156
      %7172 = vmatprep.subr.bf16.mxu0 0
      %7173 = vmatpush2.bf16.msra.mxu0 %v6155
      %7174 = vmatprep.subr.bf16.mxu0 0
      %7175 = vmatpush2.bf16.msra.mxu0 %v6154
      %7176 = vmatprep.subr.bf16.mxu0 0
      %7177 = vmatpush2.bf16.msra.mxu0 %v6153
      %7178 = vmatprep.subr.bf16.mxu0 0
      %7179 = vmatpush2.bf16.msra.mxu0 %v6152
      %7180 = vmatprep.subr.bf16.mxu0 0
      %7181 = vmatpush2.bf16.msra.mxu0 %v6151
      %7182 = vmatprep.subr.bf16.mxu0 0
      %7183 = vmatpush2.bf16.msra.mxu0 %v6150
      %7184 = vmatprep.subr.bf16.mxu0 0
      %7185 = vmatpush2.bf16.msra.mxu0 %v6149
      %7186 = vmatprep.mubr.bf16.mxu0 %v4749
      %7187 = vmatmul.mubr.bf16.gmra.mxu0 %v4685
      %v7188 = vpop.f32.mrf.mxu0
      %v7189 = vadd.f32 %v7028, %v7188
      %v7190 = vpop.f32.mrf.mxu0
      %v7191 = vpop.f32.mrf.mxu0
      %v7192 = vadd.f32 %v7031, %v7191
      %v7193 = vpop.f32.mrf.mxu0
      %7194 = vmatprep.mubr.bf16.mxu0 %v4750
      %7195 = vmatmul.mubr.bf16.gmra.mxu0 %v4686
      %v7196 = vpop.f32.mrf.mxu0
      %v7197 = vadd.f32 %v7036, %v7196
      %v7198 = vpop.f32.mrf.mxu0
      %v7199 = vpop.f32.mrf.mxu0
      %v7200 = vadd.f32 %v7039, %v7199
      %v7201 = vpop.f32.mrf.mxu0
      %7202 = vmatprep.mubr.bf16.mxu0 %v4751
      %7203 = vmatmul.mubr.bf16.gmra.mxu0 %v4687
      %v7204 = vpop.f32.mrf.mxu0
      %v7205 = vadd.f32 %v7044, %v7204
      %v7206 = vpop.f32.mrf.mxu0
      %v7207 = vpop.f32.mrf.mxu0
      %v7208 = vadd.f32 %v7047, %v7207
      %v7209 = vpop.f32.mrf.mxu0
      %7210 = vmatprep.mubr.bf16.mxu0 %v4752
      %7211 = vmatmul.mubr.bf16.gmra.mxu0 %v4688
      %v7212 = vpop.f32.mrf.mxu0
      %v7213 = vadd.f32 %v7052, %v7212
      %v7214 = vpop.f32.mrf.mxu0
      %v7215 = vpop.f32.mrf.mxu0
      %v7216 = vadd.f32 %v7055, %v7215
      %v7217 = vpop.f32.mrf.mxu0
      %7218 = vmatprep.mubr.bf16.mxu0 %v4753
      %7219 = vmatmul.mubr.bf16.gmra.mxu0 %v4689
      %v7220 = vpop.f32.mrf.mxu0
      %v7221 = vadd.f32 %v7060, %v7220
      %v7222 = vpop.f32.mrf.mxu0
      %v7223 = vpop.f32.mrf.mxu0
      %v7224 = vadd.f32 %v7063, %v7223
      %v7225 = vpop.f32.mrf.mxu0
      %7226 = vmatprep.mubr.bf16.mxu0 %v4754
      %7227 = vmatmul.mubr.bf16.gmra.mxu0 %v4690
      %v7228 = vpop.f32.mrf.mxu0
      %v7229 = vadd.f32 %v7068, %v7228
      %v7230 = vpop.f32.mrf.mxu0
      %v7231 = vpop.f32.mrf.mxu0
      %v7232 = vadd.f32 %v7071, %v7231
      %v7233 = vpop.f32.mrf.mxu0
      %7234 = vmatprep.mubr.bf16.mxu0 %v4755
      %7235 = vmatmul.mubr.bf16.gmra.mxu0 %v4691
      %v7236 = vpop.f32.mrf.mxu0
      %v7237 = vadd.f32 %v7076, %v7236
      %v7238 = vpop.f32.mrf.mxu0
      %v7239 = vpop.f32.mrf.mxu0
      %v7240 = vadd.f32 %v7079, %v7239
      %v7241 = vpop.f32.mrf.mxu0
      %7242 = vmatprep.mubr.bf16.mxu0 %v4756
      %7243 = vmatmul.mubr.bf16.gmra.mxu0 %v4692
      %v7244 = vpop.f32.mrf.mxu0
      %v7245 = vadd.f32 %v7084, %v7244
      %v7246 = vpop.f32.mrf.mxu0
      %v7247 = vpop.f32.mrf.mxu0
      %v7248 = vadd.f32 %v7087, %v7247
      %v7249 = vpop.f32.mrf.mxu0
      %7250 = vmatprep.mubr.bf16.mxu0 %v4757
      %7251 = vmatmul.mubr.bf16.gmra.mxu0 %v4693
      %v7252 = vpop.f32.mrf.mxu0
      %v7253 = vadd.f32 %v7092, %v7252
      %v7254 = vpop.f32.mrf.mxu0
      %v7255 = vpop.f32.mrf.mxu0
      %v7256 = vadd.f32 %v7095, %v7255
      %v7257 = vpop.f32.mrf.mxu0
      %7258 = vmatprep.mubr.bf16.mxu0 %v4758
      %7259 = vmatmul.mubr.bf16.gmra.mxu0 %v4694
      %v7260 = vpop.f32.mrf.mxu0
      %v7261 = vadd.f32 %v7100, %v7260
      %v7262 = vpop.f32.mrf.mxu0
      %v7263 = vpop.f32.mrf.mxu0
      %v7264 = vadd.f32 %v7103, %v7263
      %v7265 = vpop.f32.mrf.mxu0
      %7266 = vmatprep.mubr.bf16.mxu0 %v4759
      %7267 = vmatmul.mubr.bf16.gmra.mxu0 %v4695
      %v7268 = vpop.f32.mrf.mxu0
      %v7269 = vadd.f32 %v7108, %v7268
      %v7270 = vpop.f32.mrf.mxu0
      %v7271 = vpop.f32.mrf.mxu0
      %v7272 = vadd.f32 %v7111, %v7271
      %v7273 = vpop.f32.mrf.mxu0
      %7274 = vmatprep.mubr.bf16.mxu0 %v4760
      %7275 = vmatmul.mubr.bf16.gmra.mxu0 %v4696
      %v7276 = vpop.f32.mrf.mxu0
      %v7277 = vadd.f32 %v7116, %v7276
      %v7278 = vpop.f32.mrf.mxu0
      %v7279 = vpop.f32.mrf.mxu0
      %v7280 = vadd.f32 %v7119, %v7279
      %v7281 = vpop.f32.mrf.mxu0
      %7282 = vmatprep.mubr.bf16.mxu0 %v4761
      %7283 = vmatmul.mubr.bf16.gmra.mxu0 %v4697
      %v7284 = vpop.f32.mrf.mxu0
      %v7285 = vadd.f32 %v7124, %v7284
      %v7286 = vpop.f32.mrf.mxu0
      %v7287 = vpop.f32.mrf.mxu0
      %v7288 = vadd.f32 %v7127, %v7287
      %v7289 = vpop.f32.mrf.mxu0
      %7290 = vmatprep.mubr.bf16.mxu0 %v4762
      %7291 = vmatmul.mubr.bf16.gmra.mxu0 %v4698
      %v7292 = vpop.f32.mrf.mxu0
      %v7293 = vadd.f32 %v7132, %v7292
      %v7294 = vpop.f32.mrf.mxu0
      %v7295 = vpop.f32.mrf.mxu0
      %v7296 = vadd.f32 %v7135, %v7295
      %v7297 = vpop.f32.mrf.mxu0
      %7298 = vmatprep.mubr.bf16.mxu0 %v4763
      %7299 = vmatmul.mubr.bf16.gmra.mxu0 %v4699
      %v7300 = vpop.f32.mrf.mxu0
      %v7301 = vadd.f32 %v7140, %v7300
      %v7302 = vpop.f32.mrf.mxu0
      %v7303 = vpop.f32.mrf.mxu0
      %v7304 = vadd.f32 %v7143, %v7303
      %v7305 = vpop.f32.mrf.mxu0
      %7306 = vmatprep.mubr.bf16.mxu0 %v4764
      %7307 = vmatmul.mubr.bf16.gmra.mxu0 %v4700
      %v7308 = vpop.f32.mrf.mxu0
      %v7309 = vadd.f32 %v7148, %v7308
      %v7310 = vpop.f32.mrf.mxu0
      %v7311 = vpop.f32.mrf.mxu0
      %v7312 = vadd.f32 %v7151, %v7311
      %v7313 = vpop.f32.mrf.mxu0
      %7314 = vdwg.mxu0
      %7315 = vmatprep.subr.bf16.mxu0 0
      %7316 = vmatpush1.bf16.msra.mxu0 %v6164
      %7317 = vmatprep.subr.bf16.mxu0 0
      %7318 = vmatpush1.bf16.msra.mxu0 %v6163
      %7319 = vmatprep.subr.bf16.mxu0 0
      %7320 = vmatpush1.bf16.msra.mxu0 %v6162
      %7321 = vmatprep.subr.bf16.mxu0 0
      %7322 = vmatpush1.bf16.msra.mxu0 %v6161
      %7323 = vmatprep.subr.bf16.mxu0 0
      %7324 = vmatpush1.bf16.msra.mxu0 %v6160
      %7325 = vmatprep.subr.bf16.mxu0 0
      %7326 = vmatpush1.bf16.msra.mxu0 %v6159
      %7327 = vmatprep.subr.bf16.mxu0 0
      %7328 = vmatpush1.bf16.msra.mxu0 %v6158
      %7329 = vmatprep.subr.bf16.mxu0 0
      %7330 = vmatpush1.bf16.msra.mxu0 %v6157
      %7331 = vmatprep.subr.bf16.mxu0 0
      %7332 = vmatpush2.bf16.msra.mxu0 %v6172
      %7333 = vmatprep.subr.bf16.mxu0 0
      %7334 = vmatpush2.bf16.msra.mxu0 %v6171
      %7335 = vmatprep.subr.bf16.mxu0 0
      %7336 = vmatpush2.bf16.msra.mxu0 %v6170
      %7337 = vmatprep.subr.bf16.mxu0 0
      %7338 = vmatpush2.bf16.msra.mxu0 %v6169
      %7339 = vmatprep.subr.bf16.mxu0 0
      %7340 = vmatpush2.bf16.msra.mxu0 %v6168
      %7341 = vmatprep.subr.bf16.mxu0 0
      %7342 = vmatpush2.bf16.msra.mxu0 %v6167
      %7343 = vmatprep.subr.bf16.mxu0 0
      %7344 = vmatpush2.bf16.msra.mxu0 %v6166
      %7345 = vmatprep.subr.bf16.mxu0 0
      %7346 = vmatpush2.bf16.msra.mxu0 %v6165
      %7347 = vmatprep.mubr.bf16.mxu0 %v4909
      %7348 = vmatmul.mubr.bf16.gmra.mxu0 %v4829
      %v7349 = vpop.f32.mrf.mxu0
      %v7350 = vadd.f32 %v7189, %v7349
      %v7351 = vpop.f32.mrf.mxu0
      %v7352 = vpop.f32.mrf.mxu0
      %v7353 = vadd.f32 %v7192, %v7352
      %v7354 = vpop.f32.mrf.mxu0
      %7355 = vmatprep.mubr.bf16.mxu0 %v4910
      %7356 = vmatmul.mubr.bf16.gmra.mxu0 %v4830
      %v7357 = vpop.f32.mrf.mxu0
      %v7358 = vadd.f32 %v7197, %v7357
      %v7359 = vpop.f32.mrf.mxu0
      %v7360 = vpop.f32.mrf.mxu0
      %v7361 = vadd.f32 %v7200, %v7360
      %v7362 = vpop.f32.mrf.mxu0
      %7363 = vmatprep.mubr.bf16.mxu0 %v4911
      %7364 = vmatmul.mubr.bf16.gmra.mxu0 %v4831
      %v7365 = vpop.f32.mrf.mxu0
      %v7366 = vadd.f32 %v7205, %v7365
      %v7367 = vpop.f32.mrf.mxu0
      %v7368 = vpop.f32.mrf.mxu0
      %v7369 = vadd.f32 %v7208, %v7368
      %v7370 = vpop.f32.mrf.mxu0
      %7371 = vmatprep.mubr.bf16.mxu0 %v4912
      %7372 = vmatmul.mubr.bf16.gmra.mxu0 %v4832
      %v7373 = vpop.f32.mrf.mxu0
      %v7374 = vadd.f32 %v7213, %v7373
      %v7375 = vpop.f32.mrf.mxu0
      %v7376 = vpop.f32.mrf.mxu0
      %v7377 = vadd.f32 %v7216, %v7376
      %v7378 = vpop.f32.mrf.mxu0
      %7379 = vmatprep.mubr.bf16.mxu0 %v4913
      %7380 = vmatmul.mubr.bf16.gmra.mxu0 %v4833
      %v7381 = vpop.f32.mrf.mxu0
      %v7382 = vadd.f32 %v7221, %v7381
      %v7383 = vpop.f32.mrf.mxu0
      %v7384 = vpop.f32.mrf.mxu0
      %v7385 = vadd.f32 %v7224, %v7384
      %v7386 = vpop.f32.mrf.mxu0
      %7387 = vmatprep.mubr.bf16.mxu0 %v4914
      %7388 = vmatmul.mubr.bf16.gmra.mxu0 %v4834
      %v7389 = vpop.f32.mrf.mxu0
      %v7390 = vadd.f32 %v7229, %v7389
      %v7391 = vpop.f32.mrf.mxu0
      %v7392 = vpop.f32.mrf.mxu0
      %v7393 = vadd.f32 %v7232, %v7392
      %v7394 = vpop.f32.mrf.mxu0
      %7395 = vmatprep.mubr.bf16.mxu0 %v4915
      %7396 = vmatmul.mubr.bf16.gmra.mxu0 %v4835
      %v7397 = vpop.f32.mrf.mxu0
      %v7398 = vadd.f32 %v7237, %v7397
      %v7399 = vpop.f32.mrf.mxu0
      %v7400 = vpop.f32.mrf.mxu0
      %v7401 = vadd.f32 %v7240, %v7400
      %v7402 = vpop.f32.mrf.mxu0
      %7403 = vmatprep.mubr.bf16.mxu0 %v4916
      %7404 = vmatmul.mubr.bf16.gmra.mxu0 %v4836
      %v7405 = vpop.f32.mrf.mxu0
      %v7406 = vadd.f32 %v7245, %v7405
      %v7407 = vpop.f32.mrf.mxu0
      %v7408 = vpop.f32.mrf.mxu0
      %v7409 = vadd.f32 %v7248, %v7408
      %v7410 = vpop.f32.mrf.mxu0
      %7411 = vmatprep.mubr.bf16.mxu0 %v4917
      %7412 = vmatmul.mubr.bf16.gmra.mxu0 %v4837
      %v7413 = vpop.f32.mrf.mxu0
      %v7414 = vadd.f32 %v7253, %v7413
      %v7415 = vpop.f32.mrf.mxu0
      %v7416 = vpop.f32.mrf.mxu0
      %v7417 = vadd.f32 %v7256, %v7416
      %v7418 = vpop.f32.mrf.mxu0
      %7419 = vmatprep.mubr.bf16.mxu0 %v4918
      %7420 = vmatmul.mubr.bf16.gmra.mxu0 %v4838
      %v7421 = vpop.f32.mrf.mxu0
      %v7422 = vadd.f32 %v7261, %v7421
      %v7423 = vpop.f32.mrf.mxu0
      %v7424 = vpop.f32.mrf.mxu0
      %v7425 = vadd.f32 %v7264, %v7424
      %v7426 = vpop.f32.mrf.mxu0
      %7427 = vmatprep.mubr.bf16.mxu0 %v4919
      %7428 = vmatmul.mubr.bf16.gmra.mxu0 %v4839
      %v7429 = vpop.f32.mrf.mxu0
      %v7430 = vadd.f32 %v7269, %v7429
      %v7431 = vpop.f32.mrf.mxu0
      %v7432 = vpop.f32.mrf.mxu0
      %v7433 = vadd.f32 %v7272, %v7432
      %v7434 = vpop.f32.mrf.mxu0
      %7435 = vmatprep.mubr.bf16.mxu0 %v4920
      %7436 = vmatmul.mubr.bf16.gmra.mxu0 %v4840
      %v7437 = vpop.f32.mrf.mxu0
      %v7438 = vadd.f32 %v7277, %v7437
      %v7439 = vpop.f32.mrf.mxu0
      %v7440 = vpop.f32.mrf.mxu0
      %v7441 = vadd.f32 %v7280, %v7440
      %v7442 = vpop.f32.mrf.mxu0
      %7443 = vmatprep.mubr.bf16.mxu0 %v4921
      %7444 = vmatmul.mubr.bf16.gmra.mxu0 %v4841
      %v7445 = vpop.f32.mrf.mxu0
      %v7446 = vadd.f32 %v7285, %v7445
      %v7447 = vpop.f32.mrf.mxu0
      %v7448 = vpop.f32.mrf.mxu0
      %v7449 = vadd.f32 %v7288, %v7448
      %v7450 = vpop.f32.mrf.mxu0
      %7451 = vmatprep.mubr.bf16.mxu0 %v4922
      %7452 = vmatmul.mubr.bf16.gmra.mxu0 %v4842
      %v7453 = vpop.f32.mrf.mxu0
      %v7454 = vadd.f32 %v7293, %v7453
      %v7455 = vpop.f32.mrf.mxu0
      %v7456 = vpop.f32.mrf.mxu0
      %v7457 = vadd.f32 %v7296, %v7456
      %v7458 = vpop.f32.mrf.mxu0
      %7459 = vmatprep.mubr.bf16.mxu0 %v4923
      %7460 = vmatmul.mubr.bf16.gmra.mxu0 %v4843
      %v7461 = vpop.f32.mrf.mxu0
      %v7462 = vadd.f32 %v7301, %v7461
      %v7463 = vpop.f32.mrf.mxu0
      %v7464 = vpop.f32.mrf.mxu0
      %v7465 = vadd.f32 %v7304, %v7464
      %v7466 = vpop.f32.mrf.mxu0
      %7467 = vmatprep.mubr.bf16.mxu0 %v4924
      %7468 = vmatmul.mubr.bf16.gmra.mxu0 %v4844
      %v7469 = vpop.f32.mrf.mxu0
      %v7470 = vadd.f32 %v7309, %v7469
      %v7471 = vpop.f32.mrf.mxu0
      %v7472 = vpop.f32.mrf.mxu0
      %v7473 = vadd.f32 %v7312, %v7472
      %v7474 = vpop.f32.mrf.mxu0
      %7475 = vdwg.mxu0
      %7476 = vmatprep.subr.bf16.mxu0 0
      %7477 = vmatpush1.bf16.msra.mxu0 %v6180
      %7478 = vmatprep.subr.bf16.mxu0 0
      %7479 = vmatpush1.bf16.msra.mxu0 %v6179
      %7480 = vmatprep.subr.bf16.mxu0 0
      %7481 = vmatpush1.bf16.msra.mxu0 %v6178
      %7482 = vmatprep.subr.bf16.mxu0 0
      %7483 = vmatpush1.bf16.msra.mxu0 %v6177
      %7484 = vmatprep.subr.bf16.mxu0 0
      %7485 = vmatpush1.bf16.msra.mxu0 %v6176
      %7486 = vmatprep.subr.bf16.mxu0 0
      %7487 = vmatpush1.bf16.msra.mxu0 %v6175
      %7488 = vmatprep.subr.bf16.mxu0 0
      %7489 = vmatpush1.bf16.msra.mxu0 %v6174
      %7490 = vmatprep.subr.bf16.mxu0 0
      %7491 = vmatpush1.bf16.msra.mxu0 %v6173
      %7492 = vmatprep.subr.bf16.mxu0 0
      %7493 = vmatpush2.bf16.msra.mxu0 %v6188
      %7494 = vmatprep.subr.bf16.mxu0 0
      %7495 = vmatpush2.bf16.msra.mxu0 %v6187
      %7496 = vmatprep.subr.bf16.mxu0 0
      %7497 = vmatpush2.bf16.msra.mxu0 %v6186
      %7498 = vmatprep.subr.bf16.mxu0 0
      %7499 = vmatpush2.bf16.msra.mxu0 %v6185
      %7500 = vmatprep.subr.bf16.mxu0 0
      %7501 = vmatpush2.bf16.msra.mxu0 %v6184
      %7502 = vmatprep.subr.bf16.mxu0 0
      %7503 = vmatpush2.bf16.msra.mxu0 %v6183
      %7504 = vmatprep.subr.bf16.mxu0 0
      %7505 = vmatpush2.bf16.msra.mxu0 %v6182
      %7506 = vmatprep.subr.bf16.mxu0 0
      %7507 = vmatpush2.bf16.msra.mxu0 %v6181
      %7508 = vmatprep.mubr.bf16.mxu0 %v5037
      %7509 = vmatmul.mubr.bf16.gmra.mxu0 %v4973
      %v7510 = vpop.f32.mrf.mxu0
      %v7511 = vadd.f32 %v7350, %v7510
      %v7512 = vpop.f32.mrf.mxu0
      %v7513 = vpop.f32.mrf.mxu0
      %v7514 = vadd.f32 %v7353, %v7513
      %v7515 = vpop.f32.mrf.mxu0
      %7516 = vmatprep.mubr.bf16.mxu0 %v5038
      %7517 = vmatmul.mubr.bf16.gmra.mxu0 %v4974
      %v7518 = vpop.f32.mrf.mxu0
      %v7519 = vadd.f32 %v7358, %v7518
      %v7520 = vpop.f32.mrf.mxu0
      %v7521 = vpop.f32.mrf.mxu0
      %v7522 = vadd.f32 %v7361, %v7521
      %v7523 = vpop.f32.mrf.mxu0
      %7524 = vmatprep.mubr.bf16.mxu0 %v5039
      %7525 = vmatmul.mubr.bf16.gmra.mxu0 %v4975
      %v7526 = vpop.f32.mrf.mxu0
      %v7527 = vadd.f32 %v7366, %v7526
      %v7528 = vpop.f32.mrf.mxu0
      %v7529 = vpop.f32.mrf.mxu0
      %v7530 = vadd.f32 %v7369, %v7529
      %v7531 = vpop.f32.mrf.mxu0
      %7532 = vmatprep.mubr.bf16.mxu0 %v5040
      %7533 = vmatmul.mubr.bf16.gmra.mxu0 %v4976
      %v7534 = vpop.f32.mrf.mxu0
      %v7535 = vadd.f32 %v7374, %v7534
      %v7536 = vpop.f32.mrf.mxu0
      %v7537 = vpop.f32.mrf.mxu0
      %v7538 = vadd.f32 %v7377, %v7537
      %v7539 = vpop.f32.mrf.mxu0
      %7540 = vmatprep.mubr.bf16.mxu0 %v5041
      %7541 = vmatmul.mubr.bf16.gmra.mxu0 %v4977
      %v7542 = vpop.f32.mrf.mxu0
      %v7543 = vadd.f32 %v7382, %v7542
      %v7544 = vpop.f32.mrf.mxu0
      %v7545 = vpop.f32.mrf.mxu0
      %v7546 = vadd.f32 %v7385, %v7545
      %v7547 = vpop.f32.mrf.mxu0
      %7548 = vmatprep.mubr.bf16.mxu0 %v5042
      %7549 = vmatmul.mubr.bf16.gmra.mxu0 %v4978
      %v7550 = vpop.f32.mrf.mxu0
      %v7551 = vadd.f32 %v7390, %v7550
      %v7552 = vpop.f32.mrf.mxu0
      %v7553 = vpop.f32.mrf.mxu0
      %v7554 = vadd.f32 %v7393, %v7553
      %v7555 = vpop.f32.mrf.mxu0
      %7556 = vmatprep.mubr.bf16.mxu0 %v5043
      %7557 = vmatmul.mubr.bf16.gmra.mxu0 %v4979
      %v7558 = vpop.f32.mrf.mxu0
      %v7559 = vadd.f32 %v7398, %v7558
      %v7560 = vpop.f32.mrf.mxu0
      %v7561 = vpop.f32.mrf.mxu0
      %v7562 = vadd.f32 %v7401, %v7561
      %v7563 = vpop.f32.mrf.mxu0
      %7564 = vmatprep.mubr.bf16.mxu0 %v5044
      %7565 = vmatmul.mubr.bf16.gmra.mxu0 %v4980
      %v7566 = vpop.f32.mrf.mxu0
      %v7567 = vadd.f32 %v7406, %v7566
      %v7568 = vpop.f32.mrf.mxu0
      %v7569 = vpop.f32.mrf.mxu0
      %v7570 = vadd.f32 %v7409, %v7569
      %v7571 = vpop.f32.mrf.mxu0
      %7572 = vmatprep.mubr.bf16.mxu0 %v5045
      %7573 = vmatmul.mubr.bf16.gmra.mxu0 %v4981
      %v7574 = vpop.f32.mrf.mxu0
      %v7575 = vadd.f32 %v7414, %v7574
      %v7576 = vpop.f32.mrf.mxu0
      %v7577 = vpop.f32.mrf.mxu0
      %v7578 = vadd.f32 %v7417, %v7577
      %v7579 = vpop.f32.mrf.mxu0
      %7580 = vmatprep.mubr.bf16.mxu0 %v5046
      %7581 = vmatmul.mubr.bf16.gmra.mxu0 %v4982
      %v7582 = vpop.f32.mrf.mxu0
      %v7583 = vadd.f32 %v7422, %v7582
      %v7584 = vpop.f32.mrf.mxu0
      %v7585 = vpop.f32.mrf.mxu0
      %v7586 = vadd.f32 %v7425, %v7585
      %v7587 = vpop.f32.mrf.mxu0
      %7588 = vmatprep.mubr.bf16.mxu0 %v5047
      %7589 = vmatmul.mubr.bf16.gmra.mxu0 %v4983
      %v7590 = vpop.f32.mrf.mxu0
      %v7591 = vadd.f32 %v7430, %v7590
      %v7592 = vpop.f32.mrf.mxu0
      %v7593 = vpop.f32.mrf.mxu0
      %v7594 = vadd.f32 %v7433, %v7593
      %v7595 = vpop.f32.mrf.mxu0
      %7596 = vmatprep.mubr.bf16.mxu0 %v5048
      %7597 = vmatmul.mubr.bf16.gmra.mxu0 %v4984
      %v7598 = vpop.f32.mrf.mxu0
      %v7599 = vadd.f32 %v7438, %v7598
      %v7600 = vpop.f32.mrf.mxu0
      %v7601 = vpop.f32.mrf.mxu0
      %v7602 = vadd.f32 %v7441, %v7601
      %v7603 = vpop.f32.mrf.mxu0
      %7604 = vmatprep.mubr.bf16.mxu0 %v5049
      %7605 = vmatmul.mubr.bf16.gmra.mxu0 %v4985
      %v7606 = vpop.f32.mrf.mxu0
      %v7607 = vadd.f32 %v7446, %v7606
      %v7608 = vpop.f32.mrf.mxu0
      %v7609 = vpop.f32.mrf.mxu0
      %v7610 = vadd.f32 %v7449, %v7609
      %v7611 = vpop.f32.mrf.mxu0
      %7612 = vmatprep.mubr.bf16.mxu0 %v5050
      %7613 = vmatmul.mubr.bf16.gmra.mxu0 %v4986
      %v7614 = vpop.f32.mrf.mxu0
      %v7615 = vadd.f32 %v7454, %v7614
      %v7616 = vpop.f32.mrf.mxu0
      %v7617 = vpop.f32.mrf.mxu0
      %v7618 = vadd.f32 %v7457, %v7617
      %v7619 = vpop.f32.mrf.mxu0
      %7620 = vmatprep.mubr.bf16.mxu0 %v5051
      %7621 = vmatmul.mubr.bf16.gmra.mxu0 %v4987
      %v7622 = vpop.f32.mrf.mxu0
      %v7623 = vadd.f32 %v7462, %v7622
      %v7624 = vpop.f32.mrf.mxu0
      %v7625 = vpop.f32.mrf.mxu0
      %v7626 = vadd.f32 %v7465, %v7625
      %v7627 = vpop.f32.mrf.mxu0
      %7628 = vmatprep.mubr.bf16.mxu0 %v5052
      %7629 = vmatmul.mubr.bf16.gmra.mxu0 %v4988
      %v7630 = vpop.f32.mrf.mxu0
      %v7631 = vadd.f32 %v7470, %v7630
      %v7632 = vpop.f32.mrf.mxu0
      %v7633 = vpop.f32.mrf.mxu0
      %v7634 = vadd.f32 %v7473, %v7633
      %v7635 = vpop.f32.mrf.mxu0
      %7636 = vdwg.mxu0
      %7637 = vmatprep.subr.bf16.mxu0 0
      %7638 = vmatpush1.bf16.msra.mxu0 %v6196
      %7639 = vmatprep.subr.bf16.mxu0 0
      %7640 = vmatpush1.bf16.msra.mxu0 %v6195
      %7641 = vmatprep.subr.bf16.mxu0 0
      %7642 = vmatpush1.bf16.msra.mxu0 %v6194
      %7643 = vmatprep.subr.bf16.mxu0 0
      %7644 = vmatpush1.bf16.msra.mxu0 %v6193
      %7645 = vmatprep.subr.bf16.mxu0 0
      %7646 = vmatpush1.bf16.msra.mxu0 %v6192
      %7647 = vmatprep.subr.bf16.mxu0 0
      %7648 = vmatpush1.bf16.msra.mxu0 %v6191
      %7649 = vmatprep.subr.bf16.mxu0 0
      %7650 = vmatpush1.bf16.msra.mxu0 %v6190
      %7651 = vmatprep.subr.bf16.mxu0 0
      %7652 = vmatpush1.bf16.msra.mxu0 %v6189
      %7653 = vmatprep.subr.bf16.mxu0 0
      %7654 = vmatpush2.bf16.msra.mxu0 %v6204
      %7655 = vmatprep.subr.bf16.mxu0 0
      %7656 = vmatpush2.bf16.msra.mxu0 %v6203
      %7657 = vmatprep.subr.bf16.mxu0 0
      %7658 = vmatpush2.bf16.msra.mxu0 %v6202
      %7659 = vmatprep.subr.bf16.mxu0 0
      %7660 = vmatpush2.bf16.msra.mxu0 %v6201
      %7661 = vmatprep.subr.bf16.mxu0 0
      %7662 = vmatpush2.bf16.msra.mxu0 %v6200
      %7663 = vmatprep.subr.bf16.mxu0 0
      %7664 = vmatpush2.bf16.msra.mxu0 %v6199
      %7665 = vmatprep.subr.bf16.mxu0 0
      %7666 = vmatpush2.bf16.msra.mxu0 %v6198
      %7667 = vmatprep.subr.bf16.mxu0 0
      %7668 = vmatpush2.bf16.msra.mxu0 %v6197
      %7669 = vmatprep.mubr.bf16.mxu0 %v5165
      %7670 = vmatmul.mubr.bf16.gmra.mxu0 %v5101
      %v7671 = vpop.f32.mrf.mxu0
      %v7672 = vadd.f32 %v7511, %v7671
      %v7673 = vpop.f32.mrf.mxu0
      %v7674 = vpop.f32.mrf.mxu0
      %v7675 = vadd.f32 %v7514, %v7674
      %v7676 = vpop.f32.mrf.mxu0
      %7677 = vmatprep.mubr.bf16.mxu0 %v5166
      %7678 = vmatmul.mubr.bf16.gmra.mxu0 %v5102
      %v7679 = vpop.f32.mrf.mxu0
      %v7680 = vadd.f32 %v7519, %v7679
      %v7681 = vpop.f32.mrf.mxu0
      %v7682 = vpop.f32.mrf.mxu0
      %v7683 = vadd.f32 %v7522, %v7682
      %v7684 = vpop.f32.mrf.mxu0
      %7685 = vmatprep.mubr.bf16.mxu0 %v5167
      %7686 = vmatmul.mubr.bf16.gmra.mxu0 %v5103
      %v7687 = vpop.f32.mrf.mxu0
      %v7688 = vadd.f32 %v7527, %v7687
      %v7689 = vpop.f32.mrf.mxu0
      %v7690 = vpop.f32.mrf.mxu0
      %v7691 = vadd.f32 %v7530, %v7690
      %v7692 = vpop.f32.mrf.mxu0
      %7693 = vmatprep.mubr.bf16.mxu0 %v5168
      %7694 = vmatmul.mubr.bf16.gmra.mxu0 %v5104
      %v7695 = vpop.f32.mrf.mxu0
      %v7696 = vadd.f32 %v7535, %v7695
      %v7697 = vpop.f32.mrf.mxu0
      %v7698 = vpop.f32.mrf.mxu0
      %v7699 = vadd.f32 %v7538, %v7698
      %v7700 = vpop.f32.mrf.mxu0
      %7701 = vmatprep.mubr.bf16.mxu0 %v5169
      %7702 = vmatmul.mubr.bf16.gmra.mxu0 %v5105
      %v7703 = vpop.f32.mrf.mxu0
      %v7704 = vadd.f32 %v7543, %v7703
      %v7705 = vpop.f32.mrf.mxu0
      %v7706 = vpop.f32.mrf.mxu0
      %v7707 = vadd.f32 %v7546, %v7706
      %v7708 = vpop.f32.mrf.mxu0
      %7709 = vmatprep.mubr.bf16.mxu0 %v5170
      %7710 = vmatmul.mubr.bf16.gmra.mxu0 %v5106
      %v7711 = vpop.f32.mrf.mxu0
      %v7712 = vadd.f32 %v7551, %v7711
      %v7713 = vpop.f32.mrf.mxu0
      %v7714 = vpop.f32.mrf.mxu0
      %v7715 = vadd.f32 %v7554, %v7714
      %v7716 = vpop.f32.mrf.mxu0
      %7717 = vmatprep.mubr.bf16.mxu0 %v5171
      %7718 = vmatmul.mubr.bf16.gmra.mxu0 %v5107
      %v7719 = vpop.f32.mrf.mxu0
      %v7720 = vadd.f32 %v7559, %v7719
      %v7721 = vpop.f32.mrf.mxu0
      %v7722 = vpop.f32.mrf.mxu0
      %v7723 = vadd.f32 %v7562, %v7722
      %v7724 = vpop.f32.mrf.mxu0
      %7725 = vmatprep.mubr.bf16.mxu0 %v5172
      %7726 = vmatmul.mubr.bf16.gmra.mxu0 %v5108
      %v7727 = vpop.f32.mrf.mxu0
      %v7728 = vadd.f32 %v7567, %v7727
      %v7729 = vpop.f32.mrf.mxu0
      %v7730 = vpop.f32.mrf.mxu0
      %v7731 = vadd.f32 %v7570, %v7730
      %v7732 = vpop.f32.mrf.mxu0
      %7733 = vmatprep.mubr.bf16.mxu0 %v5173
      %7734 = vmatmul.mubr.bf16.gmra.mxu0 %v5109
      %v7735 = vpop.f32.mrf.mxu0
      %v7736 = vadd.f32 %v7575, %v7735
      %v7737 = vpop.f32.mrf.mxu0
      %v7738 = vpop.f32.mrf.mxu0
      %v7739 = vadd.f32 %v7578, %v7738
      %v7740 = vpop.f32.mrf.mxu0
      %7741 = vmatprep.mubr.bf16.mxu0 %v5174
      %7742 = vmatmul.mubr.bf16.gmra.mxu0 %v5110
      %v7743 = vpop.f32.mrf.mxu0
      %v7744 = vadd.f32 %v7583, %v7743
      %v7745 = vpop.f32.mrf.mxu0
      %v7746 = vpop.f32.mrf.mxu0
      %v7747 = vadd.f32 %v7586, %v7746
      %v7748 = vpop.f32.mrf.mxu0
      %7749 = vmatprep.mubr.bf16.mxu0 %v5175
      %7750 = vmatmul.mubr.bf16.gmra.mxu0 %v5111
      %v7751 = vpop.f32.mrf.mxu0
      %v7752 = vadd.f32 %v7591, %v7751
      %v7753 = vpop.f32.mrf.mxu0
      %v7754 = vpop.f32.mrf.mxu0
      %v7755 = vadd.f32 %v7594, %v7754
      %v7756 = vpop.f32.mrf.mxu0
      %7757 = vmatprep.mubr.bf16.mxu0 %v5176
      %7758 = vmatmul.mubr.bf16.gmra.mxu0 %v5112
      %v7759 = vpop.f32.mrf.mxu0
      %v7760 = vadd.f32 %v7599, %v7759
      %v7761 = vpop.f32.mrf.mxu0
      %v7762 = vpop.f32.mrf.mxu0
      %v7763 = vadd.f32 %v7602, %v7762
      %v7764 = vpop.f32.mrf.mxu0
      %7765 = vmatprep.mubr.bf16.mxu0 %v5177
      %7766 = vmatmul.mubr.bf16.gmra.mxu0 %v5113
      %v7767 = vpop.f32.mrf.mxu0
      %v7768 = vadd.f32 %v7607, %v7767
      %v7769 = vpop.f32.mrf.mxu0
      %v7770 = vpop.f32.mrf.mxu0
      %v7771 = vadd.f32 %v7610, %v7770
      %v7772 = vpop.f32.mrf.mxu0
      %7773 = vmatprep.mubr.bf16.mxu0 %v5178
      %7774 = vmatmul.mubr.bf16.gmra.mxu0 %v5114
      %v7775 = vpop.f32.mrf.mxu0
      %v7776 = vadd.f32 %v7615, %v7775
      %v7777 = vpop.f32.mrf.mxu0
      %v7778 = vpop.f32.mrf.mxu0
      %v7779 = vadd.f32 %v7618, %v7778
      %v7780 = vpop.f32.mrf.mxu0
      %7781 = vmatprep.mubr.bf16.mxu0 %v5179
      %7782 = vmatmul.mubr.bf16.gmra.mxu0 %v5115
      %v7783 = vpop.f32.mrf.mxu0
      %v7784 = vadd.f32 %v7623, %v7783
      %v7785 = vpop.f32.mrf.mxu0
      %v7786 = vpop.f32.mrf.mxu0
      %v7787 = vadd.f32 %v7626, %v7786
      %v7788 = vpop.f32.mrf.mxu0
      %7789 = vmatprep.mubr.bf16.mxu0 %v5180
      %7790 = vmatmul.mubr.bf16.gmra.mxu0 %v5116
      %v7791 = vpop.f32.mrf.mxu0
      %v7792 = vadd.f32 %v7631, %v7791
      %v7793 = vpop.f32.mrf.mxu0
      %v7794 = vpop.f32.mrf.mxu0
      %v7795 = vadd.f32 %v7634, %v7794
      %v7796 = vpop.f32.mrf.mxu0
      %7797 = vdwg.mxu0
      %7798 = vst [vmem:[%s281] sm:$0xff] %v7672
      %7799 = vst [vmem:[%s281 + $0x8] sm:$0xff] %v7675
      %7800 = vst [vmem:[%s281 + $0x10] sm:$0xff] %v7680
      %7801 = vst [vmem:[%s281 + $0x18] sm:$0xff] %v7683
      %7802 = vst [vmem:[%s281 + $0x20] sm:$0xff] %v7688
      %7803 = vst [vmem:[%s281 + $0x28] sm:$0xff] %v7691
      %7804 = vst [vmem:[%s281 + $0x30] sm:$0xff] %v7696
      %7805 = vst [vmem:[%s281 + $0x38] sm:$0xff] %v7699
      %7806 = vst [vmem:[%s281 + $0x40] sm:$0xff] %v7704
      %7807 = vst [vmem:[%s281 + $0x48] sm:$0xff] %v7707
      %7808 = vst [vmem:[%s281 + $0x50] sm:$0xff] %v7712
      %7809 = vst [vmem:[%s281 + $0x58] sm:$0xff] %v7715
      %7810 = vst [vmem:[%s281 + $0x60] sm:$0xff] %v7720
      %7811 = vst [vmem:[%s281 + $0x68] sm:$0xff] %v7723
      %7812 = vst [vmem:[%s281 + $0x70] sm:$0xff] %v7728
      %7813 = vst [vmem:[%s281 + $0x78] sm:$0xff] %v7731
      %7814 = vst [vmem:[%s281 + $0x80] sm:$0xff] %v7736
      %7815 = vst [vmem:[%s281 + $0x88] sm:$0xff] %v7739
      %7816 = vst [vmem:[%s281 + $0x90] sm:$0xff] %v7744
      %7817 = vst [vmem:[%s281 + $0x98] sm:$0xff] %v7747
      %7818 = vst [vmem:[%s281 + $0xa0] sm:$0xff] %v7752
      %7819 = vst [vmem:[%s281 + $0xa8] sm:$0xff] %v7755
      %7820 = vst [vmem:[%s281 + $0xb0] sm:$0xff] %v7760
      %7821 = vst [vmem:[%s281 + $0xb8] sm:$0xff] %v7763
      %7822 = vst [vmem:[%s281 + $0xc0] sm:$0xff] %v7768
      %7823 = vst [vmem:[%s281 + $0xc8] sm:$0xff] %v7771
      %7824 = vst [vmem:[%s281 + $0xd0] sm:$0xff] %v7776
      %7825 = vst [vmem:[%s281 + $0xd8] sm:$0xff] %v7779
      %7826 = vst [vmem:[%s281 + $0xe0] sm:$0xff] %v7784
      %7827 = vst [vmem:[%s281 + $0xe8] sm:$0xff] %v7787
      %7828 = vst [vmem:[%s281 + $0xf0] sm:$0xff] %v7792
      %7829 = vst [vmem:[%s281 + $0xf8] sm:$0xff] %v7795
      %v7830 = vadd.f32 %v7672, %v7675
      %v7831 = vadd.f32 %v7830, %v7680
      %v7832 = vadd.f32 %v7831, %v7683
      %v7833 = vadd.f32 %v7832, %v7688
      %v7834 = vadd.f32 %v7833, %v7691
      %v7835 = vadd.f32 %v7834, %v7696
      %v7836 = vadd.f32 %v7835, %v7699
      %v7837 = vadd.f32 %v7836, %v7704
      %v7838 = vadd.f32 %v7837, %v7707
      %v7839 = vadd.f32 %v7838, %v7712
      %v7840 = vadd.f32 %v7839, %v7715
      %v7841 = vadd.f32 %v7840, %v7720
      %v7842 = vadd.f32 %v7841, %v7723
      %v7843 = vadd.f32 %v7842, %v7728
      %v7844 = vadd.f32 %v7843, %v7731
      %v7845 = vadd.f32 %v7844, %v7736
      %v7846 = vadd.f32 %v7845, %v7739
      %v7847 = vadd.f32 %v7846, %v7744
      %v7848 = vadd.f32 %v7847, %v7747
      %v7849 = vadd.f32 %v7848, %v7752
      %v7850 = vadd.f32 %v7849, %v7755
      %v7851 = vadd.f32 %v7850, %v7760
      %v7852 = vadd.f32 %v7851, %v7763
      %v7853 = vadd.f32 %v7852, %v7768
      %v7854 = vadd.f32 %v7853, %v7771
      %v7855 = vadd.f32 %v7854, %v7776
      %v7856 = vadd.f32 %v7855, %v7779
      %v7857 = vadd.f32 %v7856, %v7784
      %v7858 = vadd.f32 %v7857, %v7787
      %v7859 = vadd.f32 %v7858, %v7792
      %v7860 = vadd.f32 %v7859, %v7795
      %v7861 = vrot.slane %v7860, 4
      %v7862 = vadd.f32 %v7860, %v7861
      %v7863 = vrot.slane %v7862, 2
      %v7864 = vadd.f32 %v7862, %v7863
      %v7865 = vrot.slane %v7864, 1
      %v7866 = vadd.f32 %v7864, %v7865
      %v7867 = vrcp.pop 256.0
      %v7868 = vmul.f32 %v7866, %v7867
      %v7869 = vsub.f32 %v7672, %v7868
      %v7870 = vsub.f32 %v7675, %v7868
      %v7871 = vsub.f32 %v7680, %v7868
      %v7872 = vsub.f32 %v7683, %v7868
      %v7873 = vsub.f32 %v7688, %v7868
      %v7874 = vsub.f32 %v7691, %v7868
      %v7875 = vsub.f32 %v7696, %v7868
      %v7876 = vsub.f32 %v7699, %v7868
      %v7877 = vsub.f32 %v7704, %v7868
      %v7878 = vsub.f32 %v7707, %v7868
      %v7879 = vsub.f32 %v7712, %v7868
      %v7880 = vsub.f32 %v7715, %v7868
      %v7881 = vsub.f32 %v7720, %v7868
      %v7882 = vsub.f32 %v7723, %v7868
      %v7883 = vsub.f32 %v7728, %v7868
      %v7884 = vsub.f32 %v7731, %v7868
      %v7885 = vsub.f32 %v7736, %v7868
      %v7886 = vsub.f32 %v7739, %v7868
      %v7887 = vsub.f32 %v7744, %v7868
      %v7888 = vsub.f32 %v7747, %v7868
      %v7889 = vsub.f32 %v7752, %v7868
      %v7890 = vsub.f32 %v7755, %v7868
      %v7891 = vsub.f32 %v7760, %v7868
      %v7892 = vsub.f32 %v7763, %v7868
      %v7893 = vsub.f32 %v7768, %v7868
      %v7894 = vsub.f32 %v7771, %v7868
      %v7895 = vsub.f32 %v7776, %v7868
      %v7896 = vsub.f32 %v7779, %v7868
      %v7897 = vsub.f32 %v7784, %v7868
      %v7898 = vsub.f32 %v7787, %v7868
      %v7899 = vsub.f32 %v7792, %v7868
      %v7900 = vsub.f32 %v7795, %v7868
      %7901 = vst [vmem:[%s289] sm:$0x1] %v7866
      %v7902 = vmul.f32 %v7869, %v7869
      %v7903 = vmul.f32 %v7870, %v7870
      %v7904 = vmul.f32 %v7871, %v7871
      %v7905 = vmul.f32 %v7872, %v7872
      %v7906 = vmul.f32 %v7873, %v7873
      %v7907 = vmul.f32 %v7874, %v7874
      %v7908 = vmul.f32 %v7875, %v7875
      %v7909 = vmul.f32 %v7876, %v7876
      %v7910 = vmul.f32 %v7877, %v7877
      %v7911 = vmul.f32 %v7878, %v7878
      %v7912 = vmul.f32 %v7879, %v7879
      %v7913 = vmul.f32 %v7880, %v7880
      %v7914 = vmul.f32 %v7881, %v7881
      %v7915 = vmul.f32 %v7882, %v7882
      %v7916 = vmul.f32 %v7883, %v7883
      %v7917 = vmul.f32 %v7884, %v7884
      %v7918 = vmul.f32 %v7885, %v7885
      %v7919 = vmul.f32 %v7886, %v7886
      %v7920 = vmul.f32 %v7887, %v7887
      %v7921 = vmul.f32 %v7888, %v7888
      %v7922 = vmul.f32 %v7889, %v7889
      %v7923 = vmul.f32 %v7890, %v7890
      %v7924 = vmul.f32 %v7891, %v7891
      %v7925 = vmul.f32 %v7892, %v7892
      %v7926 = vmul.f32 %v7893, %v7893
      %v7927 = vmul.f32 %v7894, %v7894
      %v7928 = vmul.f32 %v7895, %v7895
      %v7929 = vmul.f32 %v7896, %v7896
      %v7930 = vmul.f32 %v7897, %v7897
      %v7931 = vmul.f32 %v7898, %v7898
      %v7932 = vmul.f32 %v7899, %v7899
      %v7933 = vmul.f32 %v7900, %v7900
      %v7934 = vadd.f32 %v7902, %v7903
      %v7935 = vadd.f32 %v7934, %v7904
      %v7936 = vadd.f32 %v7935, %v7905
      %v7937 = vadd.f32 %v7936, %v7906
      %v7938 = vadd.f32 %v7937, %v7907
      %v7939 = vadd.f32 %v7938, %v7908
      %v7940 = vadd.f32 %v7939, %v7909
      %v7941 = vadd.f32 %v7940, %v7910
      %v7942 = vadd.f32 %v7941, %v7911
      %v7943 = vadd.f32 %v7942, %v7912
      %v7944 = vadd.f32 %v7943, %v7913
      %v7945 = vadd.f32 %v7944, %v7914
      %v7946 = vadd.f32 %v7945, %v7915
      %v7947 = vadd.f32 %v7946, %v7916
      %v7948 = vadd.f32 %v7947, %v7917
      %v7949 = vadd.f32 %v7948, %v7918
      %v7950 = vadd.f32 %v7949, %v7919
      %v7951 = vadd.f32 %v7950, %v7920
      %v7952 = vadd.f32 %v7951, %v7921
      %v7953 = vadd.f32 %v7952, %v7922
      %v7954 = vadd.f32 %v7953, %v7923
      %v7955 = vadd.f32 %v7954, %v7924
      %v7956 = vadd.f32 %v7955, %v7925
      %v7957 = vadd.f32 %v7956, %v7926
      %v7958 = vadd.f32 %v7957, %v7927
      %v7959 = vadd.f32 %v7958, %v7928
      %v7960 = vadd.f32 %v7959, %v7929
      %v7961 = vadd.f32 %v7960, %v7930
      %v7962 = vadd.f32 %v7961, %v7931
      %v7963 = vadd.f32 %v7962, %v7932
      %v7964 = vadd.f32 %v7963, %v7933
      %v7965 = vrot.slane %v7964, 4
      %v7966 = vadd.f32 %v7964, %v7965
      %v7967 = vrot.slane %v7966, 2
      %v7968 = vadd.f32 %v7966, %v7967
      %v7969 = vrot.slane %v7968, 1
      %v7970 = vadd.f32 %v7968, %v7969
      %7971 = vst [vmem:[%s289 + $0x1] sm:$0x1] %v7970
      %s7972 = smul.u32 16, %s21
      %p7973 = scmp.lt.s32.totalorder %s20, 1
      %s7974 = scalar_select %p7973, %s20, 1
      %p7975 = scmp.lt.s32.totalorder %s7972, 15
      %s7976 = scalar_select %p7975, %s7972, 15
      %s7977 = smul.addr %s7976, 2
      %s7978 = smul.addr %s7974, 32
      %s7979 = sadd.s32 %s7977, %s7978
      %s7980 = smul.addr %s7979, 8
      %s7981 = scalar_lea.vmem %s3, %s7980
      %p7982 = scmp.lt.s32.totalorder %s20, 1
      %s7983 = scalar_select %p7982, %s20, 1
      %p7984 = scmp.lt.s32.totalorder %s21, 0
      %s7985 = scalar_select %p7984, %s21, 0
      %s7986 = sadd.s32 %s7985, %s7983
      %s7987 = smul.addr %s7986, 2
      %s7988 = scalar_lea.vmem %s4, %s7987
      // Predicated region
      $region33: #{decoder_block_forward.5} parent=31 // pred_check
        %p7989 = pneg %p125
      $region34: #{decoder_block_forward.5} parent=31 // pred_check_branch
        %7991 = sbr.rel (%p7989) target = $region36
      $region35: #{decoder_block_forward.5} parent=31 // pred_region
        %s7992 = smul.u32 16, %s21
      $region36: #{decoder_block_forward.5} parent=31 // pred_fallthru
        _
      // Predicated region
      $region37: #{decoder_block_forward.5} parent=31 // pred_check
        %p7993 = pneg %p153
      $region38: #{decoder_block_forward.5} parent=31 // pred_check_branch
        %7995 = sbr.rel (%p7993) target = $region40
      $region39: #{decoder_block_forward.5} parent=31 // pred_region
        _
      $region40: #{decoder_block_forward.5} parent=31 // pred_fallthru
        _
    $region32: #{decoder_block_forward.5} parent=5 // pred_fallthru
      _
    %p7996 = scmp.le.s32.totalorder 2, %s11
    // Predicated region
    $region41: #{decoder_block_forward.5} parent=5 // pred_check
      %p7997 = pneg %p7996
    $region42: #{decoder_block_forward.5} parent=5 // pred_check_branch
      %7999 = sbr.rel (%p7997) target = $region44
    $region43: #{decoder_block_forward.5} parent=5 // pred_region
      %s8000 = ssub.s32 %s11, 2
      // Predicated region
      $region45: #{decoder_block_forward.5} parent=43 // pred_check
        %p8001 = pneg %p131
      $region46: #{decoder_block_forward.5} parent=43 // pred_check_branch
        %8003 = sbr.rel (%p8001) target = $region48
      $region47: #{decoder_block_forward.5} parent=43 // pred_region
        %s8004 = smul.u32 16, %s23
        %p8005 = scmp.lt.s32.totalorder %s22, 1
        %s8006 = scalar_select %p8005, %s22, 1
        %p8007 = scmp.lt.s32.totalorder %s8004, 15
        %s8008 = scalar_select %p8007, %s8004, 15
        %s8009 = smul.addr %s8008, 2
        %s8010 = smul.addr %s8006, 32
        %s8011 = sadd.s32 %s8009, %s8010
        %s8012 = smul.addr %s8011, 8
        %s8013 = scalar_lea.vmem %s3, %s8012
      $region48: #{decoder_block_forward.5} parent=43 // pred_fallthru
        _
      // Predicated region
      $region49: #{decoder_block_forward.5} parent=43 // pred_check
        %p8014 = pneg %p159
      $region50: #{decoder_block_forward.5} parent=43 // pred_check_branch
        %8016 = sbr.rel (%p8014) target = $region52
      $region51: #{decoder_block_forward.5} parent=43 // pred_region
        %p8017 = scmp.lt.s32.totalorder %s22, 1
        %s8018 = scalar_select %p8017, %s22, 1
        %p8019 = scmp.lt.s32.totalorder %s23, 0
        %s8020 = scalar_select %p8019, %s23, 0
        %s8021 = sadd.s32 %s8020, %s8018
        %s8022 = smul.addr %s8021, 2
        %s8023 = scalar_lea.vmem %s4, %s8022
      $region52: #{decoder_block_forward.5} parent=43 // pred_fallthru
        _
    $region44: #{decoder_block_forward.5} parent=5 // pred_fallthru
      _
  $region6: #{decoder_block_forward.5} parent=0 // loop_footer
    %s15 = sadd.s32 1, %s11
  $region7: #{decoder_block_forward.5} parent=0 // loop_footer_branch
    %10 = sbr.rel target = $region3
  $region8: #{decoder_block_forward.5} parent=0 // loop_exit
    _

</llo_original>
